<compile_context>
chip_gen: v6e
topology: v6e:2x2x1
jax: 0.10.0
libtpu: 0.0.40
codegen_flags: <defaults>
</compile_context>

<pallas_src>
import jax
import jax.numpy as jnp
from jax.experimental import pallas as pl
from jax.experimental.pallas import tpu as pltpu

# ----------------------------- configuration -----------------------------
X_FREQS = 10                       # x_encoding_frequencies
D_FREQS = 4                        # direction_encoding_frequencies
VOL_CH = 8                         # volume_encoding_channels
IMG_CH = 3                         # image_colour_channels
VIEWS = 3                          # view_count
HID = 256                          # hidden_layer_neurons
X_ENC = (2 * X_FREQS + 1) * 3      # 63
D_ENC = (2 * D_FREQS + 1) * 3      # 27
VC_CH = VOL_CH + VIEWS * IMG_CH    # 17
# sublane-friendly padded feature widths (activations zero-padded, weight rows
# zero-padded to match -> numerically identical)
X_PAD = 64
D_PAD = 32
VC_PAD = 24

# Rows of points per grid step.  512 amortises per-step overhead and weight
# pushes while the working set (~6 MiB) fits every generation's scoped VMEM
# (v5e default 16 MiB, v7x physical 64 MiB).  Sweep 256-1024 per generation.
TM = 512

# weight/bias argument order shared by the kernel signature and the wrapper
P_ORDER = [
    "w0", "b0", "w1", "b1", "w2", "b2", "w3", "b3", "w4", "b4",
    "w5a", "w5b", "b5", "w6", "b6", "w7", "b7", "wd", "bd",
    "w8", "b8", "w9a", "w9b", "b9", "wc", "bc",
]


# ----------------------------- Pallas kernel -----------------------------
def _renderer_kernel(
    xe_ref, de_ref, vc_ref,
    w0_ref, b0_ref, w1_ref, b1_ref,
    w2_ref, b2_ref, w3_ref, b3_ref, w4_ref, b4_ref,
    w5a_ref, w5b_ref, b5_ref,
    w6_ref, b6_ref, w7_ref, b7_ref,
    wd_ref, bd_ref,
    w8_ref, b8_ref,
    w9a_ref, w9b_ref, b9_ref,
    wc_ref, bc_ref,
    out_ref,
):
    f32 = jnp.float32
    bf16 = jnp.bfloat16

    def lin_relu(x_bf16, w_ref, b_ref):
        # bf16 operands on the MXU, f32 accumulation, f32 bias/ReLU on the VPU.
        return jnp.maximum(
            jnp.dot(x_bf16, w_ref[...], preferred_element_type=f32) + b_ref[...],
            0.0,
        )

    xe = xe_ref[...]          # (TM, 64)  bf16, padded encoded positions
    de = de_ref[...]          # (TM, 32)  bf16, padded encoded directions
    vc = vc_ref[...]          # (TM, 24)  bf16, padded [volume_feats, colours]

    # lr_zero on cat([volume_features, colours])  (concat + pad done in wrapper)
    lr0 = lin_relu(vc, w0_ref, b0_ref)                       # (TM, 256) f32
    # lr_one on encoded positions
    v = lin_relu(xe, w1_ref, b1_ref)
    # lr_two_four: gate by lr_0 (f32 VPU multiply), then Linear+ReLU, x3
    v = lin_relu((v * lr0).astype(bf16), w2_ref, b2_ref)
    v = lin_relu((v * lr0).astype(bf16), w3_ref, b3_ref)
    v = lin_relu((v * lr0).astype(bf16), w4_ref, b4_ref)
    # lr_five on cat([x_enc, values]) == split matmul (no in-kernel concat)
    v = jnp.maximum(
        jnp.dot(xe, w5a_ref[...], preferred_element_type=f32)
        + jnp.dot(v.astype(bf16), w5b_ref[...], preferred_element_type=f32)
        + b5_ref[...],
        0.0,
    )
    v = lin_relu(v.astype(bf16), w6_ref, b6_ref)
    v = lin_relu(v.astype(bf16), w7_ref, b7_ref)
    # density_out (256 -> 1, then ReLU): f32 VPU multiply + lane reduction
    # instead of a 1-useful-lane MXU matmul.
    sigma = jnp.maximum(
        jnp.sum(v * wd_ref[...], axis=-1, keepdims=True) + bd_ref[...], 0.0
    )                                                         # (TM, 1) f32
    # lr_eight
    v = lin_relu(v.astype(bf16), w8_ref, b8_ref)
    # lr_direction on cat([d_enc, values]) == split matmul
    v = jnp.maximum(
        jnp.dot(de, w9a_ref[...], preferred_element_type=f32)
        + jnp.dot(v.astype(bf16), w9b_ref[...], preferred_element_type=f32)
        + b9_ref[...],
        0.0,
    )
    # colour_out: LinearRelu then sigmoid (matches the torch forward)
    col = jnp.maximum(
        jnp.dot(v.astype(bf16), wc_ref[...], preferred_element_type=f32)
        + bc_ref[...],
        0.0,
    )
    # single lane-packed (TM, 4) output: [r, g, b, sigma]
    out_ref[:, 0:IMG_CH] = jax.nn.sigmoid(col)
    out_ref[:, IMG_CH:IMG_CH + 1] = sigma


# ----------------------------- wrapper (glue) -----------------------------
def positional_encode(x, n_freqs):
    """NeRF-style encoding: [x, sin(2^k x), cos(2^k x)] for k in [0, n_freqs)."""
    outs = [x]
    for k in range(n_freqs):
        outs.append(jnp.sin((2.0 ** k) * x))
        outs.append(jnp.cos((2.0 ** k) * x))
    return jnp.concatenate(outs, axis=-1)


def init_params(key):
    """Deterministic kaiming-normal weights, zero biases (matches init_weights)."""
    shapes = {
        "w0": (VC_CH, HID), "w1": (X_ENC, HID),
        "w2": (HID, HID), "w3": (HID, HID), "w4": (HID, HID),
        "w5a": (X_ENC, HID), "w5b": (HID, HID),   # split of (X_ENC+HID, HID)
        "w6": (HID, HID), "w7": (HID, HID),
        "wd": (HID, 1),
        "w8": (HID, HID),
        "w9a": (D_ENC, HID), "w9b": (HID, HID),   # split of (D_ENC+HID, HID)
        "wc": (HID, IMG_CH),
    }
    # fan_in of the logical (concatenated) layers for the skip layers
    fan_in = {k: s[0] for k, s in shapes.items()}
    fan_in["w5a"] = fan_in["w5b"] = X_ENC + HID
    fan_in["w9a"] = fan_in["w9b"] = D_ENC + HID

    params = {}
    keys = jax.random.split(key, len(shapes))
    for k_rng, (name, shape) in zip(keys, shapes.items()):
        std = jnp.sqrt(2.0 / fan_in[name])
        params[name] = (std * jax.random.normal(k_rng, shape)).astype(jnp.float32)
    for bname, width in [("b0", HID), ("b1", HID), ("b2", HID), ("b3", HID),
                         ("b4", HID), ("b5", HID), ("b6", HID), ("b7", HID),
                         ("bd", 1), ("b8", HID), ("b9", HID), ("bc", IMG_CH)]:
        params[bname] = jnp.zeros((1, width), jnp.float32)
    return params


def prepare_kernel_params(params):
    """One-time conversion into kernel layout: bf16 matmul weights (rows padded
    to sublane multiples), f32 biases, and the density head as an f32 (1, HID)
    row for the in-kernel VPU reduction."""
    bf16 = jnp.bfloat16

    def pad_rows(w, rows):
        return jnp.pad(w, ((0, rows - w.shape[0]), (0, 0)))

    kp = {
        "w0": pad_rows(params["w0"], VC_PAD).astype(bf16),
        "w1": pad_rows(params["w1"], X_PAD).astype(bf16),
        "w5a": pad_rows(params["w5a"], X_PAD).astype(bf16),
        "w9a": pad_rows(params["w9a"], D_PAD).astype(bf16),
    }
    for name in ["w2", "w3", "w4", "w5b", "w6", "w7", "w8", "w9b", "wc"]:
        kp[name] = params[name].astype(bf16)
    for name in ["b0", "b1", "b2", "b3", "b4", "b5", "b6", "b7",
                 "b8", "b9", "bc", "bd"]:
        kp[name] = params[name].astype(jnp.float32)
    kp["wd"] = params["wd"].T.astype(jnp.float32)   # (1, HID) row, VPU path
    return kp


@jax.jit
def renderer_forward(view_positions, view_directions, volume_features, colours,
                     kparams):
    n = view_positions.shape[0]
    n_pad = ((n + TM - 1) // TM) * TM

    # Positional encodings + feature concat stay as cheap fused XLA glue; the
    # encoded activations are cast to bf16, halving the kernel's input traffic
    # and feeding the MXU operands directly.
    xe = positional_encode(view_positions.astype(jnp.float32), X_FREQS)   # (N,63)
    de = positional_encode(view_directions.astype(jnp.float32), D_FREQS)  # (N,27)
    vc = jnp.concatenate(
        [volume_features.astype(jnp.float32), colours.astype(jnp.float32)], axis=1
    )                                                                      # (N,17)

    def prep(a, width):
        a = jnp.pad(a, ((0, n_pad - n), (0, width - a.shape[1])))
        return a.astype(jnp.bfloat16)

    xe = prep(xe, X_PAD)
    de = prep(de, D_PAD)
    vc = prep(vc, VC_PAD)

    weight_args = [kparams[name] for name in P_ORDER]

    def row_spec(width):
        return pl.BlockSpec((TM, width), lambda i: (i, 0))

    def full_spec(a):
        # NOTE: constant-index weights could additionally be single-buffered
        # (pipeline_mode=pl.Buffered(1)) to save ~1 MiB VMEM; not needed at TM=512.
        return pl.BlockSpec(a.shape, lambda i: (0, 0))

    in_specs = [row_spec(X_PAD), row_spec(D_PAD), row_spec(VC_PAD)]
    in_specs += [full_spec(a) for a in weight_args]

    out = pl.pallas_call(
        _renderer_kernel,
        out_shape=jax.ShapeDtypeStruct((n_pad, IMG_CH + 1), jnp.float32),
        grid_spec=pltpu.PrefetchScalarGridSpec(
            num_scalar_prefetch=0,
            grid=(n_pad // TM,),
            in_specs=in_specs,
            out_specs=pl.BlockSpec((TM, IMG_CH + 1), lambda i: (i, 0)),
        ),
        compiler_params=pltpu.CompilerParams(
            dimension_semantics=("parallel",),
            vmem_limit_bytes=48 * 1024 * 1024,
        ),
    )(xe, de, vc, *weight_args)

    colour = out[:n, :IMG_CH]
    sigma = out[:n, IMG_CH:IMG_CH + 1]
    return colour, sigma


# ----------------------------- pure-JAX reference -----------------------------
def renderer_reference(view_positions, view_directions, volume_features, colours, p):
    xe = positional_encode(view_positions, X_FREQS)
    de = positional_encode(view_directions, D_FREQS)
    vc = jnp.concatenate([volume_features, colours], axis=1)

    def lr(x, w, b):
        return jnp.maximum(x @ w + b, 0.0)

    lr0 = lr(vc, p["w0"], p["b0"])
    v = lr(xe, p["w1"], p["b1"])
    v = lr(v * lr0, p["w2"], p["b2"])
    v = lr(v * lr0, p["w3"], p["b3"])
    v = lr(v * lr0, p["w4"], p["b4"])
    v = jnp.maximum(xe @ p["w5a"] + v @ p["w5b"] + p["b5"], 0.0)
    v = lr(v, p["w6"], p["b6"])
    v = lr(v, p["w7"], p["b7"])
    sigma = jnp.maximum(v @ p["wd"] + p["bd"], 0.0)
    v = lr(v, p["w8"], p["b8"])
    v = jnp.maximum(de @ p["w9a"] + v @ p["w9b"] + p["b9"], 0.0)
    colour = jax.nn.sigmoid(jnp.maximum(v @ p["wc"] + p["bc"], 0.0))
    return colour, sigma


# ----------------------------- main -----------------------------
if __name__ == "__main__":
    key = jax.random.PRNGKey(0)
    k_p, k_x, k_d, k_v, k_c = jax.random.split(key, 5)

    params = init_params(k_p)
    kparams = prepare_kernel_params(params)   # bf16 cast / padding done once

    # 2048 points = 4 grid steps of TM=512 (>=2 so v7x megacore gets both TCs)
    N = 2048
    view_positions = jax.random.normal(k_x, (N, 3), jnp.float32)
    view_directions = jax.random.normal(k_d, (N, 3), jnp.float32)
    volume_features = jax.random.normal(k_v, (N, VOL_CH), jnp.float32)
    colours = jax.random.uniform(k_c, (N, VIEWS * IMG_CH), jnp.float32)

    colour, sigma = renderer_forward(
        view_positions, view_directions, volume_features, colours, kparams
    )
    jax.block_until_ready((colour, sigma))

    ref_colour, ref_sigma = renderer_reference(
        view_positions, view_directions, volume_features, colours, params
    )

    assert colour.shape == (N, IMG_CH) and sigma.shape == (N, 1)
    assert bool(jnp.all(jnp.isfinite(colour))) and bool(jnp.all(jnp.isfinite(sigma)))
    # bf16 MXU operands (f32 accumulation) vs. the all-f32 reference ->
    # tolerances loosened accordingly.
    col_err = float(jnp.max(jnp.abs(colour - ref_colour)))
    sig_err = float(
        jnp.linalg.norm(sigma - ref_sigma) / (jnp.linalg.norm(ref_sigma) + 1e-6)
    )
    assert col_err < 6e-2, f"colour max-abs error too large: {col_err}"
    assert sig_err < 6e-2, f"sigma relative L2 error too large: {sig_err}"

    print("KERNEL_OK")
</pallas_src>

<mosaic_0001>
module attributes {stable_mosaic.version = 11 : i64} {
  func.func @_renderer_kernel(%arg0: i32, %arg1: memref<512x64xbf16, #tpu.memory_space<vmem>>, %arg2: memref<512x32xbf16, #tpu.memory_space<vmem>>, %arg3: memref<512x24xbf16, #tpu.memory_space<vmem>>, %arg4: memref<24x256xbf16, #tpu.memory_space<vmem>>, %arg5: memref<1x256xf32, #tpu.memory_space<vmem>>, %arg6: memref<64x256xbf16, #tpu.memory_space<vmem>>, %arg7: memref<1x256xf32, #tpu.memory_space<vmem>>, %arg8: memref<256x256xbf16, #tpu.memory_space<vmem>>, %arg9: memref<1x256xf32, #tpu.memory_space<vmem>>, %arg10: memref<256x256xbf16, #tpu.memory_space<vmem>>, %arg11: memref<1x256xf32, #tpu.memory_space<vmem>>, %arg12: memref<256x256xbf16, #tpu.memory_space<vmem>>, %arg13: memref<1x256xf32, #tpu.memory_space<vmem>>, %arg14: memref<64x256xbf16, #tpu.memory_space<vmem>>, %arg15: memref<256x256xbf16, #tpu.memory_space<vmem>>, %arg16: memref<1x256xf32, #tpu.memory_space<vmem>>, %arg17: memref<256x256xbf16, #tpu.memory_space<vmem>>, %arg18: memref<1x256xf32, #tpu.memory_space<vmem>>, %arg19: memref<256x256xbf16, #tpu.memory_space<vmem>>, %arg20: memref<1x256xf32, #tpu.memory_space<vmem>>, %arg21: memref<1x256xf32, #tpu.memory_space<vmem>>, %arg22: memref<1x1xf32, #tpu.memory_space<vmem>>, %arg23: memref<256x256xbf16, #tpu.memory_space<vmem>>, %arg24: memref<1x256xf32, #tpu.memory_space<vmem>>, %arg25: memref<32x256xbf16, #tpu.memory_space<vmem>>, %arg26: memref<256x256xbf16, #tpu.memory_space<vmem>>, %arg27: memref<1x256xf32, #tpu.memory_space<vmem>>, %arg28: memref<256x3xbf16, #tpu.memory_space<vmem>>, %arg29: memref<1x3xf32, #tpu.memory_space<vmem>>, %arg30: memref<512x4xf32, #tpu.memory_space<vmem>>) attributes {dimension_semantics = [#tpu.dimension_semantics<parallel>], iteration_bounds = array<i64: 4>, scalar_prefetch = 0 : i64, scratch_operands = 0 : i64, tpu.core_type = #tpu.core_type<tc>, window_params = [{transform_indices = @transform_0, window_bounds = array<i64: 512, 64>}, {transform_indices = @transform_1, window_bounds = array<i64: 512, 32>}, {transform_indices = @transform_2, window_bounds = array<i64: 512, 24>}, {pipeline_mode = #tpu.pipeline_mode<synchronous>, transform_indices = @transform_3, window_bounds = array<i64: 24, 256>}, {pipeline_mode = #tpu.pipeline_mode<synchronous>, transform_indices = @transform_4, window_bounds = array<i64: 1, 256>}, {pipeline_mode = #tpu.pipeline_mode<synchronous>, transform_indices = @transform_5, window_bounds = array<i64: 64, 256>}, {pipeline_mode = #tpu.pipeline_mode<synchronous>, transform_indices = @transform_6, window_bounds = array<i64: 1, 256>}, {pipeline_mode = #tpu.pipeline_mode<synchronous>, transform_indices = @transform_7, window_bounds = array<i64: 256, 256>}, {pipeline_mode = #tpu.pipeline_mode<synchronous>, transform_indices = @transform_8, window_bounds = array<i64: 1, 256>}, {pipeline_mode = #tpu.pipeline_mode<synchronous>, transform_indices = @transform_9, window_bounds = array<i64: 256, 256>}, {pipeline_mode = #tpu.pipeline_mode<synchronous>, transform_indices = @transform_10, window_bounds = array<i64: 1, 256>}, {pipeline_mode = #tpu.pipeline_mode<synchronous>, transform_indices = @transform_11, window_bounds = array<i64: 256, 256>}, {pipeline_mode = #tpu.pipeline_mode<synchronous>, transform_indices = @transform_12, window_bounds = array<i64: 1, 256>}, {pipeline_mode = #tpu.pipeline_mode<synchronous>, transform_indices = @transform_13, window_bounds = array<i64: 64, 256>}, {pipeline_mode = #tpu.pipeline_mode<synchronous>, transform_indices = @transform_14, window_bounds = array<i64: 256, 256>}, {pipeline_mode = #tpu.pipeline_mode<synchronous>, transform_indices = @transform_15, window_bounds = array<i64: 1, 256>}, {pipeline_mode = #tpu.pipeline_mode<synchronous>, transform_indices = @transform_16, window_bounds = array<i64: 256, 256>}, {pipeline_mode = #tpu.pipeline_mode<synchronous>, transform_indices = @transform_17, window_bounds = array<i64: 1, 256>}, {pipeline_mode = #tpu.pipeline_mode<synchronous>, transform_indices = @transform_18, window_bounds = array<i64: 256, 256>}, {pipeline_mode = #tpu.pipeline_mode<synchronous>, transform_indices = @transform_19, window_bounds = array<i64: 1, 256>}, {pipeline_mode = #tpu.pipeline_mode<synchronous>, transform_indices = @transform_20, window_bounds = array<i64: 1, 256>}, {pipeline_mode = #tpu.pipeline_mode<synchronous>, transform_indices = @transform_21, window_bounds = array<i64: 1, 1>}, {pipeline_mode = #tpu.pipeline_mode<synchronous>, transform_indices = @transform_22, window_bounds = array<i64: 256, 256>}, {pipeline_mode = #tpu.pipeline_mode<synchronous>, transform_indices = @transform_23, window_bounds = array<i64: 1, 256>}, {pipeline_mode = #tpu.pipeline_mode<synchronous>, transform_indices = @transform_24, window_bounds = array<i64: 32, 256>}, {pipeline_mode = #tpu.pipeline_mode<synchronous>, transform_indices = @transform_25, window_bounds = array<i64: 256, 256>}, {pipeline_mode = #tpu.pipeline_mode<synchronous>, transform_indices = @transform_26, window_bounds = array<i64: 1, 256>}, {pipeline_mode = #tpu.pipeline_mode<synchronous>, transform_indices = @transform_27, window_bounds = array<i64: 256, 3>}, {pipeline_mode = #tpu.pipeline_mode<synchronous>, transform_indices = @transform_28, window_bounds = array<i64: 1, 3>}, {transform_indices = @transform_29, window_bounds = array<i64: 512, 4>}]} {
    %c0 = arith.constant 0 : index
    %c0_0 = arith.constant 0 : index
    %0 = vector.load %arg1[%c0, %c0_0] : memref<512x64xbf16, #tpu.memory_space<vmem>>, vector<512x64xbf16>
    %c0_1 = arith.constant 0 : index
    %c0_2 = arith.constant 0 : index
    %1 = vector.load %arg2[%c0_1, %c0_2] : memref<512x32xbf16, #tpu.memory_space<vmem>>, vector<512x32xbf16>
    %c0_3 = arith.constant 0 : index
    %c0_4 = arith.constant 0 : index
    %2 = vector.load %arg3[%c0_3, %c0_4] : memref<512x24xbf16, #tpu.memory_space<vmem>>, vector<512x24xbf16>
    %c0_5 = arith.constant 0 : index
    %c0_6 = arith.constant 0 : index
    %3 = vector.load %arg4[%c0_5, %c0_6] : memref<24x256xbf16, #tpu.memory_space<vmem>>, vector<24x256xbf16>
    %cst = arith.constant dense<0.000000e+00> : vector<512x256xf32>
    %4 = tpu.matmul %2, %3, %cst {dimension_numbers = #tpu.dot_dimension_numbers<[1], [0], [0], [1], [0, 0, 1, 1], [], []>} : vector<512x24xbf16>, vector<24x256xbf16>, vector<512x256xf32> -> vector<512x256xf32>
    %c0_7 = arith.constant 0 : index
    %c0_8 = arith.constant 0 : index
    %5 = vector.load %arg5[%c0_7, %c0_8] : memref<1x256xf32, #tpu.memory_space<vmem>>, vector<1x256xf32>
    %6 = vector.broadcast %5 : vector<1x256xf32> to vector<512x256xf32>
    %7 = arith.addf %4, %6 : vector<512x256xf32>
    %cst_9 = arith.constant 0.000000e+00 : f32
    %8 = vector.broadcast %cst_9 : f32 to vector<512x256xf32>
    %9 = arith.maximumf %7, %8 : vector<512x256xf32>
    %c0_10 = arith.constant 0 : index
    %c0_11 = arith.constant 0 : index
    %10 = vector.load %arg6[%c0_10, %c0_11] : memref<64x256xbf16, #tpu.memory_space<vmem>>, vector<64x256xbf16>
    %cst_12 = arith.constant dense<0.000000e+00> : vector<512x256xf32>
    %11 = tpu.matmul %0, %10, %cst_12 {dimension_numbers = #tpu.dot_dimension_numbers<[1], [0], [0], [1], [0, 0, 1, 1], [], []>} : vector<512x64xbf16>, vector<64x256xbf16>, vector<512x256xf32> -> vector<512x256xf32>
    %c0_13 = arith.constant 0 : index
    %c0_14 = arith.constant 0 : index
    %12 = vector.load %arg7[%c0_13, %c0_14] : memref<1x256xf32, #tpu.memory_space<vmem>>, vector<1x256xf32>
    %13 = vector.broadcast %12 : vector<1x256xf32> to vector<512x256xf32>
    %14 = arith.addf %11, %13 : vector<512x256xf32>
    %cst_15 = arith.constant 0.000000e+00 : f32
    %15 = vector.broadcast %cst_15 : f32 to vector<512x256xf32>
    %16 = arith.maximumf %14, %15 : vector<512x256xf32>
    %17 = arith.mulf %16, %9 : vector<512x256xf32>
    %18 = arith.truncf %17 : vector<512x256xf32> to vector<512x256xbf16>
    %c0_16 = arith.constant 0 : index
    %c0_17 = arith.constant 0 : index
    %19 = vector.load %arg8[%c0_16, %c0_17] : memref<256x256xbf16, #tpu.memory_space<vmem>>, vector<256x256xbf16>
    %cst_18 = arith.constant dense<0.000000e+00> : vector<512x256xf32>
    %20 = tpu.matmul %18, %19, %cst_18 {dimension_numbers = #tpu.dot_dimension_numbers<[1], [0], [0], [1], [0, 0, 1, 1], [], []>} : vector<512x256xbf16>, vector<256x256xbf16>, vector<512x256xf32> -> vector<512x256xf32>
    %c0_19 = arith.constant 0 : index
    %c0_20 = arith.constant 0 : index
    %21 = vector.load %arg9[%c0_19, %c0_20] : memref<1x256xf32, #tpu.memory_space<vmem>>, vector<1x256xf32>
    %22 = vector.broadcast %21 : vector<1x256xf32> to vector<512x256xf32>
    %23 = arith.addf %20, %22 : vector<512x256xf32>
    %cst_21 = arith.constant 0.000000e+00 : f32
    %24 = vector.broadcast %cst_21 : f32 to vector<512x256xf32>
    %25 = arith.maximumf %23, %24 : vector<512x256xf32>
    %26 = arith.mulf %25, %9 : vector<512x256xf32>
    %27 = arith.truncf %26 : vector<512x256xf32> to vector<512x256xbf16>
    %c0_22 = arith.constant 0 : index
    %c0_23 = arith.constant 0 : index
    %28 = vector.load %arg10[%c0_22, %c0_23] : memref<256x256xbf16, #tpu.memory_space<vmem>>, vector<256x256xbf16>
    %cst_24 = arith.constant dense<0.000000e+00> : vector<512x256xf32>
    %29 = tpu.matmul %27, %28, %cst_24 {dimension_numbers = #tpu.dot_dimension_numbers<[1], [0], [0], [1], [0, 0, 1, 1], [], []>} : vector<512x256xbf16>, vector<256x256xbf16>, vector<512x256xf32> -> vector<512x256xf32>
    %c0_25 = arith.constant 0 : index
    %c0_26 = arith.constant 0 : index
    %30 = vector.load %arg11[%c0_25, %c0_26] : memref<1x256xf32, #tpu.memory_space<vmem>>, vector<1x256xf32>
    %31 = vector.broadcast %30 : vector<1x256xf32> to vector<512x256xf32>
    %32 = arith.addf %29, %31 : vector<512x256xf32>
    %cst_27 = arith.constant 0.000000e+00 : f32
    %33 = vector.broadcast %cst_27 : f32 to vector<512x256xf32>
    %34 = arith.maximumf %32, %33 : vector<512x256xf32>
    %35 = arith.mulf %34, %9 : vector<512x256xf32>
    %36 = arith.truncf %35 : vector<512x256xf32> to vector<512x256xbf16>
    %c0_28 = arith.constant 0 : index
    %c0_29 = arith.constant 0 : index
    %37 = vector.load %arg12[%c0_28, %c0_29] : memref<256x256xbf16, #tpu.memory_space<vmem>>, vector<256x256xbf16>
    %cst_30 = arith.constant dense<0.000000e+00> : vector<512x256xf32>
    %38 = tpu.matmul %36, %37, %cst_30 {dimension_numbers = #tpu.dot_dimension_numbers<[1], [0], [0], [1], [0, 0, 1, 1], [], []>} : vector<512x256xbf16>, vector<256x256xbf16>, vector<512x256xf32> -> vector<512x256xf32>
    %c0_31 = arith.constant 0 : index
    %c0_32 = arith.constant 0 : index
    %39 = vector.load %arg13[%c0_31, %c0_32] : memref<1x256xf32, #tpu.memory_space<vmem>>, vector<1x256xf32>
    %40 = vector.broadcast %39 : vector<1x256xf32> to vector<512x256xf32>
    %41 = arith.addf %38, %40 : vector<512x256xf32>
    %cst_33 = arith.constant 0.000000e+00 : f32
    %42 = vector.broadcast %cst_33 : f32 to vector<512x256xf32>
    %43 = arith.maximumf %41, %42 : vector<512x256xf32>
    %c0_34 = arith.constant 0 : index
    %c0_35 = arith.constant 0 : index
    %44 = vector.load %arg14[%c0_34, %c0_35] : memref<64x256xbf16, #tpu.memory_space<vmem>>, vector<64x256xbf16>
    %cst_36 = arith.constant dense<0.000000e+00> : vector<512x256xf32>
    %45 = tpu.matmul %0, %44, %cst_36 {dimension_numbers = #tpu.dot_dimension_numbers<[1], [0], [0], [1], [0, 0, 1, 1], [], []>} : vector<512x64xbf16>, vector<64x256xbf16>, vector<512x256xf32> -> vector<512x256xf32>
    %46 = arith.truncf %43 : vector<512x256xf32> to vector<512x256xbf16>
    %c0_37 = arith.constant 0 : index
    %c0_38 = arith.constant 0 : index
    %47 = vector.load %arg15[%c0_37, %c0_38] : memref<256x256xbf16, #tpu.memory_space<vmem>>, vector<256x256xbf16>
    %cst_39 = arith.constant dense<0.000000e+00> : vector<512x256xf32>
    %48 = tpu.matmul %46, %47, %cst_39 {dimension_numbers = #tpu.dot_dimension_numbers<[1], [0], [0], [1], [0, 0, 1, 1], [], []>} : vector<512x256xbf16>, vector<256x256xbf16>, vector<512x256xf32> -> vector<512x256xf32>
    %49 = arith.addf %45, %48 : vector<512x256xf32>
    %c0_40 = arith.constant 0 : index
    %c0_41 = arith.constant 0 : index
    %50 = vector.load %arg16[%c0_40, %c0_41] : memref<1x256xf32, #tpu.memory_space<vmem>>, vector<1x256xf32>
    %51 = vector.broadcast %50 : vector<1x256xf32> to vector<512x256xf32>
    %52 = arith.addf %49, %51 : vector<512x256xf32>
    %cst_42 = arith.constant 0.000000e+00 : f32
    %53 = vector.broadcast %cst_42 : f32 to vector<512x256xf32>
    %54 = arith.maximumf %52, %53 : vector<512x256xf32>
    %55 = arith.truncf %54 : vector<512x256xf32> to vector<512x256xbf16>
    %c0_43 = arith.constant 0 : index
    %c0_44 = arith.constant 0 : index
    %56 = vector.load %arg17[%c0_43, %c0_44] : memref<256x256xbf16, #tpu.memory_space<vmem>>, vector<256x256xbf16>
    %cst_45 = arith.constant dense<0.000000e+00> : vector<512x256xf32>
    %57 = tpu.matmul %55, %56, %cst_45 {dimension_numbers = #tpu.dot_dimension_numbers<[1], [0], [0], [1], [0, 0, 1, 1], [], []>} : vector<512x256xbf16>, vector<256x256xbf16>, vector<512x256xf32> -> vector<512x256xf32>
    %c0_46 = arith.constant 0 : index
    %c0_47 = arith.constant 0 : index
    %58 = vector.load %arg18[%c0_46, %c0_47] : memref<1x256xf32, #tpu.memory_space<vmem>>, vector<1x256xf32>
    %59 = vector.broadcast %58 : vector<1x256xf32> to vector<512x256xf32>
    %60 = arith.addf %57, %59 : vector<512x256xf32>
    %cst_48 = arith.constant 0.000000e+00 : f32
    %61 = vector.broadcast %cst_48 : f32 to vector<512x256xf32>
    %62 = arith.maximumf %60, %61 : vector<512x256xf32>
    %63 = arith.truncf %62 : vector<512x256xf32> to vector<512x256xbf16>
    %c0_49 = arith.constant 0 : index
    %c0_50 = arith.constant 0 : index
    %64 = vector.load %arg19[%c0_49, %c0_50] : memref<256x256xbf16, #tpu.memory_space<vmem>>, vector<256x256xbf16>
    %cst_51 = arith.constant dense<0.000000e+00> : vector<512x256xf32>
    %65 = tpu.matmul %63, %64, %cst_51 {dimension_numbers = #tpu.dot_dimension_numbers<[1], [0], [0], [1], [0, 0, 1, 1], [], []>} : vector<512x256xbf16>, vector<256x256xbf16>, vector<512x256xf32> -> vector<512x256xf32>
    %c0_52 = arith.constant 0 : index
    %c0_53 = arith.constant 0 : index
    %66 = vector.load %arg20[%c0_52, %c0_53] : memref<1x256xf32, #tpu.memory_space<vmem>>, vector<1x256xf32>
    %67 = vector.broadcast %66 : vector<1x256xf32> to vector<512x256xf32>
    %68 = arith.addf %65, %67 : vector<512x256xf32>
    %cst_54 = arith.constant 0.000000e+00 : f32
    %69 = vector.broadcast %cst_54 : f32 to vector<512x256xf32>
    %70 = arith.maximumf %68, %69 : vector<512x256xf32>
    %c0_55 = arith.constant 0 : index
    %c0_56 = arith.constant 0 : index
    %71 = vector.load %arg21[%c0_55, %c0_56] : memref<1x256xf32, #tpu.memory_space<vmem>>, vector<1x256xf32>
    %72 = vector.broadcast %71 : vector<1x256xf32> to vector<512x256xf32>
    %73 = arith.mulf %70, %72 : vector<512x256xf32>
    %cst_57 = arith.constant dense<0.000000e+00> : vector<512xf32>
    %74 = vector.multi_reduction <add>, %73, %cst_57 [1] : vector<512x256xf32> to vector<512xf32>
    %75 = vector.shape_cast %74 : vector<512xf32> to vector<512x1xf32>
    %c0_58 = arith.constant 0 : index
    %c0_59 = arith.constant 0 : index
    %76 = vector.load %arg22[%c0_58, %c0_59] : memref<1x1xf32, #tpu.memory_space<vmem>>, vector<1x1xf32>
    %77 = vector.broadcast %76 : vector<1x1xf32> to vector<512x1xf32>
    %78 = arith.addf %75, %77 : vector<512x1xf32>
    %cst_60 = arith.constant 0.000000e+00 : f32
    %79 = vector.broadcast %cst_60 : f32 to vector<512x1xf32>
    %80 = arith.maximumf %78, %79 : vector<512x1xf32>
    %81 = arith.truncf %70 : vector<512x256xf32> to vector<512x256xbf16>
    %c0_61 = arith.constant 0 : index
    %c0_62 = arith.constant 0 : index
    %82 = vector.load %arg23[%c0_61, %c0_62] : memref<256x256xbf16, #tpu.memory_space<vmem>>, vector<256x256xbf16>
    %cst_63 = arith.constant dense<0.000000e+00> : vector<512x256xf32>
    %83 = tpu.matmul %81, %82, %cst_63 {dimension_numbers = #tpu.dot_dimension_numbers<[1], [0], [0], [1], [0, 0, 1, 1], [], []>} : vector<512x256xbf16>, vector<256x256xbf16>, vector<512x256xf32> -> vector<512x256xf32>
    %c0_64 = arith.constant 0 : index
    %c0_65 = arith.constant 0 : index
    %84 = vector.load %arg24[%c0_64, %c0_65] : memref<1x256xf32, #tpu.memory_space<vmem>>, vector<1x256xf32>
    %85 = vector.broadcast %84 : vector<1x256xf32> to vector<512x256xf32>
    %86 = arith.addf %83, %85 : vector<512x256xf32>
    %cst_66 = arith.constant 0.000000e+00 : f32
    %87 = vector.broadcast %cst_66 : f32 to vector<512x256xf32>
    %88 = arith.maximumf %86, %87 : vector<512x256xf32>
    %c0_67 = arith.constant 0 : index
    %c0_68 = arith.constant 0 : index
    %89 = vector.load %arg25[%c0_67, %c0_68] : memref<32x256xbf16, #tpu.memory_space<vmem>>, vector<32x256xbf16>
    %cst_69 = arith.constant dense<0.000000e+00> : vector<512x256xf32>
    %90 = tpu.matmul %1, %89, %cst_69 {dimension_numbers = #tpu.dot_dimension_numbers<[1], [0], [0], [1], [0, 0, 1, 1], [], []>} : vector<512x32xbf16>, vector<32x256xbf16>, vector<512x256xf32> -> vector<512x256xf32>
    %91 = arith.truncf %88 : vector<512x256xf32> to vector<512x256xbf16>
    %c0_70 = arith.constant 0 : index
    %c0_71 = arith.constant 0 : index
    %92 = vector.load %arg26[%c0_70, %c0_71] : memref<256x256xbf16, #tpu.memory_space<vmem>>, vector<256x256xbf16>
    %cst_72 = arith.constant dense<0.000000e+00> : vector<512x256xf32>
    %93 = tpu.matmul %91, %92, %cst_72 {dimension_numbers = #tpu.dot_dimension_numbers<[1], [0], [0], [1], [0, 0, 1, 1], [], []>} : vector<512x256xbf16>, vector<256x256xbf16>, vector<512x256xf32> -> vector<512x256xf32>
    %94 = arith.addf %90, %93 : vector<512x256xf32>
    %c0_73 = arith.constant 0 : index
    %c0_74 = arith.constant 0 : index
    %95 = vector.load %arg27[%c0_73, %c0_74] : memref<1x256xf32, #tpu.memory_space<vmem>>, vector<1x256xf32>
    %96 = vector.broadcast %95 : vector<1x256xf32> to vector<512x256xf32>
    %97 = arith.addf %94, %96 : vector<512x256xf32>
    %cst_75 = arith.constant 0.000000e+00 : f32
    %98 = vector.broadcast %cst_75 : f32 to vector<512x256xf32>
    %99 = arith.maximumf %97, %98 : vector<512x256xf32>
    %100 = arith.truncf %99 : vector<512x256xf32> to vector<512x256xbf16>
    %c0_76 = arith.constant 0 : index
    %c0_77 = arith.constant 0 : index
    %101 = vector.load %arg28[%c0_76, %c0_77] : memref<256x3xbf16, #tpu.memory_space<vmem>>, vector<256x3xbf16>
    %cst_78 = arith.constant dense<0.000000e+00> : vector<512x3xf32>
    %102 = tpu.matmul %100, %101, %cst_78 {dimension_numbers = #tpu.dot_dimension_numbers<[1], [0], [0], [1], [0, 0, 1, 1], [], []>} : vector<512x256xbf16>, vector<256x3xbf16>, vector<512x3xf32> -> vector<512x3xf32>
    %c0_79 = arith.constant 0 : index
    %c0_80 = arith.constant 0 : index
    %103 = vector.load %arg29[%c0_79, %c0_80] : memref<1x3xf32, #tpu.memory_space<vmem>>, vector<1x3xf32>
    %104 = vector.broadcast %103 : vector<1x3xf32> to vector<512x3xf32>
    %105 = arith.addf %102, %104 : vector<512x3xf32>
    %cst_81 = arith.constant 0.000000e+00 : f32
    %106 = vector.broadcast %cst_81 : f32 to vector<512x3xf32>
    %107 = arith.maximumf %105, %106 : vector<512x3xf32>
    %108 = arith.negf %107 : vector<512x3xf32>
    %109 = math.exp %108 : vector<512x3xf32>
    %cst_82 = arith.constant 1.000000e+00 : f32
    %110 = vector.broadcast %cst_82 : f32 to vector<512x3xf32>
    %111 = arith.addf %110, %109 : vector<512x3xf32>
    %112 = arith.divf %110, %111 : vector<512x3xf32>
    %c0_83 = arith.constant 0 : index
    %c0_84 = arith.constant 0 : index
    %113 = vector.load %arg30[%c0_83, %c0_84] : memref<512x4xf32, #tpu.memory_space<vmem>>, vector<512x3xf32>
    tpu.vector_store %arg30[%c0_83, %c0_84], %112 {strides = array<i32>} : memref<512x4xf32, #tpu.memory_space<vmem>>, vector<512x3xf32>,
    %c0_85 = arith.constant 0 : index
    %c3 = arith.constant 3 : index
    %114 = vector.load %arg30[%c0_85, %c3] : memref<512x4xf32, #tpu.memory_space<vmem>>, vector<512x1xf32>
    tpu.vector_store %arg30[%c0_85, %c3], %80 {strides = array<i32>} : memref<512x4xf32, #tpu.memory_space<vmem>>, vector<512x1xf32>,
    return
  }
  func.func @transform_0(%arg0: i32) -> (i32, i32) {
    %c0_i32 = arith.constant 0 : i32
    %c0_i32_0 = arith.constant 0 : i32
    return %arg0, %c0_i32 : i32, i32
  }
  func.func @transform_1(%arg0: i32) -> (i32, i32) {
    %c0_i32 = arith.constant 0 : i32
    %c0_i32_0 = arith.constant 0 : i32
    return %arg0, %c0_i32 : i32, i32
  }
  func.func @transform_2(%arg0: i32) -> (i32, i32) {
    %c0_i32 = arith.constant 0 : i32
    %c0_i32_0 = arith.constant 0 : i32
    return %arg0, %c0_i32 : i32, i32
  }
  func.func @transform_3(%arg0: i32) -> (i32, i32) {
    %c0_i32 = arith.constant 0 : i32
    %c0_i32_0 = arith.constant 0 : i32
    %c0_i32_1 = arith.constant 0 : i32
    return %c0_i32, %c0_i32_0 : i32, i32
  }
  func.func @transform_4(%arg0: i32) -> (i32, i32) {
    %c0_i32 = arith.constant 0 : i32
    %c0_i32_0 = arith.constant 0 : i32
    %c0_i32_1 = arith.constant 0 : i32
    return %c0_i32, %c0_i32_0 : i32, i32
  }
  func.func @transform_5(%arg0: i32) -> (i32, i32) {
    %c0_i32 = arith.constant 0 : i32
    %c0_i32_0 = arith.constant 0 : i32
    %c0_i32_1 = arith.constant 0 : i32
    return %c0_i32, %c0_i32_0 : i32, i32
  }
  func.func @transform_6(%arg0: i32) -> (i32, i32) {
    %c0_i32 = arith.constant 0 : i32
    %c0_i32_0 = arith.constant 0 : i32
    %c0_i32_1 = arith.constant 0 : i32
    return %c0_i32, %c0_i32_0 : i32, i32
  }
  func.func @transform_7(%arg0: i32) -> (i32, i32) {
    %c0_i32 = arith.constant 0 : i32
    %c0_i32_0 = arith.constant 0 : i32
    %c0_i32_1 = arith.constant 0 : i32
    return %c0_i32, %c0_i32_0 : i32, i32
  }
  func.func @transform_8(%arg0: i32) -> (i32, i32) {
    %c0_i32 = arith.constant 0 : i32
    %c0_i32_0 = arith.constant 0 : i32
    %c0_i32_1 = arith.constant 0 : i32
    return %c0_i32, %c0_i32_0 : i32, i32
  }
  func.func @transform_9(%arg0: i32) -> (i32, i32) {
    %c0_i32 = arith.constant 0 : i32
    %c0_i32_0 = arith.constant 0 : i32
    %c0_i32_1 = arith.constant 0 : i32
    return %c0_i32, %c0_i32_0 : i32, i32
  }
  func.func @transform_10(%arg0: i32) -> (i32, i32) {
    %c0_i32 = arith.constant 0 : i32
    %c0_i32_0 = arith.constant 0 : i32
    %c0_i32_1 = arith.constant 0 : i32
    return %c0_i32, %c0_i32_0 : i32, i32
  }
  func.func @transform_11(%arg0: i32) -> (i32, i32) {
    %c0_i32 = arith.constant 0 : i32
    %c0_i32_0 = arith.constant 0 : i32
    %c0_i32_1 = arith.constant 0 : i32
    return %c0_i32, %c0_i32_0 : i32, i32
  }
  func.func @transform_12(%arg0: i32) -> (i32, i32) {
    %c0_i32 = arith.constant 0 : i32
    %c0_i32_0 = arith.constant 0 : i32
    %c0_i32_1 = arith.constant 0 : i32
    return %c0_i32, %c0_i32_0 : i32, i32
  }
  func.func @transform_13(%arg0: i32) -> (i32, i32) {
    %c0_i32 = arith.constant 0 : i32
    %c0_i32_0 = arith.constant 0 : i32
    %c0_i32_1 = arith.constant 0 : i32
    return %c0_i32, %c0_i32_0 : i32, i32
  }
  func.func @transform_14(%arg0: i32) -> (i32, i32) {
    %c0_i32 = arith.constant 0 : i32
    %c0_i32_0 = arith.constant 0 : i32
    %c0_i32_1 = arith.constant 0 : i32
    return %c0_i32, %c0_i32_0 : i32, i32
  }
  func.func @transform_15(%arg0: i32) -> (i32, i32) {
    %c0_i32 = arith.constant 0 : i32
    %c0_i32_0 = arith.constant 0 : i32
    %c0_i32_1 = arith.constant 0 : i32
    return %c0_i32, %c0_i32_0 : i32, i32
  }
  func.func @transform_16(%arg0: i32) -> (i32, i32) {
    %c0_i32 = arith.constant 0 : i32
    %c0_i32_0 = arith.constant 0 : i32
    %c0_i32_1 = arith.constant 0 : i32
    return %c0_i32, %c0_i32_0 : i32, i32
  }
  func.func @transform_17(%arg0: i32) -> (i32, i32) {
    %c0_i32 = arith.constant 0 : i32
    %c0_i32_0 = arith.constant 0 : i32
    %c0_i32_1 = arith.constant 0 : i32
    return %c0_i32, %c0_i32_0 : i32, i32
  }
  func.func @transform_18(%arg0: i32) -> (i32, i32) {
    %c0_i32 = arith.constant 0 : i32
    %c0_i32_0 = arith.constant 0 : i32
    %c0_i32_1 = arith.constant 0 : i32
    return %c0_i32, %c0_i32_0 : i32, i32
  }
  func.func @transform_19(%arg0: i32) -> (i32, i32) {
    %c0_i32 = arith.constant 0 : i32
    %c0_i32_0 = arith.constant 0 : i32
    %c0_i32_1 = arith.constant 0 : i32
    return %c0_i32, %c0_i32_0 : i32, i32
  }
  func.func @transform_20(%arg0: i32) -> (i32, i32) {
    %c0_i32 = arith.constant 0 : i32
    %c0_i32_0 = arith.constant 0 : i32
    %c0_i32_1 = arith.constant 0 : i32
    return %c0_i32, %c0_i32_0 : i32, i32
  }
  func.func @transform_21(%arg0: i32) -> (i32, i32) {
    %c0_i32 = arith.constant 0 : i32
    %c0_i32_0 = arith.constant 0 : i32
    %c0_i32_1 = arith.constant 0 : i32
    return %c0_i32, %c0_i32_0 : i32, i32
  }
  func.func @transform_22(%arg0: i32) -> (i32, i32) {
    %c0_i32 = arith.constant 0 : i32
    %c0_i32_0 = arith.constant 0 : i32
    %c0_i32_1 = arith.constant 0 : i32
    return %c0_i32, %c0_i32_0 : i32, i32
  }
  func.func @transform_23(%arg0: i32) -> (i32, i32) {
    %c0_i32 = arith.constant 0 : i32
    %c0_i32_0 = arith.constant 0 : i32
    %c0_i32_1 = arith.constant 0 : i32
    return %c0_i32, %c0_i32_0 : i32, i32
  }
  func.func @transform_24(%arg0: i32) -> (i32, i32) {
    %c0_i32 = arith.constant 0 : i32
    %c0_i32_0 = arith.constant 0 : i32
    %c0_i32_1 = arith.constant 0 : i32
    return %c0_i32, %c0_i32_0 : i32, i32
  }
  func.func @transform_25(%arg0: i32) -> (i32, i32) {
    %c0_i32 = arith.constant 0 : i32
    %c0_i32_0 = arith.constant 0 : i32
    %c0_i32_1 = arith.constant 0 : i32
    return %c0_i32, %c0_i32_0 : i32, i32
  }
  func.func @transform_26(%arg0: i32) -> (i32, i32) {
    %c0_i32 = arith.constant 0 : i32
    %c0_i32_0 = arith.constant 0 : i32
    %c0_i32_1 = arith.constant 0 : i32
    return %c0_i32, %c0_i32_0 : i32, i32
  }
  func.func @transform_27(%arg0: i32) -> (i32, i32) {
    %c0_i32 = arith.constant 0 : i32
    %c0_i32_0 = arith.constant 0 : i32
    %c0_i32_1 = arith.constant 0 : i32
    return %c0_i32, %c0_i32_0 : i32, i32
  }
  func.func @transform_28(%arg0: i32) -> (i32, i32) {
    %c0_i32 = arith.constant 0 : i32
    %c0_i32_0 = arith.constant 0 : i32
    %c0_i32_1 = arith.constant 0 : i32
    return %c0_i32, %c0_i32_0 : i32, i32
  }
  func.func @transform_29(%arg0: i32) -> (i32, i32) {
    %c0_i32 = arith.constant 0 : i32
    %c0_i32_0 = arith.constant 0 : i32
    return %arg0, %c0_i32 : i32, i32
  }
}

</mosaic_0001>

<llo_original>
// kernel: renderer_forward.1
$region0: #{renderer_forward.1}
  #allocation0 [shape = 'u32[]', space=smem, size = 0x4, offset = 0x4, fixed_abs, tag = 'smem constant byte address 0x4 - core index']
  #allocation1 [shape = 'u32[144,128]{1,0:T(1,128)}', space=vmem, size = 0x12000, scoped, tag = 'internal scratch']
  #allocation2 [shape = 'f32[1,1]{1,0:T(1,128)S(1)}', space=vmem, size = 0x200, scoped, tag = 'scoped memory for renderer_forward.1']
  %s0 = inlined_call_operand.smem [shape: u32[30], index: -1, kind: input, shape index: {}]
  %s1 = sld [smem:[%s0]]
  %s2 = scalar_lea.smem %s0, 1
  %s3 = sld [smem:[%s2]]
  %s4 = scalar_lea.smem %s0, 2
  %s5 = sld [smem:[%s4]]
  %s6 = scalar_lea.smem %s0, 3
  %s7 = sld [smem:[%s6]]
  %s8 = scalar_lea.smem %s0, 4
  %s9 = sld [smem:[%s8]]
  %s10 = scalar_lea.smem %s0, 5
  %s11 = sld [smem:[%s10]]
  %s12 = scalar_lea.smem %s0, 6
  %s13 = sld [smem:[%s12]]
  %s14 = scalar_lea.smem %s0, 7
  %s15 = sld [smem:[%s14]]
  %s16 = scalar_lea.smem %s0, 8
  %s17 = sld [smem:[%s16]]
  %s18 = scalar_lea.smem %s0, 9
  %s19 = sld [smem:[%s18]]
  %s20 = scalar_lea.smem %s0, 10
  %s21 = sld [smem:[%s20]]
  %s22 = scalar_lea.smem %s0, 11
  %s23 = sld [smem:[%s22]]
  %s24 = scalar_lea.smem %s0, 12
  %s25 = sld [smem:[%s24]]
  %s26 = scalar_lea.smem %s0, 13
  %s27 = sld [smem:[%s26]]
  %s28 = scalar_lea.smem %s0, 14
  %s29 = sld [smem:[%s28]]
  %s30 = scalar_lea.smem %s0, 15
  %s31 = sld [smem:[%s30]]
  %s32 = scalar_lea.smem %s0, 16
  %s33 = sld [smem:[%s32]]
  %s34 = scalar_lea.smem %s0, 17
  %s35 = sld [smem:[%s34]]
  %s36 = scalar_lea.smem %s0, 18
  %s37 = sld [smem:[%s36]]
  %s38 = scalar_lea.smem %s0, 19
  %s39 = sld [smem:[%s38]]
  %s40 = scalar_lea.smem %s0, 20
  %s41 = sld [smem:[%s40]]
  %s42 = scalar_lea.smem %s0, 21
  %s43 = sld [smem:[%s42]]
  %s44 = scalar_lea.smem %s0, 22
  %s45 = sld [smem:[%s44]]
  %s46 = scalar_lea.smem %s0, 23
  %s47 = sld [smem:[%s46]]
  %s48 = scalar_lea.smem %s0, 24
  %s49 = sld [smem:[%s48]]
  %s50 = scalar_lea.smem %s0, 25
  %s51 = sld [smem:[%s50]]
  %s52 = scalar_lea.smem %s0, 26
  %s53 = sld [smem:[%s52]]
  %s54 = scalar_lea.smem %s0, 27
  %s55 = sld [smem:[%s54]]
  %s56 = scalar_lea.smem %s0, 28
  %s57 = sld [smem:[%s56]]
  %s58 = scalar_lea.smem %s0, 29
  %s59 = sld [smem:[%s58]]
  %s60 = sld [smem:[#allocation0]]
  $region149: #{renderer_forward.1} parent=0
    _
  %s62 = ssub.s32 1, %s60
  %s63 = scalar_select 0, %s62, %s60
  %v64 = vstv %s43
  %65 = vst [vmem:[#allocation2] sm:$0x1] %v64
  loop: start=0, step=1, limit=6
  $region2: #{renderer_forward.1} parent=0 // loop_pre_header
    _
  $region3: #{renderer_forward.1} parent=0 // loop_header
    %s67 = sphi 0, %s71
    %p68 = scmp.ge.s32.totalorder %s67, 6
    %s77 = sphi 0, %s79
    %s80 = sphi 0, %s77
    %s81 = sphi 0, %s80
    %s97 = sphi 0, %s81
    %s103 = sphi 0, %s105
    %s106 = sphi 0, %s103
    %s107 = sphi 0, %s106
    %s123 = sphi 0, %s107
    %s129 = sphi 0, %s131
    %s132 = sphi 0, %s129
    %s133 = sphi 0, %s132
    %s149 = sphi 0, %s133
    %s153 = sphi 0, %s153
    %s155 = sphi 0, %s153
    %s156 = sphi 0, %s155
    %s170 = sphi 0, %s156
    %s174 = sphi 0, %s174
    %s176 = sphi 0, %s174
    %s177 = sphi 0, %s176
    %s191 = sphi 0, %s177
    %s195 = sphi 0, %s195
    %s197 = sphi 0, %s195
    %s198 = sphi 0, %s197
    %s212 = sphi 0, %s198
    %s216 = sphi 0, %s216
    %s218 = sphi 0, %s216
    %s219 = sphi 0, %s218
    %s233 = sphi 0, %s219
    %s237 = sphi 0, %s237
    %s239 = sphi 0, %s237
    %s240 = sphi 0, %s239
    %s254 = sphi 0, %s240
    %s258 = sphi 0, %s258
    %s260 = sphi 0, %s258
    %s261 = sphi 0, %s260
    %s275 = sphi 0, %s261
    %s279 = sphi 0, %s279
    %s281 = sphi 0, %s279
    %s282 = sphi 0, %s281
    %s296 = sphi 0, %s282
    %s300 = sphi 0, %s300
    %s302 = sphi 0, %s300
    %s303 = sphi 0, %s302
    %s317 = sphi 0, %s303
    %s321 = sphi 0, %s321
    %s323 = sphi 0, %s321
    %s324 = sphi 0, %s323
    %s338 = sphi 0, %s324
    %s342 = sphi 0, %s342
    %s344 = sphi 0, %s342
    %s345 = sphi 0, %s344
    %s359 = sphi 0, %s345
    %s363 = sphi 0, %s363
    %s365 = sphi 0, %s363
    %s366 = sphi 0, %s365
    %s380 = sphi 0, %s366
    %s384 = sphi 0, %s384
    %s386 = sphi 0, %s384
    %s387 = sphi 0, %s386
    %s401 = sphi 0, %s387
    %s405 = sphi 0, %s405
    %s407 = sphi 0, %s405
    %s408 = sphi 0, %s407
    %s422 = sphi 0, %s408
    %s426 = sphi 0, %s426
    %s428 = sphi 0, %s426
    %s429 = sphi 0, %s428
    %s443 = sphi 0, %s429
    %s447 = sphi 0, %s447
    %s449 = sphi 0, %s447
    %s450 = sphi 0, %s449
    %s464 = sphi 0, %s450
    %s468 = sphi 0, %s468
    %s470 = sphi 0, %s468
    %s471 = sphi 0, %s470
    %s485 = sphi 0, %s471
    %s489 = sphi 0, %s489
    %s491 = sphi 0, %s489
    %s492 = sphi 0, %s491
    %s506 = sphi 0, %s492
    %s510 = sphi 0, %s510
    %s512 = sphi 0, %s510
    %s513 = sphi 0, %s512
    %s527 = sphi 0, %s513
    %s531 = sphi 0, %s531
    %s533 = sphi 0, %s531
    %s534 = sphi 0, %s533
    %s548 = sphi 0, %s534
    %s552 = sphi 0, %s552
    %s554 = sphi 0, %s552
    %s555 = sphi 0, %s554
    %s569 = sphi 0, %s555
    %s573 = sphi 0, %s573
    %s575 = sphi 0, %s573
    %s576 = sphi 0, %s575
    %s590 = sphi 0, %s576
    %s594 = sphi 0, %s594
    %s596 = sphi 0, %s594
    %s597 = sphi 0, %s596
    %s611 = sphi 0, %s597
    %s615 = sphi 0, %s615
    %s617 = sphi 0, %s615
    %s618 = sphi 0, %s617
    %s632 = sphi 0, %s618
    %s636 = sphi 0, %s636
    %s638 = sphi 0, %s636
    %s639 = sphi 0, %s638
    %s653 = sphi 0, %s639
    %s657 = sphi 0, %s657
    %s659 = sphi 0, %s657
    %s660 = sphi 0, %s659
    %s674 = sphi 0, %s660
    %s678 = sphi 0, %s678
    %s680 = sphi 0, %s678
    %s681 = sphi 0, %s680
    %s695 = sphi 0, %s681
    %s701 = sphi 0, %s703
    %s704 = sphi 0, %s701
    %s705 = sphi 0, %s704
    %s721 = sphi 0, %s705
  $region4: #{renderer_forward.1} parent=0 // loop_header_branch
    %70 = sbr.rel (%p68) target = $region8
  $region5: #{renderer_forward.1} parent=0 // loop_body
    %s72 = ssub.s32 %s67, 1
    %s73 = ssub.s32 %s67, 2
    %s74 = sadd.s32 %s67, 1
    %s75 = ssub.s32 %s67, %s74
    %p76 = scmp.eq.s32.totalorder %s75, 0
    %s78 = sadd.s32 %s77, 1
    %s79 = scalar_select %p76, %s77, %s78
    %p82 = pneg %p76
    %p83 = scmp.eq.s32.totalorder %s67, 3
    %p84 = por %p82, %p83
    %p85 = scmp.ne.s32.totalorder %s77, %s80
    %p86 = scmp.eq.s32.totalorder %s67, 0
    %p87 = por %p85, %p86
    %p88 = scmp.ne.s32.totalorder %s77, %s80
    %p89 = scmp.eq.s32.totalorder %s72, 3
    %p90 = por %p88, %p89
    %p91 = scmp.ne.s32.totalorder %s80, %s81
    %p92 = scmp.eq.s32.totalorder %s72, 0
    %p93 = por %p91, %p92
    %p94 = scmp.ne.s32.totalorder %s80, %s81
    %p95 = scmp.eq.s32.totalorder %s73, 3
    %p96 = por %p94, %p95
    %p98 = scmp.ne.s32.totalorder %s81, %s97
    %p99 = scmp.eq.s32.totalorder %s73, 0
    %p100 = por %p98, %p99
    %s101 = ssub.s32 %s67, %s74
    %p102 = scmp.eq.s32.totalorder %s101, 0
    %s104 = sadd.s32 %s103, 1
    %s105 = scalar_select %p102, %s103, %s104
    %p108 = pneg %p102
    %p109 = scmp.eq.s32.totalorder %s67, 3
    %p110 = por %p108, %p109
    %p111 = scmp.ne.s32.totalorder %s103, %s106
    %p112 = scmp.eq.s32.totalorder %s67, 0
    %p113 = por %p111, %p112
    %p114 = scmp.ne.s32.totalorder %s103, %s106
    %p115 = scmp.eq.s32.totalorder %s72, 3
    %p116 = por %p114, %p115
    %p117 = scmp.ne.s32.totalorder %s106, %s107
    %p118 = scmp.eq.s32.totalorder %s72, 0
    %p119 = por %p117, %p118
    %p120 = scmp.ne.s32.totalorder %s106, %s107
    %p121 = scmp.eq.s32.totalorder %s73, 3
    %p122 = por %p120, %p121
    %p124 = scmp.ne.s32.totalorder %s107, %s123
    %p125 = scmp.eq.s32.totalorder %s73, 0
    %p126 = por %p124, %p125
    %s127 = ssub.s32 %s67, %s74
    %p128 = scmp.eq.s32.totalorder %s127, 0
    %s130 = sadd.s32 %s129, 1
    %s131 = scalar_select %p128, %s129, %s130
    %p134 = pneg %p128
    %p135 = scmp.eq.s32.totalorder %s67, 3
    %p136 = por %p134, %p135
    %p137 = scmp.ne.s32.totalorder %s129, %s132
    %p138 = scmp.eq.s32.totalorder %s67, 0
    %p139 = por %p137, %p138
    %p140 = scmp.ne.s32.totalorder %s129, %s132
    %p141 = scmp.eq.s32.totalorder %s72, 3
    %p142 = por %p140, %p141
    %p143 = scmp.ne.s32.totalorder %s132, %s133
    %p144 = scmp.eq.s32.totalorder %s72, 0
    %p145 = por %p143, %p144
    %p146 = scmp.ne.s32.totalorder %s132, %s133
    %p147 = scmp.eq.s32.totalorder %s73, 3
    %p148 = por %p146, %p147
    %p150 = scmp.ne.s32.totalorder %s133, %s149
    %p151 = scmp.eq.s32.totalorder %s73, 0
    %p152 = por %p150, %p151
    %s154 = sadd.s32 %s153, 1
    %p157 = scmp.eq.s32.totalorder %s67, 3
    %p158 = scmp.ne.s32.totalorder %s153, %s155
    %p159 = scmp.eq.s32.totalorder %s67, 0
    %p160 = por %p158, %p159
    %p161 = scmp.ne.s32.totalorder %s153, %s155
    %p162 = scmp.eq.s32.totalorder %s72, 3
    %p163 = por %p161, %p162
    %p164 = scmp.ne.s32.totalorder %s155, %s156
    %p165 = scmp.eq.s32.totalorder %s72, 0
    %p166 = por %p164, %p165
    %p167 = scmp.ne.s32.totalorder %s155, %s156
    %p168 = scmp.eq.s32.totalorder %s73, 3
    %p169 = por %p167, %p168
    %p171 = scmp.ne.s32.totalorder %s156, %s170
    %p172 = scmp.eq.s32.totalorder %s73, 0
    %p173 = por %p171, %p172
    %s175 = sadd.s32 %s174, 1
    %p178 = scmp.eq.s32.totalorder %s67, 3
    %p179 = scmp.ne.s32.totalorder %s174, %s176
    %p180 = scmp.eq.s32.totalorder %s67, 0
    %p181 = por %p179, %p180
    %p182 = scmp.ne.s32.totalorder %s174, %s176
    %p183 = scmp.eq.s32.totalorder %s72, 3
    %p184 = por %p182, %p183
    %p185 = scmp.ne.s32.totalorder %s176, %s177
    %p186 = scmp.eq.s32.totalorder %s72, 0
    %p187 = por %p185, %p186
    %p188 = scmp.ne.s32.totalorder %s176, %s177
    %p189 = scmp.eq.s32.totalorder %s73, 3
    %p190 = por %p188, %p189
    %p192 = scmp.ne.s32.totalorder %s177, %s191
    %p193 = scmp.eq.s32.totalorder %s73, 0
    %p194 = por %p192, %p193
    %s196 = sadd.s32 %s195, 1
    %p199 = scmp.eq.s32.totalorder %s67, 3
    %p200 = scmp.ne.s32.totalorder %s195, %s197
    %p201 = scmp.eq.s32.totalorder %s67, 0
    %p202 = por %p200, %p201
    %p203 = scmp.ne.s32.totalorder %s195, %s197
    %p204 = scmp.eq.s32.totalorder %s72, 3
    %p205 = por %p203, %p204
    %p206 = scmp.ne.s32.totalorder %s197, %s198
    %p207 = scmp.eq.s32.totalorder %s72, 0
    %p208 = por %p206, %p207
    %p209 = scmp.ne.s32.totalorder %s197, %s198
    %p210 = scmp.eq.s32.totalorder %s73, 3
    %p211 = por %p209, %p210
    %p213 = scmp.ne.s32.totalorder %s198, %s212
    %p214 = scmp.eq.s32.totalorder %s73, 0
    %p215 = por %p213, %p214
    %s217 = sadd.s32 %s216, 1
    %p220 = scmp.eq.s32.totalorder %s67, 3
    %p221 = scmp.ne.s32.totalorder %s216, %s218
    %p222 = scmp.eq.s32.totalorder %s67, 0
    %p223 = por %p221, %p222
    %p224 = scmp.ne.s32.totalorder %s216, %s218
    %p225 = scmp.eq.s32.totalorder %s72, 3
    %p226 = por %p224, %p225
    %p227 = scmp.ne.s32.totalorder %s218, %s219
    %p228 = scmp.eq.s32.totalorder %s72, 0
    %p229 = por %p227, %p228
    %p230 = scmp.ne.s32.totalorder %s218, %s219
    %p231 = scmp.eq.s32.totalorder %s73, 3
    %p232 = por %p230, %p231
    %p234 = scmp.ne.s32.totalorder %s219, %s233
    %p235 = scmp.eq.s32.totalorder %s73, 0
    %p236 = por %p234, %p235
    %s238 = sadd.s32 %s237, 1
    %p241 = scmp.eq.s32.totalorder %s67, 3
    %p242 = scmp.ne.s32.totalorder %s237, %s239
    %p243 = scmp.eq.s32.totalorder %s67, 0
    %p244 = por %p242, %p243
    %p245 = scmp.ne.s32.totalorder %s237, %s239
    %p246 = scmp.eq.s32.totalorder %s72, 3
    %p247 = por %p245, %p246
    %p248 = scmp.ne.s32.totalorder %s239, %s240
    %p249 = scmp.eq.s32.totalorder %s72, 0
    %p250 = por %p248, %p249
    %p251 = scmp.ne.s32.totalorder %s239, %s240
    %p252 = scmp.eq.s32.totalorder %s73, 3
    %p253 = por %p251, %p252
    %p255 = scmp.ne.s32.totalorder %s240, %s254
    %p256 = scmp.eq.s32.totalorder %s73, 0
    %p257 = por %p255, %p256
    %s259 = sadd.s32 %s258, 1
    %p262 = scmp.eq.s32.totalorder %s67, 3
    %p263 = scmp.ne.s32.totalorder %s258, %s260
    %p264 = scmp.eq.s32.totalorder %s67, 0
    %p265 = por %p263, %p264
    %p266 = scmp.ne.s32.totalorder %s258, %s260
    %p267 = scmp.eq.s32.totalorder %s72, 3
    %p268 = por %p266, %p267
    %p269 = scmp.ne.s32.totalorder %s260, %s261
    %p270 = scmp.eq.s32.totalorder %s72, 0
    %p271 = por %p269, %p270
    %p272 = scmp.ne.s32.totalorder %s260, %s261
    %p273 = scmp.eq.s32.totalorder %s73, 3
    %p274 = por %p272, %p273
    %p276 = scmp.ne.s32.totalorder %s261, %s275
    %p277 = scmp.eq.s32.totalorder %s73, 0
    %p278 = por %p276, %p277
    %s280 = sadd.s32 %s279, 1
    %p283 = scmp.eq.s32.totalorder %s67, 3
    %p284 = scmp.ne.s32.totalorder %s279, %s281
    %p285 = scmp.eq.s32.totalorder %s67, 0
    %p286 = por %p284, %p285
    %p287 = scmp.ne.s32.totalorder %s279, %s281
    %p288 = scmp.eq.s32.totalorder %s72, 3
    %p289 = por %p287, %p288
    %p290 = scmp.ne.s32.totalorder %s281, %s282
    %p291 = scmp.eq.s32.totalorder %s72, 0
    %p292 = por %p290, %p291
    %p293 = scmp.ne.s32.totalorder %s281, %s282
    %p294 = scmp.eq.s32.totalorder %s73, 3
    %p295 = por %p293, %p294
    %p297 = scmp.ne.s32.totalorder %s282, %s296
    %p298 = scmp.eq.s32.totalorder %s73, 0
    %p299 = por %p297, %p298
    %s301 = sadd.s32 %s300, 1
    %p304 = scmp.eq.s32.totalorder %s67, 3
    %p305 = scmp.ne.s32.totalorder %s300, %s302
    %p306 = scmp.eq.s32.totalorder %s67, 0
    %p307 = por %p305, %p306
    %p308 = scmp.ne.s32.totalorder %s300, %s302
    %p309 = scmp.eq.s32.totalorder %s72, 3
    %p310 = por %p308, %p309
    %p311 = scmp.ne.s32.totalorder %s302, %s303
    %p312 = scmp.eq.s32.totalorder %s72, 0
    %p313 = por %p311, %p312
    %p314 = scmp.ne.s32.totalorder %s302, %s303
    %p315 = scmp.eq.s32.totalorder %s73, 3
    %p316 = por %p314, %p315
    %p318 = scmp.ne.s32.totalorder %s303, %s317
    %p319 = scmp.eq.s32.totalorder %s73, 0
    %p320 = por %p318, %p319
    %s322 = sadd.s32 %s321, 1
    %p325 = scmp.eq.s32.totalorder %s67, 3
    %p326 = scmp.ne.s32.totalorder %s321, %s323
    %p327 = scmp.eq.s32.totalorder %s67, 0
    %p328 = por %p326, %p327
    %p329 = scmp.ne.s32.totalorder %s321, %s323
    %p330 = scmp.eq.s32.totalorder %s72, 3
    %p331 = por %p329, %p330
    %p332 = scmp.ne.s32.totalorder %s323, %s324
    %p333 = scmp.eq.s32.totalorder %s72, 0
    %p334 = por %p332, %p333
    %p335 = scmp.ne.s32.totalorder %s323, %s324
    %p336 = scmp.eq.s32.totalorder %s73, 3
    %p337 = por %p335, %p336
    %p339 = scmp.ne.s32.totalorder %s324, %s338
    %p340 = scmp.eq.s32.totalorder %s73, 0
    %p341 = por %p339, %p340
    %s343 = sadd.s32 %s342, 1
    %p346 = scmp.eq.s32.totalorder %s67, 3
    %p347 = scmp.ne.s32.totalorder %s342, %s344
    %p348 = scmp.eq.s32.totalorder %s67, 0
    %p349 = por %p347, %p348
    %p350 = scmp.ne.s32.totalorder %s342, %s344
    %p351 = scmp.eq.s32.totalorder %s72, 3
    %p352 = por %p350, %p351
    %p353 = scmp.ne.s32.totalorder %s344, %s345
    %p354 = scmp.eq.s32.totalorder %s72, 0
    %p355 = por %p353, %p354
    %p356 = scmp.ne.s32.totalorder %s344, %s345
    %p357 = scmp.eq.s32.totalorder %s73, 3
    %p358 = por %p356, %p357
    %p360 = scmp.ne.s32.totalorder %s345, %s359
    %p361 = scmp.eq.s32.totalorder %s73, 0
    %p362 = por %p360, %p361
    %s364 = sadd.s32 %s363, 1
    %p367 = scmp.eq.s32.totalorder %s67, 3
    %p368 = scmp.ne.s32.totalorder %s363, %s365
    %p369 = scmp.eq.s32.totalorder %s67, 0
    %p370 = por %p368, %p369
    %p371 = scmp.ne.s32.totalorder %s363, %s365
    %p372 = scmp.eq.s32.totalorder %s72, 3
    %p373 = por %p371, %p372
    %p374 = scmp.ne.s32.totalorder %s365, %s366
    %p375 = scmp.eq.s32.totalorder %s72, 0
    %p376 = por %p374, %p375
    %p377 = scmp.ne.s32.totalorder %s365, %s366
    %p378 = scmp.eq.s32.totalorder %s73, 3
    %p379 = por %p377, %p378
    %p381 = scmp.ne.s32.totalorder %s366, %s380
    %p382 = scmp.eq.s32.totalorder %s73, 0
    %p383 = por %p381, %p382
    %s385 = sadd.s32 %s384, 1
    %p388 = scmp.eq.s32.totalorder %s67, 3
    %p389 = scmp.ne.s32.totalorder %s384, %s386
    %p390 = scmp.eq.s32.totalorder %s67, 0
    %p391 = por %p389, %p390
    %p392 = scmp.ne.s32.totalorder %s384, %s386
    %p393 = scmp.eq.s32.totalorder %s72, 3
    %p394 = por %p392, %p393
    %p395 = scmp.ne.s32.totalorder %s386, %s387
    %p396 = scmp.eq.s32.totalorder %s72, 0
    %p397 = por %p395, %p396
    %p398 = scmp.ne.s32.totalorder %s386, %s387
    %p399 = scmp.eq.s32.totalorder %s73, 3
    %p400 = por %p398, %p399
    %p402 = scmp.ne.s32.totalorder %s387, %s401
    %p403 = scmp.eq.s32.totalorder %s73, 0
    %p404 = por %p402, %p403
    %s406 = sadd.s32 %s405, 1
    %p409 = scmp.eq.s32.totalorder %s67, 3
    %p410 = scmp.ne.s32.totalorder %s405, %s407
    %p411 = scmp.eq.s32.totalorder %s67, 0
    %p412 = por %p410, %p411
    %p413 = scmp.ne.s32.totalorder %s405, %s407
    %p414 = scmp.eq.s32.totalorder %s72, 3
    %p415 = por %p413, %p414
    %p416 = scmp.ne.s32.totalorder %s407, %s408
    %p417 = scmp.eq.s32.totalorder %s72, 0
    %p418 = por %p416, %p417
    %p419 = scmp.ne.s32.totalorder %s407, %s408
    %p420 = scmp.eq.s32.totalorder %s73, 3
    %p421 = por %p419, %p420
    %p423 = scmp.ne.s32.totalorder %s408, %s422
    %p424 = scmp.eq.s32.totalorder %s73, 0
    %p425 = por %p423, %p424
    %s427 = sadd.s32 %s426, 1
    %p430 = scmp.eq.s32.totalorder %s67, 3
    %p431 = scmp.ne.s32.totalorder %s426, %s428
    %p432 = scmp.eq.s32.totalorder %s67, 0
    %p433 = por %p431, %p432
    %p434 = scmp.ne.s32.totalorder %s426, %s428
    %p435 = scmp.eq.s32.totalorder %s72, 3
    %p436 = por %p434, %p435
    %p437 = scmp.ne.s32.totalorder %s428, %s429
    %p438 = scmp.eq.s32.totalorder %s72, 0
    %p439 = por %p437, %p438
    %p440 = scmp.ne.s32.totalorder %s428, %s429
    %p441 = scmp.eq.s32.totalorder %s73, 3
    %p442 = por %p440, %p441
    %p444 = scmp.ne.s32.totalorder %s429, %s443
    %p445 = scmp.eq.s32.totalorder %s73, 0
    %p446 = por %p444, %p445
    %s448 = sadd.s32 %s447, 1
    %p451 = scmp.eq.s32.totalorder %s67, 3
    %p452 = scmp.ne.s32.totalorder %s447, %s449
    %p453 = scmp.eq.s32.totalorder %s67, 0
    %p454 = por %p452, %p453
    %p455 = scmp.ne.s32.totalorder %s447, %s449
    %p456 = scmp.eq.s32.totalorder %s72, 3
    %p457 = por %p455, %p456
    %p458 = scmp.ne.s32.totalorder %s449, %s450
    %p459 = scmp.eq.s32.totalorder %s72, 0
    %p460 = por %p458, %p459
    %p461 = scmp.ne.s32.totalorder %s449, %s450
    %p462 = scmp.eq.s32.totalorder %s73, 3
    %p463 = por %p461, %p462
    %p465 = scmp.ne.s32.totalorder %s450, %s464
    %p466 = scmp.eq.s32.totalorder %s73, 0
    %p467 = por %p465, %p466
    %s469 = sadd.s32 %s468, 1
    %p472 = scmp.eq.s32.totalorder %s67, 3
    %p473 = scmp.ne.s32.totalorder %s468, %s470
    %p474 = scmp.eq.s32.totalorder %s67, 0
    %p475 = por %p473, %p474
    %p476 = scmp.ne.s32.totalorder %s468, %s470
    %p477 = scmp.eq.s32.totalorder %s72, 3
    %p478 = por %p476, %p477
    %p479 = scmp.ne.s32.totalorder %s470, %s471
    %p480 = scmp.eq.s32.totalorder %s72, 0
    %p481 = por %p479, %p480
    %p482 = scmp.ne.s32.totalorder %s470, %s471
    %p483 = scmp.eq.s32.totalorder %s73, 3
    %p484 = por %p482, %p483
    %p486 = scmp.ne.s32.totalorder %s471, %s485
    %p487 = scmp.eq.s32.totalorder %s73, 0
    %p488 = por %p486, %p487
    %s490 = sadd.s32 %s489, 1
    %p493 = scmp.eq.s32.totalorder %s67, 3
    %p494 = scmp.ne.s32.totalorder %s489, %s491
    %p495 = scmp.eq.s32.totalorder %s67, 0
    %p496 = por %p494, %p495
    %p497 = scmp.ne.s32.totalorder %s489, %s491
    %p498 = scmp.eq.s32.totalorder %s72, 3
    %p499 = por %p497, %p498
    %p500 = scmp.ne.s32.totalorder %s491, %s492
    %p501 = scmp.eq.s32.totalorder %s72, 0
    %p502 = por %p500, %p501
    %p503 = scmp.ne.s32.totalorder %s491, %s492
    %p504 = scmp.eq.s32.totalorder %s73, 3
    %p505 = por %p503, %p504
    %p507 = scmp.ne.s32.totalorder %s492, %s506
    %p508 = scmp.eq.s32.totalorder %s73, 0
    %p509 = por %p507, %p508
    %s511 = sadd.s32 %s510, 1
    %p514 = scmp.eq.s32.totalorder %s67, 3
    %p515 = scmp.ne.s32.totalorder %s510, %s512
    %p516 = scmp.eq.s32.totalorder %s67, 0
    %p517 = por %p515, %p516
    %p518 = scmp.ne.s32.totalorder %s510, %s512
    %p519 = scmp.eq.s32.totalorder %s72, 3
    %p520 = por %p518, %p519
    %p521 = scmp.ne.s32.totalorder %s512, %s513
    %p522 = scmp.eq.s32.totalorder %s72, 0
    %p523 = por %p521, %p522
    %p524 = scmp.ne.s32.totalorder %s512, %s513
    %p525 = scmp.eq.s32.totalorder %s73, 3
    %p526 = por %p524, %p525
    %p528 = scmp.ne.s32.totalorder %s513, %s527
    %p529 = scmp.eq.s32.totalorder %s73, 0
    %p530 = por %p528, %p529
    %s532 = sadd.s32 %s531, 1
    %p535 = scmp.eq.s32.totalorder %s67, 3
    %p536 = scmp.ne.s32.totalorder %s531, %s533
    %p537 = scmp.eq.s32.totalorder %s67, 0
    %p538 = por %p536, %p537
    %p539 = scmp.ne.s32.totalorder %s531, %s533
    %p540 = scmp.eq.s32.totalorder %s72, 3
    %p541 = por %p539, %p540
    %p542 = scmp.ne.s32.totalorder %s533, %s534
    %p543 = scmp.eq.s32.totalorder %s72, 0
    %p544 = por %p542, %p543
    %p545 = scmp.ne.s32.totalorder %s533, %s534
    %p546 = scmp.eq.s32.totalorder %s73, 3
    %p547 = por %p545, %p546
    %p549 = scmp.ne.s32.totalorder %s534, %s548
    %p550 = scmp.eq.s32.totalorder %s73, 0
    %p551 = por %p549, %p550
    %s553 = sadd.s32 %s552, 1
    %p556 = scmp.eq.s32.totalorder %s67, 3
    %p557 = scmp.ne.s32.totalorder %s552, %s554
    %p558 = scmp.eq.s32.totalorder %s67, 0
    %p559 = por %p557, %p558
    %p560 = scmp.ne.s32.totalorder %s552, %s554
    %p561 = scmp.eq.s32.totalorder %s72, 3
    %p562 = por %p560, %p561
    %p563 = scmp.ne.s32.totalorder %s554, %s555
    %p564 = scmp.eq.s32.totalorder %s72, 0
    %p565 = por %p563, %p564
    %p566 = scmp.ne.s32.totalorder %s554, %s555
    %p567 = scmp.eq.s32.totalorder %s73, 3
    %p568 = por %p566, %p567
    %p570 = scmp.ne.s32.totalorder %s555, %s569
    %p571 = scmp.eq.s32.totalorder %s73, 0
    %p572 = por %p570, %p571
    %s574 = sadd.s32 %s573, 1
    %p577 = scmp.eq.s32.totalorder %s67, 3
    %p578 = scmp.ne.s32.totalorder %s573, %s575
    %p579 = scmp.eq.s32.totalorder %s67, 0
    %p580 = por %p578, %p579
    %p581 = scmp.ne.s32.totalorder %s573, %s575
    %p582 = scmp.eq.s32.totalorder %s72, 3
    %p583 = por %p581, %p582
    %p584 = scmp.ne.s32.totalorder %s575, %s576
    %p585 = scmp.eq.s32.totalorder %s72, 0
    %p586 = por %p584, %p585
    %p587 = scmp.ne.s32.totalorder %s575, %s576
    %p588 = scmp.eq.s32.totalorder %s73, 3
    %p589 = por %p587, %p588
    %p591 = scmp.ne.s32.totalorder %s576, %s590
    %p592 = scmp.eq.s32.totalorder %s73, 0
    %p593 = por %p591, %p592
    %s595 = sadd.s32 %s594, 1
    %p598 = scmp.eq.s32.totalorder %s67, 3
    %p599 = scmp.ne.s32.totalorder %s594, %s596
    %p600 = scmp.eq.s32.totalorder %s67, 0
    %p601 = por %p599, %p600
    %p602 = scmp.ne.s32.totalorder %s594, %s596
    %p603 = scmp.eq.s32.totalorder %s72, 3
    %p604 = por %p602, %p603
    %p605 = scmp.ne.s32.totalorder %s596, %s597
    %p606 = scmp.eq.s32.totalorder %s72, 0
    %p607 = por %p605, %p606
    %p608 = scmp.ne.s32.totalorder %s596, %s597
    %p609 = scmp.eq.s32.totalorder %s73, 3
    %p610 = por %p608, %p609
    %p612 = scmp.ne.s32.totalorder %s597, %s611
    %p613 = scmp.eq.s32.totalorder %s73, 0
    %p614 = por %p612, %p613
    %s616 = sadd.s32 %s615, 1
    %p619 = scmp.eq.s32.totalorder %s67, 3
    %p620 = scmp.ne.s32.totalorder %s615, %s617
    %p621 = scmp.eq.s32.totalorder %s67, 0
    %p622 = por %p620, %p621
    %p623 = scmp.ne.s32.totalorder %s615, %s617
    %p624 = scmp.eq.s32.totalorder %s72, 3
    %p625 = por %p623, %p624
    %p626 = scmp.ne.s32.totalorder %s617, %s618
    %p627 = scmp.eq.s32.totalorder %s72, 0
    %p628 = por %p626, %p627
    %p629 = scmp.ne.s32.totalorder %s617, %s618
    %p630 = scmp.eq.s32.totalorder %s73, 3
    %p631 = por %p629, %p630
    %p633 = scmp.ne.s32.totalorder %s618, %s632
    %p634 = scmp.eq.s32.totalorder %s73, 0
    %p635 = por %p633, %p634
    %s637 = sadd.s32 %s636, 1
    %p640 = scmp.eq.s32.totalorder %s67, 3
    %p641 = scmp.ne.s32.totalorder %s636, %s638
    %p642 = scmp.eq.s32.totalorder %s67, 0
    %p643 = por %p641, %p642
    %p644 = scmp.ne.s32.totalorder %s636, %s638
    %p645 = scmp.eq.s32.totalorder %s72, 3
    %p646 = por %p644, %p645
    %p647 = scmp.ne.s32.totalorder %s638, %s639
    %p648 = scmp.eq.s32.totalorder %s72, 0
    %p649 = por %p647, %p648
    %p650 = scmp.ne.s32.totalorder %s638, %s639
    %p651 = scmp.eq.s32.totalorder %s73, 3
    %p652 = por %p650, %p651
    %p654 = scmp.ne.s32.totalorder %s639, %s653
    %p655 = scmp.eq.s32.totalorder %s73, 0
    %p656 = por %p654, %p655
    %s658 = sadd.s32 %s657, 1
    %p661 = scmp.eq.s32.totalorder %s67, 3
    %p662 = scmp.ne.s32.totalorder %s657, %s659
    %p663 = scmp.eq.s32.totalorder %s67, 0
    %p664 = por %p662, %p663
    %p665 = scmp.ne.s32.totalorder %s657, %s659
    %p666 = scmp.eq.s32.totalorder %s72, 3
    %p667 = por %p665, %p666
    %p668 = scmp.ne.s32.totalorder %s659, %s660
    %p669 = scmp.eq.s32.totalorder %s72, 0
    %p670 = por %p668, %p669
    %p671 = scmp.ne.s32.totalorder %s659, %s660
    %p672 = scmp.eq.s32.totalorder %s73, 3
    %p673 = por %p671, %p672
    %p675 = scmp.ne.s32.totalorder %s660, %s674
    %p676 = scmp.eq.s32.totalorder %s73, 0
    %p677 = por %p675, %p676
    %s679 = sadd.s32 %s678, 1
    %p682 = scmp.eq.s32.totalorder %s67, 3
    %p683 = scmp.ne.s32.totalorder %s678, %s680
    %p684 = scmp.eq.s32.totalorder %s67, 0
    %p685 = por %p683, %p684
    %p686 = scmp.ne.s32.totalorder %s678, %s680
    %p687 = scmp.eq.s32.totalorder %s72, 3
    %p688 = por %p686, %p687
    %p689 = scmp.ne.s32.totalorder %s680, %s681
    %p690 = scmp.eq.s32.totalorder %s72, 0
    %p691 = por %p689, %p690
    %p692 = scmp.ne.s32.totalorder %s680, %s681
    %p693 = scmp.eq.s32.totalorder %s73, 3
    %p694 = por %p692, %p693
    %p696 = scmp.ne.s32.totalorder %s681, %s695
    %p697 = scmp.eq.s32.totalorder %s73, 0
    %p698 = por %p696, %p697
    %s699 = ssub.s32 %s67, %s74
    %p700 = scmp.eq.s32.totalorder %s699, 0
    %s702 = sadd.s32 %s701, 1
    %s703 = scalar_select %p700, %s701, %s702
    %p706 = pneg %p700
    %p707 = scmp.eq.s32.totalorder %s67, 3
    %p708 = por %p706, %p707
    %p709 = scmp.ne.s32.totalorder %s701, %s704
    %p710 = scmp.eq.s32.totalorder %s67, 0
    %p711 = por %p709, %p710
    %p712 = scmp.ne.s32.totalorder %s701, %s704
    %p713 = scmp.eq.s32.totalorder %s72, 3
    %p714 = por %p712, %p713
    %p715 = scmp.ne.s32.totalorder %s704, %s705
    %p716 = scmp.eq.s32.totalorder %s72, 0
    %p717 = por %p715, %p716
    %p718 = scmp.ne.s32.totalorder %s704, %s705
    %p719 = scmp.eq.s32.totalorder %s73, 3
    %p720 = por %p718, %p719
    %p722 = scmp.ne.s32.totalorder %s705, %s721
    %p723 = scmp.eq.s32.totalorder %s73, 0
    %p724 = por %p722, %p723
    %p725 = scmp.le.s32.totalorder 1, %s67
    %p726 = scmp.lt.s32.totalorder %s67, 5
    %p727 = pnand %p725, %p726
    %p728 = pneg %p727
    // Predicated region
    $region9: #{renderer_forward.1} parent=5 // pred_check
      _
    $region10: #{renderer_forward.1} parent=5 // pred_check_branch
      %730 = sbr.rel (%p727) target = $region12
    $region11: #{renderer_forward.1} parent=5 // pred_region
      %s731 = ssub.s32 %s67, 1
      // Predicated region
      $region13: #{renderer_forward.1} parent=11 // pred_check
        %p732 = pneg %p166
      $region14: #{renderer_forward.1} parent=11 // pred_check_branch
        %734 = sbr.rel (%p732) target = $region16
      $region15: #{renderer_forward.1} parent=11 // pred_region
        _
      $region16: #{renderer_forward.1} parent=11 // pred_fallthru
        _
      // Predicated region
      $region17: #{renderer_forward.1} parent=11 // pred_check
        %p735 = pneg %p187
      $region18: #{renderer_forward.1} parent=11 // pred_check_branch
        %737 = sbr.rel (%p735) target = $region20
      $region19: #{renderer_forward.1} parent=11 // pred_region
        _
      $region20: #{renderer_forward.1} parent=11 // pred_fallthru
        _
      // Predicated region
      $region21: #{renderer_forward.1} parent=11 // pred_check
        %p738 = pneg %p208
      $region22: #{renderer_forward.1} parent=11 // pred_check_branch
        %740 = sbr.rel (%p738) target = $region24
      $region23: #{renderer_forward.1} parent=11 // pred_region
        _
      $region24: #{renderer_forward.1} parent=11 // pred_fallthru
        _
      // Predicated region
      $region25: #{renderer_forward.1} parent=11 // pred_check
        %p741 = pneg %p229
      $region26: #{renderer_forward.1} parent=11 // pred_check_branch
        %743 = sbr.rel (%p741) target = $region28
      $region27: #{renderer_forward.1} parent=11 // pred_region
        _
      $region28: #{renderer_forward.1} parent=11 // pred_fallthru
        _
      // Predicated region
      $region29: #{renderer_forward.1} parent=11 // pred_check
        %p744 = pneg %p250
      $region30: #{renderer_forward.1} parent=11 // pred_check_branch
        %746 = sbr.rel (%p744) target = $region32
      $region31: #{renderer_forward.1} parent=11 // pred_region
        _
      $region32: #{renderer_forward.1} parent=11 // pred_fallthru
        _
      // Predicated region
      $region33: #{renderer_forward.1} parent=11 // pred_check
        %p747 = pneg %p271
      $region34: #{renderer_forward.1} parent=11 // pred_check_branch
        %749 = sbr.rel (%p747) target = $region36
      $region35: #{renderer_forward.1} parent=11 // pred_region
        _
      $region36: #{renderer_forward.1} parent=11 // pred_fallthru
        _
      // Predicated region
      $region37: #{renderer_forward.1} parent=11 // pred_check
        %p750 = pneg %p292
      $region38: #{renderer_forward.1} parent=11 // pred_check_branch
        %752 = sbr.rel (%p750) target = $region40
      $region39: #{renderer_forward.1} parent=11 // pred_region
        _
      $region40: #{renderer_forward.1} parent=11 // pred_fallthru
        _
      // Predicated region
      $region41: #{renderer_forward.1} parent=11 // pred_check
        %p753 = pneg %p313
      $region42: #{renderer_forward.1} parent=11 // pred_check_branch
        %755 = sbr.rel (%p753) target = $region44
      $region43: #{renderer_forward.1} parent=11 // pred_region
        _
      $region44: #{renderer_forward.1} parent=11 // pred_fallthru
        _
      // Predicated region
      $region45: #{renderer_forward.1} parent=11 // pred_check
        %p756 = pneg %p334
      $region46: #{renderer_forward.1} parent=11 // pred_check_branch
        %758 = sbr.rel (%p756) target = $region48
      $region47: #{renderer_forward.1} parent=11 // pred_region
        _
      $region48: #{renderer_forward.1} parent=11 // pred_fallthru
        _
      // Predicated region
      $region49: #{renderer_forward.1} parent=11 // pred_check
        %p759 = pneg %p355
      $region50: #{renderer_forward.1} parent=11 // pred_check_branch
        %761 = sbr.rel (%p759) target = $region52
      $region51: #{renderer_forward.1} parent=11 // pred_region
        _
      $region52: #{renderer_forward.1} parent=11 // pred_fallthru
        _
      // Predicated region
      $region53: #{renderer_forward.1} parent=11 // pred_check
        %p762 = pneg %p376
      $region54: #{renderer_forward.1} parent=11 // pred_check_branch
        %764 = sbr.rel (%p762) target = $region56
      $region55: #{renderer_forward.1} parent=11 // pred_region
        _
      $region56: #{renderer_forward.1} parent=11 // pred_fallthru
        _
      // Predicated region
      $region57: #{renderer_forward.1} parent=11 // pred_check
        %p765 = pneg %p397
      $region58: #{renderer_forward.1} parent=11 // pred_check_branch
        %767 = sbr.rel (%p765) target = $region60
      $region59: #{renderer_forward.1} parent=11 // pred_region
        _
      $region60: #{renderer_forward.1} parent=11 // pred_fallthru
        _
      // Predicated region
      $region61: #{renderer_forward.1} parent=11 // pred_check
        %p768 = pneg %p418
      $region62: #{renderer_forward.1} parent=11 // pred_check_branch
        %770 = sbr.rel (%p768) target = $region64
      $region63: #{renderer_forward.1} parent=11 // pred_region
        _
      $region64: #{renderer_forward.1} parent=11 // pred_fallthru
        _
      // Predicated region
      $region65: #{renderer_forward.1} parent=11 // pred_check
        %p771 = pneg %p439
      $region66: #{renderer_forward.1} parent=11 // pred_check_branch
        %773 = sbr.rel (%p771) target = $region68
      $region67: #{renderer_forward.1} parent=11 // pred_region
        _
      $region68: #{renderer_forward.1} parent=11 // pred_fallthru
        _
      // Predicated region
      $region69: #{renderer_forward.1} parent=11 // pred_check
        %p774 = pneg %p460
      $region70: #{renderer_forward.1} parent=11 // pred_check_branch
        %776 = sbr.rel (%p774) target = $region72
      $region71: #{renderer_forward.1} parent=11 // pred_region
        _
      $region72: #{renderer_forward.1} parent=11 // pred_fallthru
        _
      // Predicated region
      $region73: #{renderer_forward.1} parent=11 // pred_check
        %p777 = pneg %p481
      $region74: #{renderer_forward.1} parent=11 // pred_check_branch
        %779 = sbr.rel (%p777) target = $region76
      $region75: #{renderer_forward.1} parent=11 // pred_region
        _
      $region76: #{renderer_forward.1} parent=11 // pred_fallthru
        _
      // Predicated region
      $region77: #{renderer_forward.1} parent=11 // pred_check
        %p780 = pneg %p502
      $region78: #{renderer_forward.1} parent=11 // pred_check_branch
        %782 = sbr.rel (%p780) target = $region80
      $region79: #{renderer_forward.1} parent=11 // pred_region
        _
      $region80: #{renderer_forward.1} parent=11 // pred_fallthru
        _
      // Predicated region
      $region81: #{renderer_forward.1} parent=11 // pred_check
        %p783 = pneg %p523
      $region82: #{renderer_forward.1} parent=11 // pred_check_branch
        %785 = sbr.rel (%p783) target = $region84
      $region83: #{renderer_forward.1} parent=11 // pred_region
        _
      $region84: #{renderer_forward.1} parent=11 // pred_fallthru
        _
      // Predicated region
      $region85: #{renderer_forward.1} parent=11 // pred_check
        %p786 = pneg %p544
      $region86: #{renderer_forward.1} parent=11 // pred_check_branch
        %788 = sbr.rel (%p786) target = $region88
      $region87: #{renderer_forward.1} parent=11 // pred_region
        _
      $region88: #{renderer_forward.1} parent=11 // pred_fallthru
        _
      // Predicated region
      $region89: #{renderer_forward.1} parent=11 // pred_check
        %p789 = pneg %p565
      $region90: #{renderer_forward.1} parent=11 // pred_check_branch
        %791 = sbr.rel (%p789) target = $region92
      $region91: #{renderer_forward.1} parent=11 // pred_region
        _
      $region92: #{renderer_forward.1} parent=11 // pred_fallthru
        _
      // Predicated region
      $region93: #{renderer_forward.1} parent=11 // pred_check
        %p792 = pneg %p586
      $region94: #{renderer_forward.1} parent=11 // pred_check_branch
        %794 = sbr.rel (%p792) target = $region96
      $region95: #{renderer_forward.1} parent=11 // pred_region
        _
      $region96: #{renderer_forward.1} parent=11 // pred_fallthru
        _
      // Predicated region
      $region97: #{renderer_forward.1} parent=11 // pred_check
        %p795 = pneg %p607
      $region98: #{renderer_forward.1} parent=11 // pred_check_branch
        %797 = sbr.rel (%p795) target = $region100
      $region99: #{renderer_forward.1} parent=11 // pred_region
        _
      $region100: #{renderer_forward.1} parent=11 // pred_fallthru
        _
      // Predicated region
      $region101: #{renderer_forward.1} parent=11 // pred_check
        %p798 = pneg %p628
      $region102: #{renderer_forward.1} parent=11 // pred_check_branch
        %800 = sbr.rel (%p798) target = $region104
      $region103: #{renderer_forward.1} parent=11 // pred_region
        _
      $region104: #{renderer_forward.1} parent=11 // pred_fallthru
        _
      // Predicated region
      $region105: #{renderer_forward.1} parent=11 // pred_check
        %p801 = pneg %p649
      $region106: #{renderer_forward.1} parent=11 // pred_check_branch
        %803 = sbr.rel (%p801) target = $region108
      $region107: #{renderer_forward.1} parent=11 // pred_region
        _
      $region108: #{renderer_forward.1} parent=11 // pred_fallthru
        _
      // Predicated region
      $region109: #{renderer_forward.1} parent=11 // pred_check
        %p804 = pneg %p670
      $region110: #{renderer_forward.1} parent=11 // pred_check_branch
        %806 = sbr.rel (%p804) target = $region112
      $region111: #{renderer_forward.1} parent=11 // pred_region
        _
      $region112: #{renderer_forward.1} parent=11 // pred_fallthru
        _
      // Predicated region
      $region113: #{renderer_forward.1} parent=11 // pred_check
        %p807 = pneg %p691
      $region114: #{renderer_forward.1} parent=11 // pred_check_branch
        %809 = sbr.rel (%p807) target = $region116
      $region115: #{renderer_forward.1} parent=11 // pred_region
        _
      $region116: #{renderer_forward.1} parent=11 // pred_fallthru
        _
    $region12: #{renderer_forward.1} parent=5 // pred_fallthru
      _
    %p810 = scmp.lt.s32.totalorder %s67, 4
    // Predicated region
    $region117: #{renderer_forward.1} parent=5 // pred_check
      %p811 = pneg %p810
    $region118: #{renderer_forward.1} parent=5 // pred_check_branch
      %813 = sbr.rel (%p811) target = $region120
    $region119: #{renderer_forward.1} parent=5 // pred_region
      // Predicated region
      $region121: #{renderer_forward.1} parent=119 // pred_check
        %p814 = pneg %p87
      $region122: #{renderer_forward.1} parent=119 // pred_check_branch
        %816 = sbr.rel (%p814) target = $region124
      $region123: #{renderer_forward.1} parent=119 // pred_region
        %s817 = smul.u32 64, %s67
        %p818 = scmp.lt.s32.totalorder %s817, 255
        %s819 = scalar_select %p818, %s817, 255
        %s820 = smul.addr %s819, 4
        %s821 = scalar_lea.vmem %s1, %s820
        %s822 = smul.u32 64, %s67
      $region124: #{renderer_forward.1} parent=119 // pred_fallthru
        _
      // Predicated region
      $region125: #{renderer_forward.1} parent=119 // pred_check
        %p823 = pneg %p113
      $region126: #{renderer_forward.1} parent=119 // pred_check_branch
        %825 = sbr.rel (%p823) target = $region128
      $region127: #{renderer_forward.1} parent=119 // pred_region
        %s826 = smul.u32 64, %s67
        %p827 = scmp.lt.s32.totalorder %s826, 255
        %s828 = scalar_select %p827, %s826, 255
        %s829 = smul.addr %s828, 4
        %s830 = scalar_lea.vmem %s3, %s829
        %s831 = smul.u32 64, %s67
      $region128: #{renderer_forward.1} parent=119 // pred_fallthru
        _
      // Predicated region
      $region129: #{renderer_forward.1} parent=119 // pred_check
        %p832 = pneg %p139
      $region130: #{renderer_forward.1} parent=119 // pred_check_branch
        %834 = sbr.rel (%p832) target = $region132
      $region131: #{renderer_forward.1} parent=119 // pred_region
        %s835 = smul.u32 64, %s67
        %p836 = scmp.lt.s32.totalorder %s835, 255
        %s837 = scalar_select %p836, %s835, 255
        %s838 = smul.addr %s837, 4
        %s839 = scalar_lea.vmem %s5, %s838
        %s840 = smul.u32 64, %s67
      $region132: #{renderer_forward.1} parent=119 // pred_fallthru
        _
    $region120: #{renderer_forward.1} parent=5 // pred_fallthru
      _
    %p841 = scmp.le.s32.totalorder 1, %s67
    %p842 = scmp.lt.s32.totalorder %s67, 5
    %p843 = pnand %p841, %p842
    %p844 = pneg %p843
    // Predicated region
    $region133: #{renderer_forward.1} parent=5 // pred_check
      _
    $region134: #{renderer_forward.1} parent=5 // pred_check_branch
      %846 = sbr.rel (%p843) target = $region136
    $region135: #{renderer_forward.1} parent=5 // pred_region
      %s847 = ssub.s32 %s67, 1
      %s848 = smul.u32 64, %s72
      %p849 = scmp.lt.s32.totalorder %s848, 255
      %s850 = scalar_select %p849, %s848, 255
      %s851 = smul.addr %s850, 4
      %s852 = scalar_lea.vmem %s1, %s851
      %p853 = pneg %p93
      %p854 = pneg %p90
      %s855 = smul.u32 64, %s72
      %p856 = scmp.lt.s32.totalorder %s855, 255
      %s857 = scalar_select %p856, %s855, 255
      %s858 = smul.addr %s857, 4
      %s859 = scalar_lea.vmem %s3, %s858
      %p860 = pneg %p119
      %p861 = pneg %p116
      %s862 = smul.u32 64, %s72
      %p863 = scmp.lt.s32.totalorder %s862, 255
      %s864 = scalar_select %p863, %s862, 255
      %s865 = smul.addr %s864, 4
      %s866 = scalar_lea.vmem %s5, %s865
      %p867 = pneg %p145
      %p868 = pneg %p142
      %p869 = pneg %p166
      %p870 = pneg %p163
      %p871 = pneg %p187
      %p872 = pneg %p184
      %p873 = pneg %p208
      %p874 = pneg %p205
      %p875 = pneg %p229
      %p876 = pneg %p226
      %p877 = pneg %p250
      %p878 = pneg %p247
      %p879 = pneg %p271
      %p880 = pneg %p268
      %p881 = pneg %p292
      %p882 = pneg %p289
      %p883 = pneg %p313
      %p884 = pneg %p310
      %p885 = pneg %p334
      %p886 = pneg %p331
      %p887 = pneg %p355
      %p888 = pneg %p352
      %p889 = pneg %p376
      %p890 = pneg %p373
      %p891 = pneg %p397
      %p892 = pneg %p394
      %p893 = pneg %p418
      %p894 = pneg %p415
      %p895 = pneg %p439
      %p896 = pneg %p436
      %p897 = pneg %p460
      %p898 = pneg %p457
      %p899 = pneg %p481
      %p900 = pneg %p478
      %p901 = pneg %p502
      %p902 = pneg %p499
      %p903 = pneg %p523
      %p904 = pneg %p520
      %p905 = pneg %p544
      %p906 = pneg %p541
      %p907 = pneg %p565
      %p908 = pneg %p562
      %p909 = pneg %p586
      %p910 = pneg %p583
      %p911 = pneg %p607
      %p912 = pneg %p604
      %p913 = pneg %p628
      %p914 = pneg %p625
      %p915 = pneg %p649
      %p916 = pneg %p646
      %p917 = pneg %p670
      %p918 = pneg %p667
      %p919 = pneg %p691
      %p920 = pneg %p688
      %p921 = pneg %p717
      %p922 = pneg %p714
      %s923 = smul.u32 64, %s72
      %p924 = scmp.lt.s32.totalorder %s923, 255
      %s925 = scalar_select %p924, %s923, 255
      %s926 = smul.addr %s925, 8
      %s927 = scalar_lea.vmem %s59, %s926
      %s928 = smul.u32 64, %s72
      %p929 = scmp.lt.s32.totalorder %s928, 255
      %s930 = scalar_select %p929, %s928, 255
      %s931 = smul.addr %s930, 4
      %s932 = scalar_lea.vmem %s1, %s931
      %s933 = smul.u32 64, %s72
      %s934 = smul.u32 64, %s72
      %p935 = scmp.lt.s32.totalorder %s934, 255
      %s936 = scalar_select %p935, %s934, 255
      %s937 = smul.addr %s936, 4
      %s938 = scalar_lea.vmem %s3, %s937
      %s939 = smul.u32 64, %s72
      %s940 = smul.u32 64, %s72
      %p941 = scmp.lt.s32.totalorder %s940, 255
      %s942 = scalar_select %p941, %s940, 255
      %s943 = smul.addr %s942, 4
      %s944 = scalar_lea.vmem %s5, %s943
      %s945 = smul.u32 64, %s72
      %s946 = smul.u32 64, %s72
      %p947 = scmp.lt.s32.totalorder %s946, 255
      %s948 = scalar_select %p947, %s946, 255
      %s949 = smul.addr %s948, 8
      %s950 = scalar_lea.vmem %s59, %s949
      %s951 = smul.u32 64, %s72
      %v953 = vld [vmem:[%s932] sm:$0xf]
      %v954 = vld [vmem:[%s932 + $0x4] sm:$0xf]
      %v955 = vld [vmem:[%s932 + $0x8] sm:$0xf]
      %v956 = vld [vmem:[%s932 + $0xc] sm:$0xf]
      %v957 = vld [vmem:[%s932 + $0x10] sm:$0xf]
      %v958 = vld [vmem:[%s932 + $0x14] sm:$0xf]
      %v959 = vld [vmem:[%s932 + $0x18] sm:$0xf]
      %v960 = vld [vmem:[%s932 + $0x1c] sm:$0xf]
      %v961 = vld [vmem:[%s932 + $0x20] sm:$0xf]
      %v962 = vld [vmem:[%s932 + $0x24] sm:$0xf]
      %v963 = vld [vmem:[%s932 + $0x28] sm:$0xf]
      %v964 = vld [vmem:[%s932 + $0x2c] sm:$0xf]
      %v965 = vld [vmem:[%s932 + $0x30] sm:$0xf]
      %v966 = vld [vmem:[%s932 + $0x34] sm:$0xf]
      %v967 = vld [vmem:[%s932 + $0x38] sm:$0xf]
      %v968 = vld [vmem:[%s932 + $0x3c] sm:$0xf]
      %v969 = vld [vmem:[%s932 + $0x40] sm:$0xf]
      %v970 = vld [vmem:[%s932 + $0x44] sm:$0xf]
      %v971 = vld [vmem:[%s932 + $0x48] sm:$0xf]
      %v972 = vld [vmem:[%s932 + $0x4c] sm:$0xf]
      %v973 = vld [vmem:[%s932 + $0x50] sm:$0xf]
      %v974 = vld [vmem:[%s932 + $0x54] sm:$0xf]
      %v975 = vld [vmem:[%s932 + $0x58] sm:$0xf]
      %v976 = vld [vmem:[%s932 + $0x5c] sm:$0xf]
      %v977 = vld [vmem:[%s932 + $0x60] sm:$0xf]
      %v978 = vld [vmem:[%s932 + $0x64] sm:$0xf]
      %v979 = vld [vmem:[%s932 + $0x68] sm:$0xf]
      %v980 = vld [vmem:[%s932 + $0x6c] sm:$0xf]
      %v981 = vld [vmem:[%s932 + $0x70] sm:$0xf]
      %v982 = vld [vmem:[%s932 + $0x74] sm:$0xf]
      %v983 = vld [vmem:[%s932 + $0x78] sm:$0xf]
      %v984 = vld [vmem:[%s932 + $0x7c] sm:$0xf]
      %v985 = vld [vmem:[%s932 + $0x80] sm:$0xf]
      %v986 = vld [vmem:[%s932 + $0x84] sm:$0xf]
      %v987 = vld [vmem:[%s932 + $0x88] sm:$0xf]
      %v988 = vld [vmem:[%s932 + $0x8c] sm:$0xf]
      %v989 = vld [vmem:[%s932 + $0x90] sm:$0xf]
      %v990 = vld [vmem:[%s932 + $0x94] sm:$0xf]
      %v991 = vld [vmem:[%s932 + $0x98] sm:$0xf]
      %v992 = vld [vmem:[%s932 + $0x9c] sm:$0xf]
      %v993 = vld [vmem:[%s932 + $0xa0] sm:$0xf]
      %v994 = vld [vmem:[%s932 + $0xa4] sm:$0xf]
      %v995 = vld [vmem:[%s932 + $0xa8] sm:$0xf]
      %v996 = vld [vmem:[%s932 + $0xac] sm:$0xf]
      %v997 = vld [vmem:[%s932 + $0xb0] sm:$0xf]
      %v998 = vld [vmem:[%s932 + $0xb4] sm:$0xf]
      %v999 = vld [vmem:[%s932 + $0xb8] sm:$0xf]
      %v1000 = vld [vmem:[%s932 + $0xbc] sm:$0xf]
      %v1001 = vld [vmem:[%s932 + $0xc0] sm:$0xf]
      %v1002 = vld [vmem:[%s932 + $0xc4] sm:$0xf]
      %v1003 = vld [vmem:[%s932 + $0xc8] sm:$0xf]
      %v1004 = vld [vmem:[%s932 + $0xcc] sm:$0xf]
      %v1005 = vld [vmem:[%s932 + $0xd0] sm:$0xf]
      %v1006 = vld [vmem:[%s932 + $0xd4] sm:$0xf]
      %v1007 = vld [vmem:[%s932 + $0xd8] sm:$0xf]
      %v1008 = vld [vmem:[%s932 + $0xdc] sm:$0xf]
      %v1009 = vld [vmem:[%s932 + $0xe0] sm:$0xf]
      %v1010 = vld [vmem:[%s932 + $0xe4] sm:$0xf]
      %v1011 = vld [vmem:[%s932 + $0xe8] sm:$0xf]
      %v1012 = vld [vmem:[%s932 + $0xec] sm:$0xf]
      %v1013 = vld [vmem:[%s932 + $0xf0] sm:$0xf]
      %v1014 = vld [vmem:[%s932 + $0xf4] sm:$0xf]
      %v1015 = vld [vmem:[%s932 + $0xf8] sm:$0xf]
      %v1016 = vld [vmem:[%s932 + $0xfc] sm:$0xf]
      %v1017 = vld [vmem:[%s938] sm:$0xf]
      %v1018 = vld [vmem:[%s938 + $0x4] sm:$0xf]
      %v1019 = vld [vmem:[%s938 + $0x8] sm:$0xf]
      %v1020 = vld [vmem:[%s938 + $0xc] sm:$0xf]
      %v1021 = vld [vmem:[%s938 + $0x10] sm:$0xf]
      %v1022 = vld [vmem:[%s938 + $0x14] sm:$0xf]
      %v1023 = vld [vmem:[%s938 + $0x18] sm:$0xf]
      %v1024 = vld [vmem:[%s938 + $0x1c] sm:$0xf]
      %v1025 = vld [vmem:[%s938 + $0x20] sm:$0xf]
      %v1026 = vld [vmem:[%s938 + $0x24] sm:$0xf]
      %v1027 = vld [vmem:[%s938 + $0x28] sm:$0xf]
      %v1028 = vld [vmem:[%s938 + $0x2c] sm:$0xf]
      %v1029 = vld [vmem:[%s938 + $0x30] sm:$0xf]
      %v1030 = vld [vmem:[%s938 + $0x34] sm:$0xf]
      %v1031 = vld [vmem:[%s938 + $0x38] sm:$0xf]
      %v1032 = vld [vmem:[%s938 + $0x3c] sm:$0xf]
      %v1033 = vld [vmem:[%s938 + $0x40] sm:$0xf]
      %v1034 = vld [vmem:[%s938 + $0x44] sm:$0xf]
      %v1035 = vld [vmem:[%s938 + $0x48] sm:$0xf]
      %v1036 = vld [vmem:[%s938 + $0x4c] sm:$0xf]
      %v1037 = vld [vmem:[%s938 + $0x50] sm:$0xf]
      %v1038 = vld [vmem:[%s938 + $0x54] sm:$0xf]
      %v1039 = vld [vmem:[%s938 + $0x58] sm:$0xf]
      %v1040 = vld [vmem:[%s938 + $0x5c] sm:$0xf]
      %v1041 = vld [vmem:[%s938 + $0x60] sm:$0xf]
      %v1042 = vld [vmem:[%s938 + $0x64] sm:$0xf]
      %v1043 = vld [vmem:[%s938 + $0x68] sm:$0xf]
      %v1044 = vld [vmem:[%s938 + $0x6c] sm:$0xf]
      %v1045 = vld [vmem:[%s938 + $0x70] sm:$0xf]
      %v1046 = vld [vmem:[%s938 + $0x74] sm:$0xf]
      %v1047 = vld [vmem:[%s938 + $0x78] sm:$0xf]
      %v1048 = vld [vmem:[%s938 + $0x7c] sm:$0xf]
      %v1049 = vld [vmem:[%s938 + $0x80] sm:$0xf]
      %v1050 = vld [vmem:[%s938 + $0x84] sm:$0xf]
      %v1051 = vld [vmem:[%s938 + $0x88] sm:$0xf]
      %v1052 = vld [vmem:[%s938 + $0x8c] sm:$0xf]
      %v1053 = vld [vmem:[%s938 + $0x90] sm:$0xf]
      %v1054 = vld [vmem:[%s938 + $0x94] sm:$0xf]
      %v1055 = vld [vmem:[%s938 + $0x98] sm:$0xf]
      %v1056 = vld [vmem:[%s938 + $0x9c] sm:$0xf]
      %v1057 = vld [vmem:[%s938 + $0xa0] sm:$0xf]
      %v1058 = vld [vmem:[%s938 + $0xa4] sm:$0xf]
      %v1059 = vld [vmem:[%s938 + $0xa8] sm:$0xf]
      %v1060 = vld [vmem:[%s938 + $0xac] sm:$0xf]
      %v1061 = vld [vmem:[%s938 + $0xb0] sm:$0xf]
      %v1062 = vld [vmem:[%s938 + $0xb4] sm:$0xf]
      %v1063 = vld [vmem:[%s938 + $0xb8] sm:$0xf]
      %v1064 = vld [vmem:[%s938 + $0xbc] sm:$0xf]
      %v1065 = vld [vmem:[%s938 + $0xc0] sm:$0xf]
      %v1066 = vld [vmem:[%s938 + $0xc4] sm:$0xf]
      %v1067 = vld [vmem:[%s938 + $0xc8] sm:$0xf]
      %v1068 = vld [vmem:[%s938 + $0xcc] sm:$0xf]
      %v1069 = vld [vmem:[%s938 + $0xd0] sm:$0xf]
      %v1070 = vld [vmem:[%s938 + $0xd4] sm:$0xf]
      %v1071 = vld [vmem:[%s938 + $0xd8] sm:$0xf]
      %v1072 = vld [vmem:[%s938 + $0xdc] sm:$0xf]
      %v1073 = vld [vmem:[%s938 + $0xe0] sm:$0xf]
      %v1074 = vld [vmem:[%s938 + $0xe4] sm:$0xf]
      %v1075 = vld [vmem:[%s938 + $0xe8] sm:$0xf]
      %v1076 = vld [vmem:[%s938 + $0xec] sm:$0xf]
      %v1077 = vld [vmem:[%s938 + $0xf0] sm:$0xf]
      %v1078 = vld [vmem:[%s938 + $0xf4] sm:$0xf]
      %v1079 = vld [vmem:[%s938 + $0xf8] sm:$0xf]
      %v1080 = vld [vmem:[%s938 + $0xfc] sm:$0xf]
      %v1081 = vld [vmem:[%s944] sm:$0xf]
      %v1082 = vld [vmem:[%s944 + $0x4] sm:$0xf]
      %v1083 = vld [vmem:[%s944 + $0x8] sm:$0xf]
      %v1084 = vld [vmem:[%s944 + $0xc] sm:$0xf]
      %v1085 = vld [vmem:[%s944 + $0x10] sm:$0xf]
      %v1086 = vld [vmem:[%s944 + $0x14] sm:$0xf]
      %v1087 = vld [vmem:[%s944 + $0x18] sm:$0xf]
      %v1088 = vld [vmem:[%s944 + $0x1c] sm:$0xf]
      %v1089 = vld [vmem:[%s944 + $0x20] sm:$0xf]
      %v1090 = vld [vmem:[%s944 + $0x24] sm:$0xf]
      %v1091 = vld [vmem:[%s944 + $0x28] sm:$0xf]
      %v1092 = vld [vmem:[%s944 + $0x2c] sm:$0xf]
      %v1093 = vld [vmem:[%s944 + $0x30] sm:$0xf]
      %v1094 = vld [vmem:[%s944 + $0x34] sm:$0xf]
      %v1095 = vld [vmem:[%s944 + $0x38] sm:$0xf]
      %v1096 = vld [vmem:[%s944 + $0x3c] sm:$0xf]
      %v1097 = vld [vmem:[%s944 + $0x40] sm:$0xf]
      %v1098 = vld [vmem:[%s944 + $0x44] sm:$0xf]
      %v1099 = vld [vmem:[%s944 + $0x48] sm:$0xf]
      %v1100 = vld [vmem:[%s944 + $0x4c] sm:$0xf]
      %v1101 = vld [vmem:[%s944 + $0x50] sm:$0xf]
      %v1102 = vld [vmem:[%s944 + $0x54] sm:$0xf]
      %v1103 = vld [vmem:[%s944 + $0x58] sm:$0xf]
      %v1104 = vld [vmem:[%s944 + $0x5c] sm:$0xf]
      %v1105 = vld [vmem:[%s944 + $0x60] sm:$0xf]
      %v1106 = vld [vmem:[%s944 + $0x64] sm:$0xf]
      %v1107 = vld [vmem:[%s944 + $0x68] sm:$0xf]
      %v1108 = vld [vmem:[%s944 + $0x6c] sm:$0xf]
      %v1109 = vld [vmem:[%s944 + $0x70] sm:$0xf]
      %v1110 = vld [vmem:[%s944 + $0x74] sm:$0xf]
      %v1111 = vld [vmem:[%s944 + $0x78] sm:$0xf]
      %v1112 = vld [vmem:[%s944 + $0x7c] sm:$0xf]
      %v1113 = vld [vmem:[%s944 + $0x80] sm:$0xf]
      %v1114 = vld [vmem:[%s944 + $0x84] sm:$0xf]
      %v1115 = vld [vmem:[%s944 + $0x88] sm:$0xf]
      %v1116 = vld [vmem:[%s944 + $0x8c] sm:$0xf]
      %v1117 = vld [vmem:[%s944 + $0x90] sm:$0xf]
      %v1118 = vld [vmem:[%s944 + $0x94] sm:$0xf]
      %v1119 = vld [vmem:[%s944 + $0x98] sm:$0xf]
      %v1120 = vld [vmem:[%s944 + $0x9c] sm:$0xf]
      %v1121 = vld [vmem:[%s944 + $0xa0] sm:$0xf]
      %v1122 = vld [vmem:[%s944 + $0xa4] sm:$0xf]
      %v1123 = vld [vmem:[%s944 + $0xa8] sm:$0xf]
      %v1124 = vld [vmem:[%s944 + $0xac] sm:$0xf]
      %v1125 = vld [vmem:[%s944 + $0xb0] sm:$0xf]
      %v1126 = vld [vmem:[%s944 + $0xb4] sm:$0xf]
      %v1127 = vld [vmem:[%s944 + $0xb8] sm:$0xf]
      %v1128 = vld [vmem:[%s944 + $0xbc] sm:$0xf]
      %v1129 = vld [vmem:[%s944 + $0xc0] sm:$0xf]
      %v1130 = vld [vmem:[%s944 + $0xc4] sm:$0xf]
      %v1131 = vld [vmem:[%s944 + $0xc8] sm:$0xf]
      %v1132 = vld [vmem:[%s944 + $0xcc] sm:$0xf]
      %v1133 = vld [vmem:[%s944 + $0xd0] sm:$0xf]
      %v1134 = vld [vmem:[%s944 + $0xd4] sm:$0xf]
      %v1135 = vld [vmem:[%s944 + $0xd8] sm:$0xf]
      %v1136 = vld [vmem:[%s944 + $0xdc] sm:$0xf]
      %v1137 = vld [vmem:[%s944 + $0xe0] sm:$0xf]
      %v1138 = vld [vmem:[%s944 + $0xe4] sm:$0xf]
      %v1139 = vld [vmem:[%s944 + $0xe8] sm:$0xf]
      %v1140 = vld [vmem:[%s944 + $0xec] sm:$0xf]
      %v1141 = vld [vmem:[%s944 + $0xf0] sm:$0xf]
      %v1142 = vld [vmem:[%s944 + $0xf4] sm:$0xf]
      %v1143 = vld [vmem:[%s944 + $0xf8] sm:$0xf]
      %v1144 = vld [vmem:[%s944 + $0xfc] sm:$0xf]
      %v1145 = vld [vmem:[%s7] sm:$0xff]
      %v1146 = vld [vmem:[%s7 + $0x8] sm:$0xff]
      %v1147 = vld [vmem:[%s7 + $0x10] sm:$0xff]
      %v1148 = vld [vmem:[%s9] sm:$0x3]
      %v1150 = vlaneseq
      %v1151 = vshrl.u32 %v1150, 7
      %v1152 = vsub.s32 0, %v1151
      %v1153 = vrot.slane %v1148, %v1152
      %v1154 = vlaneseq
      %v1155 = vshrl.u32 %v1154, 7
      %v1156 = vsub.s32 1, %v1155
      %v1157 = vrot.slane %v1148, %v1156
      %v1224 = vunpack.c.l.b16 %v1081
      %v1225 = vunpack.c.l.b16 %v1082
      %v1226 = vunpack.c.l.b16 %v1083
      %v1227 = vunpack.c.l.b16 %v1084
      %v1228 = vunpack.c.l.b16 %v1085
      %v1229 = vunpack.c.l.b16 %v1086
      %v1230 = vunpack.c.l.b16 %v1087
      %v1231 = vunpack.c.l.b16 %v1088
      %v1232 = vunpack.c.l.b16 %v1089
      %v1233 = vunpack.c.l.b16 %v1090
      %v1234 = vunpack.c.l.b16 %v1091
      %v1235 = vunpack.c.l.b16 %v1092
      %v1236 = vunpack.c.l.b16 %v1093
      %v1237 = vunpack.c.l.b16 %v1094
      %v1238 = vunpack.c.l.b16 %v1095
      %v1239 = vunpack.c.l.b16 %v1096
      %v1240 = vunpack.c.l.b16 %v1097
      %v1241 = vunpack.c.l.b16 %v1098
      %v1242 = vunpack.c.l.b16 %v1099
      %v1243 = vunpack.c.l.b16 %v1100
      %v1244 = vunpack.c.l.b16 %v1101
      %v1245 = vunpack.c.l.b16 %v1102
      %v1246 = vunpack.c.l.b16 %v1103
      %v1247 = vunpack.c.l.b16 %v1104
      %v1248 = vunpack.c.l.b16 %v1105
      %v1249 = vunpack.c.l.b16 %v1106
      %v1250 = vunpack.c.l.b16 %v1107
      %v1251 = vunpack.c.l.b16 %v1108
      %v1252 = vunpack.c.l.b16 %v1109
      %v1253 = vunpack.c.l.b16 %v1110
      %v1254 = vunpack.c.l.b16 %v1111
      %v1255 = vunpack.c.l.b16 %v1112
      %v1256 = vunpack.c.l.b16 %v1113
      %v1257 = vunpack.c.l.b16 %v1114
      %v1258 = vunpack.c.l.b16 %v1115
      %v1259 = vunpack.c.l.b16 %v1116
      %v1260 = vunpack.c.l.b16 %v1117
      %v1261 = vunpack.c.l.b16 %v1118
      %v1262 = vunpack.c.l.b16 %v1119
      %v1263 = vunpack.c.l.b16 %v1120
      %v1264 = vunpack.c.l.b16 %v1121
      %v1265 = vunpack.c.l.b16 %v1122
      %v1266 = vunpack.c.l.b16 %v1123
      %v1267 = vunpack.c.l.b16 %v1124
      %v1268 = vunpack.c.l.b16 %v1125
      %v1269 = vunpack.c.l.b16 %v1126
      %v1270 = vunpack.c.l.b16 %v1127
      %v1271 = vunpack.c.l.b16 %v1128
      %v1272 = vunpack.c.l.b16 %v1129
      %v1273 = vunpack.c.l.b16 %v1130
      %v1274 = vunpack.c.l.b16 %v1131
      %v1275 = vunpack.c.l.b16 %v1132
      %v1276 = vunpack.c.l.b16 %v1133
      %v1277 = vunpack.c.l.b16 %v1134
      %v1278 = vunpack.c.l.b16 %v1135
      %v1279 = vunpack.c.l.b16 %v1136
      %v1280 = vunpack.c.l.b16 %v1137
      %v1281 = vunpack.c.l.b16 %v1138
      %v1282 = vunpack.c.l.b16 %v1139
      %v1283 = vunpack.c.l.b16 %v1140
      %v1284 = vunpack.c.l.b16 %v1141
      %v1285 = vunpack.c.l.b16 %v1142
      %v1286 = vunpack.c.l.b16 %v1143
      %v1287 = vunpack.c.l.b16 %v1144
      %v1288 = vpack.c.b16 %v1225, %v1224
      %v1289 = vpack.c.b16 %v1227, %v1226
      %v1290 = vpack.c.b16 %v1229, %v1228
      %v1291 = vpack.c.b16 %v1231, %v1230
      %v1292 = vpack.c.b16 %v1233, %v1232
      %v1293 = vpack.c.b16 %v1235, %v1234
      %v1294 = vpack.c.b16 %v1237, %v1236
      %v1295 = vpack.c.b16 %v1239, %v1238
      %v1296 = vpack.c.b16 %v1241, %v1240
      %v1297 = vpack.c.b16 %v1243, %v1242
      %v1298 = vpack.c.b16 %v1245, %v1244
      %v1299 = vpack.c.b16 %v1247, %v1246
      %v1300 = vpack.c.b16 %v1249, %v1248
      %v1301 = vpack.c.b16 %v1251, %v1250
      %v1302 = vpack.c.b16 %v1253, %v1252
      %v1303 = vpack.c.b16 %v1255, %v1254
      %v1304 = vpack.c.b16 %v1257, %v1256
      %v1305 = vpack.c.b16 %v1259, %v1258
      %v1306 = vpack.c.b16 %v1261, %v1260
      %v1307 = vpack.c.b16 %v1263, %v1262
      %v1308 = vpack.c.b16 %v1265, %v1264
      %v1309 = vpack.c.b16 %v1267, %v1266
      %v1310 = vpack.c.b16 %v1269, %v1268
      %v1311 = vpack.c.b16 %v1271, %v1270
      %v1312 = vpack.c.b16 %v1273, %v1272
      %v1313 = vpack.c.b16 %v1275, %v1274
      %v1314 = vpack.c.b16 %v1277, %v1276
      %v1315 = vpack.c.b16 %v1279, %v1278
      %v1316 = vpack.c.b16 %v1281, %v1280
      %v1317 = vpack.c.b16 %v1283, %v1282
      %v1318 = vpack.c.b16 %v1285, %v1284
      %v1319 = vpack.c.b16 %v1287, %v1286
      %v1323 = vunpack.c.l.b16 %v1145
      %v1324 = vunpack.c.h.b16 %v1145
      %v1325 = vunpack.c.l.b16 %v1146
      %v1326 = vunpack.c.h.b16 %v1146
      %v1327 = vunpack.c.l.b16 %v1147
      %v1328 = vunpack.c.h.b16 %v1147
      %v1329 = vpack.c.b16 %v1325, %v1323
      %v1330 = vpack.c.b16 %v1326, %v1324
      %v1331 = vpack.c.b16 %v1327, %v1327
      %v1332 = vpack.c.b16 %v1328, %v1328
      %vm1335 = vcmask 195584
      %v1337 = vsel %vm1335, %v1288, 0
      %v1340 = vsel %vm1335, %v1289, 0
      %v1343 = vsel %vm1335, %v1290, 0
      %v1346 = vsel %vm1335, %v1291, 0
      %v1349 = vsel %vm1335, %v1292, 0
      %v1352 = vsel %vm1335, %v1293, 0
      %v1355 = vsel %vm1335, %v1294, 0
      %v1358 = vsel %vm1335, %v1295, 0
      %v1361 = vsel %vm1335, %v1296, 0
      %v1364 = vsel %vm1335, %v1297, 0
      %v1367 = vsel %vm1335, %v1298, 0
      %v1370 = vsel %vm1335, %v1299, 0
      %v1373 = vsel %vm1335, %v1300, 0
      %v1376 = vsel %vm1335, %v1301, 0
      %v1379 = vsel %vm1335, %v1302, 0
      %v1382 = vsel %vm1335, %v1303, 0
      %v1385 = vsel %vm1335, %v1304, 0
      %v1388 = vsel %vm1335, %v1305, 0
      %v1391 = vsel %vm1335, %v1306, 0
      %v1394 = vsel %vm1335, %v1307, 0
      %v1397 = vsel %vm1335, %v1308, 0
      %v1400 = vsel %vm1335, %v1309, 0
      %v1403 = vsel %vm1335, %v1310, 0
      %v1406 = vsel %vm1335, %v1311, 0
      %v1409 = vsel %vm1335, %v1312, 0
      %v1412 = vsel %vm1335, %v1313, 0
      %v1415 = vsel %vm1335, %v1314, 0
      %v1418 = vsel %vm1335, %v1315, 0
      %v1421 = vsel %vm1335, %v1316, 0
      %v1424 = vsel %vm1335, %v1317, 0
      %v1427 = vsel %vm1335, %v1318, 0
      %v1430 = vsel %vm1335, %v1319, 0
      %vm1432 = vcmask 1043456
      %v1434 = vsel %vm1432, %v1331, 0
      %v1437 = vsel %vm1432, %v1332, 0
      %1439 = vmatprep.subr.bf16.mxu0 0
      %1440 = vmatpush1.bf16.msra.mxu0 0
      %1441 = vmatprep.subr.bf16.mxu0 0
      %1442 = vmatpush1.bf16.msra.mxu0 0
      %1443 = vmatprep.subr.bf16.mxu0 0
      %1444 = vmatpush1.bf16.msra.mxu0 0
      %1445 = vmatprep.subr.bf16.mxu0 0
      %1446 = vmatpush1.bf16.msra.mxu0 0
      %1447 = vmatprep.subr.bf16.mxu0 0
      %1448 = vmatpush1.bf16.msra.mxu0 0
      %1449 = vmatprep.subr.bf16.mxu0 0
      %1450 = vmatpush1.bf16.msra.mxu0 0
      %1451 = vmatprep.subr.bf16.mxu0 %v1437
      %1452 = vmatpush1.bf16.msra.mxu0 %v1434
      %1453 = vmatprep.subr.bf16.mxu0 %v1330
      %1454 = vmatpush1.bf16.msra.mxu0 %v1329
      %1455 = vmatprep.subr.bf16.mxu0 0
      %1456 = vmatpush2.bf16.msra.mxu0 0
      %1457 = vmatprep.subr.bf16.mxu0 0
      %1458 = vmatpush2.bf16.msra.mxu0 0
      %1459 = vmatprep.subr.bf16.mxu0 0
      %1460 = vmatpush2.bf16.msra.mxu0 0
      %1461 = vmatprep.subr.bf16.mxu0 0
      %1462 = vmatpush2.bf16.msra.mxu0 0
      %1463 = vmatprep.subr.bf16.mxu0 0
      %1464 = vmatpush2.bf16.msra.mxu0 0
      %1465 = vmatprep.subr.bf16.mxu0 0
      %1466 = vmatpush2.bf16.msra.mxu0 0
      %1467 = vmatprep.subr.bf16.mxu0 0
      %1468 = vmatpush2.bf16.msra.mxu0 0
      %1469 = vmatprep.subr.bf16.mxu0 0
      %1470 = vmatpush2.bf16.msra.mxu0 0
      %1471 = vmatprep.mubr.bf16.mxu0 0
      %1472 = vmatmul.mubr.bf16.gmra.mxu0 %v1337
      %v1473 = vpop.f32.mrf.mxu0
      %v1474 = vadd.f32 %v1153, %v1473
      %v1475 = vpop.f32.mrf.mxu0
      %v1476 = vadd.f32 %v1157, %v1475
      %v1477 = vpop.f32.mrf.mxu0
      %v1478 = vadd.f32 %v1153, %v1477
      %v1479 = vpop.f32.mrf.mxu0
      %v1480 = vadd.f32 %v1157, %v1479
      %1481 = vmatprep.mubr.bf16.mxu0 0
      %1482 = vmatmul.mubr.bf16.gmra.mxu0 %v1340
      %v1483 = vpop.f32.mrf.mxu0
      %v1484 = vadd.f32 %v1153, %v1483
      %v1485 = vpop.f32.mrf.mxu0
      %v1486 = vadd.f32 %v1157, %v1485
      %v1487 = vpop.f32.mrf.mxu0
      %v1488 = vadd.f32 %v1153, %v1487
      %v1489 = vpop.f32.mrf.mxu0
      %v1490 = vadd.f32 %v1157, %v1489
      %1491 = vmatprep.mubr.bf16.mxu0 0
      %1492 = vmatmul.mubr.bf16.gmra.mxu0 %v1343
      %v1493 = vpop.f32.mrf.mxu0
      %v1494 = vadd.f32 %v1153, %v1493
      %v1495 = vpop.f32.mrf.mxu0
      %v1496 = vadd.f32 %v1157, %v1495
      %v1497 = vpop.f32.mrf.mxu0
      %v1498 = vadd.f32 %v1153, %v1497
      %v1499 = vpop.f32.mrf.mxu0
      %v1500 = vadd.f32 %v1157, %v1499
      %1501 = vmatprep.mubr.bf16.mxu0 0
      %1502 = vmatmul.mubr.bf16.gmra.mxu0 %v1346
      %v1503 = vpop.f32.mrf.mxu0
      %v1504 = vadd.f32 %v1153, %v1503
      %v1505 = vpop.f32.mrf.mxu0
      %v1506 = vadd.f32 %v1157, %v1505
      %v1507 = vpop.f32.mrf.mxu0
      %v1508 = vadd.f32 %v1153, %v1507
      %v1509 = vpop.f32.mrf.mxu0
      %v1510 = vadd.f32 %v1157, %v1509
      %1511 = vmatprep.mubr.bf16.mxu0 0
      %1512 = vmatmul.mubr.bf16.gmra.mxu0 %v1349
      %v1513 = vpop.f32.mrf.mxu0
      %v1514 = vadd.f32 %v1153, %v1513
      %v1515 = vpop.f32.mrf.mxu0
      %v1516 = vadd.f32 %v1157, %v1515
      %v1517 = vpop.f32.mrf.mxu0
      %v1518 = vadd.f32 %v1153, %v1517
      %v1519 = vpop.f32.mrf.mxu0
      %v1520 = vadd.f32 %v1157, %v1519
      %1521 = vmatprep.mubr.bf16.mxu0 0
      %1522 = vmatmul.mubr.bf16.gmra.mxu0 %v1352
      %v1523 = vpop.f32.mrf.mxu0
      %v1524 = vadd.f32 %v1153, %v1523
      %v1525 = vpop.f32.mrf.mxu0
      %v1526 = vadd.f32 %v1157, %v1525
      %v1527 = vpop.f32.mrf.mxu0
      %v1528 = vadd.f32 %v1153, %v1527
      %v1529 = vpop.f32.mrf.mxu0
      %v1530 = vadd.f32 %v1157, %v1529
      %1531 = vmatprep.mubr.bf16.mxu0 0
      %1532 = vmatmul.mubr.bf16.gmra.mxu0 %v1355
      %v1533 = vpop.f32.mrf.mxu0
      %v1534 = vadd.f32 %v1153, %v1533
      %v1535 = vpop.f32.mrf.mxu0
      %v1536 = vadd.f32 %v1157, %v1535
      %v1537 = vpop.f32.mrf.mxu0
      %v1538 = vadd.f32 %v1153, %v1537
      %v1539 = vpop.f32.mrf.mxu0
      %v1540 = vadd.f32 %v1157, %v1539
      %1541 = vmatprep.mubr.bf16.mxu0 0
      %1542 = vmatmul.mubr.bf16.gmra.mxu0 %v1358
      %v1543 = vpop.f32.mrf.mxu0
      %v1544 = vadd.f32 %v1153, %v1543
      %v1545 = vpop.f32.mrf.mxu0
      %v1546 = vadd.f32 %v1157, %v1545
      %v1547 = vpop.f32.mrf.mxu0
      %v1548 = vadd.f32 %v1153, %v1547
      %v1549 = vpop.f32.mrf.mxu0
      %v1550 = vadd.f32 %v1157, %v1549
      %1551 = vmatprep.mubr.bf16.mxu0 0
      %1552 = vmatmul.mubr.bf16.gmra.mxu0 %v1361
      %v1553 = vpop.f32.mrf.mxu0
      %v1554 = vadd.f32 %v1153, %v1553
      %v1555 = vpop.f32.mrf.mxu0
      %v1556 = vadd.f32 %v1157, %v1555
      %v1557 = vpop.f32.mrf.mxu0
      %v1558 = vadd.f32 %v1153, %v1557
      %v1559 = vpop.f32.mrf.mxu0
      %v1560 = vadd.f32 %v1157, %v1559
      %1561 = vmatprep.mubr.bf16.mxu0 0
      %1562 = vmatmul.mubr.bf16.gmra.mxu0 %v1364
      %v1563 = vpop.f32.mrf.mxu0
      %v1564 = vadd.f32 %v1153, %v1563
      %v1565 = vpop.f32.mrf.mxu0
      %v1566 = vadd.f32 %v1157, %v1565
      %v1567 = vpop.f32.mrf.mxu0
      %v1568 = vadd.f32 %v1153, %v1567
      %v1569 = vpop.f32.mrf.mxu0
      %v1570 = vadd.f32 %v1157, %v1569
      %1571 = vmatprep.mubr.bf16.mxu0 0
      %1572 = vmatmul.mubr.bf16.gmra.mxu0 %v1367
      %v1573 = vpop.f32.mrf.mxu0
      %v1574 = vadd.f32 %v1153, %v1573
      %v1575 = vpop.f32.mrf.mxu0
      %v1576 = vadd.f32 %v1157, %v1575
      %v1577 = vpop.f32.mrf.mxu0
      %v1578 = vadd.f32 %v1153, %v1577
      %v1579 = vpop.f32.mrf.mxu0
      %v1580 = vadd.f32 %v1157, %v1579
      %1581 = vmatprep.mubr.bf16.mxu0 0
      %1582 = vmatmul.mubr.bf16.gmra.mxu0 %v1370
      %v1583 = vpop.f32.mrf.mxu0
      %v1584 = vadd.f32 %v1153, %v1583
      %v1585 = vpop.f32.mrf.mxu0
      %v1586 = vadd.f32 %v1157, %v1585
      %v1587 = vpop.f32.mrf.mxu0
      %v1588 = vadd.f32 %v1153, %v1587
      %v1589 = vpop.f32.mrf.mxu0
      %v1590 = vadd.f32 %v1157, %v1589
      %1591 = vmatprep.mubr.bf16.mxu0 0
      %1592 = vmatmul.mubr.bf16.gmra.mxu0 %v1373
      %v1593 = vpop.f32.mrf.mxu0
      %v1594 = vadd.f32 %v1153, %v1593
      %v1595 = vpop.f32.mrf.mxu0
      %v1596 = vadd.f32 %v1157, %v1595
      %v1597 = vpop.f32.mrf.mxu0
      %v1598 = vadd.f32 %v1153, %v1597
      %v1599 = vpop.f32.mrf.mxu0
      %v1600 = vadd.f32 %v1157, %v1599
      %1601 = vmatprep.mubr.bf16.mxu0 0
      %1602 = vmatmul.mubr.bf16.gmra.mxu0 %v1376
      %v1603 = vpop.f32.mrf.mxu0
      %v1604 = vadd.f32 %v1153, %v1603
      %v1605 = vpop.f32.mrf.mxu0
      %v1606 = vadd.f32 %v1157, %v1605
      %v1607 = vpop.f32.mrf.mxu0
      %v1608 = vadd.f32 %v1153, %v1607
      %v1609 = vpop.f32.mrf.mxu0
      %v1610 = vadd.f32 %v1157, %v1609
      %1611 = vmatprep.mubr.bf16.mxu0 0
      %1612 = vmatmul.mubr.bf16.gmra.mxu0 %v1379
      %v1613 = vpop.f32.mrf.mxu0
      %v1614 = vadd.f32 %v1153, %v1613
      %v1615 = vpop.f32.mrf.mxu0
      %v1616 = vadd.f32 %v1157, %v1615
      %v1617 = vpop.f32.mrf.mxu0
      %v1618 = vadd.f32 %v1153, %v1617
      %v1619 = vpop.f32.mrf.mxu0
      %v1620 = vadd.f32 %v1157, %v1619
      %1621 = vmatprep.mubr.bf16.mxu0 0
      %1622 = vmatmul.mubr.bf16.gmra.mxu0 %v1382
      %v1623 = vpop.f32.mrf.mxu0
      %v1624 = vadd.f32 %v1153, %v1623
      %v1625 = vpop.f32.mrf.mxu0
      %v1626 = vadd.f32 %v1157, %v1625
      %v1627 = vpop.f32.mrf.mxu0
      %v1628 = vadd.f32 %v1153, %v1627
      %v1629 = vpop.f32.mrf.mxu0
      %v1630 = vadd.f32 %v1157, %v1629
      %1631 = vmatprep.mubr.bf16.mxu0 0
      %1632 = vmatmul.mubr.bf16.gmra.mxu0 %v1385
      %v1633 = vpop.f32.mrf.mxu0
      %v1634 = vadd.f32 %v1153, %v1633
      %v1635 = vpop.f32.mrf.mxu0
      %v1636 = vadd.f32 %v1157, %v1635
      %v1637 = vpop.f32.mrf.mxu0
      %v1638 = vadd.f32 %v1153, %v1637
      %v1639 = vpop.f32.mrf.mxu0
      %v1640 = vadd.f32 %v1157, %v1639
      %1641 = vmatprep.mubr.bf16.mxu0 0
      %1642 = vmatmul.mubr.bf16.gmra.mxu0 %v1388
      %v1643 = vpop.f32.mrf.mxu0
      %v1644 = vadd.f32 %v1153, %v1643
      %v1645 = vpop.f32.mrf.mxu0
      %v1646 = vadd.f32 %v1157, %v1645
      %v1647 = vpop.f32.mrf.mxu0
      %v1648 = vadd.f32 %v1153, %v1647
      %v1649 = vpop.f32.mrf.mxu0
      %v1650 = vadd.f32 %v1157, %v1649
      %1651 = vmatprep.mubr.bf16.mxu0 0
      %1652 = vmatmul.mubr.bf16.gmra.mxu0 %v1391
      %v1653 = vpop.f32.mrf.mxu0
      %v1654 = vadd.f32 %v1153, %v1653
      %v1655 = vpop.f32.mrf.mxu0
      %v1656 = vadd.f32 %v1157, %v1655
      %v1657 = vpop.f32.mrf.mxu0
      %v1658 = vadd.f32 %v1153, %v1657
      %v1659 = vpop.f32.mrf.mxu0
      %v1660 = vadd.f32 %v1157, %v1659
      %1661 = vmatprep.mubr.bf16.mxu0 0
      %1662 = vmatmul.mubr.bf16.gmra.mxu0 %v1394
      %v1663 = vpop.f32.mrf.mxu0
      %v1664 = vadd.f32 %v1153, %v1663
      %v1665 = vpop.f32.mrf.mxu0
      %v1666 = vadd.f32 %v1157, %v1665
      %v1667 = vpop.f32.mrf.mxu0
      %v1668 = vadd.f32 %v1153, %v1667
      %v1669 = vpop.f32.mrf.mxu0
      %v1670 = vadd.f32 %v1157, %v1669
      %1671 = vmatprep.mubr.bf16.mxu0 0
      %1672 = vmatmul.mubr.bf16.gmra.mxu0 %v1397
      %v1673 = vpop.f32.mrf.mxu0
      %v1674 = vadd.f32 %v1153, %v1673
      %v1675 = vpop.f32.mrf.mxu0
      %v1676 = vadd.f32 %v1157, %v1675
      %v1677 = vpop.f32.mrf.mxu0
      %v1678 = vadd.f32 %v1153, %v1677
      %v1679 = vpop.f32.mrf.mxu0
      %v1680 = vadd.f32 %v1157, %v1679
      %1681 = vmatprep.mubr.bf16.mxu0 0
      %1682 = vmatmul.mubr.bf16.gmra.mxu0 %v1400
      %v1683 = vpop.f32.mrf.mxu0
      %v1684 = vadd.f32 %v1153, %v1683
      %v1685 = vpop.f32.mrf.mxu0
      %v1686 = vadd.f32 %v1157, %v1685
      %v1687 = vpop.f32.mrf.mxu0
      %v1688 = vadd.f32 %v1153, %v1687
      %v1689 = vpop.f32.mrf.mxu0
      %v1690 = vadd.f32 %v1157, %v1689
      %1691 = vmatprep.mubr.bf16.mxu0 0
      %1692 = vmatmul.mubr.bf16.gmra.mxu0 %v1403
      %v1693 = vpop.f32.mrf.mxu0
      %v1694 = vadd.f32 %v1153, %v1693
      %v1695 = vpop.f32.mrf.mxu0
      %v1696 = vadd.f32 %v1157, %v1695
      %v1697 = vpop.f32.mrf.mxu0
      %v1698 = vadd.f32 %v1153, %v1697
      %v1699 = vpop.f32.mrf.mxu0
      %v1700 = vadd.f32 %v1157, %v1699
      %1701 = vmatprep.mubr.bf16.mxu0 0
      %1702 = vmatmul.mubr.bf16.gmra.mxu0 %v1406
      %v1703 = vpop.f32.mrf.mxu0
      %v1704 = vadd.f32 %v1153, %v1703
      %v1705 = vpop.f32.mrf.mxu0
      %v1706 = vadd.f32 %v1157, %v1705
      %v1707 = vpop.f32.mrf.mxu0
      %v1708 = vadd.f32 %v1153, %v1707
      %v1709 = vpop.f32.mrf.mxu0
      %v1710 = vadd.f32 %v1157, %v1709
      %1711 = vmatprep.mubr.bf16.mxu0 0
      %1712 = vmatmul.mubr.bf16.gmra.mxu0 %v1409
      %v1713 = vpop.f32.mrf.mxu0
      %v1714 = vadd.f32 %v1153, %v1713
      %v1715 = vpop.f32.mrf.mxu0
      %v1716 = vadd.f32 %v1157, %v1715
      %v1717 = vpop.f32.mrf.mxu0
      %v1718 = vadd.f32 %v1153, %v1717
      %v1719 = vpop.f32.mrf.mxu0
      %v1720 = vadd.f32 %v1157, %v1719
      %1721 = vmatprep.mubr.bf16.mxu0 0
      %1722 = vmatmul.mubr.bf16.gmra.mxu0 %v1412
      %v1723 = vpop.f32.mrf.mxu0
      %v1724 = vadd.f32 %v1153, %v1723
      %v1725 = vpop.f32.mrf.mxu0
      %v1726 = vadd.f32 %v1157, %v1725
      %v1727 = vpop.f32.mrf.mxu0
      %v1728 = vadd.f32 %v1153, %v1727
      %v1729 = vpop.f32.mrf.mxu0
      %v1730 = vadd.f32 %v1157, %v1729
      %1731 = vmatprep.mubr.bf16.mxu0 0
      %1732 = vmatmul.mubr.bf16.gmra.mxu0 %v1415
      %v1733 = vpop.f32.mrf.mxu0
      %v1734 = vadd.f32 %v1153, %v1733
      %v1735 = vpop.f32.mrf.mxu0
      %v1736 = vadd.f32 %v1157, %v1735
      %v1737 = vpop.f32.mrf.mxu0
      %v1738 = vadd.f32 %v1153, %v1737
      %v1739 = vpop.f32.mrf.mxu0
      %v1740 = vadd.f32 %v1157, %v1739
      %1741 = vmatprep.mubr.bf16.mxu0 0
      %1742 = vmatmul.mubr.bf16.gmra.mxu0 %v1418
      %v1743 = vpop.f32.mrf.mxu0
      %v1744 = vadd.f32 %v1153, %v1743
      %v1745 = vpop.f32.mrf.mxu0
      %v1746 = vadd.f32 %v1157, %v1745
      %v1747 = vpop.f32.mrf.mxu0
      %v1748 = vadd.f32 %v1153, %v1747
      %v1749 = vpop.f32.mrf.mxu0
      %v1750 = vadd.f32 %v1157, %v1749
      %1751 = vmatprep.mubr.bf16.mxu0 0
      %1752 = vmatmul.mubr.bf16.gmra.mxu0 %v1421
      %v1753 = vpop.f32.mrf.mxu0
      %v1754 = vadd.f32 %v1153, %v1753
      %v1755 = vpop.f32.mrf.mxu0
      %v1756 = vadd.f32 %v1157, %v1755
      %v1757 = vpop.f32.mrf.mxu0
      %v1758 = vadd.f32 %v1153, %v1757
      %v1759 = vpop.f32.mrf.mxu0
      %v1760 = vadd.f32 %v1157, %v1759
      %1761 = vmatprep.mubr.bf16.mxu0 0
      %1762 = vmatmul.mubr.bf16.gmra.mxu0 %v1424
      %v1763 = vpop.f32.mrf.mxu0
      %v1764 = vadd.f32 %v1153, %v1763
      %v1765 = vpop.f32.mrf.mxu0
      %v1766 = vadd.f32 %v1157, %v1765
      %v1767 = vpop.f32.mrf.mxu0
      %v1768 = vadd.f32 %v1153, %v1767
      %v1769 = vpop.f32.mrf.mxu0
      %v1770 = vadd.f32 %v1157, %v1769
      %1771 = vmatprep.mubr.bf16.mxu0 0
      %1772 = vmatmul.mubr.bf16.gmra.mxu0 %v1427
      %v1773 = vpop.f32.mrf.mxu0
      %v1774 = vadd.f32 %v1153, %v1773
      %v1775 = vpop.f32.mrf.mxu0
      %v1776 = vadd.f32 %v1157, %v1775
      %v1777 = vpop.f32.mrf.mxu0
      %v1778 = vadd.f32 %v1153, %v1777
      %v1779 = vpop.f32.mrf.mxu0
      %v1780 = vadd.f32 %v1157, %v1779
      %1781 = vmatprep.mubr.bf16.mxu0 0
      %1782 = vmatmul.mubr.bf16.gmra.mxu0 %v1430
      %v1783 = vpop.f32.mrf.mxu0
      %v1784 = vadd.f32 %v1153, %v1783
      %v1785 = vpop.f32.mrf.mxu0
      %v1786 = vadd.f32 %v1157, %v1785
      %v1787 = vpop.f32.mrf.mxu0
      %v1788 = vadd.f32 %v1153, %v1787
      %v1789 = vpop.f32.mrf.mxu0
      %v1790 = vadd.f32 %v1157, %v1789
      %1791 = vdwg.mxu0
      %v1792 = vmax.f32 %v1474, 0.0
      %v1793 = vmax.f32 %v1476, 0.0
      %v1794 = vmax.f32 %v1478, 0.0
      %v1795 = vmax.f32 %v1480, 0.0
      %v1796 = vmax.f32 %v1484, 0.0
      %v1797 = vmax.f32 %v1486, 0.0
      %v1798 = vmax.f32 %v1488, 0.0
      %v1799 = vmax.f32 %v1490, 0.0
      %v1800 = vmax.f32 %v1494, 0.0
      %v1801 = vmax.f32 %v1496, 0.0
      %v1802 = vmax.f32 %v1498, 0.0
      %v1803 = vmax.f32 %v1500, 0.0
      %v1804 = vmax.f32 %v1504, 0.0
      %v1805 = vmax.f32 %v1506, 0.0
      %v1806 = vmax.f32 %v1508, 0.0
      %v1807 = vmax.f32 %v1510, 0.0
      %v1808 = vmax.f32 %v1514, 0.0
      %v1809 = vmax.f32 %v1516, 0.0
      %v1810 = vmax.f32 %v1518, 0.0
      %v1811 = vmax.f32 %v1520, 0.0
      %v1812 = vmax.f32 %v1524, 0.0
      %v1813 = vmax.f32 %v1526, 0.0
      %v1814 = vmax.f32 %v1528, 0.0
      %v1815 = vmax.f32 %v1530, 0.0
      %v1816 = vmax.f32 %v1534, 0.0
      %v1817 = vmax.f32 %v1536, 0.0
      %v1818 = vmax.f32 %v1538, 0.0
      %v1819 = vmax.f32 %v1540, 0.0
      %v1820 = vmax.f32 %v1544, 0.0
      %v1821 = vmax.f32 %v1546, 0.0
      %v1822 = vmax.f32 %v1548, 0.0
      %v1823 = vmax.f32 %v1550, 0.0
      %v1824 = vmax.f32 %v1554, 0.0
      %v1825 = vmax.f32 %v1556, 0.0
      %v1826 = vmax.f32 %v1558, 0.0
      %v1827 = vmax.f32 %v1560, 0.0
      %v1828 = vmax.f32 %v1564, 0.0
      %v1829 = vmax.f32 %v1566, 0.0
      %v1830 = vmax.f32 %v1568, 0.0
      %v1831 = vmax.f32 %v1570, 0.0
      %v1832 = vmax.f32 %v1574, 0.0
      %v1833 = vmax.f32 %v1576, 0.0
      %v1834 = vmax.f32 %v1578, 0.0
      %v1835 = vmax.f32 %v1580, 0.0
      %v1836 = vmax.f32 %v1584, 0.0
      %v1837 = vmax.f32 %v1586, 0.0
      %v1838 = vmax.f32 %v1588, 0.0
      %v1839 = vmax.f32 %v1590, 0.0
      %v1840 = vmax.f32 %v1594, 0.0
      %v1841 = vmax.f32 %v1596, 0.0
      %v1842 = vmax.f32 %v1598, 0.0
      %v1843 = vmax.f32 %v1600, 0.0
      %v1844 = vmax.f32 %v1604, 0.0
      %v1845 = vmax.f32 %v1606, 0.0
      %v1846 = vmax.f32 %v1608, 0.0
      %v1847 = vmax.f32 %v1610, 0.0
      %v1848 = vmax.f32 %v1614, 0.0
      %v1849 = vmax.f32 %v1616, 0.0
      %v1850 = vmax.f32 %v1618, 0.0
      %v1851 = vmax.f32 %v1620, 0.0
      %v1852 = vmax.f32 %v1624, 0.0
      %v1853 = vmax.f32 %v1626, 0.0
      %v1854 = vmax.f32 %v1628, 0.0
      %v1855 = vmax.f32 %v1630, 0.0
      %v1856 = vmax.f32 %v1634, 0.0
      %v1857 = vmax.f32 %v1636, 0.0
      %v1858 = vmax.f32 %v1638, 0.0
      %v1859 = vmax.f32 %v1640, 0.0
      %v1860 = vmax.f32 %v1644, 0.0
      %v1861 = vmax.f32 %v1646, 0.0
      %v1862 = vmax.f32 %v1648, 0.0
      %v1863 = vmax.f32 %v1650, 0.0
      %v1864 = vmax.f32 %v1654, 0.0
      %v1865 = vmax.f32 %v1656, 0.0
      %v1866 = vmax.f32 %v1658, 0.0
      %v1867 = vmax.f32 %v1660, 0.0
      %v1868 = vmax.f32 %v1664, 0.0
      %v1869 = vmax.f32 %v1666, 0.0
      %v1870 = vmax.f32 %v1668, 0.0
      %v1871 = vmax.f32 %v1670, 0.0
      %v1872 = vmax.f32 %v1674, 0.0
      %v1873 = vmax.f32 %v1676, 0.0
      %v1874 = vmax.f32 %v1678, 0.0
      %v1875 = vmax.f32 %v1680, 0.0
      %v1876 = vmax.f32 %v1684, 0.0
      %v1877 = vmax.f32 %v1686, 0.0
      %v1878 = vmax.f32 %v1688, 0.0
      %v1879 = vmax.f32 %v1690, 0.0
      %v1880 = vmax.f32 %v1694, 0.0
      %v1881 = vmax.f32 %v1696, 0.0
      %v1882 = vmax.f32 %v1698, 0.0
      %v1883 = vmax.f32 %v1700, 0.0
      %v1884 = vmax.f32 %v1704, 0.0
      %v1885 = vmax.f32 %v1706, 0.0
      %v1886 = vmax.f32 %v1708, 0.0
      %v1887 = vmax.f32 %v1710, 0.0
      %v1888 = vmax.f32 %v1714, 0.0
      %v1889 = vmax.f32 %v1716, 0.0
      %v1890 = vmax.f32 %v1718, 0.0
      %v1891 = vmax.f32 %v1720, 0.0
      %v1892 = vmax.f32 %v1724, 0.0
      %v1893 = vmax.f32 %v1726, 0.0
      %v1894 = vmax.f32 %v1728, 0.0
      %v1895 = vmax.f32 %v1730, 0.0
      %v1896 = vmax.f32 %v1734, 0.0
      %v1897 = vmax.f32 %v1736, 0.0
      %v1898 = vmax.f32 %v1738, 0.0
      %v1899 = vmax.f32 %v1740, 0.0
      %v1900 = vmax.f32 %v1744, 0.0
      %v1901 = vmax.f32 %v1746, 0.0
      %v1902 = vmax.f32 %v1748, 0.0
      %v1903 = vmax.f32 %v1750, 0.0
      %v1904 = vmax.f32 %v1754, 0.0
      %v1905 = vmax.f32 %v1756, 0.0
      %v1906 = vmax.f32 %v1758, 0.0
      %v1907 = vmax.f32 %v1760, 0.0
      %v1908 = vmax.f32 %v1764, 0.0
      %v1909 = vmax.f32 %v1766, 0.0
      %v1910 = vmax.f32 %v1768, 0.0
      %v1911 = vmax.f32 %v1770, 0.0
      %v1912 = vmax.f32 %v1774, 0.0
      %v1913 = vmax.f32 %v1776, 0.0
      %v1914 = vmax.f32 %v1778, 0.0
      %v1915 = vmax.f32 %v1780, 0.0
      %v1916 = vmax.f32 %v1784, 0.0
      %v1917 = vmax.f32 %v1786, 0.0
      %v1918 = vmax.f32 %v1788, 0.0
      %v1919 = vmax.f32 %v1790, 0.0
      %v1920 = vld [vmem:[%s11] sm:$0xff]
      %v1921 = vld [vmem:[%s11 + $0x8] sm:$0xff]
      %v1922 = vld [vmem:[%s11 + $0x10] sm:$0xff]
      %v1923 = vld [vmem:[%s11 + $0x18] sm:$0xff]
      %v1924 = vld [vmem:[%s11 + $0x20] sm:$0xff]
      %v1925 = vld [vmem:[%s11 + $0x28] sm:$0xff]
      %v1926 = vld [vmem:[%s11 + $0x30] sm:$0xff]
      %v1927 = vld [vmem:[%s11 + $0x38] sm:$0xff]
      %v1928 = vld [vmem:[%s13] sm:$0x3]
      %v1930 = vlaneseq
      %v1931 = vshrl.u32 %v1930, 7
      %v1932 = vsub.s32 0, %v1931
      %v1933 = vrot.slane %v1928, %v1932
      %v1934 = vlaneseq
      %v1935 = vshrl.u32 %v1934, 7
      %v1936 = vsub.s32 1, %v1935
      %v1937 = vrot.slane %v1928, %v1936
      %v2004 = vunpack.c.l.b16 %v953
      %v2005 = vunpack.c.l.b16 %v954
      %v2006 = vunpack.c.l.b16 %v955
      %v2007 = vunpack.c.l.b16 %v956
      %v2008 = vunpack.c.l.b16 %v957
      %v2009 = vunpack.c.l.b16 %v958
      %v2010 = vunpack.c.l.b16 %v959
      %v2011 = vunpack.c.l.b16 %v960
      %v2012 = vunpack.c.l.b16 %v961
      %v2013 = vunpack.c.l.b16 %v962
      %v2014 = vunpack.c.l.b16 %v963
      %v2015 = vunpack.c.l.b16 %v964
      %v2016 = vunpack.c.l.b16 %v965
      %v2017 = vunpack.c.l.b16 %v966
      %v2018 = vunpack.c.l.b16 %v967
      %v2019 = vunpack.c.l.b16 %v968
      %v2020 = vunpack.c.l.b16 %v969
      %v2021 = vunpack.c.l.b16 %v970
      %v2022 = vunpack.c.l.b16 %v971
      %v2023 = vunpack.c.l.b16 %v972
      %v2024 = vunpack.c.l.b16 %v973
      %v2025 = vunpack.c.l.b16 %v974
      %v2026 = vunpack.c.l.b16 %v975
      %v2027 = vunpack.c.l.b16 %v976
      %v2028 = vunpack.c.l.b16 %v977
      %v2029 = vunpack.c.l.b16 %v978
      %v2030 = vunpack.c.l.b16 %v979
      %v2031 = vunpack.c.l.b16 %v980
      %v2032 = vunpack.c.l.b16 %v981
      %v2033 = vunpack.c.l.b16 %v982
      %v2034 = vunpack.c.l.b16 %v983
      %v2035 = vunpack.c.l.b16 %v984
      %v2036 = vunpack.c.l.b16 %v985
      %v2037 = vunpack.c.l.b16 %v986
      %v2038 = vunpack.c.l.b16 %v987
      %v2039 = vunpack.c.l.b16 %v988
      %v2040 = vunpack.c.l.b16 %v989
      %v2041 = vunpack.c.l.b16 %v990
      %v2042 = vunpack.c.l.b16 %v991
      %v2043 = vunpack.c.l.b16 %v992
      %v2044 = vunpack.c.l.b16 %v993
      %v2045 = vunpack.c.l.b16 %v994
      %v2046 = vunpack.c.l.b16 %v995
      %v2047 = vunpack.c.l.b16 %v996
      %v2048 = vunpack.c.l.b16 %v997
      %v2049 = vunpack.c.l.b16 %v998
      %v2050 = vunpack.c.l.b16 %v999
      %v2051 = vunpack.c.l.b16 %v1000
      %v2052 = vunpack.c.l.b16 %v1001
      %v2053 = vunpack.c.l.b16 %v1002
      %v2054 = vunpack.c.l.b16 %v1003
      %v2055 = vunpack.c.l.b16 %v1004
      %v2056 = vunpack.c.l.b16 %v1005
      %v2057 = vunpack.c.l.b16 %v1006
      %v2058 = vunpack.c.l.b16 %v1007
      %v2059 = vunpack.c.l.b16 %v1008
      %v2060 = vunpack.c.l.b16 %v1009
      %v2061 = vunpack.c.l.b16 %v1010
      %v2062 = vunpack.c.l.b16 %v1011
      %v2063 = vunpack.c.l.b16 %v1012
      %v2064 = vunpack.c.l.b16 %v1013
      %v2065 = vunpack.c.l.b16 %v1014
      %v2066 = vunpack.c.l.b16 %v1015
      %v2067 = vunpack.c.l.b16 %v1016
      %v2068 = vpack.c.b16 %v2005, %v2004
      %v2069 = vpack.c.b16 %v2007, %v2006
      %v2070 = vpack.c.b16 %v2009, %v2008
      %v2071 = vpack.c.b16 %v2011, %v2010
      %v2072 = vpack.c.b16 %v2013, %v2012
      %v2073 = vpack.c.b16 %v2015, %v2014
      %v2074 = vpack.c.b16 %v2017, %v2016
      %v2075 = vpack.c.b16 %v2019, %v2018
      %v2076 = vpack.c.b16 %v2021, %v2020
      %v2077 = vpack.c.b16 %v2023, %v2022
      %v2078 = vpack.c.b16 %v2025, %v2024
      %v2079 = vpack.c.b16 %v2027, %v2026
      %v2080 = vpack.c.b16 %v2029, %v2028
      %v2081 = vpack.c.b16 %v2031, %v2030
      %v2082 = vpack.c.b16 %v2033, %v2032
      %v2083 = vpack.c.b16 %v2035, %v2034
      %v2084 = vpack.c.b16 %v2037, %v2036
      %v2085 = vpack.c.b16 %v2039, %v2038
      %v2086 = vpack.c.b16 %v2041, %v2040
      %v2087 = vpack.c.b16 %v2043, %v2042
      %v2088 = vpack.c.b16 %v2045, %v2044
      %v2089 = vpack.c.b16 %v2047, %v2046
      %v2090 = vpack.c.b16 %v2049, %v2048
      %v2091 = vpack.c.b16 %v2051, %v2050
      %v2092 = vpack.c.b16 %v2053, %v2052
      %v2093 = vpack.c.b16 %v2055, %v2054
      %v2094 = vpack.c.b16 %v2057, %v2056
      %v2095 = vpack.c.b16 %v2059, %v2058
      %v2096 = vpack.c.b16 %v2061, %v2060
      %v2097 = vpack.c.b16 %v2063, %v2062
      %v2098 = vpack.c.b16 %v2065, %v2064
      %v2099 = vpack.c.b16 %v2067, %v2066
      %v2108 = vunpack.c.l.b16 %v1920
      %v2109 = vunpack.c.h.b16 %v1920
      %v2110 = vunpack.c.l.b16 %v1921
      %v2111 = vunpack.c.h.b16 %v1921
      %v2112 = vunpack.c.l.b16 %v1922
      %v2113 = vunpack.c.h.b16 %v1922
      %v2114 = vunpack.c.l.b16 %v1923
      %v2115 = vunpack.c.h.b16 %v1923
      %v2116 = vunpack.c.l.b16 %v1924
      %v2117 = vunpack.c.h.b16 %v1924
      %v2118 = vunpack.c.l.b16 %v1925
      %v2119 = vunpack.c.h.b16 %v1925
      %v2120 = vunpack.c.l.b16 %v1926
      %v2121 = vunpack.c.h.b16 %v1926
      %v2122 = vunpack.c.l.b16 %v1927
      %v2123 = vunpack.c.h.b16 %v1927
      %v2124 = vpack.c.b16 %v2110, %v2108
      %v2125 = vpack.c.b16 %v2111, %v2109
      %v2126 = vpack.c.b16 %v2114, %v2112
      %v2127 = vpack.c.b16 %v2115, %v2113
      %v2128 = vpack.c.b16 %v2118, %v2116
      %v2129 = vpack.c.b16 %v2119, %v2117
      %v2130 = vpack.c.b16 %v2122, %v2120
      %v2131 = vpack.c.b16 %v2123, %v2121
      %vm2140 = vcmask 523264
      %v2142 = vsel %vm2140, %v2068, 0
      %v2145 = vsel %vm2140, %v2069, 0
      %v2148 = vsel %vm2140, %v2070, 0
      %v2151 = vsel %vm2140, %v2071, 0
      %v2154 = vsel %vm2140, %v2072, 0
      %v2157 = vsel %vm2140, %v2073, 0
      %v2160 = vsel %vm2140, %v2074, 0
      %v2163 = vsel %vm2140, %v2075, 0
      %v2166 = vsel %vm2140, %v2076, 0
      %v2169 = vsel %vm2140, %v2077, 0
      %v2172 = vsel %vm2140, %v2078, 0
      %v2175 = vsel %vm2140, %v2079, 0
      %v2178 = vsel %vm2140, %v2080, 0
      %v2181 = vsel %vm2140, %v2081, 0
      %v2184 = vsel %vm2140, %v2082, 0
      %v2187 = vsel %vm2140, %v2083, 0
      %v2190 = vsel %vm2140, %v2084, 0
      %v2193 = vsel %vm2140, %v2085, 0
      %v2196 = vsel %vm2140, %v2086, 0
      %v2199 = vsel %vm2140, %v2087, 0
      %v2202 = vsel %vm2140, %v2088, 0
      %v2205 = vsel %vm2140, %v2089, 0
      %v2208 = vsel %vm2140, %v2090, 0
      %v2211 = vsel %vm2140, %v2091, 0
      %v2214 = vsel %vm2140, %v2092, 0
      %v2217 = vsel %vm2140, %v2093, 0
      %v2220 = vsel %vm2140, %v2094, 0
      %v2223 = vsel %vm2140, %v2095, 0
      %v2226 = vsel %vm2140, %v2096, 0
      %v2229 = vsel %vm2140, %v2097, 0
      %v2232 = vsel %vm2140, %v2098, 0
      %v2235 = vsel %vm2140, %v2099, 0
      %2237 = vmatprep.subr.bf16.mxu0 0
      %2238 = vmatpush1.bf16.msra.mxu0 0
      %2239 = vmatprep.subr.bf16.mxu0 0
      %2240 = vmatpush1.bf16.msra.mxu0 0
      %2241 = vmatprep.subr.bf16.mxu0 0
      %2242 = vmatpush1.bf16.msra.mxu0 0
      %2243 = vmatprep.subr.bf16.mxu0 0
      %2244 = vmatpush1.bf16.msra.mxu0 0
      %2245 = vmatprep.subr.bf16.mxu0 %v2131
      %2246 = vmatpush1.bf16.msra.mxu0 %v2130
      %2247 = vmatprep.subr.bf16.mxu0 %v2129
      %2248 = vmatpush1.bf16.msra.mxu0 %v2128
      %2249 = vmatprep.subr.bf16.mxu0 %v2127
      %2250 = vmatpush1.bf16.msra.mxu0 %v2126
      %2251 = vmatprep.subr.bf16.mxu0 %v2125
      %2252 = vmatpush1.bf16.msra.mxu0 %v2124
      %2253 = vmatprep.subr.bf16.mxu0 0
      %2254 = vmatpush2.bf16.msra.mxu0 0
      %2255 = vmatprep.subr.bf16.mxu0 0
      %2256 = vmatpush2.bf16.msra.mxu0 0
      %2257 = vmatprep.subr.bf16.mxu0 0
      %2258 = vmatpush2.bf16.msra.mxu0 0
      %2259 = vmatprep.subr.bf16.mxu0 0
      %2260 = vmatpush2.bf16.msra.mxu0 0
      %2261 = vmatprep.subr.bf16.mxu0 0
      %2262 = vmatpush2.bf16.msra.mxu0 0
      %2263 = vmatprep.subr.bf16.mxu0 0
      %2264 = vmatpush2.bf16.msra.mxu0 0
      %2265 = vmatprep.subr.bf16.mxu0 0
      %2266 = vmatpush2.bf16.msra.mxu0 0
      %2267 = vmatprep.subr.bf16.mxu0 0
      %2268 = vmatpush2.bf16.msra.mxu0 0
      %2269 = vmatprep.mubr.bf16.mxu0 0
      %2270 = vmatmul.mubr.bf16.gmra.mxu0 %v2142
      %v2271 = vpop.f32.mrf.mxu0
      %v2272 = vadd.f32 %v1933, %v2271
      %v2273 = vpop.f32.mrf.mxu0
      %v2274 = vadd.f32 %v1937, %v2273
      %v2275 = vpop.f32.mrf.mxu0
      %v2276 = vadd.f32 %v1933, %v2275
      %v2277 = vpop.f32.mrf.mxu0
      %v2278 = vadd.f32 %v1937, %v2277
      %2279 = vmatprep.mubr.bf16.mxu0 0
      %2280 = vmatmul.mubr.bf16.gmra.mxu0 %v2145
      %v2281 = vpop.f32.mrf.mxu0
      %v2282 = vadd.f32 %v1933, %v2281
      %v2283 = vpop.f32.mrf.mxu0
      %v2284 = vadd.f32 %v1937, %v2283
      %v2285 = vpop.f32.mrf.mxu0
      %v2286 = vadd.f32 %v1933, %v2285
      %v2287 = vpop.f32.mrf.mxu0
      %v2288 = vadd.f32 %v1937, %v2287
      %2289 = vmatprep.mubr.bf16.mxu0 0
      %2290 = vmatmul.mubr.bf16.gmra.mxu0 %v2148
      %v2291 = vpop.f32.mrf.mxu0
      %v2292 = vadd.f32 %v1933, %v2291
      %v2293 = vpop.f32.mrf.mxu0
      %v2294 = vadd.f32 %v1937, %v2293
      %v2295 = vpop.f32.mrf.mxu0
      %v2296 = vadd.f32 %v1933, %v2295
      %v2297 = vpop.f32.mrf.mxu0
      %v2298 = vadd.f32 %v1937, %v2297
      %2299 = vmatprep.mubr.bf16.mxu0 0
      %2300 = vmatmul.mubr.bf16.gmra.mxu0 %v2151
      %v2301 = vpop.f32.mrf.mxu0
      %v2302 = vadd.f32 %v1933, %v2301
      %v2303 = vpop.f32.mrf.mxu0
      %v2304 = vadd.f32 %v1937, %v2303
      %v2305 = vpop.f32.mrf.mxu0
      %v2306 = vadd.f32 %v1933, %v2305
      %v2307 = vpop.f32.mrf.mxu0
      %v2308 = vadd.f32 %v1937, %v2307
      %2309 = vmatprep.mubr.bf16.mxu0 0
      %2310 = vmatmul.mubr.bf16.gmra.mxu0 %v2154
      %v2311 = vpop.f32.mrf.mxu0
      %v2312 = vadd.f32 %v1933, %v2311
      %v2313 = vpop.f32.mrf.mxu0
      %v2314 = vadd.f32 %v1937, %v2313
      %v2315 = vpop.f32.mrf.mxu0
      %v2316 = vadd.f32 %v1933, %v2315
      %v2317 = vpop.f32.mrf.mxu0
      %v2318 = vadd.f32 %v1937, %v2317
      %2319 = vmatprep.mubr.bf16.mxu0 0
      %2320 = vmatmul.mubr.bf16.gmra.mxu0 %v2157
      %v2321 = vpop.f32.mrf.mxu0
      %v2322 = vadd.f32 %v1933, %v2321
      %v2323 = vpop.f32.mrf.mxu0
      %v2324 = vadd.f32 %v1937, %v2323
      %v2325 = vpop.f32.mrf.mxu0
      %v2326 = vadd.f32 %v1933, %v2325
      %v2327 = vpop.f32.mrf.mxu0
      %v2328 = vadd.f32 %v1937, %v2327
      %2329 = vmatprep.mubr.bf16.mxu0 0
      %2330 = vmatmul.mubr.bf16.gmra.mxu0 %v2160
      %v2331 = vpop.f32.mrf.mxu0
      %v2332 = vadd.f32 %v1933, %v2331
      %v2333 = vpop.f32.mrf.mxu0
      %v2334 = vadd.f32 %v1937, %v2333
      %v2335 = vpop.f32.mrf.mxu0
      %v2336 = vadd.f32 %v1933, %v2335
      %v2337 = vpop.f32.mrf.mxu0
      %v2338 = vadd.f32 %v1937, %v2337
      %2339 = vmatprep.mubr.bf16.mxu0 0
      %2340 = vmatmul.mubr.bf16.gmra.mxu0 %v2163
      %v2341 = vpop.f32.mrf.mxu0
      %v2342 = vadd.f32 %v1933, %v2341
      %v2343 = vpop.f32.mrf.mxu0
      %v2344 = vadd.f32 %v1937, %v2343
      %v2345 = vpop.f32.mrf.mxu0
      %v2346 = vadd.f32 %v1933, %v2345
      %v2347 = vpop.f32.mrf.mxu0
      %v2348 = vadd.f32 %v1937, %v2347
      %2349 = vmatprep.mubr.bf16.mxu0 0
      %2350 = vmatmul.mubr.bf16.gmra.mxu0 %v2166
      %v2351 = vpop.f32.mrf.mxu0
      %v2352 = vadd.f32 %v1933, %v2351
      %v2353 = vpop.f32.mrf.mxu0
      %v2354 = vadd.f32 %v1937, %v2353
      %v2355 = vpop.f32.mrf.mxu0
      %v2356 = vadd.f32 %v1933, %v2355
      %v2357 = vpop.f32.mrf.mxu0
      %v2358 = vadd.f32 %v1937, %v2357
      %2359 = vmatprep.mubr.bf16.mxu0 0
      %2360 = vmatmul.mubr.bf16.gmra.mxu0 %v2169
      %v2361 = vpop.f32.mrf.mxu0
      %v2362 = vadd.f32 %v1933, %v2361
      %v2363 = vpop.f32.mrf.mxu0
      %v2364 = vadd.f32 %v1937, %v2363
      %v2365 = vpop.f32.mrf.mxu0
      %v2366 = vadd.f32 %v1933, %v2365
      %v2367 = vpop.f32.mrf.mxu0
      %v2368 = vadd.f32 %v1937, %v2367
      %2369 = vmatprep.mubr.bf16.mxu0 0
      %2370 = vmatmul.mubr.bf16.gmra.mxu0 %v2172
      %v2371 = vpop.f32.mrf.mxu0
      %v2372 = vadd.f32 %v1933, %v2371
      %v2373 = vpop.f32.mrf.mxu0
      %v2374 = vadd.f32 %v1937, %v2373
      %v2375 = vpop.f32.mrf.mxu0
      %v2376 = vadd.f32 %v1933, %v2375
      %v2377 = vpop.f32.mrf.mxu0
      %v2378 = vadd.f32 %v1937, %v2377
      %2379 = vmatprep.mubr.bf16.mxu0 0
      %2380 = vmatmul.mubr.bf16.gmra.mxu0 %v2175
      %v2381 = vpop.f32.mrf.mxu0
      %v2382 = vadd.f32 %v1933, %v2381
      %v2383 = vpop.f32.mrf.mxu0
      %v2384 = vadd.f32 %v1937, %v2383
      %v2385 = vpop.f32.mrf.mxu0
      %v2386 = vadd.f32 %v1933, %v2385
      %v2387 = vpop.f32.mrf.mxu0
      %v2388 = vadd.f32 %v1937, %v2387
      %2389 = vmatprep.mubr.bf16.mxu0 0
      %2390 = vmatmul.mubr.bf16.gmra.mxu0 %v2178
      %v2391 = vpop.f32.mrf.mxu0
      %v2392 = vadd.f32 %v1933, %v2391
      %v2393 = vpop.f32.mrf.mxu0
      %v2394 = vadd.f32 %v1937, %v2393
      %v2395 = vpop.f32.mrf.mxu0
      %v2396 = vadd.f32 %v1933, %v2395
      %v2397 = vpop.f32.mrf.mxu0
      %v2398 = vadd.f32 %v1937, %v2397
      %2399 = vmatprep.mubr.bf16.mxu0 0
      %2400 = vmatmul.mubr.bf16.gmra.mxu0 %v2181
      %v2401 = vpop.f32.mrf.mxu0
      %v2402 = vadd.f32 %v1933, %v2401
      %v2403 = vpop.f32.mrf.mxu0
      %v2404 = vadd.f32 %v1937, %v2403
      %v2405 = vpop.f32.mrf.mxu0
      %v2406 = vadd.f32 %v1933, %v2405
      %v2407 = vpop.f32.mrf.mxu0
      %v2408 = vadd.f32 %v1937, %v2407
      %2409 = vmatprep.mubr.bf16.mxu0 0
      %2410 = vmatmul.mubr.bf16.gmra.mxu0 %v2184
      %v2411 = vpop.f32.mrf.mxu0
      %v2412 = vadd.f32 %v1933, %v2411
      %v2413 = vpop.f32.mrf.mxu0
      %v2414 = vadd.f32 %v1937, %v2413
      %v2415 = vpop.f32.mrf.mxu0
      %v2416 = vadd.f32 %v1933, %v2415
      %v2417 = vpop.f32.mrf.mxu0
      %v2418 = vadd.f32 %v1937, %v2417
      %2419 = vmatprep.mubr.bf16.mxu0 0
      %2420 = vmatmul.mubr.bf16.gmra.mxu0 %v2187
      %v2421 = vpop.f32.mrf.mxu0
      %v2422 = vadd.f32 %v1933, %v2421
      %v2423 = vpop.f32.mrf.mxu0
      %v2424 = vadd.f32 %v1937, %v2423
      %v2425 = vpop.f32.mrf.mxu0
      %v2426 = vadd.f32 %v1933, %v2425
      %v2427 = vpop.f32.mrf.mxu0
      %v2428 = vadd.f32 %v1937, %v2427
      %2429 = vmatprep.mubr.bf16.mxu0 0
      %2430 = vmatmul.mubr.bf16.gmra.mxu0 %v2190
      %v2431 = vpop.f32.mrf.mxu0
      %v2432 = vadd.f32 %v1933, %v2431
      %v2433 = vpop.f32.mrf.mxu0
      %v2434 = vadd.f32 %v1937, %v2433
      %v2435 = vpop.f32.mrf.mxu0
      %v2436 = vadd.f32 %v1933, %v2435
      %v2437 = vpop.f32.mrf.mxu0
      %v2438 = vadd.f32 %v1937, %v2437
      %2439 = vmatprep.mubr.bf16.mxu0 0
      %2440 = vmatmul.mubr.bf16.gmra.mxu0 %v2193
      %v2441 = vpop.f32.mrf.mxu0
      %v2442 = vadd.f32 %v1933, %v2441
      %v2443 = vpop.f32.mrf.mxu0
      %v2444 = vadd.f32 %v1937, %v2443
      %v2445 = vpop.f32.mrf.mxu0
      %v2446 = vadd.f32 %v1933, %v2445
      %v2447 = vpop.f32.mrf.mxu0
      %v2448 = vadd.f32 %v1937, %v2447
      %2449 = vmatprep.mubr.bf16.mxu0 0
      %2450 = vmatmul.mubr.bf16.gmra.mxu0 %v2196
      %v2451 = vpop.f32.mrf.mxu0
      %v2452 = vadd.f32 %v1933, %v2451
      %v2453 = vpop.f32.mrf.mxu0
      %v2454 = vadd.f32 %v1937, %v2453
      %v2455 = vpop.f32.mrf.mxu0
      %v2456 = vadd.f32 %v1933, %v2455
      %v2457 = vpop.f32.mrf.mxu0
      %v2458 = vadd.f32 %v1937, %v2457
      %2459 = vmatprep.mubr.bf16.mxu0 0
      %2460 = vmatmul.mubr.bf16.gmra.mxu0 %v2199
      %v2461 = vpop.f32.mrf.mxu0
      %v2462 = vadd.f32 %v1933, %v2461
      %v2463 = vpop.f32.mrf.mxu0
      %v2464 = vadd.f32 %v1937, %v2463
      %v2465 = vpop.f32.mrf.mxu0
      %v2466 = vadd.f32 %v1933, %v2465
      %v2467 = vpop.f32.mrf.mxu0
      %v2468 = vadd.f32 %v1937, %v2467
      %2469 = vmatprep.mubr.bf16.mxu0 0
      %2470 = vmatmul.mubr.bf16.gmra.mxu0 %v2202
      %v2471 = vpop.f32.mrf.mxu0
      %v2472 = vadd.f32 %v1933, %v2471
      %v2473 = vpop.f32.mrf.mxu0
      %v2474 = vadd.f32 %v1937, %v2473
      %v2475 = vpop.f32.mrf.mxu0
      %v2476 = vadd.f32 %v1933, %v2475
      %v2477 = vpop.f32.mrf.mxu0
      %v2478 = vadd.f32 %v1937, %v2477
      %2479 = vmatprep.mubr.bf16.mxu0 0
      %2480 = vmatmul.mubr.bf16.gmra.mxu0 %v2205
      %v2481 = vpop.f32.mrf.mxu0
      %v2482 = vadd.f32 %v1933, %v2481
      %v2483 = vpop.f32.mrf.mxu0
      %v2484 = vadd.f32 %v1937, %v2483
      %v2485 = vpop.f32.mrf.mxu0
      %v2486 = vadd.f32 %v1933, %v2485
      %v2487 = vpop.f32.mrf.mxu0
      %v2488 = vadd.f32 %v1937, %v2487
      %2489 = vmatprep.mubr.bf16.mxu0 0
      %2490 = vmatmul.mubr.bf16.gmra.mxu0 %v2208
      %v2491 = vpop.f32.mrf.mxu0
      %v2492 = vadd.f32 %v1933, %v2491
      %v2493 = vpop.f32.mrf.mxu0
      %v2494 = vadd.f32 %v1937, %v2493
      %v2495 = vpop.f32.mrf.mxu0
      %v2496 = vadd.f32 %v1933, %v2495
      %v2497 = vpop.f32.mrf.mxu0
      %v2498 = vadd.f32 %v1937, %v2497
      %2499 = vmatprep.mubr.bf16.mxu0 0
      %2500 = vmatmul.mubr.bf16.gmra.mxu0 %v2211
      %v2501 = vpop.f32.mrf.mxu0
      %v2502 = vadd.f32 %v1933, %v2501
      %v2503 = vpop.f32.mrf.mxu0
      %v2504 = vadd.f32 %v1937, %v2503
      %v2505 = vpop.f32.mrf.mxu0
      %v2506 = vadd.f32 %v1933, %v2505
      %v2507 = vpop.f32.mrf.mxu0
      %v2508 = vadd.f32 %v1937, %v2507
      %2509 = vmatprep.mubr.bf16.mxu0 0
      %2510 = vmatmul.mubr.bf16.gmra.mxu0 %v2214
      %v2511 = vpop.f32.mrf.mxu0
      %v2512 = vadd.f32 %v1933, %v2511
      %v2513 = vpop.f32.mrf.mxu0
      %v2514 = vadd.f32 %v1937, %v2513
      %v2515 = vpop.f32.mrf.mxu0
      %v2516 = vadd.f32 %v1933, %v2515
      %v2517 = vpop.f32.mrf.mxu0
      %v2518 = vadd.f32 %v1937, %v2517
      %2519 = vmatprep.mubr.bf16.mxu0 0
      %2520 = vmatmul.mubr.bf16.gmra.mxu0 %v2217
      %v2521 = vpop.f32.mrf.mxu0
      %v2522 = vadd.f32 %v1933, %v2521
      %v2523 = vpop.f32.mrf.mxu0
      %v2524 = vadd.f32 %v1937, %v2523
      %v2525 = vpop.f32.mrf.mxu0
      %v2526 = vadd.f32 %v1933, %v2525
      %v2527 = vpop.f32.mrf.mxu0
      %v2528 = vadd.f32 %v1937, %v2527
      %2529 = vmatprep.mubr.bf16.mxu0 0
      %2530 = vmatmul.mubr.bf16.gmra.mxu0 %v2220
      %v2531 = vpop.f32.mrf.mxu0
      %v2532 = vadd.f32 %v1933, %v2531
      %v2533 = vpop.f32.mrf.mxu0
      %v2534 = vadd.f32 %v1937, %v2533
      %v2535 = vpop.f32.mrf.mxu0
      %v2536 = vadd.f32 %v1933, %v2535
      %v2537 = vpop.f32.mrf.mxu0
      %v2538 = vadd.f32 %v1937, %v2537
      %2539 = vmatprep.mubr.bf16.mxu0 0
      %2540 = vmatmul.mubr.bf16.gmra.mxu0 %v2223
      %v2541 = vpop.f32.mrf.mxu0
      %v2542 = vadd.f32 %v1933, %v2541
      %v2543 = vpop.f32.mrf.mxu0
      %v2544 = vadd.f32 %v1937, %v2543
      %v2545 = vpop.f32.mrf.mxu0
      %v2546 = vadd.f32 %v1933, %v2545
      %v2547 = vpop.f32.mrf.mxu0
      %v2548 = vadd.f32 %v1937, %v2547
      %2549 = vmatprep.mubr.bf16.mxu0 0
      %2550 = vmatmul.mubr.bf16.gmra.mxu0 %v2226
      %v2551 = vpop.f32.mrf.mxu0
      %v2552 = vadd.f32 %v1933, %v2551
      %v2553 = vpop.f32.mrf.mxu0
      %v2554 = vadd.f32 %v1937, %v2553
      %v2555 = vpop.f32.mrf.mxu0
      %v2556 = vadd.f32 %v1933, %v2555
      %v2557 = vpop.f32.mrf.mxu0
      %v2558 = vadd.f32 %v1937, %v2557
      %2559 = vmatprep.mubr.bf16.mxu0 0
      %2560 = vmatmul.mubr.bf16.gmra.mxu0 %v2229
      %v2561 = vpop.f32.mrf.mxu0
      %v2562 = vadd.f32 %v1933, %v2561
      %v2563 = vpop.f32.mrf.mxu0
      %v2564 = vadd.f32 %v1937, %v2563
      %v2565 = vpop.f32.mrf.mxu0
      %v2566 = vadd.f32 %v1933, %v2565
      %v2567 = vpop.f32.mrf.mxu0
      %v2568 = vadd.f32 %v1937, %v2567
      %2569 = vmatprep.mubr.bf16.mxu0 0
      %2570 = vmatmul.mubr.bf16.gmra.mxu0 %v2232
      %v2571 = vpop.f32.mrf.mxu0
      %v2572 = vadd.f32 %v1933, %v2571
      %v2573 = vpop.f32.mrf.mxu0
      %v2574 = vadd.f32 %v1937, %v2573
      %v2575 = vpop.f32.mrf.mxu0
      %v2576 = vadd.f32 %v1933, %v2575
      %v2577 = vpop.f32.mrf.mxu0
      %v2578 = vadd.f32 %v1937, %v2577
      %2579 = vmatprep.mubr.bf16.mxu0 0
      %2580 = vmatmul.mubr.bf16.gmra.mxu0 %v2235
      %v2581 = vpop.f32.mrf.mxu0
      %v2582 = vadd.f32 %v1933, %v2581
      %v2583 = vpop.f32.mrf.mxu0
      %v2584 = vadd.f32 %v1937, %v2583
      %v2585 = vpop.f32.mrf.mxu0
      %v2586 = vadd.f32 %v1933, %v2585
      %v2587 = vpop.f32.mrf.mxu0
      %v2588 = vadd.f32 %v1937, %v2587
      %2589 = vdwg.mxu0
      %v2590 = vmax.f32 %v2272, 0.0
      %v2591 = vmax.f32 %v2274, 0.0
      %v2592 = vmax.f32 %v2276, 0.0
      %v2593 = vmax.f32 %v2278, 0.0
      %v2594 = vmax.f32 %v2282, 0.0
      %v2595 = vmax.f32 %v2284, 0.0
      %v2596 = vmax.f32 %v2286, 0.0
      %v2597 = vmax.f32 %v2288, 0.0
      %v2598 = vmax.f32 %v2292, 0.0
      %v2599 = vmax.f32 %v2294, 0.0
      %v2600 = vmax.f32 %v2296, 0.0
      %v2601 = vmax.f32 %v2298, 0.0
      %v2602 = vmax.f32 %v2302, 0.0
      %v2603 = vmax.f32 %v2304, 0.0
      %v2604 = vmax.f32 %v2306, 0.0
      %v2605 = vmax.f32 %v2308, 0.0
      %v2606 = vmax.f32 %v2312, 0.0
      %v2607 = vmax.f32 %v2314, 0.0
      %v2608 = vmax.f32 %v2316, 0.0
      %v2609 = vmax.f32 %v2318, 0.0
      %v2610 = vmax.f32 %v2322, 0.0
      %v2611 = vmax.f32 %v2324, 0.0
      %v2612 = vmax.f32 %v2326, 0.0
      %v2613 = vmax.f32 %v2328, 0.0
      %v2614 = vmax.f32 %v2332, 0.0
      %v2615 = vmax.f32 %v2334, 0.0
      %v2616 = vmax.f32 %v2336, 0.0
      %v2617 = vmax.f32 %v2338, 0.0
      %v2618 = vmax.f32 %v2342, 0.0
      %v2619 = vmax.f32 %v2344, 0.0
      %v2620 = vmax.f32 %v2346, 0.0
      %v2621 = vmax.f32 %v2348, 0.0
      %v2622 = vmax.f32 %v2352, 0.0
      %v2623 = vmax.f32 %v2354, 0.0
      %v2624 = vmax.f32 %v2356, 0.0
      %v2625 = vmax.f32 %v2358, 0.0
      %v2626 = vmax.f32 %v2362, 0.0
      %v2627 = vmax.f32 %v2364, 0.0
      %v2628 = vmax.f32 %v2366, 0.0
      %v2629 = vmax.f32 %v2368, 0.0
      %v2630 = vmax.f32 %v2372, 0.0
      %v2631 = vmax.f32 %v2374, 0.0
      %v2632 = vmax.f32 %v2376, 0.0
      %v2633 = vmax.f32 %v2378, 0.0
      %v2634 = vmax.f32 %v2382, 0.0
      %v2635 = vmax.f32 %v2384, 0.0
      %v2636 = vmax.f32 %v2386, 0.0
      %v2637 = vmax.f32 %v2388, 0.0
      %v2638 = vmax.f32 %v2392, 0.0
      %v2639 = vmax.f32 %v2394, 0.0
      %v2640 = vmax.f32 %v2396, 0.0
      %v2641 = vmax.f32 %v2398, 0.0
      %v2642 = vmax.f32 %v2402, 0.0
      %v2643 = vmax.f32 %v2404, 0.0
      %v2644 = vmax.f32 %v2406, 0.0
      %v2645 = vmax.f32 %v2408, 0.0
      %v2646 = vmax.f32 %v2412, 0.0
      %v2647 = vmax.f32 %v2414, 0.0
      %v2648 = vmax.f32 %v2416, 0.0
      %v2649 = vmax.f32 %v2418, 0.0
      %v2650 = vmax.f32 %v2422, 0.0
      %v2651 = vmax.f32 %v2424, 0.0
      %v2652 = vmax.f32 %v2426, 0.0
      %v2653 = vmax.f32 %v2428, 0.0
      %v2654 = vmax.f32 %v2432, 0.0
      %v2655 = vmax.f32 %v2434, 0.0
      %v2656 = vmax.f32 %v2436, 0.0
      %v2657 = vmax.f32 %v2438, 0.0
      %v2658 = vmax.f32 %v2442, 0.0
      %v2659 = vmax.f32 %v2444, 0.0
      %v2660 = vmax.f32 %v2446, 0.0
      %v2661 = vmax.f32 %v2448, 0.0
      %v2662 = vmax.f32 %v2452, 0.0
      %v2663 = vmax.f32 %v2454, 0.0
      %v2664 = vmax.f32 %v2456, 0.0
      %v2665 = vmax.f32 %v2458, 0.0
      %v2666 = vmax.f32 %v2462, 0.0
      %v2667 = vmax.f32 %v2464, 0.0
      %v2668 = vmax.f32 %v2466, 0.0
      %v2669 = vmax.f32 %v2468, 0.0
      %v2670 = vmax.f32 %v2472, 0.0
      %v2671 = vmax.f32 %v2474, 0.0
      %v2672 = vmax.f32 %v2476, 0.0
      %v2673 = vmax.f32 %v2478, 0.0
      %v2674 = vmax.f32 %v2482, 0.0
      %v2675 = vmax.f32 %v2484, 0.0
      %v2676 = vmax.f32 %v2486, 0.0
      %v2677 = vmax.f32 %v2488, 0.0
      %v2678 = vmax.f32 %v2492, 0.0
      %v2679 = vmax.f32 %v2494, 0.0
      %v2680 = vmax.f32 %v2496, 0.0
      %v2681 = vmax.f32 %v2498, 0.0
      %v2682 = vmax.f32 %v2502, 0.0
      %v2683 = vmax.f32 %v2504, 0.0
      %v2684 = vmax.f32 %v2506, 0.0
      %v2685 = vmax.f32 %v2508, 0.0
      %v2686 = vmax.f32 %v2512, 0.0
      %v2687 = vmax.f32 %v2514, 0.0
      %v2688 = vmax.f32 %v2516, 0.0
      %v2689 = vmax.f32 %v2518, 0.0
      %v2690 = vmax.f32 %v2522, 0.0
      %v2691 = vmax.f32 %v2524, 0.0
      %v2692 = vmax.f32 %v2526, 0.0
      %v2693 = vmax.f32 %v2528, 0.0
      %v2694 = vmax.f32 %v2532, 0.0
      %v2695 = vmax.f32 %v2534, 0.0
      %v2696 = vmax.f32 %v2536, 0.0
      %v2697 = vmax.f32 %v2538, 0.0
      %v2698 = vmax.f32 %v2542, 0.0
      %v2699 = vmax.f32 %v2544, 0.0
      %v2700 = vmax.f32 %v2546, 0.0
      %v2701 = vmax.f32 %v2548, 0.0
      %v2702 = vmax.f32 %v2552, 0.0
      %v2703 = vmax.f32 %v2554, 0.0
      %v2704 = vmax.f32 %v2556, 0.0
      %v2705 = vmax.f32 %v2558, 0.0
      %v2706 = vmax.f32 %v2562, 0.0
      %v2707 = vmax.f32 %v2564, 0.0
      %v2708 = vmax.f32 %v2566, 0.0
      %v2709 = vmax.f32 %v2568, 0.0
      %v2710 = vmax.f32 %v2572, 0.0
      %v2711 = vmax.f32 %v2574, 0.0
      %v2712 = vmax.f32 %v2576, 0.0
      %v2713 = vmax.f32 %v2578, 0.0
      %v2714 = vmax.f32 %v2582, 0.0
      %v2715 = vmax.f32 %v2584, 0.0
      %v2716 = vmax.f32 %v2586, 0.0
      %v2717 = vmax.f32 %v2588, 0.0
      %v2718 = vmul.f32 %v2590, %v1792
      %v2719 = vmul.f32 %v2591, %v1793
      %v2720 = vmul.f32 %v2592, %v1794
      %v2721 = vmul.f32 %v2593, %v1795
      %v2722 = vmul.f32 %v2594, %v1796
      %v2723 = vmul.f32 %v2595, %v1797
      %v2724 = vmul.f32 %v2596, %v1798
      %v2725 = vmul.f32 %v2597, %v1799
      %v2726 = vmul.f32 %v2598, %v1800
      %v2727 = vmul.f32 %v2599, %v1801
      %v2728 = vmul.f32 %v2600, %v1802
      %v2729 = vmul.f32 %v2601, %v1803
      %v2730 = vmul.f32 %v2602, %v1804
      %v2731 = vmul.f32 %v2603, %v1805
      %v2732 = vmul.f32 %v2604, %v1806
      %v2733 = vmul.f32 %v2605, %v1807
      %v2734 = vmul.f32 %v2606, %v1808
      %v2735 = vmul.f32 %v2607, %v1809
      %v2736 = vmul.f32 %v2608, %v1810
      %v2737 = vmul.f32 %v2609, %v1811
      %v2738 = vmul.f32 %v2610, %v1812
      %v2739 = vmul.f32 %v2611, %v1813
      %v2740 = vmul.f32 %v2612, %v1814
      %v2741 = vmul.f32 %v2613, %v1815
      %v2742 = vmul.f32 %v2614, %v1816
      %v2743 = vmul.f32 %v2615, %v1817
      %v2744 = vmul.f32 %v2616, %v1818
      %v2745 = vmul.f32 %v2617, %v1819
      %v2746 = vmul.f32 %v2618, %v1820
      %v2747 = vmul.f32 %v2619, %v1821
      %v2748 = vmul.f32 %v2620, %v1822
      %v2749 = vmul.f32 %v2621, %v1823
      %v2750 = vmul.f32 %v2622, %v1824
      %v2751 = vmul.f32 %v2623, %v1825
      %v2752 = vmul.f32 %v2624, %v1826
      %v2753 = vmul.f32 %v2625, %v1827
      %v2754 = vmul.f32 %v2626, %v1828
      %v2755 = vmul.f32 %v2627, %v1829
      %v2756 = vmul.f32 %v2628, %v1830
      %v2757 = vmul.f32 %v2629, %v1831
      %v2758 = vmul.f32 %v2630, %v1832
      %v2759 = vmul.f32 %v2631, %v1833
      %v2760 = vmul.f32 %v2632, %v1834
      %v2761 = vmul.f32 %v2633, %v1835
      %v2762 = vmul.f32 %v2634, %v1836
      %v2763 = vmul.f32 %v2635, %v1837
      %v2764 = vmul.f32 %v2636, %v1838
      %v2765 = vmul.f32 %v2637, %v1839
      %v2766 = vmul.f32 %v2638, %v1840
      %v2767 = vmul.f32 %v2639, %v1841
      %v2768 = vmul.f32 %v2640, %v1842
      %v2769 = vmul.f32 %v2641, %v1843
      %v2770 = vmul.f32 %v2642, %v1844
      %v2771 = vmul.f32 %v2643, %v1845
      %v2772 = vmul.f32 %v2644, %v1846
      %v2773 = vmul.f32 %v2645, %v1847
      %v2774 = vmul.f32 %v2646, %v1848
      %v2775 = vmul.f32 %v2647, %v1849
      %v2776 = vmul.f32 %v2648, %v1850
      %v2777 = vmul.f32 %v2649, %v1851
      %v2778 = vmul.f32 %v2650, %v1852
      %v2779 = vmul.f32 %v2651, %v1853
      %v2780 = vmul.f32 %v2652, %v1854
      %v2781 = vmul.f32 %v2653, %v1855
      %v2782 = vmul.f32 %v2654, %v1856
      %v2783 = vmul.f32 %v2655, %v1857
      %v2784 = vmul.f32 %v2656, %v1858
      %v2785 = vmul.f32 %v2657, %v1859
      %v2786 = vmul.f32 %v2658, %v1860
      %v2787 = vmul.f32 %v2659, %v1861
      %v2788 = vmul.f32 %v2660, %v1862
      %v2789 = vmul.f32 %v2661, %v1863
      %v2790 = vmul.f32 %v2662, %v1864
      %v2791 = vmul.f32 %v2663, %v1865
      %v2792 = vmul.f32 %v2664, %v1866
      %v2793 = vmul.f32 %v2665, %v1867
      %v2794 = vmul.f32 %v2666, %v1868
      %v2795 = vmul.f32 %v2667, %v1869
      %v2796 = vmul.f32 %v2668, %v1870
      %v2797 = vmul.f32 %v2669, %v1871
      %v2798 = vmul.f32 %v2670, %v1872
      %v2799 = vmul.f32 %v2671, %v1873
      %v2800 = vmul.f32 %v2672, %v1874
      %v2801 = vmul.f32 %v2673, %v1875
      %v2802 = vmul.f32 %v2674, %v1876
      %v2803 = vmul.f32 %v2675, %v1877
      %v2804 = vmul.f32 %v2676, %v1878
      %v2805 = vmul.f32 %v2677, %v1879
      %v2806 = vmul.f32 %v2678, %v1880
      %v2807 = vmul.f32 %v2679, %v1881
      %v2808 = vmul.f32 %v2680, %v1882
      %v2809 = vmul.f32 %v2681, %v1883
      %v2810 = vmul.f32 %v2682, %v1884
      %v2811 = vmul.f32 %v2683, %v1885
      %v2812 = vmul.f32 %v2684, %v1886
      %v2813 = vmul.f32 %v2685, %v1887
      %v2814 = vmul.f32 %v2686, %v1888
      %v2815 = vmul.f32 %v2687, %v1889
      %v2816 = vmul.f32 %v2688, %v1890
      %v2817 = vmul.f32 %v2689, %v1891
      %v2818 = vmul.f32 %v2690, %v1892
      %v2819 = vmul.f32 %v2691, %v1893
      %v2820 = vmul.f32 %v2692, %v1894
      %v2821 = vmul.f32 %v2693, %v1895
      %v2822 = vmul.f32 %v2694, %v1896
      %v2823 = vmul.f32 %v2695, %v1897
      %v2824 = vmul.f32 %v2696, %v1898
      %v2825 = vmul.f32 %v2697, %v1899
      %v2826 = vmul.f32 %v2698, %v1900
      %v2827 = vmul.f32 %v2699, %v1901
      %v2828 = vmul.f32 %v2700, %v1902
      %v2829 = vmul.f32 %v2701, %v1903
      %v2830 = vmul.f32 %v2702, %v1904
      %v2831 = vmul.f32 %v2703, %v1905
      %v2832 = vmul.f32 %v2704, %v1906
      %v2833 = vmul.f32 %v2705, %v1907
      %v2834 = vmul.f32 %v2706, %v1908
      %v2835 = vmul.f32 %v2707, %v1909
      %v2836 = vmul.f32 %v2708, %v1910
      %v2837 = vmul.f32 %v2709, %v1911
      %v2838 = vmul.f32 %v2710, %v1912
      %v2839 = vmul.f32 %v2711, %v1913
      %v2840 = vmul.f32 %v2712, %v1914
      %v2841 = vmul.f32 %v2713, %v1915
      %v2842 = vmul.f32 %v2714, %v1916
      %v2843 = vmul.f32 %v2715, %v1917
      %v2844 = vmul.f32 %v2716, %v1918
      %v2845 = vmul.f32 %v2717, %v1919
      %v2846 = vpack.c.bf16 %v2720, %v2718
      %v2847 = vpack.c.bf16 %v2721, %v2719
      %v2848 = vpack.c.bf16 %v2724, %v2722
      %v2849 = vpack.c.bf16 %v2725, %v2723
      %v2850 = vpack.c.bf16 %v2728, %v2726
      %v2851 = vpack.c.bf16 %v2729, %v2727
      %v2852 = vpack.c.bf16 %v2732, %v2730
      %v2853 = vpack.c.bf16 %v2733, %v2731
      %v2854 = vpack.c.bf16 %v2736, %v2734
      %v2855 = vpack.c.bf16 %v2737, %v2735
      %v2856 = vpack.c.bf16 %v2740, %v2738
      %v2857 = vpack.c.bf16 %v2741, %v2739
      %v2858 = vpack.c.bf16 %v2744, %v2742
      %v2859 = vpack.c.bf16 %v2745, %v2743
      %v2860 = vpack.c.bf16 %v2748, %v2746
      %v2861 = vpack.c.bf16 %v2749, %v2747
      %v2862 = vpack.c.bf16 %v2752, %v2750
      %v2863 = vpack.c.bf16 %v2753, %v2751
      %v2864 = vpack.c.bf16 %v2756, %v2754
      %v2865 = vpack.c.bf16 %v2757, %v2755
      %v2866 = vpack.c.bf16 %v2760, %v2758
      %v2867 = vpack.c.bf16 %v2761, %v2759
      %v2868 = vpack.c.bf16 %v2764, %v2762
      %v2869 = vpack.c.bf16 %v2765, %v2763
      %v2870 = vpack.c.bf16 %v2768, %v2766
      %v2871 = vpack.c.bf16 %v2769, %v2767
      %v2872 = vpack.c.bf16 %v2772, %v2770
      %v2873 = vpack.c.bf16 %v2773, %v2771
      %v2874 = vpack.c.bf16 %v2776, %v2774
      %v2875 = vpack.c.bf16 %v2777, %v2775
      %v2876 = vpack.c.bf16 %v2780, %v2778
      %v2877 = vpack.c.bf16 %v2781, %v2779
      %v2878 = vpack.c.bf16 %v2784, %v2782
      %v2879 = vpack.c.bf16 %v2785, %v2783
      %v2880 = vpack.c.bf16 %v2788, %v2786
      %v2881 = vpack.c.bf16 %v2789, %v2787
      %v2882 = vpack.c.bf16 %v2792, %v2790
      %v2883 = vpack.c.bf16 %v2793, %v2791
      %v2884 = vpack.c.bf16 %v2796, %v2794
      %v2885 = vpack.c.bf16 %v2797, %v2795
      %v2886 = vpack.c.bf16 %v2800, %v2798
      %v2887 = vpack.c.bf16 %v2801, %v2799
      %v2888 = vpack.c.bf16 %v2804, %v2802
      %v2889 = vpack.c.bf16 %v2805, %v2803
      %v2890 = vpack.c.bf16 %v2808, %v2806
      %v2891 = vpack.c.bf16 %v2809, %v2807
      %v2892 = vpack.c.bf16 %v2812, %v2810
      %v2893 = vpack.c.bf16 %v2813, %v2811
      %v2894 = vpack.c.bf16 %v2816, %v2814
      %v2895 = vpack.c.bf16 %v2817, %v2815
      %v2896 = vpack.c.bf16 %v2820, %v2818
      %v2897 = vpack.c.bf16 %v2821, %v2819
      %v2898 = vpack.c.bf16 %v2824, %v2822
      %v2899 = vpack.c.bf16 %v2825, %v2823
      %v2900 = vpack.c.bf16 %v2828, %v2826
      %v2901 = vpack.c.bf16 %v2829, %v2827
      %v2902 = vpack.c.bf16 %v2832, %v2830
      %v2903 = vpack.c.bf16 %v2833, %v2831
      %v2904 = vpack.c.bf16 %v2836, %v2834
      %v2905 = vpack.c.bf16 %v2837, %v2835
      %v2906 = vpack.c.bf16 %v2840, %v2838
      %v2907 = vpack.c.bf16 %v2841, %v2839
      %v2908 = vpack.c.bf16 %v2844, %v2842
      %v2909 = vpack.c.bf16 %v2845, %v2843
      %v2910 = vld [vmem:[%s15] sm:$0xff]
      %v2911 = vld [vmem:[%s15 + $0x8] sm:$0xff]
      %v2912 = vld [vmem:[%s15 + $0x10] sm:$0xff]
      %v2913 = vld [vmem:[%s15 + $0x18] sm:$0xff]
      %v2914 = vld [vmem:[%s15 + $0x20] sm:$0xff]
      %v2915 = vld [vmem:[%s15 + $0x28] sm:$0xff]
      %v2916 = vld [vmem:[%s15 + $0x30] sm:$0xff]
      %v2917 = vld [vmem:[%s15 + $0x38] sm:$0xff]
      %v2918 = vld [vmem:[%s15 + $0x40] sm:$0xff]
      %v2919 = vld [vmem:[%s15 + $0x48] sm:$0xff]
      %v2920 = vld [vmem:[%s15 + $0x50] sm:$0xff]
      %v2921 = vld [vmem:[%s15 + $0x58] sm:$0xff]
      %v2922 = vld [vmem:[%s15 + $0x60] sm:$0xff]
      %v2923 = vld [vmem:[%s15 + $0x68] sm:$0xff]
      %v2924 = vld [vmem:[%s15 + $0x70] sm:$0xff]
      %v2925 = vld [vmem:[%s15 + $0x78] sm:$0xff]
      %v2926 = vld [vmem:[%s15 + $0x80] sm:$0xff]
      %v2927 = vld [vmem:[%s15 + $0x88] sm:$0xff]
      %v2928 = vld [vmem:[%s15 + $0x90] sm:$0xff]
      %v2929 = vld [vmem:[%s15 + $0x98] sm:$0xff]
      %v2930 = vld [vmem:[%s15 + $0xa0] sm:$0xff]
      %v2931 = vld [vmem:[%s15 + $0xa8] sm:$0xff]
      %v2932 = vld [vmem:[%s15 + $0xb0] sm:$0xff]
      %v2933 = vld [vmem:[%s15 + $0xb8] sm:$0xff]
      %v2934 = vld [vmem:[%s15 + $0xc0] sm:$0xff]
      %v2935 = vld [vmem:[%s15 + $0xc8] sm:$0xff]
      %v2936 = vld [vmem:[%s15 + $0xd0] sm:$0xff]
      %v2937 = vld [vmem:[%s15 + $0xd8] sm:$0xff]
      %v2938 = vld [vmem:[%s15 + $0xe0] sm:$0xff]
      %v2939 = vld [vmem:[%s15 + $0xe8] sm:$0xff]
      %v2940 = vld [vmem:[%s15 + $0xf0] sm:$0xff]
      %v2941 = vld [vmem:[%s15 + $0xf8] sm:$0xff]
      %v2942 = vld [vmem:[%s17] sm:$0x3]
      %v2944 = vlaneseq
      %v2945 = vshrl.u32 %v2944, 7
      %v2946 = vsub.s32 0, %v2945
      %v2947 = vrot.slane %v2942, %v2946
      %v2948 = vlaneseq
      %v2949 = vshrl.u32 %v2948, 7
      %v2950 = vsub.s32 1, %v2949
      %v2951 = vrot.slane %v2942, %v2950
      %v2986 = vunpack.c.l.b16 %v2910
      %v2987 = vunpack.c.h.b16 %v2910
      %v2988 = vunpack.c.l.b16 %v2911
      %v2989 = vunpack.c.h.b16 %v2911
      %v2990 = vunpack.c.l.b16 %v2912
      %v2991 = vunpack.c.h.b16 %v2912
      %v2992 = vunpack.c.l.b16 %v2913
      %v2993 = vunpack.c.h.b16 %v2913
      %v2994 = vunpack.c.l.b16 %v2914
      %v2995 = vunpack.c.h.b16 %v2914
      %v2996 = vunpack.c.l.b16 %v2915
      %v2997 = vunpack.c.h.b16 %v2915
      %v2998 = vunpack.c.l.b16 %v2916
      %v2999 = vunpack.c.h.b16 %v2916
      %v3000 = vunpack.c.l.b16 %v2917
      %v3001 = vunpack.c.h.b16 %v2917
      %v3002 = vunpack.c.l.b16 %v2918
      %v3003 = vunpack.c.h.b16 %v2918
      %v3004 = vunpack.c.l.b16 %v2919
      %v3005 = vunpack.c.h.b16 %v2919
      %v3006 = vunpack.c.l.b16 %v2920
      %v3007 = vunpack.c.h.b16 %v2920
      %v3008 = vunpack.c.l.b16 %v2921
      %v3009 = vunpack.c.h.b16 %v2921
      %v3010 = vunpack.c.l.b16 %v2922
      %v3011 = vunpack.c.h.b16 %v2922
      %v3012 = vunpack.c.l.b16 %v2923
      %v3013 = vunpack.c.h.b16 %v2923
      %v3014 = vunpack.c.l.b16 %v2924
      %v3015 = vunpack.c.h.b16 %v2924
      %v3016 = vunpack.c.l.b16 %v2925
      %v3017 = vunpack.c.h.b16 %v2925
      %v3018 = vunpack.c.l.b16 %v2926
      %v3019 = vunpack.c.h.b16 %v2926
      %v3020 = vunpack.c.l.b16 %v2927
      %v3021 = vunpack.c.h.b16 %v2927
      %v3022 = vunpack.c.l.b16 %v2928
      %v3023 = vunpack.c.h.b16 %v2928
      %v3024 = vunpack.c.l.b16 %v2929
      %v3025 = vunpack.c.h.b16 %v2929
      %v3026 = vunpack.c.l.b16 %v2930
      %v3027 = vunpack.c.h.b16 %v2930
      %v3028 = vunpack.c.l.b16 %v2931
      %v3029 = vunpack.c.h.b16 %v2931
      %v3030 = vunpack.c.l.b16 %v2932
      %v3031 = vunpack.c.h.b16 %v2932
      %v3032 = vunpack.c.l.b16 %v2933
      %v3033 = vunpack.c.h.b16 %v2933
      %v3034 = vunpack.c.l.b16 %v2934
      %v3035 = vunpack.c.h.b16 %v2934
      %v3036 = vunpack.c.l.b16 %v2935
      %v3037 = vunpack.c.h.b16 %v2935
      %v3038 = vunpack.c.l.b16 %v2936
      %v3039 = vunpack.c.h.b16 %v2936
      %v3040 = vunpack.c.l.b16 %v2937
      %v3041 = vunpack.c.h.b16 %v2937
      %v3042 = vunpack.c.l.b16 %v2938
      %v3043 = vunpack.c.h.b16 %v2938
      %v3044 = vunpack.c.l.b16 %v2939
      %v3045 = vunpack.c.h.b16 %v2939
      %v3046 = vunpack.c.l.b16 %v2940
      %v3047 = vunpack.c.h.b16 %v2940
      %v3048 = vunpack.c.l.b16 %v2941
      %v3049 = vunpack.c.h.b16 %v2941
      %v3050 = vpack.c.b16 %v2988, %v2986
      %v3051 = vpack.c.b16 %v2989, %v2987
      %v3052 = vpack.c.b16 %v2992, %v2990
      %v3053 = vpack.c.b16 %v2993, %v2991
      %v3054 = vpack.c.b16 %v2996, %v2994
      %v3055 = vpack.c.b16 %v2997, %v2995
      %v3056 = vpack.c.b16 %v3000, %v2998
      %v3057 = vpack.c.b16 %v3001, %v2999
      %v3058 = vpack.c.b16 %v3004, %v3002
      %v3059 = vpack.c.b16 %v3005, %v3003
      %v3060 = vpack.c.b16 %v3008, %v3006
      %v3061 = vpack.c.b16 %v3009, %v3007
      %v3062 = vpack.c.b16 %v3012, %v3010
      %v3063 = vpack.c.b16 %v3013, %v3011
      %v3064 = vpack.c.b16 %v3016, %v3014
      %v3065 = vpack.c.b16 %v3017, %v3015
      %v3066 = vpack.c.b16 %v3020, %v3018
      %v3067 = vpack.c.b16 %v3021, %v3019
      %v3068 = vpack.c.b16 %v3024, %v3022
      %v3069 = vpack.c.b16 %v3025, %v3023
      %v3070 = vpack.c.b16 %v3028, %v3026
      %v3071 = vpack.c.b16 %v3029, %v3027
      %v3072 = vpack.c.b16 %v3032, %v3030
      %v3073 = vpack.c.b16 %v3033, %v3031
      %v3074 = vpack.c.b16 %v3036, %v3034
      %v3075 = vpack.c.b16 %v3037, %v3035
      %v3076 = vpack.c.b16 %v3040, %v3038
      %v3077 = vpack.c.b16 %v3041, %v3039
      %v3078 = vpack.c.b16 %v3044, %v3042
      %v3079 = vpack.c.b16 %v3045, %v3043
      %v3080 = vpack.c.b16 %v3048, %v3046
      %v3081 = vpack.c.b16 %v3049, %v3047
      %3114 = vmatprep.subr.bf16.mxu0 %v3065
      %3115 = vmatpush1.bf16.msra.mxu0 %v3064
      %3116 = vmatprep.subr.bf16.mxu0 %v3063
      %3117 = vmatpush1.bf16.msra.mxu0 %v3062
      %3118 = vmatprep.subr.bf16.mxu0 %v3061
      %3119 = vmatpush1.bf16.msra.mxu0 %v3060
      %3120 = vmatprep.subr.bf16.mxu0 %v3059
      %3121 = vmatpush1.bf16.msra.mxu0 %v3058
      %3122 = vmatprep.subr.bf16.mxu0 %v3057
      %3123 = vmatpush1.bf16.msra.mxu0 %v3056
      %3124 = vmatprep.subr.bf16.mxu0 %v3055
      %3125 = vmatpush1.bf16.msra.mxu0 %v3054
      %3126 = vmatprep.subr.bf16.mxu0 %v3053
      %3127 = vmatpush1.bf16.msra.mxu0 %v3052
      %3128 = vmatprep.subr.bf16.mxu0 %v3051
      %3129 = vmatpush1.bf16.msra.mxu0 %v3050
      %3130 = vmatprep.subr.bf16.mxu0 %v3081
      %3131 = vmatpush2.bf16.msra.mxu0 %v3080
      %3132 = vmatprep.subr.bf16.mxu0 %v3079
      %3133 = vmatpush2.bf16.msra.mxu0 %v3078
      %3134 = vmatprep.subr.bf16.mxu0 %v3077
      %3135 = vmatpush2.bf16.msra.mxu0 %v3076
      %3136 = vmatprep.subr.bf16.mxu0 %v3075
      %3137 = vmatpush2.bf16.msra.mxu0 %v3074
      %3138 = vmatprep.subr.bf16.mxu0 %v3073
      %3139 = vmatpush2.bf16.msra.mxu0 %v3072
      %3140 = vmatprep.subr.bf16.mxu0 %v3071
      %3141 = vmatpush2.bf16.msra.mxu0 %v3070
      %3142 = vmatprep.subr.bf16.mxu0 %v3069
      %3143 = vmatpush2.bf16.msra.mxu0 %v3068
      %3144 = vmatprep.subr.bf16.mxu0 %v3067
      %3145 = vmatpush2.bf16.msra.mxu0 %v3066
      %3146 = vmatprep.mubr.bf16.mxu0 %v2847
      %3147 = vmatmul.mubr.bf16.gmra.mxu0 %v2846
      %v3148 = vpop.f32.mrf.mxu0
      %v3149 = vadd.f32 %v2947, %v3148
      %v3150 = vpop.f32.mrf.mxu0
      %v3151 = vadd.f32 %v2951, %v3150
      %v3152 = vpop.f32.mrf.mxu0
      %v3153 = vadd.f32 %v2947, %v3152
      %v3154 = vpop.f32.mrf.mxu0
      %v3155 = vadd.f32 %v2951, %v3154
      %3156 = vmatprep.mubr.bf16.mxu0 %v2849
      %3157 = vmatmul.mubr.bf16.gmra.mxu0 %v2848
      %v3158 = vpop.f32.mrf.mxu0
      %v3159 = vadd.f32 %v2947, %v3158
      %v3160 = vpop.f32.mrf.mxu0
      %v3161 = vadd.f32 %v2951, %v3160
      %v3162 = vpop.f32.mrf.mxu0
      %v3163 = vadd.f32 %v2947, %v3162
      %v3164 = vpop.f32.mrf.mxu0
      %v3165 = vadd.f32 %v2951, %v3164
      %3166 = vmatprep.mubr.bf16.mxu0 %v2851
      %3167 = vmatmul.mubr.bf16.gmra.mxu0 %v2850
      %v3168 = vpop.f32.mrf.mxu0
      %v3169 = vadd.f32 %v2947, %v3168
      %v3170 = vpop.f32.mrf.mxu0
      %v3171 = vadd.f32 %v2951, %v3170
      %v3172 = vpop.f32.mrf.mxu0
      %v3173 = vadd.f32 %v2947, %v3172
      %v3174 = vpop.f32.mrf.mxu0
      %v3175 = vadd.f32 %v2951, %v3174
      %3176 = vmatprep.mubr.bf16.mxu0 %v2853
      %3177 = vmatmul.mubr.bf16.gmra.mxu0 %v2852
      %v3178 = vpop.f32.mrf.mxu0
      %v3179 = vadd.f32 %v2947, %v3178
      %v3180 = vpop.f32.mrf.mxu0
      %v3181 = vadd.f32 %v2951, %v3180
      %v3182 = vpop.f32.mrf.mxu0
      %v3183 = vadd.f32 %v2947, %v3182
      %v3184 = vpop.f32.mrf.mxu0
      %v3185 = vadd.f32 %v2951, %v3184
      %3186 = vmatprep.mubr.bf16.mxu0 %v2855
      %3187 = vmatmul.mubr.bf16.gmra.mxu0 %v2854
      %v3188 = vpop.f32.mrf.mxu0
      %v3189 = vadd.f32 %v2947, %v3188
      %v3190 = vpop.f32.mrf.mxu0
      %v3191 = vadd.f32 %v2951, %v3190
      %v3192 = vpop.f32.mrf.mxu0
      %v3193 = vadd.f32 %v2947, %v3192
      %v3194 = vpop.f32.mrf.mxu0
      %v3195 = vadd.f32 %v2951, %v3194
      %3196 = vmatprep.mubr.bf16.mxu0 %v2857
      %3197 = vmatmul.mubr.bf16.gmra.mxu0 %v2856
      %v3198 = vpop.f32.mrf.mxu0
      %v3199 = vadd.f32 %v2947, %v3198
      %v3200 = vpop.f32.mrf.mxu0
      %v3201 = vadd.f32 %v2951, %v3200
      %v3202 = vpop.f32.mrf.mxu0
      %v3203 = vadd.f32 %v2947, %v3202
      %v3204 = vpop.f32.mrf.mxu0
      %v3205 = vadd.f32 %v2951, %v3204
      %3206 = vmatprep.mubr.bf16.mxu0 %v2859
      %3207 = vmatmul.mubr.bf16.gmra.mxu0 %v2858
      %v3208 = vpop.f32.mrf.mxu0
      %v3209 = vadd.f32 %v2947, %v3208
      %v3210 = vpop.f32.mrf.mxu0
      %v3211 = vadd.f32 %v2951, %v3210
      %v3212 = vpop.f32.mrf.mxu0
      %v3213 = vadd.f32 %v2947, %v3212
      %v3214 = vpop.f32.mrf.mxu0
      %v3215 = vadd.f32 %v2951, %v3214
      %3216 = vmatprep.mubr.bf16.mxu0 %v2861
      %3217 = vmatmul.mubr.bf16.gmra.mxu0 %v2860
      %v3218 = vpop.f32.mrf.mxu0
      %v3219 = vadd.f32 %v2947, %v3218
      %v3220 = vpop.f32.mrf.mxu0
      %v3221 = vadd.f32 %v2951, %v3220
      %v3222 = vpop.f32.mrf.mxu0
      %v3223 = vadd.f32 %v2947, %v3222
      %v3224 = vpop.f32.mrf.mxu0
      %v3225 = vadd.f32 %v2951, %v3224
      %3226 = vmatprep.mubr.bf16.mxu0 %v2863
      %3227 = vmatmul.mubr.bf16.gmra.mxu0 %v2862
      %v3228 = vpop.f32.mrf.mxu0
      %v3229 = vadd.f32 %v2947, %v3228
      %v3230 = vpop.f32.mrf.mxu0
      %v3231 = vadd.f32 %v2951, %v3230
      %v3232 = vpop.f32.mrf.mxu0
      %v3233 = vadd.f32 %v2947, %v3232
      %v3234 = vpop.f32.mrf.mxu0
      %v3235 = vadd.f32 %v2951, %v3234
      %3236 = vmatprep.mubr.bf16.mxu0 %v2865
      %3237 = vmatmul.mubr.bf16.gmra.mxu0 %v2864
      %v3238 = vpop.f32.mrf.mxu0
      %v3239 = vadd.f32 %v2947, %v3238
      %v3240 = vpop.f32.mrf.mxu0
      %v3241 = vadd.f32 %v2951, %v3240
      %v3242 = vpop.f32.mrf.mxu0
      %v3243 = vadd.f32 %v2947, %v3242
      %v3244 = vpop.f32.mrf.mxu0
      %v3245 = vadd.f32 %v2951, %v3244
      %3246 = vmatprep.mubr.bf16.mxu0 %v2867
      %3247 = vmatmul.mubr.bf16.gmra.mxu0 %v2866
      %v3248 = vpop.f32.mrf.mxu0
      %v3249 = vadd.f32 %v2947, %v3248
      %v3250 = vpop.f32.mrf.mxu0
      %v3251 = vadd.f32 %v2951, %v3250
      %v3252 = vpop.f32.mrf.mxu0
      %v3253 = vadd.f32 %v2947, %v3252
      %v3254 = vpop.f32.mrf.mxu0
      %v3255 = vadd.f32 %v2951, %v3254
      %3256 = vmatprep.mubr.bf16.mxu0 %v2869
      %3257 = vmatmul.mubr.bf16.gmra.mxu0 %v2868
      %v3258 = vpop.f32.mrf.mxu0
      %v3259 = vadd.f32 %v2947, %v3258
      %v3260 = vpop.f32.mrf.mxu0
      %v3261 = vadd.f32 %v2951, %v3260
      %v3262 = vpop.f32.mrf.mxu0
      %v3263 = vadd.f32 %v2947, %v3262
      %v3264 = vpop.f32.mrf.mxu0
      %v3265 = vadd.f32 %v2951, %v3264
      %3266 = vmatprep.mubr.bf16.mxu0 %v2871
      %3267 = vmatmul.mubr.bf16.gmra.mxu0 %v2870
      %v3268 = vpop.f32.mrf.mxu0
      %v3269 = vadd.f32 %v2947, %v3268
      %v3270 = vpop.f32.mrf.mxu0
      %v3271 = vadd.f32 %v2951, %v3270
      %v3272 = vpop.f32.mrf.mxu0
      %v3273 = vadd.f32 %v2947, %v3272
      %v3274 = vpop.f32.mrf.mxu0
      %v3275 = vadd.f32 %v2951, %v3274
      %3276 = vmatprep.mubr.bf16.mxu0 %v2873
      %3277 = vmatmul.mubr.bf16.gmra.mxu0 %v2872
      %v3278 = vpop.f32.mrf.mxu0
      %v3279 = vadd.f32 %v2947, %v3278
      %v3280 = vpop.f32.mrf.mxu0
      %v3281 = vadd.f32 %v2951, %v3280
      %v3282 = vpop.f32.mrf.mxu0
      %v3283 = vadd.f32 %v2947, %v3282
      %v3284 = vpop.f32.mrf.mxu0
      %v3285 = vadd.f32 %v2951, %v3284
      %3286 = vmatprep.mubr.bf16.mxu0 %v2875
      %3287 = vmatmul.mubr.bf16.gmra.mxu0 %v2874
      %v3288 = vpop.f32.mrf.mxu0
      %v3289 = vadd.f32 %v2947, %v3288
      %v3290 = vpop.f32.mrf.mxu0
      %v3291 = vadd.f32 %v2951, %v3290
      %v3292 = vpop.f32.mrf.mxu0
      %v3293 = vadd.f32 %v2947, %v3292
      %v3294 = vpop.f32.mrf.mxu0
      %v3295 = vadd.f32 %v2951, %v3294
      %3296 = vmatprep.mubr.bf16.mxu0 %v2877
      %3297 = vmatmul.mubr.bf16.gmra.mxu0 %v2876
      %v3298 = vpop.f32.mrf.mxu0
      %v3299 = vadd.f32 %v2947, %v3298
      %v3300 = vpop.f32.mrf.mxu0
      %v3301 = vadd.f32 %v2951, %v3300
      %v3302 = vpop.f32.mrf.mxu0
      %v3303 = vadd.f32 %v2947, %v3302
      %v3304 = vpop.f32.mrf.mxu0
      %v3305 = vadd.f32 %v2951, %v3304
      %3306 = vmatprep.mubr.bf16.mxu0 %v2879
      %3307 = vmatmul.mubr.bf16.gmra.mxu0 %v2878
      %v3308 = vpop.f32.mrf.mxu0
      %v3309 = vadd.f32 %v2947, %v3308
      %v3310 = vpop.f32.mrf.mxu0
      %v3311 = vadd.f32 %v2951, %v3310
      %v3312 = vpop.f32.mrf.mxu0
      %v3313 = vadd.f32 %v2947, %v3312
      %v3314 = vpop.f32.mrf.mxu0
      %v3315 = vadd.f32 %v2951, %v3314
      %3316 = vmatprep.mubr.bf16.mxu0 %v2881
      %3317 = vmatmul.mubr.bf16.gmra.mxu0 %v2880
      %v3318 = vpop.f32.mrf.mxu0
      %v3319 = vadd.f32 %v2947, %v3318
      %v3320 = vpop.f32.mrf.mxu0
      %v3321 = vadd.f32 %v2951, %v3320
      %v3322 = vpop.f32.mrf.mxu0
      %v3323 = vadd.f32 %v2947, %v3322
      %v3324 = vpop.f32.mrf.mxu0
      %v3325 = vadd.f32 %v2951, %v3324
      %3326 = vmatprep.mubr.bf16.mxu0 %v2883
      %3327 = vmatmul.mubr.bf16.gmra.mxu0 %v2882
      %v3328 = vpop.f32.mrf.mxu0
      %v3329 = vadd.f32 %v2947, %v3328
      %v3330 = vpop.f32.mrf.mxu0
      %v3331 = vadd.f32 %v2951, %v3330
      %v3332 = vpop.f32.mrf.mxu0
      %v3333 = vadd.f32 %v2947, %v3332
      %v3334 = vpop.f32.mrf.mxu0
      %v3335 = vadd.f32 %v2951, %v3334
      %3336 = vmatprep.mubr.bf16.mxu0 %v2885
      %3337 = vmatmul.mubr.bf16.gmra.mxu0 %v2884
      %v3338 = vpop.f32.mrf.mxu0
      %v3339 = vadd.f32 %v2947, %v3338
      %v3340 = vpop.f32.mrf.mxu0
      %v3341 = vadd.f32 %v2951, %v3340
      %v3342 = vpop.f32.mrf.mxu0
      %v3343 = vadd.f32 %v2947, %v3342
      %v3344 = vpop.f32.mrf.mxu0
      %v3345 = vadd.f32 %v2951, %v3344
      %3346 = vmatprep.mubr.bf16.mxu0 %v2887
      %3347 = vmatmul.mubr.bf16.gmra.mxu0 %v2886
      %v3348 = vpop.f32.mrf.mxu0
      %v3349 = vadd.f32 %v2947, %v3348
      %v3350 = vpop.f32.mrf.mxu0
      %v3351 = vadd.f32 %v2951, %v3350
      %v3352 = vpop.f32.mrf.mxu0
      %v3353 = vadd.f32 %v2947, %v3352
      %v3354 = vpop.f32.mrf.mxu0
      %v3355 = vadd.f32 %v2951, %v3354
      %3356 = vmatprep.mubr.bf16.mxu0 %v2889
      %3357 = vmatmul.mubr.bf16.gmra.mxu0 %v2888
      %v3358 = vpop.f32.mrf.mxu0
      %v3359 = vadd.f32 %v2947, %v3358
      %v3360 = vpop.f32.mrf.mxu0
      %v3361 = vadd.f32 %v2951, %v3360
      %v3362 = vpop.f32.mrf.mxu0
      %v3363 = vadd.f32 %v2947, %v3362
      %v3364 = vpop.f32.mrf.mxu0
      %v3365 = vadd.f32 %v2951, %v3364
      %3366 = vmatprep.mubr.bf16.mxu0 %v2891
      %3367 = vmatmul.mubr.bf16.gmra.mxu0 %v2890
      %v3368 = vpop.f32.mrf.mxu0
      %v3369 = vadd.f32 %v2947, %v3368
      %v3370 = vpop.f32.mrf.mxu0
      %v3371 = vadd.f32 %v2951, %v3370
      %v3372 = vpop.f32.mrf.mxu0
      %v3373 = vadd.f32 %v2947, %v3372
      %v3374 = vpop.f32.mrf.mxu0
      %v3375 = vadd.f32 %v2951, %v3374
      %3376 = vmatprep.mubr.bf16.mxu0 %v2893
      %3377 = vmatmul.mubr.bf16.gmra.mxu0 %v2892
      %v3378 = vpop.f32.mrf.mxu0
      %v3379 = vadd.f32 %v2947, %v3378
      %v3380 = vpop.f32.mrf.mxu0
      %v3381 = vadd.f32 %v2951, %v3380
      %v3382 = vpop.f32.mrf.mxu0
      %v3383 = vadd.f32 %v2947, %v3382
      %v3384 = vpop.f32.mrf.mxu0
      %v3385 = vadd.f32 %v2951, %v3384
      %3386 = vmatprep.mubr.bf16.mxu0 %v2895
      %3387 = vmatmul.mubr.bf16.gmra.mxu0 %v2894
      %v3388 = vpop.f32.mrf.mxu0
      %v3389 = vadd.f32 %v2947, %v3388
      %v3390 = vpop.f32.mrf.mxu0
      %v3391 = vadd.f32 %v2951, %v3390
      %v3392 = vpop.f32.mrf.mxu0
      %v3393 = vadd.f32 %v2947, %v3392
      %v3394 = vpop.f32.mrf.mxu0
      %v3395 = vadd.f32 %v2951, %v3394
      %3396 = vmatprep.mubr.bf16.mxu0 %v2897
      %3397 = vmatmul.mubr.bf16.gmra.mxu0 %v2896
      %v3398 = vpop.f32.mrf.mxu0
      %v3399 = vadd.f32 %v2947, %v3398
      %v3400 = vpop.f32.mrf.mxu0
      %v3401 = vadd.f32 %v2951, %v3400
      %v3402 = vpop.f32.mrf.mxu0
      %v3403 = vadd.f32 %v2947, %v3402
      %v3404 = vpop.f32.mrf.mxu0
      %v3405 = vadd.f32 %v2951, %v3404
      %3406 = vmatprep.mubr.bf16.mxu0 %v2899
      %3407 = vmatmul.mubr.bf16.gmra.mxu0 %v2898
      %v3408 = vpop.f32.mrf.mxu0
      %v3409 = vadd.f32 %v2947, %v3408
      %v3410 = vpop.f32.mrf.mxu0
      %v3411 = vadd.f32 %v2951, %v3410
      %v3412 = vpop.f32.mrf.mxu0
      %v3413 = vadd.f32 %v2947, %v3412
      %v3414 = vpop.f32.mrf.mxu0
      %v3415 = vadd.f32 %v2951, %v3414
      %3416 = vmatprep.mubr.bf16.mxu0 %v2901
      %3417 = vmatmul.mubr.bf16.gmra.mxu0 %v2900
      %v3418 = vpop.f32.mrf.mxu0
      %v3419 = vadd.f32 %v2947, %v3418
      %v3420 = vpop.f32.mrf.mxu0
      %v3421 = vadd.f32 %v2951, %v3420
      %v3422 = vpop.f32.mrf.mxu0
      %v3423 = vadd.f32 %v2947, %v3422
      %v3424 = vpop.f32.mrf.mxu0
      %v3425 = vadd.f32 %v2951, %v3424
      %3426 = vmatprep.mubr.bf16.mxu0 %v2903
      %3427 = vmatmul.mubr.bf16.gmra.mxu0 %v2902
      %v3428 = vpop.f32.mrf.mxu0
      %v3429 = vadd.f32 %v2947, %v3428
      %v3430 = vpop.f32.mrf.mxu0
      %v3431 = vadd.f32 %v2951, %v3430
      %v3432 = vpop.f32.mrf.mxu0
      %v3433 = vadd.f32 %v2947, %v3432
      %v3434 = vpop.f32.mrf.mxu0
      %v3435 = vadd.f32 %v2951, %v3434
      %3436 = vmatprep.mubr.bf16.mxu0 %v2905
      %3437 = vmatmul.mubr.bf16.gmra.mxu0 %v2904
      %v3438 = vpop.f32.mrf.mxu0
      %v3439 = vadd.f32 %v2947, %v3438
      %v3440 = vpop.f32.mrf.mxu0
      %v3441 = vadd.f32 %v2951, %v3440
      %v3442 = vpop.f32.mrf.mxu0
      %v3443 = vadd.f32 %v2947, %v3442
      %v3444 = vpop.f32.mrf.mxu0
      %v3445 = vadd.f32 %v2951, %v3444
      %3446 = vmatprep.mubr.bf16.mxu0 %v2907
      %3447 = vmatmul.mubr.bf16.gmra.mxu0 %v2906
      %v3448 = vpop.f32.mrf.mxu0
      %v3449 = vadd.f32 %v2947, %v3448
      %v3450 = vpop.f32.mrf.mxu0
      %v3451 = vadd.f32 %v2951, %v3450
      %v3452 = vpop.f32.mrf.mxu0
      %v3453 = vadd.f32 %v2947, %v3452
      %v3454 = vpop.f32.mrf.mxu0
      %v3455 = vadd.f32 %v2951, %v3454
      %3456 = vmatprep.mubr.bf16.mxu0 %v2909
      %3457 = vmatmul.mubr.bf16.gmra.mxu0 %v2908
      %v3458 = vpop.f32.mrf.mxu0
      %v3459 = vadd.f32 %v2947, %v3458
      %v3460 = vpop.f32.mrf.mxu0
      %v3461 = vadd.f32 %v2951, %v3460
      %v3462 = vpop.f32.mrf.mxu0
      %v3463 = vadd.f32 %v2947, %v3462
      %v3464 = vpop.f32.mrf.mxu0
      %v3465 = vadd.f32 %v2951, %v3464
      %3466 = vdwg.mxu0
      %v3467 = vmax.f32 %v3149, 0.0
      %v3468 = vmax.f32 %v3151, 0.0
      %v3469 = vmax.f32 %v3153, 0.0
      %v3470 = vmax.f32 %v3155, 0.0
      %v3471 = vmax.f32 %v3159, 0.0
      %v3472 = vmax.f32 %v3161, 0.0
      %v3473 = vmax.f32 %v3163, 0.0
      %v3474 = vmax.f32 %v3165, 0.0
      %v3475 = vmax.f32 %v3169, 0.0
      %v3476 = vmax.f32 %v3171, 0.0
      %v3477 = vmax.f32 %v3173, 0.0
      %v3478 = vmax.f32 %v3175, 0.0
      %v3479 = vmax.f32 %v3179, 0.0
      %v3480 = vmax.f32 %v3181, 0.0
      %v3481 = vmax.f32 %v3183, 0.0
      %v3482 = vmax.f32 %v3185, 0.0
      %v3483 = vmax.f32 %v3189, 0.0
      %v3484 = vmax.f32 %v3191, 0.0
      %v3485 = vmax.f32 %v3193, 0.0
      %v3486 = vmax.f32 %v3195, 0.0
      %v3487 = vmax.f32 %v3199, 0.0
      %v3488 = vmax.f32 %v3201, 0.0
      %v3489 = vmax.f32 %v3203, 0.0
      %v3490 = vmax.f32 %v3205, 0.0
      %v3491 = vmax.f32 %v3209, 0.0
      %v3492 = vmax.f32 %v3211, 0.0
      %v3493 = vmax.f32 %v3213, 0.0
      %v3494 = vmax.f32 %v3215, 0.0
      %v3495 = vmax.f32 %v3219, 0.0
      %v3496 = vmax.f32 %v3221, 0.0
      %v3497 = vmax.f32 %v3223, 0.0
      %v3498 = vmax.f32 %v3225, 0.0
      %v3499 = vmax.f32 %v3229, 0.0
      %v3500 = vmax.f32 %v3231, 0.0
      %v3501 = vmax.f32 %v3233, 0.0
      %v3502 = vmax.f32 %v3235, 0.0
      %v3503 = vmax.f32 %v3239, 0.0
      %v3504 = vmax.f32 %v3241, 0.0
      %v3505 = vmax.f32 %v3243, 0.0
      %v3506 = vmax.f32 %v3245, 0.0
      %v3507 = vmax.f32 %v3249, 0.0
      %v3508 = vmax.f32 %v3251, 0.0
      %v3509 = vmax.f32 %v3253, 0.0
      %v3510 = vmax.f32 %v3255, 0.0
      %v3511 = vmax.f32 %v3259, 0.0
      %v3512 = vmax.f32 %v3261, 0.0
      %v3513 = vmax.f32 %v3263, 0.0
      %v3514 = vmax.f32 %v3265, 0.0
      %v3515 = vmax.f32 %v3269, 0.0
      %v3516 = vmax.f32 %v3271, 0.0
      %v3517 = vmax.f32 %v3273, 0.0
      %v3518 = vmax.f32 %v3275, 0.0
      %v3519 = vmax.f32 %v3279, 0.0
      %v3520 = vmax.f32 %v3281, 0.0
      %v3521 = vmax.f32 %v3283, 0.0
      %v3522 = vmax.f32 %v3285, 0.0
      %v3523 = vmax.f32 %v3289, 0.0
      %v3524 = vmax.f32 %v3291, 0.0
      %v3525 = vmax.f32 %v3293, 0.0
      %v3526 = vmax.f32 %v3295, 0.0
      %v3527 = vmax.f32 %v3299, 0.0
      %v3528 = vmax.f32 %v3301, 0.0
      %v3529 = vmax.f32 %v3303, 0.0
      %v3530 = vmax.f32 %v3305, 0.0
      %v3531 = vmax.f32 %v3309, 0.0
      %v3532 = vmax.f32 %v3311, 0.0
      %v3533 = vmax.f32 %v3313, 0.0
      %v3534 = vmax.f32 %v3315, 0.0
      %v3535 = vmax.f32 %v3319, 0.0
      %v3536 = vmax.f32 %v3321, 0.0
      %v3537 = vmax.f32 %v3323, 0.0
      %v3538 = vmax.f32 %v3325, 0.0
      %v3539 = vmax.f32 %v3329, 0.0
      %v3540 = vmax.f32 %v3331, 0.0
      %v3541 = vmax.f32 %v3333, 0.0
      %v3542 = vmax.f32 %v3335, 0.0
      %v3543 = vmax.f32 %v3339, 0.0
      %v3544 = vmax.f32 %v3341, 0.0
      %v3545 = vmax.f32 %v3343, 0.0
      %v3546 = vmax.f32 %v3345, 0.0
      %v3547 = vmax.f32 %v3349, 0.0
      %v3548 = vmax.f32 %v3351, 0.0
      %v3549 = vmax.f32 %v3353, 0.0
      %v3550 = vmax.f32 %v3355, 0.0
      %v3551 = vmax.f32 %v3359, 0.0
      %v3552 = vmax.f32 %v3361, 0.0
      %v3553 = vmax.f32 %v3363, 0.0
      %v3554 = vmax.f32 %v3365, 0.0
      %v3555 = vmax.f32 %v3369, 0.0
      %v3556 = vmax.f32 %v3371, 0.0
      %v3557 = vmax.f32 %v3373, 0.0
      %v3558 = vmax.f32 %v3375, 0.0
      %v3559 = vmax.f32 %v3379, 0.0
      %v3560 = vmax.f32 %v3381, 0.0
      %v3561 = vmax.f32 %v3383, 0.0
      %v3562 = vmax.f32 %v3385, 0.0
      %v3563 = vmax.f32 %v3389, 0.0
      %v3564 = vmax.f32 %v3391, 0.0
      %v3565 = vmax.f32 %v3393, 0.0
      %v3566 = vmax.f32 %v3395, 0.0
      %v3567 = vmax.f32 %v3399, 0.0
      %v3568 = vmax.f32 %v3401, 0.0
      %v3569 = vmax.f32 %v3403, 0.0
      %v3570 = vmax.f32 %v3405, 0.0
      %v3571 = vmax.f32 %v3409, 0.0
      %v3572 = vmax.f32 %v3411, 0.0
      %v3573 = vmax.f32 %v3413, 0.0
      %v3574 = vmax.f32 %v3415, 0.0
      %v3575 = vmax.f32 %v3419, 0.0
      %v3576 = vmax.f32 %v3421, 0.0
      %v3577 = vmax.f32 %v3423, 0.0
      %v3578 = vmax.f32 %v3425, 0.0
      %v3579 = vmax.f32 %v3429, 0.0
      %v3580 = vmax.f32 %v3431, 0.0
      %v3581 = vmax.f32 %v3433, 0.0
      %v3582 = vmax.f32 %v3435, 0.0
      %v3583 = vmax.f32 %v3439, 0.0
      %v3584 = vmax.f32 %v3441, 0.0
      %v3585 = vmax.f32 %v3443, 0.0
      %v3586 = vmax.f32 %v3445, 0.0
      %v3587 = vmax.f32 %v3449, 0.0
      %v3588 = vmax.f32 %v3451, 0.0
      %v3589 = vmax.f32 %v3453, 0.0
      %v3590 = vmax.f32 %v3455, 0.0
      %v3591 = vmax.f32 %v3459, 0.0
      %v3592 = vmax.f32 %v3461, 0.0
      %v3593 = vmax.f32 %v3463, 0.0
      %v3594 = vmax.f32 %v3465, 0.0
      %v3595 = vmul.f32 %v3467, %v1792
      %v3596 = vmul.f32 %v3468, %v1793
      %v3597 = vmul.f32 %v3469, %v1794
      %v3598 = vmul.f32 %v3470, %v1795
      %v3599 = vmul.f32 %v3471, %v1796
      %v3600 = vmul.f32 %v3472, %v1797
      %v3601 = vmul.f32 %v3473, %v1798
      %v3602 = vmul.f32 %v3474, %v1799
      %v3603 = vmul.f32 %v3475, %v1800
      %v3604 = vmul.f32 %v3476, %v1801
      %v3605 = vmul.f32 %v3477, %v1802
      %v3606 = vmul.f32 %v3478, %v1803
      %v3607 = vmul.f32 %v3479, %v1804
      %v3608 = vmul.f32 %v3480, %v1805
      %v3609 = vmul.f32 %v3481, %v1806
      %v3610 = vmul.f32 %v3482, %v1807
      %v3611 = vmul.f32 %v3483, %v1808
      %v3612 = vmul.f32 %v3484, %v1809
      %v3613 = vmul.f32 %v3485, %v1810
      %v3614 = vmul.f32 %v3486, %v1811
      %v3615 = vmul.f32 %v3487, %v1812
      %v3616 = vmul.f32 %v3488, %v1813
      %v3617 = vmul.f32 %v3489, %v1814
      %v3618 = vmul.f32 %v3490, %v1815
      %v3619 = vmul.f32 %v3491, %v1816
      %v3620 = vmul.f32 %v3492, %v1817
      %v3621 = vmul.f32 %v3493, %v1818
      %v3622 = vmul.f32 %v3494, %v1819
      %v3623 = vmul.f32 %v3495, %v1820
      %v3624 = vmul.f32 %v3496, %v1821
      %v3625 = vmul.f32 %v3497, %v1822
      %v3626 = vmul.f32 %v3498, %v1823
      %v3627 = vmul.f32 %v3499, %v1824
      %v3628 = vmul.f32 %v3500, %v1825
      %v3629 = vmul.f32 %v3501, %v1826
      %v3630 = vmul.f32 %v3502, %v1827
      %v3631 = vmul.f32 %v3503, %v1828
      %v3632 = vmul.f32 %v3504, %v1829
      %v3633 = vmul.f32 %v3505, %v1830
      %v3634 = vmul.f32 %v3506, %v1831
      %v3635 = vmul.f32 %v3507, %v1832
      %v3636 = vmul.f32 %v3508, %v1833
      %v3637 = vmul.f32 %v3509, %v1834
      %v3638 = vmul.f32 %v3510, %v1835
      %v3639 = vmul.f32 %v3511, %v1836
      %v3640 = vmul.f32 %v3512, %v1837
      %v3641 = vmul.f32 %v3513, %v1838
      %v3642 = vmul.f32 %v3514, %v1839
      %v3643 = vmul.f32 %v3515, %v1840
      %v3644 = vmul.f32 %v3516, %v1841
      %v3645 = vmul.f32 %v3517, %v1842
      %v3646 = vmul.f32 %v3518, %v1843
      %v3647 = vmul.f32 %v3519, %v1844
      %v3648 = vmul.f32 %v3520, %v1845
      %v3649 = vmul.f32 %v3521, %v1846
      %v3650 = vmul.f32 %v3522, %v1847
      %v3651 = vmul.f32 %v3523, %v1848
      %v3652 = vmul.f32 %v3524, %v1849
      %v3653 = vmul.f32 %v3525, %v1850
      %v3654 = vmul.f32 %v3526, %v1851
      %v3655 = vmul.f32 %v3527, %v1852
      %v3656 = vmul.f32 %v3528, %v1853
      %v3657 = vmul.f32 %v3529, %v1854
      %v3658 = vmul.f32 %v3530, %v1855
      %v3659 = vmul.f32 %v3531, %v1856
      %v3660 = vmul.f32 %v3532, %v1857
      %v3661 = vmul.f32 %v3533, %v1858
      %v3662 = vmul.f32 %v3534, %v1859
      %v3663 = vmul.f32 %v3535, %v1860
      %v3664 = vmul.f32 %v3536, %v1861
      %v3665 = vmul.f32 %v3537, %v1862
      %v3666 = vmul.f32 %v3538, %v1863
      %v3667 = vmul.f32 %v3539, %v1864
      %v3668 = vmul.f32 %v3540, %v1865
      %v3669 = vmul.f32 %v3541, %v1866
      %v3670 = vmul.f32 %v3542, %v1867
      %v3671 = vmul.f32 %v3543, %v1868
      %v3672 = vmul.f32 %v3544, %v1869
      %v3673 = vmul.f32 %v3545, %v1870
      %v3674 = vmul.f32 %v3546, %v1871
      %v3675 = vmul.f32 %v3547, %v1872
      %v3676 = vmul.f32 %v3548, %v1873
      %v3677 = vmul.f32 %v3549, %v1874
      %v3678 = vmul.f32 %v3550, %v1875
      %v3679 = vmul.f32 %v3551, %v1876
      %v3680 = vmul.f32 %v3552, %v1877
      %v3681 = vmul.f32 %v3553, %v1878
      %v3682 = vmul.f32 %v3554, %v1879
      %v3683 = vmul.f32 %v3555, %v1880
      %v3684 = vmul.f32 %v3556, %v1881
      %v3685 = vmul.f32 %v3557, %v1882
      %v3686 = vmul.f32 %v3558, %v1883
      %v3687 = vmul.f32 %v3559, %v1884
      %v3688 = vmul.f32 %v3560, %v1885
      %v3689 = vmul.f32 %v3561, %v1886
      %v3690 = vmul.f32 %v3562, %v1887
      %v3691 = vmul.f32 %v3563, %v1888
      %v3692 = vmul.f32 %v3564, %v1889
      %v3693 = vmul.f32 %v3565, %v1890
      %v3694 = vmul.f32 %v3566, %v1891
      %v3695 = vmul.f32 %v3567, %v1892
      %v3696 = vmul.f32 %v3568, %v1893
      %v3697 = vmul.f32 %v3569, %v1894
      %v3698 = vmul.f32 %v3570, %v1895
      %v3699 = vmul.f32 %v3571, %v1896
      %v3700 = vmul.f32 %v3572, %v1897
      %v3701 = vmul.f32 %v3573, %v1898
      %v3702 = vmul.f32 %v3574, %v1899
      %v3703 = vmul.f32 %v3575, %v1900
      %v3704 = vmul.f32 %v3576, %v1901
      %v3705 = vmul.f32 %v3577, %v1902
      %v3706 = vmul.f32 %v3578, %v1903
      %v3707 = vmul.f32 %v3579, %v1904
      %v3708 = vmul.f32 %v3580, %v1905
      %v3709 = vmul.f32 %v3581, %v1906
      %v3710 = vmul.f32 %v3582, %v1907
      %v3711 = vmul.f32 %v3583, %v1908
      %v3712 = vmul.f32 %v3584, %v1909
      %v3713 = vmul.f32 %v3585, %v1910
      %v3714 = vmul.f32 %v3586, %v1911
      %v3715 = vmul.f32 %v3587, %v1912
      %v3716 = vmul.f32 %v3588, %v1913
      %v3717 = vmul.f32 %v3589, %v1914
      %v3718 = vmul.f32 %v3590, %v1915
      %v3719 = vmul.f32 %v3591, %v1916
      %v3720 = vmul.f32 %v3592, %v1917
      %v3721 = vmul.f32 %v3593, %v1918
      %v3722 = vmul.f32 %v3594, %v1919
      %v3723 = vpack.c.bf16 %v3597, %v3595
      %v3724 = vpack.c.bf16 %v3598, %v3596
      %v3725 = vpack.c.bf16 %v3601, %v3599
      %v3726 = vpack.c.bf16 %v3602, %v3600
      %v3727 = vpack.c.bf16 %v3605, %v3603
      %v3728 = vpack.c.bf16 %v3606, %v3604
      %v3729 = vpack.c.bf16 %v3609, %v3607
      %v3730 = vpack.c.bf16 %v3610, %v3608
      %v3731 = vpack.c.bf16 %v3613, %v3611
      %v3732 = vpack.c.bf16 %v3614, %v3612
      %v3733 = vpack.c.bf16 %v3617, %v3615
      %v3734 = vpack.c.bf16 %v3618, %v3616
      %v3735 = vpack.c.bf16 %v3621, %v3619
      %v3736 = vpack.c.bf16 %v3622, %v3620
      %v3737 = vpack.c.bf16 %v3625, %v3623
      %v3738 = vpack.c.bf16 %v3626, %v3624
      %v3739 = vpack.c.bf16 %v3629, %v3627
      %v3740 = vpack.c.bf16 %v3630, %v3628
      %v3741 = vpack.c.bf16 %v3633, %v3631
      %v3742 = vpack.c.bf16 %v3634, %v3632
      %v3743 = vpack.c.bf16 %v3637, %v3635
      %v3744 = vpack.c.bf16 %v3638, %v3636
      %v3745 = vpack.c.bf16 %v3641, %v3639
      %v3746 = vpack.c.bf16 %v3642, %v3640
      %v3747 = vpack.c.bf16 %v3645, %v3643
      %v3748 = vpack.c.bf16 %v3646, %v3644
      %v3749 = vpack.c.bf16 %v3649, %v3647
      %v3750 = vpack.c.bf16 %v3650, %v3648
      %v3751 = vpack.c.bf16 %v3653, %v3651
      %v3752 = vpack.c.bf16 %v3654, %v3652
      %v3753 = vpack.c.bf16 %v3657, %v3655
      %v3754 = vpack.c.bf16 %v3658, %v3656
      %v3755 = vpack.c.bf16 %v3661, %v3659
      %v3756 = vpack.c.bf16 %v3662, %v3660
      %v3757 = vpack.c.bf16 %v3665, %v3663
      %v3758 = vpack.c.bf16 %v3666, %v3664
      %v3759 = vpack.c.bf16 %v3669, %v3667
      %v3760 = vpack.c.bf16 %v3670, %v3668
      %v3761 = vpack.c.bf16 %v3673, %v3671
      %v3762 = vpack.c.bf16 %v3674, %v3672
      %v3763 = vpack.c.bf16 %v3677, %v3675
      %v3764 = vpack.c.bf16 %v3678, %v3676
      %v3765 = vpack.c.bf16 %v3681, %v3679
      %v3766 = vpack.c.bf16 %v3682, %v3680
      %v3767 = vpack.c.bf16 %v3685, %v3683
      %v3768 = vpack.c.bf16 %v3686, %v3684
      %v3769 = vpack.c.bf16 %v3689, %v3687
      %v3770 = vpack.c.bf16 %v3690, %v3688
      %v3771 = vpack.c.bf16 %v3693, %v3691
      %v3772 = vpack.c.bf16 %v3694, %v3692
      %v3773 = vpack.c.bf16 %v3697, %v3695
      %v3774 = vpack.c.bf16 %v3698, %v3696
      %v3775 = vpack.c.bf16 %v3701, %v3699
      %v3776 = vpack.c.bf16 %v3702, %v3700
      %v3777 = vpack.c.bf16 %v3705, %v3703
      %v3778 = vpack.c.bf16 %v3706, %v3704
      %v3779 = vpack.c.bf16 %v3709, %v3707
      %v3780 = vpack.c.bf16 %v3710, %v3708
      %v3781 = vpack.c.bf16 %v3713, %v3711
      %v3782 = vpack.c.bf16 %v3714, %v3712
      %v3783 = vpack.c.bf16 %v3717, %v3715
      %v3784 = vpack.c.bf16 %v3718, %v3716
      %v3785 = vpack.c.bf16 %v3721, %v3719
      %v3786 = vpack.c.bf16 %v3722, %v3720
      %v3787 = vld [vmem:[%s19] sm:$0xff]
      %v3788 = vld [vmem:[%s19 + $0x8] sm:$0xff]
      %v3789 = vld [vmem:[%s19 + $0x10] sm:$0xff]
      %v3790 = vld [vmem:[%s19 + $0x18] sm:$0xff]
      %v3791 = vld [vmem:[%s19 + $0x20] sm:$0xff]
      %v3792 = vld [vmem:[%s19 + $0x28] sm:$0xff]
      %v3793 = vld [vmem:[%s19 + $0x30] sm:$0xff]
      %v3794 = vld [vmem:[%s19 + $0x38] sm:$0xff]
      %v3795 = vld [vmem:[%s19 + $0x40] sm:$0xff]
      %v3796 = vld [vmem:[%s19 + $0x48] sm:$0xff]
      %v3797 = vld [vmem:[%s19 + $0x50] sm:$0xff]
      %v3798 = vld [vmem:[%s19 + $0x58] sm:$0xff]
      %v3799 = vld [vmem:[%s19 + $0x60] sm:$0xff]
      %v3800 = vld [vmem:[%s19 + $0x68] sm:$0xff]
      %v3801 = vld [vmem:[%s19 + $0x70] sm:$0xff]
      %v3802 = vld [vmem:[%s19 + $0x78] sm:$0xff]
      %v3803 = vld [vmem:[%s19 + $0x80] sm:$0xff]
      %v3804 = vld [vmem:[%s19 + $0x88] sm:$0xff]
      %v3805 = vld [vmem:[%s19 + $0x90] sm:$0xff]
      %v3806 = vld [vmem:[%s19 + $0x98] sm:$0xff]
      %v3807 = vld [vmem:[%s19 + $0xa0] sm:$0xff]
      %v3808 = vld [vmem:[%s19 + $0xa8] sm:$0xff]
      %v3809 = vld [vmem:[%s19 + $0xb0] sm:$0xff]
      %v3810 = vld [vmem:[%s19 + $0xb8] sm:$0xff]
      %v3811 = vld [vmem:[%s19 + $0xc0] sm:$0xff]
      %v3812 = vld [vmem:[%s19 + $0xc8] sm:$0xff]
      %v3813 = vld [vmem:[%s19 + $0xd0] sm:$0xff]
      %v3814 = vld [vmem:[%s19 + $0xd8] sm:$0xff]
      %v3815 = vld [vmem:[%s19 + $0xe0] sm:$0xff]
      %v3816 = vld [vmem:[%s19 + $0xe8] sm:$0xff]
      %v3817 = vld [vmem:[%s19 + $0xf0] sm:$0xff]
      %v3818 = vld [vmem:[%s19 + $0xf8] sm:$0xff]
      %v3819 = vld [vmem:[%s21] sm:$0x3]
      %v3821 = vlaneseq
      %v3822 = vshrl.u32 %v3821, 7
      %v3823 = vsub.s32 0, %v3822
      %v3824 = vrot.slane %v3819, %v3823
      %v3825 = vlaneseq
      %v3826 = vshrl.u32 %v3825, 7
      %v3827 = vsub.s32 1, %v3826
      %v3828 = vrot.slane %v3819, %v3827
      %v3863 = vunpack.c.l.b16 %v3787
      %v3864 = vunpack.c.h.b16 %v3787
      %v3865 = vunpack.c.l.b16 %v3788
      %v3866 = vunpack.c.h.b16 %v3788
      %v3867 = vunpack.c.l.b16 %v3789
      %v3868 = vunpack.c.h.b16 %v3789
      %v3869 = vunpack.c.l.b16 %v3790
      %v3870 = vunpack.c.h.b16 %v3790
      %v3871 = vunpack.c.l.b16 %v3791
      %v3872 = vunpack.c.h.b16 %v3791
      %v3873 = vunpack.c.l.b16 %v3792
      %v3874 = vunpack.c.h.b16 %v3792
      %v3875 = vunpack.c.l.b16 %v3793
      %v3876 = vunpack.c.h.b16 %v3793
      %v3877 = vunpack.c.l.b16 %v3794
      %v3878 = vunpack.c.h.b16 %v3794
      %v3879 = vunpack.c.l.b16 %v3795
      %v3880 = vunpack.c.h.b16 %v3795
      %v3881 = vunpack.c.l.b16 %v3796
      %v3882 = vunpack.c.h.b16 %v3796
      %v3883 = vunpack.c.l.b16 %v3797
      %v3884 = vunpack.c.h.b16 %v3797
      %v3885 = vunpack.c.l.b16 %v3798
      %v3886 = vunpack.c.h.b16 %v3798
      %v3887 = vunpack.c.l.b16 %v3799
      %v3888 = vunpack.c.h.b16 %v3799
      %v3889 = vunpack.c.l.b16 %v3800
      %v3890 = vunpack.c.h.b16 %v3800
      %v3891 = vunpack.c.l.b16 %v3801
      %v3892 = vunpack.c.h.b16 %v3801
      %v3893 = vunpack.c.l.b16 %v3802
      %v3894 = vunpack.c.h.b16 %v3802
      %v3895 = vunpack.c.l.b16 %v3803
      %v3896 = vunpack.c.h.b16 %v3803
      %v3897 = vunpack.c.l.b16 %v3804
      %v3898 = vunpack.c.h.b16 %v3804
      %v3899 = vunpack.c.l.b16 %v3805
      %v3900 = vunpack.c.h.b16 %v3805
      %v3901 = vunpack.c.l.b16 %v3806
      %v3902 = vunpack.c.h.b16 %v3806
      %v3903 = vunpack.c.l.b16 %v3807
      %v3904 = vunpack.c.h.b16 %v3807
      %v3905 = vunpack.c.l.b16 %v3808
      %v3906 = vunpack.c.h.b16 %v3808
      %v3907 = vunpack.c.l.b16 %v3809
      %v3908 = vunpack.c.h.b16 %v3809
      %v3909 = vunpack.c.l.b16 %v3810
      %v3910 = vunpack.c.h.b16 %v3810
      %v3911 = vunpack.c.l.b16 %v3811
      %v3912 = vunpack.c.h.b16 %v3811
      %v3913 = vunpack.c.l.b16 %v3812
      %v3914 = vunpack.c.h.b16 %v3812
      %v3915 = vunpack.c.l.b16 %v3813
      %v3916 = vunpack.c.h.b16 %v3813
      %v3917 = vunpack.c.l.b16 %v3814
      %v3918 = vunpack.c.h.b16 %v3814
      %v3919 = vunpack.c.l.b16 %v3815
      %v3920 = vunpack.c.h.b16 %v3815
      %v3921 = vunpack.c.l.b16 %v3816
      %v3922 = vunpack.c.h.b16 %v3816
      %v3923 = vunpack.c.l.b16 %v3817
      %v3924 = vunpack.c.h.b16 %v3817
      %v3925 = vunpack.c.l.b16 %v3818
      %v3926 = vunpack.c.h.b16 %v3818
      %v3927 = vpack.c.b16 %v3865, %v3863
      %v3928 = vpack.c.b16 %v3866, %v3864
      %v3929 = vpack.c.b16 %v3869, %v3867
      %v3930 = vpack.c.b16 %v3870, %v3868
      %v3931 = vpack.c.b16 %v3873, %v3871
      %v3932 = vpack.c.b16 %v3874, %v3872
      %v3933 = vpack.c.b16 %v3877, %v3875
      %v3934 = vpack.c.b16 %v3878, %v3876
      %v3935 = vpack.c.b16 %v3881, %v3879
      %v3936 = vpack.c.b16 %v3882, %v3880
      %v3937 = vpack.c.b16 %v3885, %v3883
      %v3938 = vpack.c.b16 %v3886, %v3884
      %v3939 = vpack.c.b16 %v3889, %v3887
      %v3940 = vpack.c.b16 %v3890, %v3888
      %v3941 = vpack.c.b16 %v3893, %v3891
      %v3942 = vpack.c.b16 %v3894, %v3892
      %v3943 = vpack.c.b16 %v3897, %v3895
      %v3944 = vpack.c.b16 %v3898, %v3896
      %v3945 = vpack.c.b16 %v3901, %v3899
      %v3946 = vpack.c.b16 %v3902, %v3900
      %v3947 = vpack.c.b16 %v3905, %v3903
      %v3948 = vpack.c.b16 %v3906, %v3904
      %v3949 = vpack.c.b16 %v3909, %v3907
      %v3950 = vpack.c.b16 %v3910, %v3908
      %v3951 = vpack.c.b16 %v3913, %v3911
      %v3952 = vpack.c.b16 %v3914, %v3912
      %v3953 = vpack.c.b16 %v3917, %v3915
      %v3954 = vpack.c.b16 %v3918, %v3916
      %v3955 = vpack.c.b16 %v3921, %v3919
      %v3956 = vpack.c.b16 %v3922, %v3920
      %v3957 = vpack.c.b16 %v3925, %v3923
      %v3958 = vpack.c.b16 %v3926, %v3924
      %3991 = vmatprep.subr.bf16.mxu0 %v3942
      %3992 = vmatpush1.bf16.msra.mxu0 %v3941
      %3993 = vmatprep.subr.bf16.mxu0 %v3940
      %3994 = vmatpush1.bf16.msra.mxu0 %v3939
      %3995 = vmatprep.subr.bf16.mxu0 %v3938
      %3996 = vmatpush1.bf16.msra.mxu0 %v3937
      %3997 = vmatprep.subr.bf16.mxu0 %v3936
      %3998 = vmatpush1.bf16.msra.mxu0 %v3935
      %3999 = vmatprep.subr.bf16.mxu0 %v3934
      %4000 = vmatpush1.bf16.msra.mxu0 %v3933
      %4001 = vmatprep.subr.bf16.mxu0 %v3932
      %4002 = vmatpush1.bf16.msra.mxu0 %v3931
      %4003 = vmatprep.subr.bf16.mxu0 %v3930
      %4004 = vmatpush1.bf16.msra.mxu0 %v3929
      %4005 = vmatprep.subr.bf16.mxu0 %v3928
      %4006 = vmatpush1.bf16.msra.mxu0 %v3927
      %4007 = vmatprep.subr.bf16.mxu0 %v3958
      %4008 = vmatpush2.bf16.msra.mxu0 %v3957
      %4009 = vmatprep.subr.bf16.mxu0 %v3956
      %4010 = vmatpush2.bf16.msra.mxu0 %v3955
      %4011 = vmatprep.subr.bf16.mxu0 %v3954
      %4012 = vmatpush2.bf16.msra.mxu0 %v3953
      %4013 = vmatprep.subr.bf16.mxu0 %v3952
      %4014 = vmatpush2.bf16.msra.mxu0 %v3951
      %4015 = vmatprep.subr.bf16.mxu0 %v3950
      %4016 = vmatpush2.bf16.msra.mxu0 %v3949
      %4017 = vmatprep.subr.bf16.mxu0 %v3948
      %4018 = vmatpush2.bf16.msra.mxu0 %v3947
      %4019 = vmatprep.subr.bf16.mxu0 %v3946
      %4020 = vmatpush2.bf16.msra.mxu0 %v3945
      %4021 = vmatprep.subr.bf16.mxu0 %v3944
      %4022 = vmatpush2.bf16.msra.mxu0 %v3943
      %4023 = vmatprep.mubr.bf16.mxu0 %v3724
      %4024 = vmatmul.mubr.bf16.gmra.mxu0 %v3723
      %v4025 = vpop.f32.mrf.mxu0
      %v4026 = vadd.f32 %v3824, %v4025
      %v4027 = vpop.f32.mrf.mxu0
      %v4028 = vadd.f32 %v3828, %v4027
      %v4029 = vpop.f32.mrf.mxu0
      %v4030 = vadd.f32 %v3824, %v4029
      %v4031 = vpop.f32.mrf.mxu0
      %v4032 = vadd.f32 %v3828, %v4031
      %4033 = vmatprep.mubr.bf16.mxu0 %v3726
      %4034 = vmatmul.mubr.bf16.gmra.mxu0 %v3725
      %v4035 = vpop.f32.mrf.mxu0
      %v4036 = vadd.f32 %v3824, %v4035
      %v4037 = vpop.f32.mrf.mxu0
      %v4038 = vadd.f32 %v3828, %v4037
      %v4039 = vpop.f32.mrf.mxu0
      %v4040 = vadd.f32 %v3824, %v4039
      %v4041 = vpop.f32.mrf.mxu0
      %v4042 = vadd.f32 %v3828, %v4041
      %4043 = vmatprep.mubr.bf16.mxu0 %v3728
      %4044 = vmatmul.mubr.bf16.gmra.mxu0 %v3727
      %v4045 = vpop.f32.mrf.mxu0
      %v4046 = vadd.f32 %v3824, %v4045
      %v4047 = vpop.f32.mrf.mxu0
      %v4048 = vadd.f32 %v3828, %v4047
      %v4049 = vpop.f32.mrf.mxu0
      %v4050 = vadd.f32 %v3824, %v4049
      %v4051 = vpop.f32.mrf.mxu0
      %v4052 = vadd.f32 %v3828, %v4051
      %4053 = vmatprep.mubr.bf16.mxu0 %v3730
      %4054 = vmatmul.mubr.bf16.gmra.mxu0 %v3729
      %v4055 = vpop.f32.mrf.mxu0
      %v4056 = vadd.f32 %v3824, %v4055
      %v4057 = vpop.f32.mrf.mxu0
      %v4058 = vadd.f32 %v3828, %v4057
      %v4059 = vpop.f32.mrf.mxu0
      %v4060 = vadd.f32 %v3824, %v4059
      %v4061 = vpop.f32.mrf.mxu0
      %v4062 = vadd.f32 %v3828, %v4061
      %4063 = vmatprep.mubr.bf16.mxu0 %v3732
      %4064 = vmatmul.mubr.bf16.gmra.mxu0 %v3731
      %v4065 = vpop.f32.mrf.mxu0
      %v4066 = vadd.f32 %v3824, %v4065
      %v4067 = vpop.f32.mrf.mxu0
      %v4068 = vadd.f32 %v3828, %v4067
      %v4069 = vpop.f32.mrf.mxu0
      %v4070 = vadd.f32 %v3824, %v4069
      %v4071 = vpop.f32.mrf.mxu0
      %v4072 = vadd.f32 %v3828, %v4071
      %4073 = vmatprep.mubr.bf16.mxu0 %v3734
      %4074 = vmatmul.mubr.bf16.gmra.mxu0 %v3733
      %v4075 = vpop.f32.mrf.mxu0
      %v4076 = vadd.f32 %v3824, %v4075
      %v4077 = vpop.f32.mrf.mxu0
      %v4078 = vadd.f32 %v3828, %v4077
      %v4079 = vpop.f32.mrf.mxu0
      %v4080 = vadd.f32 %v3824, %v4079
      %v4081 = vpop.f32.mrf.mxu0
      %v4082 = vadd.f32 %v3828, %v4081
      %4083 = vmatprep.mubr.bf16.mxu0 %v3736
      %4084 = vmatmul.mubr.bf16.gmra.mxu0 %v3735
      %v4085 = vpop.f32.mrf.mxu0
      %v4086 = vadd.f32 %v3824, %v4085
      %v4087 = vpop.f32.mrf.mxu0
      %v4088 = vadd.f32 %v3828, %v4087
      %v4089 = vpop.f32.mrf.mxu0
      %v4090 = vadd.f32 %v3824, %v4089
      %v4091 = vpop.f32.mrf.mxu0
      %v4092 = vadd.f32 %v3828, %v4091
      %4093 = vmatprep.mubr.bf16.mxu0 %v3738
      %4094 = vmatmul.mubr.bf16.gmra.mxu0 %v3737
      %v4095 = vpop.f32.mrf.mxu0
      %v4096 = vadd.f32 %v3824, %v4095
      %v4097 = vpop.f32.mrf.mxu0
      %v4098 = vadd.f32 %v3828, %v4097
      %v4099 = vpop.f32.mrf.mxu0
      %v4100 = vadd.f32 %v3824, %v4099
      %v4101 = vpop.f32.mrf.mxu0
      %v4102 = vadd.f32 %v3828, %v4101
      %4103 = vmatprep.mubr.bf16.mxu0 %v3740
      %4104 = vmatmul.mubr.bf16.gmra.mxu0 %v3739
      %v4105 = vpop.f32.mrf.mxu0
      %v4106 = vadd.f32 %v3824, %v4105
      %v4107 = vpop.f32.mrf.mxu0
      %v4108 = vadd.f32 %v3828, %v4107
      %v4109 = vpop.f32.mrf.mxu0
      %v4110 = vadd.f32 %v3824, %v4109
      %v4111 = vpop.f32.mrf.mxu0
      %v4112 = vadd.f32 %v3828, %v4111
      %4113 = vmatprep.mubr.bf16.mxu0 %v3742
      %4114 = vmatmul.mubr.bf16.gmra.mxu0 %v3741
      %v4115 = vpop.f32.mrf.mxu0
      %v4116 = vadd.f32 %v3824, %v4115
      %v4117 = vpop.f32.mrf.mxu0
      %v4118 = vadd.f32 %v3828, %v4117
      %v4119 = vpop.f32.mrf.mxu0
      %v4120 = vadd.f32 %v3824, %v4119
      %v4121 = vpop.f32.mrf.mxu0
      %v4122 = vadd.f32 %v3828, %v4121
      %4123 = vmatprep.mubr.bf16.mxu0 %v3744
      %4124 = vmatmul.mubr.bf16.gmra.mxu0 %v3743
      %v4125 = vpop.f32.mrf.mxu0
      %v4126 = vadd.f32 %v3824, %v4125
      %v4127 = vpop.f32.mrf.mxu0
      %v4128 = vadd.f32 %v3828, %v4127
      %v4129 = vpop.f32.mrf.mxu0
      %v4130 = vadd.f32 %v3824, %v4129
      %v4131 = vpop.f32.mrf.mxu0
      %v4132 = vadd.f32 %v3828, %v4131
      %4133 = vmatprep.mubr.bf16.mxu0 %v3746
      %4134 = vmatmul.mubr.bf16.gmra.mxu0 %v3745
      %v4135 = vpop.f32.mrf.mxu0
      %v4136 = vadd.f32 %v3824, %v4135
      %v4137 = vpop.f32.mrf.mxu0
      %v4138 = vadd.f32 %v3828, %v4137
      %v4139 = vpop.f32.mrf.mxu0
      %v4140 = vadd.f32 %v3824, %v4139
      %v4141 = vpop.f32.mrf.mxu0
      %v4142 = vadd.f32 %v3828, %v4141
      %4143 = vmatprep.mubr.bf16.mxu0 %v3748
      %4144 = vmatmul.mubr.bf16.gmra.mxu0 %v3747
      %v4145 = vpop.f32.mrf.mxu0
      %v4146 = vadd.f32 %v3824, %v4145
      %v4147 = vpop.f32.mrf.mxu0
      %v4148 = vadd.f32 %v3828, %v4147
      %v4149 = vpop.f32.mrf.mxu0
      %v4150 = vadd.f32 %v3824, %v4149
      %v4151 = vpop.f32.mrf.mxu0
      %v4152 = vadd.f32 %v3828, %v4151
      %4153 = vmatprep.mubr.bf16.mxu0 %v3750
      %4154 = vmatmul.mubr.bf16.gmra.mxu0 %v3749
      %v4155 = vpop.f32.mrf.mxu0
      %v4156 = vadd.f32 %v3824, %v4155
      %v4157 = vpop.f32.mrf.mxu0
      %v4158 = vadd.f32 %v3828, %v4157
      %v4159 = vpop.f32.mrf.mxu0
      %v4160 = vadd.f32 %v3824, %v4159
      %v4161 = vpop.f32.mrf.mxu0
      %v4162 = vadd.f32 %v3828, %v4161
      %4163 = vmatprep.mubr.bf16.mxu0 %v3752
      %4164 = vmatmul.mubr.bf16.gmra.mxu0 %v3751
      %v4165 = vpop.f32.mrf.mxu0
      %v4166 = vadd.f32 %v3824, %v4165
      %v4167 = vpop.f32.mrf.mxu0
      %v4168 = vadd.f32 %v3828, %v4167
      %v4169 = vpop.f32.mrf.mxu0
      %v4170 = vadd.f32 %v3824, %v4169
      %v4171 = vpop.f32.mrf.mxu0
      %v4172 = vadd.f32 %v3828, %v4171
      %4173 = vmatprep.mubr.bf16.mxu0 %v3754
      %4174 = vmatmul.mubr.bf16.gmra.mxu0 %v3753
      %v4175 = vpop.f32.mrf.mxu0
      %v4176 = vadd.f32 %v3824, %v4175
      %v4177 = vpop.f32.mrf.mxu0
      %v4178 = vadd.f32 %v3828, %v4177
      %v4179 = vpop.f32.mrf.mxu0
      %v4180 = vadd.f32 %v3824, %v4179
      %v4181 = vpop.f32.mrf.mxu0
      %v4182 = vadd.f32 %v3828, %v4181
      %4183 = vmatprep.mubr.bf16.mxu0 %v3756
      %4184 = vmatmul.mubr.bf16.gmra.mxu0 %v3755
      %v4185 = vpop.f32.mrf.mxu0
      %v4186 = vadd.f32 %v3824, %v4185
      %v4187 = vpop.f32.mrf.mxu0
      %v4188 = vadd.f32 %v3828, %v4187
      %v4189 = vpop.f32.mrf.mxu0
      %v4190 = vadd.f32 %v3824, %v4189
      %v4191 = vpop.f32.mrf.mxu0
      %v4192 = vadd.f32 %v3828, %v4191
      %4193 = vmatprep.mubr.bf16.mxu0 %v3758
      %4194 = vmatmul.mubr.bf16.gmra.mxu0 %v3757
      %v4195 = vpop.f32.mrf.mxu0
      %v4196 = vadd.f32 %v3824, %v4195
      %v4197 = vpop.f32.mrf.mxu0
      %v4198 = vadd.f32 %v3828, %v4197
      %v4199 = vpop.f32.mrf.mxu0
      %v4200 = vadd.f32 %v3824, %v4199
      %v4201 = vpop.f32.mrf.mxu0
      %v4202 = vadd.f32 %v3828, %v4201
      %4203 = vmatprep.mubr.bf16.mxu0 %v3760
      %4204 = vmatmul.mubr.bf16.gmra.mxu0 %v3759
      %v4205 = vpop.f32.mrf.mxu0
      %v4206 = vadd.f32 %v3824, %v4205
      %v4207 = vpop.f32.mrf.mxu0
      %v4208 = vadd.f32 %v3828, %v4207
      %v4209 = vpop.f32.mrf.mxu0
      %v4210 = vadd.f32 %v3824, %v4209
      %v4211 = vpop.f32.mrf.mxu0
      %v4212 = vadd.f32 %v3828, %v4211
      %4213 = vmatprep.mubr.bf16.mxu0 %v3762
      %4214 = vmatmul.mubr.bf16.gmra.mxu0 %v3761
      %v4215 = vpop.f32.mrf.mxu0
      %v4216 = vadd.f32 %v3824, %v4215
      %v4217 = vpop.f32.mrf.mxu0
      %v4218 = vadd.f32 %v3828, %v4217
      %v4219 = vpop.f32.mrf.mxu0
      %v4220 = vadd.f32 %v3824, %v4219
      %v4221 = vpop.f32.mrf.mxu0
      %v4222 = vadd.f32 %v3828, %v4221
      %4223 = vmatprep.mubr.bf16.mxu0 %v3764
      %4224 = vmatmul.mubr.bf16.gmra.mxu0 %v3763
      %v4225 = vpop.f32.mrf.mxu0
      %v4226 = vadd.f32 %v3824, %v4225
      %v4227 = vpop.f32.mrf.mxu0
      %v4228 = vadd.f32 %v3828, %v4227
      %v4229 = vpop.f32.mrf.mxu0
      %v4230 = vadd.f32 %v3824, %v4229
      %v4231 = vpop.f32.mrf.mxu0
      %v4232 = vadd.f32 %v3828, %v4231
      %4233 = vmatprep.mubr.bf16.mxu0 %v3766
      %4234 = vmatmul.mubr.bf16.gmra.mxu0 %v3765
      %v4235 = vpop.f32.mrf.mxu0
      %v4236 = vadd.f32 %v3824, %v4235
      %v4237 = vpop.f32.mrf.mxu0
      %v4238 = vadd.f32 %v3828, %v4237
      %v4239 = vpop.f32.mrf.mxu0
      %v4240 = vadd.f32 %v3824, %v4239
      %v4241 = vpop.f32.mrf.mxu0
      %v4242 = vadd.f32 %v3828, %v4241
      %4243 = vmatprep.mubr.bf16.mxu0 %v3768
      %4244 = vmatmul.mubr.bf16.gmra.mxu0 %v3767
      %v4245 = vpop.f32.mrf.mxu0
      %v4246 = vadd.f32 %v3824, %v4245
      %v4247 = vpop.f32.mrf.mxu0
      %v4248 = vadd.f32 %v3828, %v4247
      %v4249 = vpop.f32.mrf.mxu0
      %v4250 = vadd.f32 %v3824, %v4249
      %v4251 = vpop.f32.mrf.mxu0
      %v4252 = vadd.f32 %v3828, %v4251
      %4253 = vmatprep.mubr.bf16.mxu0 %v3770
      %4254 = vmatmul.mubr.bf16.gmra.mxu0 %v3769
      %v4255 = vpop.f32.mrf.mxu0
      %v4256 = vadd.f32 %v3824, %v4255
      %v4257 = vpop.f32.mrf.mxu0
      %v4258 = vadd.f32 %v3828, %v4257
      %v4259 = vpop.f32.mrf.mxu0
      %v4260 = vadd.f32 %v3824, %v4259
      %v4261 = vpop.f32.mrf.mxu0
      %v4262 = vadd.f32 %v3828, %v4261
      %4263 = vmatprep.mubr.bf16.mxu0 %v3772
      %4264 = vmatmul.mubr.bf16.gmra.mxu0 %v3771
      %v4265 = vpop.f32.mrf.mxu0
      %v4266 = vadd.f32 %v3824, %v4265
      %v4267 = vpop.f32.mrf.mxu0
      %v4268 = vadd.f32 %v3828, %v4267
      %v4269 = vpop.f32.mrf.mxu0
      %v4270 = vadd.f32 %v3824, %v4269
      %v4271 = vpop.f32.mrf.mxu0
      %v4272 = vadd.f32 %v3828, %v4271
      %4273 = vmatprep.mubr.bf16.mxu0 %v3774
      %4274 = vmatmul.mubr.bf16.gmra.mxu0 %v3773
      %v4275 = vpop.f32.mrf.mxu0
      %v4276 = vadd.f32 %v3824, %v4275
      %v4277 = vpop.f32.mrf.mxu0
      %v4278 = vadd.f32 %v3828, %v4277
      %v4279 = vpop.f32.mrf.mxu0
      %v4280 = vadd.f32 %v3824, %v4279
      %v4281 = vpop.f32.mrf.mxu0
      %v4282 = vadd.f32 %v3828, %v4281
      %4283 = vmatprep.mubr.bf16.mxu0 %v3776
      %4284 = vmatmul.mubr.bf16.gmra.mxu0 %v3775
      %v4285 = vpop.f32.mrf.mxu0
      %v4286 = vadd.f32 %v3824, %v4285
      %v4287 = vpop.f32.mrf.mxu0
      %v4288 = vadd.f32 %v3828, %v4287
      %v4289 = vpop.f32.mrf.mxu0
      %v4290 = vadd.f32 %v3824, %v4289
      %v4291 = vpop.f32.mrf.mxu0
      %v4292 = vadd.f32 %v3828, %v4291
      %4293 = vmatprep.mubr.bf16.mxu0 %v3778
      %4294 = vmatmul.mubr.bf16.gmra.mxu0 %v3777
      %v4295 = vpop.f32.mrf.mxu0
      %v4296 = vadd.f32 %v3824, %v4295
      %v4297 = vpop.f32.mrf.mxu0
      %v4298 = vadd.f32 %v3828, %v4297
      %v4299 = vpop.f32.mrf.mxu0
      %v4300 = vadd.f32 %v3824, %v4299
      %v4301 = vpop.f32.mrf.mxu0
      %v4302 = vadd.f32 %v3828, %v4301
      %4303 = vmatprep.mubr.bf16.mxu0 %v3780
      %4304 = vmatmul.mubr.bf16.gmra.mxu0 %v3779
      %v4305 = vpop.f32.mrf.mxu0
      %v4306 = vadd.f32 %v3824, %v4305
      %v4307 = vpop.f32.mrf.mxu0
      %v4308 = vadd.f32 %v3828, %v4307
      %v4309 = vpop.f32.mrf.mxu0
      %v4310 = vadd.f32 %v3824, %v4309
      %v4311 = vpop.f32.mrf.mxu0
      %v4312 = vadd.f32 %v3828, %v4311
      %4313 = vmatprep.mubr.bf16.mxu0 %v3782
      %4314 = vmatmul.mubr.bf16.gmra.mxu0 %v3781
      %v4315 = vpop.f32.mrf.mxu0
      %v4316 = vadd.f32 %v3824, %v4315
      %v4317 = vpop.f32.mrf.mxu0
      %v4318 = vadd.f32 %v3828, %v4317
      %v4319 = vpop.f32.mrf.mxu0
      %v4320 = vadd.f32 %v3824, %v4319
      %v4321 = vpop.f32.mrf.mxu0
      %v4322 = vadd.f32 %v3828, %v4321
      %4323 = vmatprep.mubr.bf16.mxu0 %v3784
      %4324 = vmatmul.mubr.bf16.gmra.mxu0 %v3783
      %v4325 = vpop.f32.mrf.mxu0
      %v4326 = vadd.f32 %v3824, %v4325
      %v4327 = vpop.f32.mrf.mxu0
      %v4328 = vadd.f32 %v3828, %v4327
      %v4329 = vpop.f32.mrf.mxu0
      %v4330 = vadd.f32 %v3824, %v4329
      %v4331 = vpop.f32.mrf.mxu0
      %v4332 = vadd.f32 %v3828, %v4331
      %4333 = vmatprep.mubr.bf16.mxu0 %v3786
      %4334 = vmatmul.mubr.bf16.gmra.mxu0 %v3785
      %v4335 = vpop.f32.mrf.mxu0
      %v4336 = vadd.f32 %v3824, %v4335
      %v4337 = vpop.f32.mrf.mxu0
      %v4338 = vadd.f32 %v3828, %v4337
      %v4339 = vpop.f32.mrf.mxu0
      %v4340 = vadd.f32 %v3824, %v4339
      %v4341 = vpop.f32.mrf.mxu0
      %v4342 = vadd.f32 %v3828, %v4341
      %4343 = vdwg.mxu0
      %v4344 = vmax.f32 %v4026, 0.0
      %v4345 = vmax.f32 %v4028, 0.0
      %v4346 = vmax.f32 %v4030, 0.0
      %v4347 = vmax.f32 %v4032, 0.0
      %v4348 = vmax.f32 %v4036, 0.0
      %v4349 = vmax.f32 %v4038, 0.0
      %v4350 = vmax.f32 %v4040, 0.0
      %v4351 = vmax.f32 %v4042, 0.0
      %v4352 = vmax.f32 %v4046, 0.0
      %v4353 = vmax.f32 %v4048, 0.0
      %v4354 = vmax.f32 %v4050, 0.0
      %v4355 = vmax.f32 %v4052, 0.0
      %v4356 = vmax.f32 %v4056, 0.0
      %v4357 = vmax.f32 %v4058, 0.0
      %v4358 = vmax.f32 %v4060, 0.0
      %v4359 = vmax.f32 %v4062, 0.0
      %v4360 = vmax.f32 %v4066, 0.0
      %v4361 = vmax.f32 %v4068, 0.0
      %v4362 = vmax.f32 %v4070, 0.0
      %v4363 = vmax.f32 %v4072, 0.0
      %v4364 = vmax.f32 %v4076, 0.0
      %v4365 = vmax.f32 %v4078, 0.0
      %v4366 = vmax.f32 %v4080, 0.0
      %v4367 = vmax.f32 %v4082, 0.0
      %v4368 = vmax.f32 %v4086, 0.0
      %v4369 = vmax.f32 %v4088, 0.0
      %v4370 = vmax.f32 %v4090, 0.0
      %v4371 = vmax.f32 %v4092, 0.0
      %v4372 = vmax.f32 %v4096, 0.0
      %v4373 = vmax.f32 %v4098, 0.0
      %v4374 = vmax.f32 %v4100, 0.0
      %v4375 = vmax.f32 %v4102, 0.0
      %v4376 = vmax.f32 %v4106, 0.0
      %v4377 = vmax.f32 %v4108, 0.0
      %v4378 = vmax.f32 %v4110, 0.0
      %v4379 = vmax.f32 %v4112, 0.0
      %v4380 = vmax.f32 %v4116, 0.0
      %v4381 = vmax.f32 %v4118, 0.0
      %v4382 = vmax.f32 %v4120, 0.0
      %v4383 = vmax.f32 %v4122, 0.0
      %v4384 = vmax.f32 %v4126, 0.0
      %v4385 = vmax.f32 %v4128, 0.0
      %v4386 = vmax.f32 %v4130, 0.0
      %v4387 = vmax.f32 %v4132, 0.0
      %v4388 = vmax.f32 %v4136, 0.0
      %v4389 = vmax.f32 %v4138, 0.0
      %v4390 = vmax.f32 %v4140, 0.0
      %v4391 = vmax.f32 %v4142, 0.0
      %v4392 = vmax.f32 %v4146, 0.0
      %v4393 = vmax.f32 %v4148, 0.0
      %v4394 = vmax.f32 %v4150, 0.0
      %v4395 = vmax.f32 %v4152, 0.0
      %v4396 = vmax.f32 %v4156, 0.0
      %v4397 = vmax.f32 %v4158, 0.0
      %v4398 = vmax.f32 %v4160, 0.0
      %v4399 = vmax.f32 %v4162, 0.0
      %v4400 = vmax.f32 %v4166, 0.0
      %v4401 = vmax.f32 %v4168, 0.0
      %v4402 = vmax.f32 %v4170, 0.0
      %v4403 = vmax.f32 %v4172, 0.0
      %v4404 = vmax.f32 %v4176, 0.0
      %v4405 = vmax.f32 %v4178, 0.0
      %v4406 = vmax.f32 %v4180, 0.0
      %v4407 = vmax.f32 %v4182, 0.0
      %v4408 = vmax.f32 %v4186, 0.0
      %v4409 = vmax.f32 %v4188, 0.0
      %v4410 = vmax.f32 %v4190, 0.0
      %v4411 = vmax.f32 %v4192, 0.0
      %v4412 = vmax.f32 %v4196, 0.0
      %v4413 = vmax.f32 %v4198, 0.0
      %v4414 = vmax.f32 %v4200, 0.0
      %v4415 = vmax.f32 %v4202, 0.0
      %v4416 = vmax.f32 %v4206, 0.0
      %v4417 = vmax.f32 %v4208, 0.0
      %v4418 = vmax.f32 %v4210, 0.0
      %v4419 = vmax.f32 %v4212, 0.0
      %v4420 = vmax.f32 %v4216, 0.0
      %v4421 = vmax.f32 %v4218, 0.0
      %v4422 = vmax.f32 %v4220, 0.0
      %v4423 = vmax.f32 %v4222, 0.0
      %v4424 = vmax.f32 %v4226, 0.0
      %v4425 = vmax.f32 %v4228, 0.0
      %v4426 = vmax.f32 %v4230, 0.0
      %v4427 = vmax.f32 %v4232, 0.0
      %v4428 = vmax.f32 %v4236, 0.0
      %v4429 = vmax.f32 %v4238, 0.0
      %v4430 = vmax.f32 %v4240, 0.0
      %v4431 = vmax.f32 %v4242, 0.0
      %v4432 = vmax.f32 %v4246, 0.0
      %v4433 = vmax.f32 %v4248, 0.0
      %v4434 = vmax.f32 %v4250, 0.0
      %v4435 = vmax.f32 %v4252, 0.0
      %v4436 = vmax.f32 %v4256, 0.0
      %v4437 = vmax.f32 %v4258, 0.0
      %v4438 = vmax.f32 %v4260, 0.0
      %v4439 = vmax.f32 %v4262, 0.0
      %v4440 = vmax.f32 %v4266, 0.0
      %v4441 = vmax.f32 %v4268, 0.0
      %v4442 = vmax.f32 %v4270, 0.0
      %v4443 = vmax.f32 %v4272, 0.0
      %v4444 = vmax.f32 %v4276, 0.0
      %v4445 = vmax.f32 %v4278, 0.0
      %v4446 = vmax.f32 %v4280, 0.0
      %v4447 = vmax.f32 %v4282, 0.0
      %v4448 = vmax.f32 %v4286, 0.0
      %v4449 = vmax.f32 %v4288, 0.0
      %v4450 = vmax.f32 %v4290, 0.0
      %v4451 = vmax.f32 %v4292, 0.0
      %v4452 = vmax.f32 %v4296, 0.0
      %v4453 = vmax.f32 %v4298, 0.0
      %v4454 = vmax.f32 %v4300, 0.0
      %v4455 = vmax.f32 %v4302, 0.0
      %v4456 = vmax.f32 %v4306, 0.0
      %v4457 = vmax.f32 %v4308, 0.0
      %v4458 = vmax.f32 %v4310, 0.0
      %v4459 = vmax.f32 %v4312, 0.0
      %v4460 = vmax.f32 %v4316, 0.0
      %v4461 = vmax.f32 %v4318, 0.0
      %v4462 = vmax.f32 %v4320, 0.0
      %v4463 = vmax.f32 %v4322, 0.0
      %v4464 = vmax.f32 %v4326, 0.0
      %v4465 = vmax.f32 %v4328, 0.0
      %v4466 = vmax.f32 %v4330, 0.0
      %v4467 = vmax.f32 %v4332, 0.0
      %v4468 = vmax.f32 %v4336, 0.0
      %v4469 = vmax.f32 %v4338, 0.0
      %v4470 = vmax.f32 %v4340, 0.0
      %v4471 = vmax.f32 %v4342, 0.0
      %v4472 = vmul.f32 %v4344, %v1792
      %v4473 = vmul.f32 %v4345, %v1793
      %v4474 = vmul.f32 %v4346, %v1794
      %v4475 = vmul.f32 %v4347, %v1795
      %v4476 = vmul.f32 %v4348, %v1796
      %v4477 = vmul.f32 %v4349, %v1797
      %v4478 = vmul.f32 %v4350, %v1798
      %v4479 = vmul.f32 %v4351, %v1799
      %v4480 = vmul.f32 %v4352, %v1800
      %v4481 = vmul.f32 %v4353, %v1801
      %v4482 = vmul.f32 %v4354, %v1802
      %v4483 = vmul.f32 %v4355, %v1803
      %v4484 = vmul.f32 %v4356, %v1804
      %v4485 = vmul.f32 %v4357, %v1805
      %v4486 = vmul.f32 %v4358, %v1806
      %v4487 = vmul.f32 %v4359, %v1807
      %v4488 = vmul.f32 %v4360, %v1808
      %v4489 = vmul.f32 %v4361, %v1809
      %v4490 = vmul.f32 %v4362, %v1810
      %v4491 = vmul.f32 %v4363, %v1811
      %v4492 = vmul.f32 %v4364, %v1812
      %v4493 = vmul.f32 %v4365, %v1813
      %v4494 = vmul.f32 %v4366, %v1814
      %v4495 = vmul.f32 %v4367, %v1815
      %v4496 = vmul.f32 %v4368, %v1816
      %v4497 = vmul.f32 %v4369, %v1817
      %v4498 = vmul.f32 %v4370, %v1818
      %v4499 = vmul.f32 %v4371, %v1819
      %v4500 = vmul.f32 %v4372, %v1820
      %v4501 = vmul.f32 %v4373, %v1821
      %v4502 = vmul.f32 %v4374, %v1822
      %v4503 = vmul.f32 %v4375, %v1823
      %v4504 = vmul.f32 %v4376, %v1824
      %v4505 = vmul.f32 %v4377, %v1825
      %v4506 = vmul.f32 %v4378, %v1826
      %v4507 = vmul.f32 %v4379, %v1827
      %v4508 = vmul.f32 %v4380, %v1828
      %v4509 = vmul.f32 %v4381, %v1829
      %v4510 = vmul.f32 %v4382, %v1830
      %v4511 = vmul.f32 %v4383, %v1831
      %v4512 = vmul.f32 %v4384, %v1832
      %v4513 = vmul.f32 %v4385, %v1833
      %v4514 = vmul.f32 %v4386, %v1834
      %v4515 = vmul.f32 %v4387, %v1835
      %v4516 = vmul.f32 %v4388, %v1836
      %v4517 = vmul.f32 %v4389, %v1837
      %v4518 = vmul.f32 %v4390, %v1838
      %v4519 = vmul.f32 %v4391, %v1839
      %v4520 = vmul.f32 %v4392, %v1840
      %v4521 = vmul.f32 %v4393, %v1841
      %v4522 = vmul.f32 %v4394, %v1842
      %v4523 = vmul.f32 %v4395, %v1843
      %v4524 = vmul.f32 %v4396, %v1844
      %v4525 = vmul.f32 %v4397, %v1845
      %v4526 = vmul.f32 %v4398, %v1846
      %v4527 = vmul.f32 %v4399, %v1847
      %v4528 = vmul.f32 %v4400, %v1848
      %v4529 = vmul.f32 %v4401, %v1849
      %v4530 = vmul.f32 %v4402, %v1850
      %v4531 = vmul.f32 %v4403, %v1851
      %v4532 = vmul.f32 %v4404, %v1852
      %v4533 = vmul.f32 %v4405, %v1853
      %v4534 = vmul.f32 %v4406, %v1854
      %v4535 = vmul.f32 %v4407, %v1855
      %v4536 = vmul.f32 %v4408, %v1856
      %v4537 = vmul.f32 %v4409, %v1857
      %v4538 = vmul.f32 %v4410, %v1858
      %v4539 = vmul.f32 %v4411, %v1859
      %v4540 = vmul.f32 %v4412, %v1860
      %v4541 = vmul.f32 %v4413, %v1861
      %v4542 = vmul.f32 %v4414, %v1862
      %v4543 = vmul.f32 %v4415, %v1863
      %v4544 = vmul.f32 %v4416, %v1864
      %v4545 = vmul.f32 %v4417, %v1865
      %v4546 = vmul.f32 %v4418, %v1866
      %v4547 = vmul.f32 %v4419, %v1867
      %v4548 = vmul.f32 %v4420, %v1868
      %v4549 = vmul.f32 %v4421, %v1869
      %v4550 = vmul.f32 %v4422, %v1870
      %v4551 = vmul.f32 %v4423, %v1871
      %v4552 = vmul.f32 %v4424, %v1872
      %v4553 = vmul.f32 %v4425, %v1873
      %v4554 = vmul.f32 %v4426, %v1874
      %v4555 = vmul.f32 %v4427, %v1875
      %v4556 = vmul.f32 %v4428, %v1876
      %v4557 = vmul.f32 %v4429, %v1877
      %v4558 = vmul.f32 %v4430, %v1878
      %v4559 = vmul.f32 %v4431, %v1879
      %v4560 = vmul.f32 %v4432, %v1880
      %v4561 = vmul.f32 %v4433, %v1881
      %v4562 = vmul.f32 %v4434, %v1882
      %v4563 = vmul.f32 %v4435, %v1883
      %v4564 = vmul.f32 %v4436, %v1884
      %v4565 = vmul.f32 %v4437, %v1885
      %v4566 = vmul.f32 %v4438, %v1886
      %v4567 = vmul.f32 %v4439, %v1887
      %v4568 = vmul.f32 %v4440, %v1888
      %v4569 = vmul.f32 %v4441, %v1889
      %v4570 = vmul.f32 %v4442, %v1890
      %v4571 = vmul.f32 %v4443, %v1891
      %v4572 = vmul.f32 %v4444, %v1892
      %v4573 = vmul.f32 %v4445, %v1893
      %v4574 = vmul.f32 %v4446, %v1894
      %v4575 = vmul.f32 %v4447, %v1895
      %v4576 = vmul.f32 %v4448, %v1896
      %v4577 = vmul.f32 %v4449, %v1897
      %v4578 = vmul.f32 %v4450, %v1898
      %v4579 = vmul.f32 %v4451, %v1899
      %v4580 = vmul.f32 %v4452, %v1900
      %v4581 = vmul.f32 %v4453, %v1901
      %v4582 = vmul.f32 %v4454, %v1902
      %v4583 = vmul.f32 %v4455, %v1903
      %v4584 = vmul.f32 %v4456, %v1904
      %v4585 = vmul.f32 %v4457, %v1905
      %v4586 = vmul.f32 %v4458, %v1906
      %v4587 = vmul.f32 %v4459, %v1907
      %v4588 = vmul.f32 %v4460, %v1908
      %v4589 = vmul.f32 %v4461, %v1909
      %v4590 = vmul.f32 %v4462, %v1910
      %v4591 = vmul.f32 %v4463, %v1911
      %v4592 = vmul.f32 %v4464, %v1912
      %v4593 = vmul.f32 %v4465, %v1913
      %v4594 = vmul.f32 %v4466, %v1914
      %v4595 = vmul.f32 %v4467, %v1915
      %v4596 = vmul.f32 %v4468, %v1916
      %v4597 = vmul.f32 %v4469, %v1917
      %v4598 = vmul.f32 %v4470, %v1918
      %v4599 = vmul.f32 %v4471, %v1919
      %v4600 = vpack.c.bf16 %v4474, %v4472
      %v4601 = vpack.c.bf16 %v4475, %v4473
      %v4602 = vpack.c.bf16 %v4478, %v4476
      %v4603 = vpack.c.bf16 %v4479, %v4477
      %v4604 = vpack.c.bf16 %v4482, %v4480
      %v4605 = vpack.c.bf16 %v4483, %v4481
      %v4606 = vpack.c.bf16 %v4486, %v4484
      %v4607 = vpack.c.bf16 %v4487, %v4485
      %v4608 = vpack.c.bf16 %v4490, %v4488
      %v4609 = vpack.c.bf16 %v4491, %v4489
      %v4610 = vpack.c.bf16 %v4494, %v4492
      %v4611 = vpack.c.bf16 %v4495, %v4493
      %v4612 = vpack.c.bf16 %v4498, %v4496
      %v4613 = vpack.c.bf16 %v4499, %v4497
      %v4614 = vpack.c.bf16 %v4502, %v4500
      %v4615 = vpack.c.bf16 %v4503, %v4501
      %v4616 = vpack.c.bf16 %v4506, %v4504
      %v4617 = vpack.c.bf16 %v4507, %v4505
      %v4618 = vpack.c.bf16 %v4510, %v4508
      %v4619 = vpack.c.bf16 %v4511, %v4509
      %v4620 = vpack.c.bf16 %v4514, %v4512
      %v4621 = vpack.c.bf16 %v4515, %v4513
      %v4622 = vpack.c.bf16 %v4518, %v4516
      %v4623 = vpack.c.bf16 %v4519, %v4517
      %v4624 = vpack.c.bf16 %v4522, %v4520
      %v4625 = vpack.c.bf16 %v4523, %v4521
      %v4626 = vpack.c.bf16 %v4526, %v4524
      %v4627 = vpack.c.bf16 %v4527, %v4525
      %v4628 = vpack.c.bf16 %v4530, %v4528
      %v4629 = vpack.c.bf16 %v4531, %v4529
      %v4630 = vpack.c.bf16 %v4534, %v4532
      %v4631 = vpack.c.bf16 %v4535, %v4533
      %v4632 = vpack.c.bf16 %v4538, %v4536
      %v4633 = vpack.c.bf16 %v4539, %v4537
      %v4634 = vpack.c.bf16 %v4542, %v4540
      %v4635 = vpack.c.bf16 %v4543, %v4541
      %v4636 = vpack.c.bf16 %v4546, %v4544
      %v4637 = vpack.c.bf16 %v4547, %v4545
      %v4638 = vpack.c.bf16 %v4550, %v4548
      %v4639 = vpack.c.bf16 %v4551, %v4549
      %v4640 = vpack.c.bf16 %v4554, %v4552
      %v4641 = vpack.c.bf16 %v4555, %v4553
      %v4642 = vpack.c.bf16 %v4558, %v4556
      %v4643 = vpack.c.bf16 %v4559, %v4557
      %v4644 = vpack.c.bf16 %v4562, %v4560
      %v4645 = vpack.c.bf16 %v4563, %v4561
      %v4646 = vpack.c.bf16 %v4566, %v4564
      %v4647 = vpack.c.bf16 %v4567, %v4565
      %v4648 = vpack.c.bf16 %v4570, %v4568
      %v4649 = vpack.c.bf16 %v4571, %v4569
      %v4650 = vpack.c.bf16 %v4574, %v4572
      %v4651 = vpack.c.bf16 %v4575, %v4573
      %v4652 = vpack.c.bf16 %v4578, %v4576
      %v4653 = vpack.c.bf16 %v4579, %v4577
      %v4654 = vpack.c.bf16 %v4582, %v4580
      %v4655 = vpack.c.bf16 %v4583, %v4581
      %v4656 = vpack.c.bf16 %v4586, %v4584
      %v4657 = vpack.c.bf16 %v4587, %v4585
      %v4658 = vpack.c.bf16 %v4590, %v4588
      %v4659 = vpack.c.bf16 %v4591, %v4589
      %v4660 = vpack.c.bf16 %v4594, %v4592
      %v4661 = vpack.c.bf16 %v4595, %v4593
      %v4662 = vpack.c.bf16 %v4598, %v4596
      %v4663 = vpack.c.bf16 %v4599, %v4597
      %v4664 = vld [vmem:[%s23] sm:$0xff]
      %v4665 = vld [vmem:[%s23 + $0x8] sm:$0xff]
      %v4666 = vld [vmem:[%s23 + $0x10] sm:$0xff]
      %v4667 = vld [vmem:[%s23 + $0x18] sm:$0xff]
      %v4668 = vld [vmem:[%s23 + $0x20] sm:$0xff]
      %v4669 = vld [vmem:[%s23 + $0x28] sm:$0xff]
      %v4670 = vld [vmem:[%s23 + $0x30] sm:$0xff]
      %v4671 = vld [vmem:[%s23 + $0x38] sm:$0xff]
      %v4672 = vld [vmem:[%s23 + $0x40] sm:$0xff]
      %v4673 = vld [vmem:[%s23 + $0x48] sm:$0xff]
      %v4674 = vld [vmem:[%s23 + $0x50] sm:$0xff]
      %v4675 = vld [vmem:[%s23 + $0x58] sm:$0xff]
      %v4676 = vld [vmem:[%s23 + $0x60] sm:$0xff]
      %v4677 = vld [vmem:[%s23 + $0x68] sm:$0xff]
      %v4678 = vld [vmem:[%s23 + $0x70] sm:$0xff]
      %v4679 = vld [vmem:[%s23 + $0x78] sm:$0xff]
      %v4680 = vld [vmem:[%s23 + $0x80] sm:$0xff]
      %v4681 = vld [vmem:[%s23 + $0x88] sm:$0xff]
      %v4682 = vld [vmem:[%s23 + $0x90] sm:$0xff]
      %v4683 = vld [vmem:[%s23 + $0x98] sm:$0xff]
      %v4684 = vld [vmem:[%s23 + $0xa0] sm:$0xff]
      %v4685 = vld [vmem:[%s23 + $0xa8] sm:$0xff]
      %v4686 = vld [vmem:[%s23 + $0xb0] sm:$0xff]
      %v4687 = vld [vmem:[%s23 + $0xb8] sm:$0xff]
      %v4688 = vld [vmem:[%s23 + $0xc0] sm:$0xff]
      %v4689 = vld [vmem:[%s23 + $0xc8] sm:$0xff]
      %v4690 = vld [vmem:[%s23 + $0xd0] sm:$0xff]
      %v4691 = vld [vmem:[%s23 + $0xd8] sm:$0xff]
      %v4692 = vld [vmem:[%s23 + $0xe0] sm:$0xff]
      %v4693 = vld [vmem:[%s23 + $0xe8] sm:$0xff]
      %v4694 = vld [vmem:[%s23 + $0xf0] sm:$0xff]
      %v4695 = vld [vmem:[%s23 + $0xf8] sm:$0xff]
      %v4696 = vld [vmem:[%s25] sm:$0x3]
      %v4698 = vlaneseq
      %v4699 = vshrl.u32 %v4698, 7
      %v4700 = vsub.s32 0, %v4699
      %v4701 = vrot.slane %v4696, %v4700
      %v4702 = vlaneseq
      %v4703 = vshrl.u32 %v4702, 7
      %v4704 = vsub.s32 1, %v4703
      %v4705 = vrot.slane %v4696, %v4704
      %v4740 = vunpack.c.l.b16 %v4664
      %v4741 = vunpack.c.h.b16 %v4664
      %v4742 = vunpack.c.l.b16 %v4665
      %v4743 = vunpack.c.h.b16 %v4665
      %v4744 = vunpack.c.l.b16 %v4666
      %v4745 = vunpack.c.h.b16 %v4666
      %v4746 = vunpack.c.l.b16 %v4667
      %v4747 = vunpack.c.h.b16 %v4667
      %v4748 = vunpack.c.l.b16 %v4668
      %v4749 = vunpack.c.h.b16 %v4668
      %v4750 = vunpack.c.l.b16 %v4669
      %v4751 = vunpack.c.h.b16 %v4669
      %v4752 = vunpack.c.l.b16 %v4670
      %v4753 = vunpack.c.h.b16 %v4670
      %v4754 = vunpack.c.l.b16 %v4671
      %v4755 = vunpack.c.h.b16 %v4671
      %v4756 = vunpack.c.l.b16 %v4672
      %v4757 = vunpack.c.h.b16 %v4672
      %v4758 = vunpack.c.l.b16 %v4673
      %v4759 = vunpack.c.h.b16 %v4673
      %v4760 = vunpack.c.l.b16 %v4674
      %v4761 = vunpack.c.h.b16 %v4674
      %v4762 = vunpack.c.l.b16 %v4675
      %v4763 = vunpack.c.h.b16 %v4675
      %v4764 = vunpack.c.l.b16 %v4676
      %v4765 = vunpack.c.h.b16 %v4676
      %v4766 = vunpack.c.l.b16 %v4677
      %v4767 = vunpack.c.h.b16 %v4677
      %v4768 = vunpack.c.l.b16 %v4678
      %v4769 = vunpack.c.h.b16 %v4678
      %v4770 = vunpack.c.l.b16 %v4679
      %v4771 = vunpack.c.h.b16 %v4679
      %v4772 = vunpack.c.l.b16 %v4680
      %v4773 = vunpack.c.h.b16 %v4680
      %v4774 = vunpack.c.l.b16 %v4681
      %v4775 = vunpack.c.h.b16 %v4681
      %v4776 = vunpack.c.l.b16 %v4682
      %v4777 = vunpack.c.h.b16 %v4682
      %v4778 = vunpack.c.l.b16 %v4683
      %v4779 = vunpack.c.h.b16 %v4683
      %v4780 = vunpack.c.l.b16 %v4684
      %v4781 = vunpack.c.h.b16 %v4684
      %v4782 = vunpack.c.l.b16 %v4685
      %v4783 = vunpack.c.h.b16 %v4685
      %v4784 = vunpack.c.l.b16 %v4686
      %v4785 = vunpack.c.h.b16 %v4686
      %v4786 = vunpack.c.l.b16 %v4687
      %v4787 = vunpack.c.h.b16 %v4687
      %v4788 = vunpack.c.l.b16 %v4688
      %v4789 = vunpack.c.h.b16 %v4688
      %v4790 = vunpack.c.l.b16 %v4689
      %v4791 = vunpack.c.h.b16 %v4689
      %v4792 = vunpack.c.l.b16 %v4690
      %v4793 = vunpack.c.h.b16 %v4690
      %v4794 = vunpack.c.l.b16 %v4691
      %v4795 = vunpack.c.h.b16 %v4691
      %v4796 = vunpack.c.l.b16 %v4692
      %v4797 = vunpack.c.h.b16 %v4692
      %v4798 = vunpack.c.l.b16 %v4693
      %v4799 = vunpack.c.h.b16 %v4693
      %v4800 = vunpack.c.l.b16 %v4694
      %v4801 = vunpack.c.h.b16 %v4694
      %v4802 = vunpack.c.l.b16 %v4695
      %v4803 = vunpack.c.h.b16 %v4695
      %v4804 = vpack.c.b16 %v4742, %v4740
      %v4805 = vpack.c.b16 %v4743, %v4741
      %v4806 = vpack.c.b16 %v4746, %v4744
      %v4807 = vpack.c.b16 %v4747, %v4745
      %v4808 = vpack.c.b16 %v4750, %v4748
      %v4809 = vpack.c.b16 %v4751, %v4749
      %v4810 = vpack.c.b16 %v4754, %v4752
      %v4811 = vpack.c.b16 %v4755, %v4753
      %v4812 = vpack.c.b16 %v4758, %v4756
      %v4813 = vpack.c.b16 %v4759, %v4757
      %v4814 = vpack.c.b16 %v4762, %v4760
      %v4815 = vpack.c.b16 %v4763, %v4761
      %v4816 = vpack.c.b16 %v4766, %v4764
      %v4817 = vpack.c.b16 %v4767, %v4765
      %v4818 = vpack.c.b16 %v4770, %v4768
      %v4819 = vpack.c.b16 %v4771, %v4769
      %v4820 = vpack.c.b16 %v4774, %v4772
      %v4821 = vpack.c.b16 %v4775, %v4773
      %v4822 = vpack.c.b16 %v4778, %v4776
      %v4823 = vpack.c.b16 %v4779, %v4777
      %v4824 = vpack.c.b16 %v4782, %v4780
      %v4825 = vpack.c.b16 %v4783, %v4781
      %v4826 = vpack.c.b16 %v4786, %v4784
      %v4827 = vpack.c.b16 %v4787, %v4785
      %v4828 = vpack.c.b16 %v4790, %v4788
      %v4829 = vpack.c.b16 %v4791, %v4789
      %v4830 = vpack.c.b16 %v4794, %v4792
      %v4831 = vpack.c.b16 %v4795, %v4793
      %v4832 = vpack.c.b16 %v4798, %v4796
      %v4833 = vpack.c.b16 %v4799, %v4797
      %v4834 = vpack.c.b16 %v4802, %v4800
      %v4835 = vpack.c.b16 %v4803, %v4801
      %4868 = vmatprep.subr.bf16.mxu0 %v4819
      %4869 = vmatpush1.bf16.msra.mxu0 %v4818
      %4870 = vmatprep.subr.bf16.mxu0 %v4817
      %4871 = vmatpush1.bf16.msra.mxu0 %v4816
      %4872 = vmatprep.subr.bf16.mxu0 %v4815
      %4873 = vmatpush1.bf16.msra.mxu0 %v4814
      %4874 = vmatprep.subr.bf16.mxu0 %v4813
      %4875 = vmatpush1.bf16.msra.mxu0 %v4812
      %4876 = vmatprep.subr.bf16.mxu0 %v4811
      %4877 = vmatpush1.bf16.msra.mxu0 %v4810
      %4878 = vmatprep.subr.bf16.mxu0 %v4809
      %4879 = vmatpush1.bf16.msra.mxu0 %v4808
      %4880 = vmatprep.subr.bf16.mxu0 %v4807
      %4881 = vmatpush1.bf16.msra.mxu0 %v4806
      %4882 = vmatprep.subr.bf16.mxu0 %v4805
      %4883 = vmatpush1.bf16.msra.mxu0 %v4804
      %4884 = vmatprep.subr.bf16.mxu0 %v4835
      %4885 = vmatpush2.bf16.msra.mxu0 %v4834
      %4886 = vmatprep.subr.bf16.mxu0 %v4833
      %4887 = vmatpush2.bf16.msra.mxu0 %v4832
      %4888 = vmatprep.subr.bf16.mxu0 %v4831
      %4889 = vmatpush2.bf16.msra.mxu0 %v4830
      %4890 = vmatprep.subr.bf16.mxu0 %v4829
      %4891 = vmatpush2.bf16.msra.mxu0 %v4828
      %4892 = vmatprep.subr.bf16.mxu0 %v4827
      %4893 = vmatpush2.bf16.msra.mxu0 %v4826
      %4894 = vmatprep.subr.bf16.mxu0 %v4825
      %4895 = vmatpush2.bf16.msra.mxu0 %v4824
      %4896 = vmatprep.subr.bf16.mxu0 %v4823
      %4897 = vmatpush2.bf16.msra.mxu0 %v4822
      %4898 = vmatprep.subr.bf16.mxu0 %v4821
      %4899 = vmatpush2.bf16.msra.mxu0 %v4820
      %4900 = vmatprep.mubr.bf16.mxu0 %v4601
      %4901 = vmatmul.mubr.bf16.gmra.mxu0 %v4600
      %v4902 = vpop.f32.mrf.mxu0
      %v4903 = vadd.f32 %v4701, %v4902
      %v4904 = vpop.f32.mrf.mxu0
      %v4905 = vadd.f32 %v4705, %v4904
      %v4906 = vpop.f32.mrf.mxu0
      %v4907 = vadd.f32 %v4701, %v4906
      %v4908 = vpop.f32.mrf.mxu0
      %v4909 = vadd.f32 %v4705, %v4908
      %4910 = vmatprep.mubr.bf16.mxu0 %v4603
      %4911 = vmatmul.mubr.bf16.gmra.mxu0 %v4602
      %v4912 = vpop.f32.mrf.mxu0
      %v4913 = vadd.f32 %v4701, %v4912
      %v4914 = vpop.f32.mrf.mxu0
      %v4915 = vadd.f32 %v4705, %v4914
      %v4916 = vpop.f32.mrf.mxu0
      %v4917 = vadd.f32 %v4701, %v4916
      %v4918 = vpop.f32.mrf.mxu0
      %v4919 = vadd.f32 %v4705, %v4918
      %4920 = vmatprep.mubr.bf16.mxu0 %v4605
      %4921 = vmatmul.mubr.bf16.gmra.mxu0 %v4604
      %v4922 = vpop.f32.mrf.mxu0
      %v4923 = vadd.f32 %v4701, %v4922
      %v4924 = vpop.f32.mrf.mxu0
      %v4925 = vadd.f32 %v4705, %v4924
      %v4926 = vpop.f32.mrf.mxu0
      %v4927 = vadd.f32 %v4701, %v4926
      %v4928 = vpop.f32.mrf.mxu0
      %v4929 = vadd.f32 %v4705, %v4928
      %4930 = vmatprep.mubr.bf16.mxu0 %v4607
      %4931 = vmatmul.mubr.bf16.gmra.mxu0 %v4606
      %v4932 = vpop.f32.mrf.mxu0
      %v4933 = vadd.f32 %v4701, %v4932
      %v4934 = vpop.f32.mrf.mxu0
      %v4935 = vadd.f32 %v4705, %v4934
      %v4936 = vpop.f32.mrf.mxu0
      %v4937 = vadd.f32 %v4701, %v4936
      %v4938 = vpop.f32.mrf.mxu0
      %v4939 = vadd.f32 %v4705, %v4938
      %4940 = vmatprep.mubr.bf16.mxu0 %v4609
      %4941 = vmatmul.mubr.bf16.gmra.mxu0 %v4608
      %v4942 = vpop.f32.mrf.mxu0
      %v4943 = vadd.f32 %v4701, %v4942
      %v4944 = vpop.f32.mrf.mxu0
      %v4945 = vadd.f32 %v4705, %v4944
      %v4946 = vpop.f32.mrf.mxu0
      %v4947 = vadd.f32 %v4701, %v4946
      %v4948 = vpop.f32.mrf.mxu0
      %v4949 = vadd.f32 %v4705, %v4948
      %4950 = vmatprep.mubr.bf16.mxu0 %v4611
      %4951 = vmatmul.mubr.bf16.gmra.mxu0 %v4610
      %v4952 = vpop.f32.mrf.mxu0
      %v4953 = vadd.f32 %v4701, %v4952
      %v4954 = vpop.f32.mrf.mxu0
      %v4955 = vadd.f32 %v4705, %v4954
      %v4956 = vpop.f32.mrf.mxu0
      %v4957 = vadd.f32 %v4701, %v4956
      %v4958 = vpop.f32.mrf.mxu0
      %v4959 = vadd.f32 %v4705, %v4958
      %4960 = vmatprep.mubr.bf16.mxu0 %v4613
      %4961 = vmatmul.mubr.bf16.gmra.mxu0 %v4612
      %v4962 = vpop.f32.mrf.mxu0
      %v4963 = vadd.f32 %v4701, %v4962
      %v4964 = vpop.f32.mrf.mxu0
      %v4965 = vadd.f32 %v4705, %v4964
      %v4966 = vpop.f32.mrf.mxu0
      %v4967 = vadd.f32 %v4701, %v4966
      %v4968 = vpop.f32.mrf.mxu0
      %v4969 = vadd.f32 %v4705, %v4968
      %4970 = vmatprep.mubr.bf16.mxu0 %v4615
      %4971 = vmatmul.mubr.bf16.gmra.mxu0 %v4614
      %v4972 = vpop.f32.mrf.mxu0
      %v4973 = vadd.f32 %v4701, %v4972
      %v4974 = vpop.f32.mrf.mxu0
      %v4975 = vadd.f32 %v4705, %v4974
      %v4976 = vpop.f32.mrf.mxu0
      %v4977 = vadd.f32 %v4701, %v4976
      %v4978 = vpop.f32.mrf.mxu0
      %v4979 = vadd.f32 %v4705, %v4978
      %4980 = vmatprep.mubr.bf16.mxu0 %v4617
      %4981 = vmatmul.mubr.bf16.gmra.mxu0 %v4616
      %v4982 = vpop.f32.mrf.mxu0
      %v4983 = vadd.f32 %v4701, %v4982
      %v4984 = vpop.f32.mrf.mxu0
      %v4985 = vadd.f32 %v4705, %v4984
      %v4986 = vpop.f32.mrf.mxu0
      %v4987 = vadd.f32 %v4701, %v4986
      %v4988 = vpop.f32.mrf.mxu0
      %v4989 = vadd.f32 %v4705, %v4988
      %4990 = vmatprep.mubr.bf16.mxu0 %v4619
      %4991 = vmatmul.mubr.bf16.gmra.mxu0 %v4618
      %v4992 = vpop.f32.mrf.mxu0
      %v4993 = vadd.f32 %v4701, %v4992
      %v4994 = vpop.f32.mrf.mxu0
      %v4995 = vadd.f32 %v4705, %v4994
      %v4996 = vpop.f32.mrf.mxu0
      %v4997 = vadd.f32 %v4701, %v4996
      %v4998 = vpop.f32.mrf.mxu0
      %v4999 = vadd.f32 %v4705, %v4998
      %5000 = vmatprep.mubr.bf16.mxu0 %v4621
      %5001 = vmatmul.mubr.bf16.gmra.mxu0 %v4620
      %v5002 = vpop.f32.mrf.mxu0
      %v5003 = vadd.f32 %v4701, %v5002
      %v5004 = vpop.f32.mrf.mxu0
      %v5005 = vadd.f32 %v4705, %v5004
      %v5006 = vpop.f32.mrf.mxu0
      %v5007 = vadd.f32 %v4701, %v5006
      %v5008 = vpop.f32.mrf.mxu0
      %v5009 = vadd.f32 %v4705, %v5008
      %5010 = vmatprep.mubr.bf16.mxu0 %v4623
      %5011 = vmatmul.mubr.bf16.gmra.mxu0 %v4622
      %v5012 = vpop.f32.mrf.mxu0
      %v5013 = vadd.f32 %v4701, %v5012
      %v5014 = vpop.f32.mrf.mxu0
      %v5015 = vadd.f32 %v4705, %v5014
      %v5016 = vpop.f32.mrf.mxu0
      %v5017 = vadd.f32 %v4701, %v5016
      %v5018 = vpop.f32.mrf.mxu0
      %v5019 = vadd.f32 %v4705, %v5018
      %5020 = vmatprep.mubr.bf16.mxu0 %v4625
      %5021 = vmatmul.mubr.bf16.gmra.mxu0 %v4624
      %v5022 = vpop.f32.mrf.mxu0
      %v5023 = vadd.f32 %v4701, %v5022
      %v5024 = vpop.f32.mrf.mxu0
      %v5025 = vadd.f32 %v4705, %v5024
      %v5026 = vpop.f32.mrf.mxu0
      %v5027 = vadd.f32 %v4701, %v5026
      %v5028 = vpop.f32.mrf.mxu0
      %v5029 = vadd.f32 %v4705, %v5028
      %5030 = vmatprep.mubr.bf16.mxu0 %v4627
      %5031 = vmatmul.mubr.bf16.gmra.mxu0 %v4626
      %v5032 = vpop.f32.mrf.mxu0
      %v5033 = vadd.f32 %v4701, %v5032
      %v5034 = vpop.f32.mrf.mxu0
      %v5035 = vadd.f32 %v4705, %v5034
      %v5036 = vpop.f32.mrf.mxu0
      %v5037 = vadd.f32 %v4701, %v5036
      %v5038 = vpop.f32.mrf.mxu0
      %v5039 = vadd.f32 %v4705, %v5038
      %5040 = vmatprep.mubr.bf16.mxu0 %v4629
      %5041 = vmatmul.mubr.bf16.gmra.mxu0 %v4628
      %v5042 = vpop.f32.mrf.mxu0
      %v5043 = vadd.f32 %v4701, %v5042
      %v5044 = vpop.f32.mrf.mxu0
      %v5045 = vadd.f32 %v4705, %v5044
      %v5046 = vpop.f32.mrf.mxu0
      %v5047 = vadd.f32 %v4701, %v5046
      %v5048 = vpop.f32.mrf.mxu0
      %v5049 = vadd.f32 %v4705, %v5048
      %5050 = vmatprep.mubr.bf16.mxu0 %v4631
      %5051 = vmatmul.mubr.bf16.gmra.mxu0 %v4630
      %v5052 = vpop.f32.mrf.mxu0
      %v5053 = vadd.f32 %v4701, %v5052
      %v5054 = vpop.f32.mrf.mxu0
      %v5055 = vadd.f32 %v4705, %v5054
      %v5056 = vpop.f32.mrf.mxu0
      %v5057 = vadd.f32 %v4701, %v5056
      %v5058 = vpop.f32.mrf.mxu0
      %v5059 = vadd.f32 %v4705, %v5058
      %5060 = vmatprep.mubr.bf16.mxu0 %v4633
      %5061 = vmatmul.mubr.bf16.gmra.mxu0 %v4632
      %v5062 = vpop.f32.mrf.mxu0
      %v5063 = vadd.f32 %v4701, %v5062
      %v5064 = vpop.f32.mrf.mxu0
      %v5065 = vadd.f32 %v4705, %v5064
      %v5066 = vpop.f32.mrf.mxu0
      %v5067 = vadd.f32 %v4701, %v5066
      %v5068 = vpop.f32.mrf.mxu0
      %v5069 = vadd.f32 %v4705, %v5068
      %5070 = vmatprep.mubr.bf16.mxu0 %v4635
      %5071 = vmatmul.mubr.bf16.gmra.mxu0 %v4634
      %v5072 = vpop.f32.mrf.mxu0
      %v5073 = vadd.f32 %v4701, %v5072
      %v5074 = vpop.f32.mrf.mxu0
      %v5075 = vadd.f32 %v4705, %v5074
      %v5076 = vpop.f32.mrf.mxu0
      %v5077 = vadd.f32 %v4701, %v5076
      %v5078 = vpop.f32.mrf.mxu0
      %v5079 = vadd.f32 %v4705, %v5078
      %5080 = vmatprep.mubr.bf16.mxu0 %v4637
      %5081 = vmatmul.mubr.bf16.gmra.mxu0 %v4636
      %v5082 = vpop.f32.mrf.mxu0
      %v5083 = vadd.f32 %v4701, %v5082
      %v5084 = vpop.f32.mrf.mxu0
      %v5085 = vadd.f32 %v4705, %v5084
      %v5086 = vpop.f32.mrf.mxu0
      %v5087 = vadd.f32 %v4701, %v5086
      %v5088 = vpop.f32.mrf.mxu0
      %v5089 = vadd.f32 %v4705, %v5088
      %5090 = vmatprep.mubr.bf16.mxu0 %v4639
      %5091 = vmatmul.mubr.bf16.gmra.mxu0 %v4638
      %v5092 = vpop.f32.mrf.mxu0
      %v5093 = vadd.f32 %v4701, %v5092
      %v5094 = vpop.f32.mrf.mxu0
      %v5095 = vadd.f32 %v4705, %v5094
      %v5096 = vpop.f32.mrf.mxu0
      %v5097 = vadd.f32 %v4701, %v5096
      %v5098 = vpop.f32.mrf.mxu0
      %v5099 = vadd.f32 %v4705, %v5098
      %5100 = vmatprep.mubr.bf16.mxu0 %v4641
      %5101 = vmatmul.mubr.bf16.gmra.mxu0 %v4640
      %v5102 = vpop.f32.mrf.mxu0
      %v5103 = vadd.f32 %v4701, %v5102
      %v5104 = vpop.f32.mrf.mxu0
      %v5105 = vadd.f32 %v4705, %v5104
      %v5106 = vpop.f32.mrf.mxu0
      %v5107 = vadd.f32 %v4701, %v5106
      %v5108 = vpop.f32.mrf.mxu0
      %v5109 = vadd.f32 %v4705, %v5108
      %5110 = vmatprep.mubr.bf16.mxu0 %v4643
      %5111 = vmatmul.mubr.bf16.gmra.mxu0 %v4642
      %v5112 = vpop.f32.mrf.mxu0
      %v5113 = vadd.f32 %v4701, %v5112
      %v5114 = vpop.f32.mrf.mxu0
      %v5115 = vadd.f32 %v4705, %v5114
      %v5116 = vpop.f32.mrf.mxu0
      %v5117 = vadd.f32 %v4701, %v5116
      %v5118 = vpop.f32.mrf.mxu0
      %v5119 = vadd.f32 %v4705, %v5118
      %5120 = vmatprep.mubr.bf16.mxu0 %v4645
      %5121 = vmatmul.mubr.bf16.gmra.mxu0 %v4644
      %v5122 = vpop.f32.mrf.mxu0
      %v5123 = vadd.f32 %v4701, %v5122
      %v5124 = vpop.f32.mrf.mxu0
      %v5125 = vadd.f32 %v4705, %v5124
      %v5126 = vpop.f32.mrf.mxu0
      %v5127 = vadd.f32 %v4701, %v5126
      %v5128 = vpop.f32.mrf.mxu0
      %v5129 = vadd.f32 %v4705, %v5128
      %5130 = vmatprep.mubr.bf16.mxu0 %v4647
      %5131 = vmatmul.mubr.bf16.gmra.mxu0 %v4646
      %v5132 = vpop.f32.mrf.mxu0
      %v5133 = vadd.f32 %v4701, %v5132
      %v5134 = vpop.f32.mrf.mxu0
      %v5135 = vadd.f32 %v4705, %v5134
      %v5136 = vpop.f32.mrf.mxu0
      %v5137 = vadd.f32 %v4701, %v5136
      %v5138 = vpop.f32.mrf.mxu0
      %v5139 = vadd.f32 %v4705, %v5138
      %5140 = vmatprep.mubr.bf16.mxu0 %v4649
      %5141 = vmatmul.mubr.bf16.gmra.mxu0 %v4648
      %v5142 = vpop.f32.mrf.mxu0
      %v5143 = vadd.f32 %v4701, %v5142
      %v5144 = vpop.f32.mrf.mxu0
      %v5145 = vadd.f32 %v4705, %v5144
      %v5146 = vpop.f32.mrf.mxu0
      %v5147 = vadd.f32 %v4701, %v5146
      %v5148 = vpop.f32.mrf.mxu0
      %v5149 = vadd.f32 %v4705, %v5148
      %5150 = vmatprep.mubr.bf16.mxu0 %v4651
      %5151 = vmatmul.mubr.bf16.gmra.mxu0 %v4650
      %v5152 = vpop.f32.mrf.mxu0
      %v5153 = vadd.f32 %v4701, %v5152
      %v5154 = vpop.f32.mrf.mxu0
      %v5155 = vadd.f32 %v4705, %v5154
      %v5156 = vpop.f32.mrf.mxu0
      %v5157 = vadd.f32 %v4701, %v5156
      %v5158 = vpop.f32.mrf.mxu0
      %v5159 = vadd.f32 %v4705, %v5158
      %5160 = vmatprep.mubr.bf16.mxu0 %v4653
      %5161 = vmatmul.mubr.bf16.gmra.mxu0 %v4652
      %v5162 = vpop.f32.mrf.mxu0
      %v5163 = vadd.f32 %v4701, %v5162
      %v5164 = vpop.f32.mrf.mxu0
      %v5165 = vadd.f32 %v4705, %v5164
      %v5166 = vpop.f32.mrf.mxu0
      %v5167 = vadd.f32 %v4701, %v5166
      %v5168 = vpop.f32.mrf.mxu0
      %v5169 = vadd.f32 %v4705, %v5168
      %5170 = vmatprep.mubr.bf16.mxu0 %v4655
      %5171 = vmatmul.mubr.bf16.gmra.mxu0 %v4654
      %v5172 = vpop.f32.mrf.mxu0
      %v5173 = vadd.f32 %v4701, %v5172
      %v5174 = vpop.f32.mrf.mxu0
      %v5175 = vadd.f32 %v4705, %v5174
      %v5176 = vpop.f32.mrf.mxu0
      %v5177 = vadd.f32 %v4701, %v5176
      %v5178 = vpop.f32.mrf.mxu0
      %v5179 = vadd.f32 %v4705, %v5178
      %5180 = vmatprep.mubr.bf16.mxu0 %v4657
      %5181 = vmatmul.mubr.bf16.gmra.mxu0 %v4656
      %v5182 = vpop.f32.mrf.mxu0
      %v5183 = vadd.f32 %v4701, %v5182
      %v5184 = vpop.f32.mrf.mxu0
      %v5185 = vadd.f32 %v4705, %v5184
      %v5186 = vpop.f32.mrf.mxu0
      %v5187 = vadd.f32 %v4701, %v5186
      %v5188 = vpop.f32.mrf.mxu0
      %v5189 = vadd.f32 %v4705, %v5188
      %5190 = vmatprep.mubr.bf16.mxu0 %v4659
      %5191 = vmatmul.mubr.bf16.gmra.mxu0 %v4658
      %v5192 = vpop.f32.mrf.mxu0
      %v5193 = vadd.f32 %v4701, %v5192
      %v5194 = vpop.f32.mrf.mxu0
      %v5195 = vadd.f32 %v4705, %v5194
      %v5196 = vpop.f32.mrf.mxu0
      %v5197 = vadd.f32 %v4701, %v5196
      %v5198 = vpop.f32.mrf.mxu0
      %v5199 = vadd.f32 %v4705, %v5198
      %5200 = vmatprep.mubr.bf16.mxu0 %v4661
      %5201 = vmatmul.mubr.bf16.gmra.mxu0 %v4660
      %v5202 = vpop.f32.mrf.mxu0
      %v5203 = vadd.f32 %v4701, %v5202
      %v5204 = vpop.f32.mrf.mxu0
      %v5205 = vadd.f32 %v4705, %v5204
      %v5206 = vpop.f32.mrf.mxu0
      %v5207 = vadd.f32 %v4701, %v5206
      %v5208 = vpop.f32.mrf.mxu0
      %v5209 = vadd.f32 %v4705, %v5208
      %5210 = vmatprep.mubr.bf16.mxu0 %v4663
      %5211 = vmatmul.mubr.bf16.gmra.mxu0 %v4662
      %v5212 = vpop.f32.mrf.mxu0
      %v5213 = vadd.f32 %v4701, %v5212
      %v5214 = vpop.f32.mrf.mxu0
      %v5215 = vadd.f32 %v4705, %v5214
      %v5216 = vpop.f32.mrf.mxu0
      %v5217 = vadd.f32 %v4701, %v5216
      %v5218 = vpop.f32.mrf.mxu0
      %v5219 = vadd.f32 %v4705, %v5218
      %5220 = vdwg.mxu0
      %v5221 = vmax.f32 %v4903, 0.0
      %v5222 = vmax.f32 %v4905, 0.0
      %v5223 = vmax.f32 %v4907, 0.0
      %v5224 = vmax.f32 %v4909, 0.0
      %v5225 = vmax.f32 %v4913, 0.0
      %v5226 = vmax.f32 %v4915, 0.0
      %v5227 = vmax.f32 %v4917, 0.0
      %v5228 = vmax.f32 %v4919, 0.0
      %v5229 = vmax.f32 %v4923, 0.0
      %v5230 = vmax.f32 %v4925, 0.0
      %v5231 = vmax.f32 %v4927, 0.0
      %v5232 = vmax.f32 %v4929, 0.0
      %v5233 = vmax.f32 %v4933, 0.0
      %v5234 = vmax.f32 %v4935, 0.0
      %v5235 = vmax.f32 %v4937, 0.0
      %v5236 = vmax.f32 %v4939, 0.0
      %v5237 = vmax.f32 %v4943, 0.0
      %v5238 = vmax.f32 %v4945, 0.0
      %v5239 = vmax.f32 %v4947, 0.0
      %v5240 = vmax.f32 %v4949, 0.0
      %v5241 = vmax.f32 %v4953, 0.0
      %v5242 = vmax.f32 %v4955, 0.0
      %v5243 = vmax.f32 %v4957, 0.0
      %v5244 = vmax.f32 %v4959, 0.0
      %v5245 = vmax.f32 %v4963, 0.0
      %v5246 = vmax.f32 %v4965, 0.0
      %v5247 = vmax.f32 %v4967, 0.0
      %v5248 = vmax.f32 %v4969, 0.0
      %v5249 = vmax.f32 %v4973, 0.0
      %v5250 = vmax.f32 %v4975, 0.0
      %v5251 = vmax.f32 %v4977, 0.0
      %v5252 = vmax.f32 %v4979, 0.0
      %v5253 = vmax.f32 %v4983, 0.0
      %v5254 = vmax.f32 %v4985, 0.0
      %v5255 = vmax.f32 %v4987, 0.0
      %v5256 = vmax.f32 %v4989, 0.0
      %v5257 = vmax.f32 %v4993, 0.0
      %v5258 = vmax.f32 %v4995, 0.0
      %v5259 = vmax.f32 %v4997, 0.0
      %v5260 = vmax.f32 %v4999, 0.0
      %v5261 = vmax.f32 %v5003, 0.0
      %v5262 = vmax.f32 %v5005, 0.0
      %v5263 = vmax.f32 %v5007, 0.0
      %v5264 = vmax.f32 %v5009, 0.0
      %v5265 = vmax.f32 %v5013, 0.0
      %v5266 = vmax.f32 %v5015, 0.0
      %v5267 = vmax.f32 %v5017, 0.0
      %v5268 = vmax.f32 %v5019, 0.0
      %v5269 = vmax.f32 %v5023, 0.0
      %v5270 = vmax.f32 %v5025, 0.0
      %v5271 = vmax.f32 %v5027, 0.0
      %v5272 = vmax.f32 %v5029, 0.0
      %v5273 = vmax.f32 %v5033, 0.0
      %v5274 = vmax.f32 %v5035, 0.0
      %v5275 = vmax.f32 %v5037, 0.0
      %v5276 = vmax.f32 %v5039, 0.0
      %v5277 = vmax.f32 %v5043, 0.0
      %v5278 = vmax.f32 %v5045, 0.0
      %v5279 = vmax.f32 %v5047, 0.0
      %v5280 = vmax.f32 %v5049, 0.0
      %v5281 = vmax.f32 %v5053, 0.0
      %v5282 = vmax.f32 %v5055, 0.0
      %v5283 = vmax.f32 %v5057, 0.0
      %v5284 = vmax.f32 %v5059, 0.0
      %v5285 = vmax.f32 %v5063, 0.0
      %v5286 = vmax.f32 %v5065, 0.0
      %v5287 = vmax.f32 %v5067, 0.0
      %v5288 = vmax.f32 %v5069, 0.0
      %v5289 = vmax.f32 %v5073, 0.0
      %v5290 = vmax.f32 %v5075, 0.0
      %v5291 = vmax.f32 %v5077, 0.0
      %v5292 = vmax.f32 %v5079, 0.0
      %v5293 = vmax.f32 %v5083, 0.0
      %v5294 = vmax.f32 %v5085, 0.0
      %v5295 = vmax.f32 %v5087, 0.0
      %v5296 = vmax.f32 %v5089, 0.0
      %v5297 = vmax.f32 %v5093, 0.0
      %v5298 = vmax.f32 %v5095, 0.0
      %v5299 = vmax.f32 %v5097, 0.0
      %v5300 = vmax.f32 %v5099, 0.0
      %v5301 = vmax.f32 %v5103, 0.0
      %v5302 = vmax.f32 %v5105, 0.0
      %v5303 = vmax.f32 %v5107, 0.0
      %v5304 = vmax.f32 %v5109, 0.0
      %v5305 = vmax.f32 %v5113, 0.0
      %v5306 = vmax.f32 %v5115, 0.0
      %v5307 = vmax.f32 %v5117, 0.0
      %v5308 = vmax.f32 %v5119, 0.0
      %v5309 = vmax.f32 %v5123, 0.0
      %v5310 = vmax.f32 %v5125, 0.0
      %v5311 = vmax.f32 %v5127, 0.0
      %v5312 = vmax.f32 %v5129, 0.0
      %v5313 = vmax.f32 %v5133, 0.0
      %v5314 = vmax.f32 %v5135, 0.0
      %v5315 = vmax.f32 %v5137, 0.0
      %v5316 = vmax.f32 %v5139, 0.0
      %v5317 = vmax.f32 %v5143, 0.0
      %v5318 = vmax.f32 %v5145, 0.0
      %v5319 = vmax.f32 %v5147, 0.0
      %v5320 = vmax.f32 %v5149, 0.0
      %v5321 = vmax.f32 %v5153, 0.0
      %v5322 = vmax.f32 %v5155, 0.0
      %v5323 = vmax.f32 %v5157, 0.0
      %v5324 = vmax.f32 %v5159, 0.0
      %v5325 = vmax.f32 %v5163, 0.0
      %v5326 = vmax.f32 %v5165, 0.0
      %v5327 = vmax.f32 %v5167, 0.0
      %v5328 = vmax.f32 %v5169, 0.0
      %v5329 = vmax.f32 %v5173, 0.0
      %v5330 = vmax.f32 %v5175, 0.0
      %v5331 = vmax.f32 %v5177, 0.0
      %v5332 = vmax.f32 %v5179, 0.0
      %v5333 = vmax.f32 %v5183, 0.0
      %v5334 = vmax.f32 %v5185, 0.0
      %v5335 = vmax.f32 %v5187, 0.0
      %v5336 = vmax.f32 %v5189, 0.0
      %v5337 = vmax.f32 %v5193, 0.0
      %v5338 = vmax.f32 %v5195, 0.0
      %v5339 = vmax.f32 %v5197, 0.0
      %v5340 = vmax.f32 %v5199, 0.0
      %v5341 = vmax.f32 %v5203, 0.0
      %v5342 = vmax.f32 %v5205, 0.0
      %v5343 = vmax.f32 %v5207, 0.0
      %v5344 = vmax.f32 %v5209, 0.0
      %v5345 = vmax.f32 %v5213, 0.0
      %v5346 = vmax.f32 %v5215, 0.0
      %v5347 = vmax.f32 %v5217, 0.0
      %v5348 = vmax.f32 %v5219, 0.0
      %v5349 = vld [vmem:[%s27] sm:$0xff]
      %v5350 = vld [vmem:[%s27 + $0x8] sm:$0xff]
      %v5351 = vld [vmem:[%s27 + $0x10] sm:$0xff]
      %v5352 = vld [vmem:[%s27 + $0x18] sm:$0xff]
      %v5353 = vld [vmem:[%s27 + $0x20] sm:$0xff]
      %v5354 = vld [vmem:[%s27 + $0x28] sm:$0xff]
      %v5355 = vld [vmem:[%s27 + $0x30] sm:$0xff]
      %v5356 = vld [vmem:[%s27 + $0x38] sm:$0xff]
      %v5357 = vpack.c.bf16 %v5223, %v5221
      %v5358 = vpack.c.bf16 %v5224, %v5222
      %v5359 = vpack.c.bf16 %v5227, %v5225
      %v5360 = vpack.c.bf16 %v5228, %v5226
      %v5361 = vpack.c.bf16 %v5231, %v5229
      %v5362 = vpack.c.bf16 %v5232, %v5230
      %v5363 = vpack.c.bf16 %v5235, %v5233
      %v5364 = vpack.c.bf16 %v5236, %v5234
      %v5365 = vpack.c.bf16 %v5239, %v5237
      %v5366 = vpack.c.bf16 %v5240, %v5238
      %v5367 = vpack.c.bf16 %v5243, %v5241
      %v5368 = vpack.c.bf16 %v5244, %v5242
      %v5369 = vpack.c.bf16 %v5247, %v5245
      %v5370 = vpack.c.bf16 %v5248, %v5246
      %v5371 = vpack.c.bf16 %v5251, %v5249
      %v5372 = vpack.c.bf16 %v5252, %v5250
      %v5373 = vpack.c.bf16 %v5255, %v5253
      %v5374 = vpack.c.bf16 %v5256, %v5254
      %v5375 = vpack.c.bf16 %v5259, %v5257
      %v5376 = vpack.c.bf16 %v5260, %v5258
      %v5377 = vpack.c.bf16 %v5263, %v5261
      %v5378 = vpack.c.bf16 %v5264, %v5262
      %v5379 = vpack.c.bf16 %v5267, %v5265
      %v5380 = vpack.c.bf16 %v5268, %v5266
      %v5381 = vpack.c.bf16 %v5271, %v5269
      %v5382 = vpack.c.bf16 %v5272, %v5270
      %v5383 = vpack.c.bf16 %v5275, %v5273
      %v5384 = vpack.c.bf16 %v5276, %v5274
      %v5385 = vpack.c.bf16 %v5279, %v5277
      %v5386 = vpack.c.bf16 %v5280, %v5278
      %v5387 = vpack.c.bf16 %v5283, %v5281
      %v5388 = vpack.c.bf16 %v5284, %v5282
      %v5389 = vpack.c.bf16 %v5287, %v5285
      %v5390 = vpack.c.bf16 %v5288, %v5286
      %v5391 = vpack.c.bf16 %v5291, %v5289
      %v5392 = vpack.c.bf16 %v5292, %v5290
      %v5393 = vpack.c.bf16 %v5295, %v5293
      %v5394 = vpack.c.bf16 %v5296, %v5294
      %v5395 = vpack.c.bf16 %v5299, %v5297
      %v5396 = vpack.c.bf16 %v5300, %v5298
      %v5397 = vpack.c.bf16 %v5303, %v5301
      %v5398 = vpack.c.bf16 %v5304, %v5302
      %v5399 = vpack.c.bf16 %v5307, %v5305
      %v5400 = vpack.c.bf16 %v5308, %v5306
      %v5401 = vpack.c.bf16 %v5311, %v5309
      %v5402 = vpack.c.bf16 %v5312, %v5310
      %v5403 = vpack.c.bf16 %v5315, %v5313
      %v5404 = vpack.c.bf16 %v5316, %v5314
      %v5405 = vpack.c.bf16 %v5319, %v5317
      %v5406 = vpack.c.bf16 %v5320, %v5318
      %v5407 = vpack.c.bf16 %v5323, %v5321
      %v5408 = vpack.c.bf16 %v5324, %v5322
      %v5409 = vpack.c.bf16 %v5327, %v5325
      %v5410 = vpack.c.bf16 %v5328, %v5326
      %v5411 = vpack.c.bf16 %v5331, %v5329
      %v5412 = vpack.c.bf16 %v5332, %v5330
      %v5413 = vpack.c.bf16 %v5335, %v5333
      %v5414 = vpack.c.bf16 %v5336, %v5334
      %v5415 = vpack.c.bf16 %v5339, %v5337
      %v5416 = vpack.c.bf16 %v5340, %v5338
      %v5417 = vpack.c.bf16 %v5343, %v5341
      %v5418 = vpack.c.bf16 %v5344, %v5342
      %v5419 = vpack.c.bf16 %v5347, %v5345
      %v5420 = vpack.c.bf16 %v5348, %v5346
      %v5421 = vld [vmem:[%s29] sm:$0xff]
      %v5422 = vld [vmem:[%s29 + $0x8] sm:$0xff]
      %v5423 = vld [vmem:[%s29 + $0x10] sm:$0xff]
      %v5424 = vld [vmem:[%s29 + $0x18] sm:$0xff]
      %v5425 = vld [vmem:[%s29 + $0x20] sm:$0xff]
      %v5426 = vld [vmem:[%s29 + $0x28] sm:$0xff]
      %v5427 = vld [vmem:[%s29 + $0x30] sm:$0xff]
      %v5428 = vld [vmem:[%s29 + $0x38] sm:$0xff]
      %v5429 = vld [vmem:[%s29 + $0x40] sm:$0xff]
      %v5430 = vld [vmem:[%s29 + $0x48] sm:$0xff]
      %v5431 = vld [vmem:[%s29 + $0x50] sm:$0xff]
      %v5432 = vld [vmem:[%s29 + $0x58] sm:$0xff]
      %v5433 = vld [vmem:[%s29 + $0x60] sm:$0xff]
      %v5434 = vld [vmem:[%s29 + $0x68] sm:$0xff]
      %v5435 = vld [vmem:[%s29 + $0x70] sm:$0xff]
      %v5436 = vld [vmem:[%s29 + $0x78] sm:$0xff]
      %v5437 = vld [vmem:[%s29 + $0x80] sm:$0xff]
      %v5438 = vld [vmem:[%s29 + $0x88] sm:$0xff]
      %v5439 = vld [vmem:[%s29 + $0x90] sm:$0xff]
      %v5440 = vld [vmem:[%s29 + $0x98] sm:$0xff]
      %v5441 = vld [vmem:[%s29 + $0xa0] sm:$0xff]
      %v5442 = vld [vmem:[%s29 + $0xa8] sm:$0xff]
      %v5443 = vld [vmem:[%s29 + $0xb0] sm:$0xff]
      %v5444 = vld [vmem:[%s29 + $0xb8] sm:$0xff]
      %v5445 = vld [vmem:[%s29 + $0xc0] sm:$0xff]
      %v5446 = vld [vmem:[%s29 + $0xc8] sm:$0xff]
      %v5447 = vld [vmem:[%s29 + $0xd0] sm:$0xff]
      %v5448 = vld [vmem:[%s29 + $0xd8] sm:$0xff]
      %v5449 = vld [vmem:[%s29 + $0xe0] sm:$0xff]
      %v5450 = vld [vmem:[%s29 + $0xe8] sm:$0xff]
      %v5451 = vld [vmem:[%s29 + $0xf0] sm:$0xff]
      %v5452 = vld [vmem:[%s29 + $0xf8] sm:$0xff]
      %v5485 = vunpack.c.l.b16 %v5421
      %v5486 = vunpack.c.h.b16 %v5421
      %v5487 = vunpack.c.l.b16 %v5422
      %v5488 = vunpack.c.h.b16 %v5422
      %v5489 = vunpack.c.l.b16 %v5423
      %v5490 = vunpack.c.h.b16 %v5423
      %v5491 = vunpack.c.l.b16 %v5424
      %v5492 = vunpack.c.h.b16 %v5424
      %v5493 = vunpack.c.l.b16 %v5425
      %v5494 = vunpack.c.h.b16 %v5425
      %v5495 = vunpack.c.l.b16 %v5426
      %v5496 = vunpack.c.h.b16 %v5426
      %v5497 = vunpack.c.l.b16 %v5427
      %v5498 = vunpack.c.h.b16 %v5427
      %v5499 = vunpack.c.l.b16 %v5428
      %v5500 = vunpack.c.h.b16 %v5428
      %v5501 = vunpack.c.l.b16 %v5429
      %v5502 = vunpack.c.h.b16 %v5429
      %v5503 = vunpack.c.l.b16 %v5430
      %v5504 = vunpack.c.h.b16 %v5430
      %v5505 = vunpack.c.l.b16 %v5431
      %v5506 = vunpack.c.h.b16 %v5431
      %v5507 = vunpack.c.l.b16 %v5432
      %v5508 = vunpack.c.h.b16 %v5432
      %v5509 = vunpack.c.l.b16 %v5433
      %v5510 = vunpack.c.h.b16 %v5433
      %v5511 = vunpack.c.l.b16 %v5434
      %v5512 = vunpack.c.h.b16 %v5434
      %v5513 = vunpack.c.l.b16 %v5435
      %v5514 = vunpack.c.h.b16 %v5435
      %v5515 = vunpack.c.l.b16 %v5436
      %v5516 = vunpack.c.h.b16 %v5436
      %v5517 = vunpack.c.l.b16 %v5437
      %v5518 = vunpack.c.h.b16 %v5437
      %v5519 = vunpack.c.l.b16 %v5438
      %v5520 = vunpack.c.h.b16 %v5438
      %v5521 = vunpack.c.l.b16 %v5439
      %v5522 = vunpack.c.h.b16 %v5439
      %v5523 = vunpack.c.l.b16 %v5440
      %v5524 = vunpack.c.h.b16 %v5440
      %v5525 = vunpack.c.l.b16 %v5441
      %v5526 = vunpack.c.h.b16 %v5441
      %v5527 = vunpack.c.l.b16 %v5442
      %v5528 = vunpack.c.h.b16 %v5442
      %v5529 = vunpack.c.l.b16 %v5443
      %v5530 = vunpack.c.h.b16 %v5443
      %v5531 = vunpack.c.l.b16 %v5444
      %v5532 = vunpack.c.h.b16 %v5444
      %v5533 = vunpack.c.l.b16 %v5445
      %v5534 = vunpack.c.h.b16 %v5445
      %v5535 = vunpack.c.l.b16 %v5446
      %v5536 = vunpack.c.h.b16 %v5446
      %v5537 = vunpack.c.l.b16 %v5447
      %v5538 = vunpack.c.h.b16 %v5447
      %v5539 = vunpack.c.l.b16 %v5448
      %v5540 = vunpack.c.h.b16 %v5448
      %v5541 = vunpack.c.l.b16 %v5449
      %v5542 = vunpack.c.h.b16 %v5449
      %v5543 = vunpack.c.l.b16 %v5450
      %v5544 = vunpack.c.h.b16 %v5450
      %v5545 = vunpack.c.l.b16 %v5451
      %v5546 = vunpack.c.h.b16 %v5451
      %v5547 = vunpack.c.l.b16 %v5452
      %v5548 = vunpack.c.h.b16 %v5452
      %v5549 = vpack.c.b16 %v5487, %v5485
      %v5550 = vpack.c.b16 %v5488, %v5486
      %v5551 = vpack.c.b16 %v5491, %v5489
      %v5552 = vpack.c.b16 %v5492, %v5490
      %v5553 = vpack.c.b16 %v5495, %v5493
      %v5554 = vpack.c.b16 %v5496, %v5494
      %v5555 = vpack.c.b16 %v5499, %v5497
      %v5556 = vpack.c.b16 %v5500, %v5498
      %v5557 = vpack.c.b16 %v5503, %v5501
      %v5558 = vpack.c.b16 %v5504, %v5502
      %v5559 = vpack.c.b16 %v5507, %v5505
      %v5560 = vpack.c.b16 %v5508, %v5506
      %v5561 = vpack.c.b16 %v5511, %v5509
      %v5562 = vpack.c.b16 %v5512, %v5510
      %v5563 = vpack.c.b16 %v5515, %v5513
      %v5564 = vpack.c.b16 %v5516, %v5514
      %v5565 = vpack.c.b16 %v5519, %v5517
      %v5566 = vpack.c.b16 %v5520, %v5518
      %v5567 = vpack.c.b16 %v5523, %v5521
      %v5568 = vpack.c.b16 %v5524, %v5522
      %v5569 = vpack.c.b16 %v5527, %v5525
      %v5570 = vpack.c.b16 %v5528, %v5526
      %v5571 = vpack.c.b16 %v5531, %v5529
      %v5572 = vpack.c.b16 %v5532, %v5530
      %v5573 = vpack.c.b16 %v5535, %v5533
      %v5574 = vpack.c.b16 %v5536, %v5534
      %v5575 = vpack.c.b16 %v5539, %v5537
      %v5576 = vpack.c.b16 %v5540, %v5538
      %v5577 = vpack.c.b16 %v5543, %v5541
      %v5578 = vpack.c.b16 %v5544, %v5542
      %v5579 = vpack.c.b16 %v5547, %v5545
      %v5580 = vpack.c.b16 %v5548, %v5546
      %5613 = vmatprep.subr.bf16.mxu0 %v5564
      %5614 = vmatpush1.bf16.msra.mxu0 %v5563
      %5615 = vmatprep.subr.bf16.mxu0 %v5562
      %5616 = vmatpush1.bf16.msra.mxu0 %v5561
      %5617 = vmatprep.subr.bf16.mxu0 %v5560
      %5618 = vmatpush1.bf16.msra.mxu0 %v5559
      %5619 = vmatprep.subr.bf16.mxu0 %v5558
      %5620 = vmatpush1.bf16.msra.mxu0 %v5557
      %5621 = vmatprep.subr.bf16.mxu0 %v5556
      %5622 = vmatpush1.bf16.msra.mxu0 %v5555
      %5623 = vmatprep.subr.bf16.mxu0 %v5554
      %5624 = vmatpush1.bf16.msra.mxu0 %v5553
      %5625 = vmatprep.subr.bf16.mxu0 %v5552
      %5626 = vmatpush1.bf16.msra.mxu0 %v5551
      %5627 = vmatprep.subr.bf16.mxu0 %v5550
      %5628 = vmatpush1.bf16.msra.mxu0 %v5549
      %5629 = vmatprep.subr.bf16.mxu0 %v5580
      %5630 = vmatpush2.bf16.msra.mxu0 %v5579
      %5631 = vmatprep.subr.bf16.mxu0 %v5578
      %5632 = vmatpush2.bf16.msra.mxu0 %v5577
      %5633 = vmatprep.subr.bf16.mxu0 %v5576
      %5634 = vmatpush2.bf16.msra.mxu0 %v5575
      %5635 = vmatprep.subr.bf16.mxu0 %v5574
      %5636 = vmatpush2.bf16.msra.mxu0 %v5573
      %5637 = vmatprep.subr.bf16.mxu0 %v5572
      %5638 = vmatpush2.bf16.msra.mxu0 %v5571
      %5639 = vmatprep.subr.bf16.mxu0 %v5570
      %5640 = vmatpush2.bf16.msra.mxu0 %v5569
      %5641 = vmatprep.subr.bf16.mxu0 %v5568
      %5642 = vmatpush2.bf16.msra.mxu0 %v5567
      %5643 = vmatprep.subr.bf16.mxu0 %v5566
      %5644 = vmatpush2.bf16.msra.mxu0 %v5565
      %5645 = vmatprep.mubr.bf16.mxu0 %v5358
      %5646 = vmatmul.mubr.bf16.gmra.mxu0 %v5357
      %v5647 = vpop.f32.mrf.mxu0
      %v5648 = vadd.f32 0.0, %v5647
      %v5649 = vpop.f32.mrf.mxu0
      %v5650 = vadd.f32 0.0, %v5649
      %v5651 = vpop.f32.mrf.mxu0
      %v5652 = vadd.f32 0.0, %v5651
      %v5653 = vpop.f32.mrf.mxu0
      %v5654 = vadd.f32 0.0, %v5653
      %5655 = vmatprep.mubr.bf16.mxu0 %v5360
      %5656 = vmatmul.mubr.bf16.gmra.mxu0 %v5359
      %v5657 = vpop.f32.mrf.mxu0
      %v5658 = vadd.f32 0.0, %v5657
      %v5659 = vpop.f32.mrf.mxu0
      %v5660 = vadd.f32 0.0, %v5659
      %v5661 = vpop.f32.mrf.mxu0
      %v5662 = vadd.f32 0.0, %v5661
      %v5663 = vpop.f32.mrf.mxu0
      %v5664 = vadd.f32 0.0, %v5663
      %5665 = vmatprep.mubr.bf16.mxu0 %v5362
      %5666 = vmatmul.mubr.bf16.gmra.mxu0 %v5361
      %v5667 = vpop.f32.mrf.mxu0
      %v5668 = vadd.f32 0.0, %v5667
      %v5669 = vpop.f32.mrf.mxu0
      %v5670 = vadd.f32 0.0, %v5669
      %v5671 = vpop.f32.mrf.mxu0
      %v5672 = vadd.f32 0.0, %v5671
      %v5673 = vpop.f32.mrf.mxu0
      %v5674 = vadd.f32 0.0, %v5673
      %5675 = vmatprep.mubr.bf16.mxu0 %v5364
      %5676 = vmatmul.mubr.bf16.gmra.mxu0 %v5363
      %v5677 = vpop.f32.mrf.mxu0
      %v5678 = vadd.f32 0.0, %v5677
      %v5679 = vpop.f32.mrf.mxu0
      %v5680 = vadd.f32 0.0, %v5679
      %v5681 = vpop.f32.mrf.mxu0
      %v5682 = vadd.f32 0.0, %v5681
      %v5683 = vpop.f32.mrf.mxu0
      %v5684 = vadd.f32 0.0, %v5683
      %5685 = vmatprep.mubr.bf16.mxu0 %v5366
      %5686 = vmatmul.mubr.bf16.gmra.mxu0 %v5365
      %v5687 = vpop.f32.mrf.mxu0
      %v5688 = vadd.f32 0.0, %v5687
      %v5689 = vpop.f32.mrf.mxu0
      %v5690 = vadd.f32 0.0, %v5689
      %v5691 = vpop.f32.mrf.mxu0
      %v5692 = vadd.f32 0.0, %v5691
      %v5693 = vpop.f32.mrf.mxu0
      %v5694 = vadd.f32 0.0, %v5693
      %5695 = vmatprep.mubr.bf16.mxu0 %v5368
      %5696 = vmatmul.mubr.bf16.gmra.mxu0 %v5367
      %v5697 = vpop.f32.mrf.mxu0
      %v5698 = vadd.f32 0.0, %v5697
      %v5699 = vpop.f32.mrf.mxu0
      %v5700 = vadd.f32 0.0, %v5699
      %v5701 = vpop.f32.mrf.mxu0
      %v5702 = vadd.f32 0.0, %v5701
      %v5703 = vpop.f32.mrf.mxu0
      %v5704 = vadd.f32 0.0, %v5703
      %5705 = vmatprep.mubr.bf16.mxu0 %v5370
      %5706 = vmatmul.mubr.bf16.gmra.mxu0 %v5369
      %v5707 = vpop.f32.mrf.mxu0
      %v5708 = vadd.f32 0.0, %v5707
      %v5709 = vpop.f32.mrf.mxu0
      %v5710 = vadd.f32 0.0, %v5709
      %v5711 = vpop.f32.mrf.mxu0
      %v5712 = vadd.f32 0.0, %v5711
      %v5713 = vpop.f32.mrf.mxu0
      %v5714 = vadd.f32 0.0, %v5713
      %5715 = vmatprep.mubr.bf16.mxu0 %v5372
      %5716 = vmatmul.mubr.bf16.gmra.mxu0 %v5371
      %v5717 = vpop.f32.mrf.mxu0
      %v5718 = vadd.f32 0.0, %v5717
      %v5719 = vpop.f32.mrf.mxu0
      %v5720 = vadd.f32 0.0, %v5719
      %v5721 = vpop.f32.mrf.mxu0
      %v5722 = vadd.f32 0.0, %v5721
      %v5723 = vpop.f32.mrf.mxu0
      %v5724 = vadd.f32 0.0, %v5723
      %5725 = vmatprep.mubr.bf16.mxu0 %v5374
      %5726 = vmatmul.mubr.bf16.gmra.mxu0 %v5373
      %v5727 = vpop.f32.mrf.mxu0
      %v5728 = vadd.f32 0.0, %v5727
      %v5729 = vpop.f32.mrf.mxu0
      %v5730 = vadd.f32 0.0, %v5729
      %v5731 = vpop.f32.mrf.mxu0
      %v5732 = vadd.f32 0.0, %v5731
      %v5733 = vpop.f32.mrf.mxu0
      %v5734 = vadd.f32 0.0, %v5733
      %5735 = vmatprep.mubr.bf16.mxu0 %v5376
      %5736 = vmatmul.mubr.bf16.gmra.mxu0 %v5375
      %v5737 = vpop.f32.mrf.mxu0
      %v5738 = vadd.f32 0.0, %v5737
      %v5739 = vpop.f32.mrf.mxu0
      %v5740 = vadd.f32 0.0, %v5739
      %v5741 = vpop.f32.mrf.mxu0
      %v5742 = vadd.f32 0.0, %v5741
      %v5743 = vpop.f32.mrf.mxu0
      %v5744 = vadd.f32 0.0, %v5743
      %5745 = vmatprep.mubr.bf16.mxu0 %v5378
      %5746 = vmatmul.mubr.bf16.gmra.mxu0 %v5377
      %v5747 = vpop.f32.mrf.mxu0
      %v5748 = vadd.f32 0.0, %v5747
      %v5749 = vpop.f32.mrf.mxu0
      %v5750 = vadd.f32 0.0, %v5749
      %v5751 = vpop.f32.mrf.mxu0
      %v5752 = vadd.f32 0.0, %v5751
      %v5753 = vpop.f32.mrf.mxu0
      %v5754 = vadd.f32 0.0, %v5753
      %5755 = vmatprep.mubr.bf16.mxu0 %v5380
      %5756 = vmatmul.mubr.bf16.gmra.mxu0 %v5379
      %v5757 = vpop.f32.mrf.mxu0
      %v5758 = vadd.f32 0.0, %v5757
      %v5759 = vpop.f32.mrf.mxu0
      %v5760 = vadd.f32 0.0, %v5759
      %v5761 = vpop.f32.mrf.mxu0
      %v5762 = vadd.f32 0.0, %v5761
      %v5763 = vpop.f32.mrf.mxu0
      %v5764 = vadd.f32 0.0, %v5763
      %5765 = vmatprep.mubr.bf16.mxu0 %v5382
      %5766 = vmatmul.mubr.bf16.gmra.mxu0 %v5381
      %v5767 = vpop.f32.mrf.mxu0
      %v5768 = vadd.f32 0.0, %v5767
      %v5769 = vpop.f32.mrf.mxu0
      %v5770 = vadd.f32 0.0, %v5769
      %v5771 = vpop.f32.mrf.mxu0
      %v5772 = vadd.f32 0.0, %v5771
      %v5773 = vpop.f32.mrf.mxu0
      %v5774 = vadd.f32 0.0, %v5773
      %5775 = vmatprep.mubr.bf16.mxu0 %v5384
      %5776 = vmatmul.mubr.bf16.gmra.mxu0 %v5383
      %v5777 = vpop.f32.mrf.mxu0
      %v5778 = vadd.f32 0.0, %v5777
      %v5779 = vpop.f32.mrf.mxu0
      %v5780 = vadd.f32 0.0, %v5779
      %v5781 = vpop.f32.mrf.mxu0
      %v5782 = vadd.f32 0.0, %v5781
      %v5783 = vpop.f32.mrf.mxu0
      %v5784 = vadd.f32 0.0, %v5783
      %5785 = vmatprep.mubr.bf16.mxu0 %v5386
      %5786 = vmatmul.mubr.bf16.gmra.mxu0 %v5385
      %v5787 = vpop.f32.mrf.mxu0
      %v5788 = vadd.f32 0.0, %v5787
      %v5789 = vpop.f32.mrf.mxu0
      %v5790 = vadd.f32 0.0, %v5789
      %v5791 = vpop.f32.mrf.mxu0
      %v5792 = vadd.f32 0.0, %v5791
      %v5793 = vpop.f32.mrf.mxu0
      %v5794 = vadd.f32 0.0, %v5793
      %5795 = vmatprep.mubr.bf16.mxu0 %v5388
      %5796 = vmatmul.mubr.bf16.gmra.mxu0 %v5387
      %v5797 = vpop.f32.mrf.mxu0
      %v5798 = vadd.f32 0.0, %v5797
      %v5799 = vpop.f32.mrf.mxu0
      %v5800 = vadd.f32 0.0, %v5799
      %v5801 = vpop.f32.mrf.mxu0
      %v5802 = vadd.f32 0.0, %v5801
      %v5803 = vpop.f32.mrf.mxu0
      %v5804 = vadd.f32 0.0, %v5803
      %5805 = vmatprep.mubr.bf16.mxu0 %v5390
      %5806 = vmatmul.mubr.bf16.gmra.mxu0 %v5389
      %v5807 = vpop.f32.mrf.mxu0
      %v5808 = vadd.f32 0.0, %v5807
      %v5809 = vpop.f32.mrf.mxu0
      %v5810 = vadd.f32 0.0, %v5809
      %v5811 = vpop.f32.mrf.mxu0
      %v5812 = vadd.f32 0.0, %v5811
      %v5813 = vpop.f32.mrf.mxu0
      %v5814 = vadd.f32 0.0, %v5813
      %5815 = vmatprep.mubr.bf16.mxu0 %v5392
      %5816 = vmatmul.mubr.bf16.gmra.mxu0 %v5391
      %v5817 = vpop.f32.mrf.mxu0
      %v5818 = vadd.f32 0.0, %v5817
      %v5819 = vpop.f32.mrf.mxu0
      %v5820 = vadd.f32 0.0, %v5819
      %v5821 = vpop.f32.mrf.mxu0
      %v5822 = vadd.f32 0.0, %v5821
      %v5823 = vpop.f32.mrf.mxu0
      %v5824 = vadd.f32 0.0, %v5823
      %5825 = vmatprep.mubr.bf16.mxu0 %v5394
      %5826 = vmatmul.mubr.bf16.gmra.mxu0 %v5393
      %v5827 = vpop.f32.mrf.mxu0
      %v5828 = vadd.f32 0.0, %v5827
      %v5829 = vpop.f32.mrf.mxu0
      %v5830 = vadd.f32 0.0, %v5829
      %v5831 = vpop.f32.mrf.mxu0
      %v5832 = vadd.f32 0.0, %v5831
      %v5833 = vpop.f32.mrf.mxu0
      %v5834 = vadd.f32 0.0, %v5833
      %5835 = vmatprep.mubr.bf16.mxu0 %v5396
      %5836 = vmatmul.mubr.bf16.gmra.mxu0 %v5395
      %v5837 = vpop.f32.mrf.mxu0
      %v5838 = vadd.f32 0.0, %v5837
      %v5839 = vpop.f32.mrf.mxu0
      %v5840 = vadd.f32 0.0, %v5839
      %v5841 = vpop.f32.mrf.mxu0
      %v5842 = vadd.f32 0.0, %v5841
      %v5843 = vpop.f32.mrf.mxu0
      %v5844 = vadd.f32 0.0, %v5843
      %5845 = vmatprep.mubr.bf16.mxu0 %v5398
      %5846 = vmatmul.mubr.bf16.gmra.mxu0 %v5397
      %v5847 = vpop.f32.mrf.mxu0
      %v5848 = vadd.f32 0.0, %v5847
      %v5849 = vpop.f32.mrf.mxu0
      %v5850 = vadd.f32 0.0, %v5849
      %v5851 = vpop.f32.mrf.mxu0
      %v5852 = vadd.f32 0.0, %v5851
      %v5853 = vpop.f32.mrf.mxu0
      %v5854 = vadd.f32 0.0, %v5853
      %5855 = vmatprep.mubr.bf16.mxu0 %v5400
      %5856 = vmatmul.mubr.bf16.gmra.mxu0 %v5399
      %v5857 = vpop.f32.mrf.mxu0
      %v5858 = vadd.f32 0.0, %v5857
      %v5859 = vpop.f32.mrf.mxu0
      %v5860 = vadd.f32 0.0, %v5859
      %v5861 = vpop.f32.mrf.mxu0
      %v5862 = vadd.f32 0.0, %v5861
      %v5863 = vpop.f32.mrf.mxu0
      %v5864 = vadd.f32 0.0, %v5863
      %5865 = vmatprep.mubr.bf16.mxu0 %v5402
      %5866 = vmatmul.mubr.bf16.gmra.mxu0 %v5401
      %v5867 = vpop.f32.mrf.mxu0
      %v5868 = vadd.f32 0.0, %v5867
      %v5869 = vpop.f32.mrf.mxu0
      %v5870 = vadd.f32 0.0, %v5869
      %v5871 = vpop.f32.mrf.mxu0
      %v5872 = vadd.f32 0.0, %v5871
      %v5873 = vpop.f32.mrf.mxu0
      %v5874 = vadd.f32 0.0, %v5873
      %5875 = vmatprep.mubr.bf16.mxu0 %v5404
      %5876 = vmatmul.mubr.bf16.gmra.mxu0 %v5403
      %v5877 = vpop.f32.mrf.mxu0
      %v5878 = vadd.f32 0.0, %v5877
      %v5879 = vpop.f32.mrf.mxu0
      %v5880 = vadd.f32 0.0, %v5879
      %v5881 = vpop.f32.mrf.mxu0
      %v5882 = vadd.f32 0.0, %v5881
      %v5883 = vpop.f32.mrf.mxu0
      %v5884 = vadd.f32 0.0, %v5883
      %5885 = vmatprep.mubr.bf16.mxu0 %v5406
      %5886 = vmatmul.mubr.bf16.gmra.mxu0 %v5405
      %v5887 = vpop.f32.mrf.mxu0
      %v5888 = vadd.f32 0.0, %v5887
      %v5889 = vpop.f32.mrf.mxu0
      %v5890 = vadd.f32 0.0, %v5889
      %v5891 = vpop.f32.mrf.mxu0
      %v5892 = vadd.f32 0.0, %v5891
      %v5893 = vpop.f32.mrf.mxu0
      %v5894 = vadd.f32 0.0, %v5893
      %5895 = vmatprep.mubr.bf16.mxu0 %v5408
      %5896 = vmatmul.mubr.bf16.gmra.mxu0 %v5407
      %v5897 = vpop.f32.mrf.mxu0
      %v5898 = vadd.f32 0.0, %v5897
      %v5899 = vpop.f32.mrf.mxu0
      %v5900 = vadd.f32 0.0, %v5899
      %v5901 = vpop.f32.mrf.mxu0
      %v5902 = vadd.f32 0.0, %v5901
      %v5903 = vpop.f32.mrf.mxu0
      %v5904 = vadd.f32 0.0, %v5903
      %5905 = vmatprep.mubr.bf16.mxu0 %v5410
      %5906 = vmatmul.mubr.bf16.gmra.mxu0 %v5409
      %v5907 = vpop.f32.mrf.mxu0
      %v5908 = vadd.f32 0.0, %v5907
      %v5909 = vpop.f32.mrf.mxu0
      %v5910 = vadd.f32 0.0, %v5909
      %v5911 = vpop.f32.mrf.mxu0
      %v5912 = vadd.f32 0.0, %v5911
      %v5913 = vpop.f32.mrf.mxu0
      %v5914 = vadd.f32 0.0, %v5913
      %5915 = vmatprep.mubr.bf16.mxu0 %v5412
      %5916 = vmatmul.mubr.bf16.gmra.mxu0 %v5411
      %v5917 = vpop.f32.mrf.mxu0
      %v5918 = vadd.f32 0.0, %v5917
      %v5919 = vpop.f32.mrf.mxu0
      %v5920 = vadd.f32 0.0, %v5919
      %v5921 = vpop.f32.mrf.mxu0
      %v5922 = vadd.f32 0.0, %v5921
      %v5923 = vpop.f32.mrf.mxu0
      %v5924 = vadd.f32 0.0, %v5923
      %5925 = vmatprep.mubr.bf16.mxu0 %v5414
      %5926 = vmatmul.mubr.bf16.gmra.mxu0 %v5413
      %v5927 = vpop.f32.mrf.mxu0
      %v5928 = vadd.f32 0.0, %v5927
      %v5929 = vpop.f32.mrf.mxu0
      %v5930 = vadd.f32 0.0, %v5929
      %v5931 = vpop.f32.mrf.mxu0
      %v5932 = vadd.f32 0.0, %v5931
      %v5933 = vpop.f32.mrf.mxu0
      %v5934 = vadd.f32 0.0, %v5933
      %5935 = vmatprep.mubr.bf16.mxu0 %v5416
      %5936 = vmatmul.mubr.bf16.gmra.mxu0 %v5415
      %v5937 = vpop.f32.mrf.mxu0
      %v5938 = vadd.f32 0.0, %v5937
      %v5939 = vpop.f32.mrf.mxu0
      %v5940 = vadd.f32 0.0, %v5939
      %v5941 = vpop.f32.mrf.mxu0
      %v5942 = vadd.f32 0.0, %v5941
      %v5943 = vpop.f32.mrf.mxu0
      %v5944 = vadd.f32 0.0, %v5943
      %5945 = vmatprep.mubr.bf16.mxu0 %v5418
      %5946 = vmatmul.mubr.bf16.gmra.mxu0 %v5417
      %v5947 = vpop.f32.mrf.mxu0
      %v5948 = vadd.f32 0.0, %v5947
      %v5949 = vpop.f32.mrf.mxu0
      %v5950 = vadd.f32 0.0, %v5949
      %v5951 = vpop.f32.mrf.mxu0
      %v5952 = vadd.f32 0.0, %v5951
      %v5953 = vpop.f32.mrf.mxu0
      %v5954 = vadd.f32 0.0, %v5953
      %5955 = vmatprep.mubr.bf16.mxu0 %v5420
      %5956 = vmatmul.mubr.bf16.gmra.mxu0 %v5419
      %v5957 = vpop.f32.mrf.mxu0
      %v5958 = vadd.f32 0.0, %v5957
      %v5959 = vpop.f32.mrf.mxu0
      %v5960 = vadd.f32 0.0, %v5959
      %v5961 = vpop.f32.mrf.mxu0
      %v5962 = vadd.f32 0.0, %v5961
      %v5963 = vpop.f32.mrf.mxu0
      %v5964 = vadd.f32 0.0, %v5963
      %5965 = vdwg.mxu0
      %v5974 = vunpack.c.l.b16 %v5349
      %v5975 = vunpack.c.h.b16 %v5349
      %v5976 = vunpack.c.l.b16 %v5350
      %v5977 = vunpack.c.h.b16 %v5350
      %v5978 = vunpack.c.l.b16 %v5351
      %v5979 = vunpack.c.h.b16 %v5351
      %v5980 = vunpack.c.l.b16 %v5352
      %v5981 = vunpack.c.h.b16 %v5352
      %v5982 = vunpack.c.l.b16 %v5353
      %v5983 = vunpack.c.h.b16 %v5353
      %v5984 = vunpack.c.l.b16 %v5354
      %v5985 = vunpack.c.h.b16 %v5354
      %v5986 = vunpack.c.l.b16 %v5355
      %v5987 = vunpack.c.h.b16 %v5355
      %v5988 = vunpack.c.l.b16 %v5356
      %v5989 = vunpack.c.h.b16 %v5356
      %v5990 = vpack.c.b16 %v5976, %v5974
      %v5991 = vpack.c.b16 %v5977, %v5975
      %v5992 = vpack.c.b16 %v5980, %v5978
      %v5993 = vpack.c.b16 %v5981, %v5979
      %v5994 = vpack.c.b16 %v5984, %v5982
      %v5995 = vpack.c.b16 %v5985, %v5983
      %v5996 = vpack.c.b16 %v5988, %v5986
      %v5997 = vpack.c.b16 %v5989, %v5987
      %6006 = vmatprep.subr.bf16.mxu0 0
      %6007 = vmatpush1.bf16.msra.mxu0 0
      %6008 = vmatprep.subr.bf16.mxu0 0
      %6009 = vmatpush1.bf16.msra.mxu0 0
      %6010 = vmatprep.subr.bf16.mxu0 0
      %6011 = vmatpush1.bf16.msra.mxu0 0
      %6012 = vmatprep.subr.bf16.mxu0 0
      %6013 = vmatpush1.bf16.msra.mxu0 0
      %6014 = vmatprep.subr.bf16.mxu0 %v5997
      %6015 = vmatpush1.bf16.msra.mxu0 %v5996
      %6016 = vmatprep.subr.bf16.mxu0 %v5995
      %6017 = vmatpush1.bf16.msra.mxu0 %v5994
      %6018 = vmatprep.subr.bf16.mxu0 %v5993
      %6019 = vmatpush1.bf16.msra.mxu0 %v5992
      %6020 = vmatprep.subr.bf16.mxu0 %v5991
      %6021 = vmatpush1.bf16.msra.mxu0 %v5990
      %6022 = vmatprep.subr.bf16.mxu0 0
      %6023 = vmatpush2.bf16.msra.mxu0 0
      %6024 = vmatprep.subr.bf16.mxu0 0
      %6025 = vmatpush2.bf16.msra.mxu0 0
      %6026 = vmatprep.subr.bf16.mxu0 0
      %6027 = vmatpush2.bf16.msra.mxu0 0
      %6028 = vmatprep.subr.bf16.mxu0 0
      %6029 = vmatpush2.bf16.msra.mxu0 0
      %6030 = vmatprep.subr.bf16.mxu0 0
      %6031 = vmatpush2.bf16.msra.mxu0 0
      %6032 = vmatprep.subr.bf16.mxu0 0
      %6033 = vmatpush2.bf16.msra.mxu0 0
      %6034 = vmatprep.subr.bf16.mxu0 0
      %6035 = vmatpush2.bf16.msra.mxu0 0
      %6036 = vmatprep.subr.bf16.mxu0 0
      %6037 = vmatpush2.bf16.msra.mxu0 0
      %6038 = vmatprep.mubr.bf16.mxu0 0
      %6039 = vmatmul.mubr.bf16.gmra.mxu0 %v2142
      %v6040 = vpop.f32.mrf.mxu0
      %v6041 = vadd.f32 %v5648, %v6040
      %v6042 = vpop.f32.mrf.mxu0
      %v6043 = vadd.f32 %v5650, %v6042
      %v6044 = vpop.f32.mrf.mxu0
      %v6045 = vadd.f32 %v5652, %v6044
      %v6046 = vpop.f32.mrf.mxu0
      %v6047 = vadd.f32 %v5654, %v6046
      %6048 = vmatprep.mubr.bf16.mxu0 0
      %6049 = vmatmul.mubr.bf16.gmra.mxu0 %v2145
      %v6050 = vpop.f32.mrf.mxu0
      %v6051 = vadd.f32 %v5658, %v6050
      %v6052 = vpop.f32.mrf.mxu0
      %v6053 = vadd.f32 %v5660, %v6052
      %v6054 = vpop.f32.mrf.mxu0
      %v6055 = vadd.f32 %v5662, %v6054
      %v6056 = vpop.f32.mrf.mxu0
      %v6057 = vadd.f32 %v5664, %v6056
      %6058 = vmatprep.mubr.bf16.mxu0 0
      %6059 = vmatmul.mubr.bf16.gmra.mxu0 %v2148
      %v6060 = vpop.f32.mrf.mxu0
      %v6061 = vadd.f32 %v5668, %v6060
      %v6062 = vpop.f32.mrf.mxu0
      %v6063 = vadd.f32 %v5670, %v6062
      %v6064 = vpop.f32.mrf.mxu0
      %v6065 = vadd.f32 %v5672, %v6064
      %v6066 = vpop.f32.mrf.mxu0
      %v6067 = vadd.f32 %v5674, %v6066
      %6068 = vmatprep.mubr.bf16.mxu0 0
      %6069 = vmatmul.mubr.bf16.gmra.mxu0 %v2151
      %v6070 = vpop.f32.mrf.mxu0
      %v6071 = vadd.f32 %v5678, %v6070
      %v6072 = vpop.f32.mrf.mxu0
      %v6073 = vadd.f32 %v5680, %v6072
      %v6074 = vpop.f32.mrf.mxu0
      %v6075 = vadd.f32 %v5682, %v6074
      %v6076 = vpop.f32.mrf.mxu0
      %v6077 = vadd.f32 %v5684, %v6076
      %6078 = vmatprep.mubr.bf16.mxu0 0
      %6079 = vmatmul.mubr.bf16.gmra.mxu0 %v2154
      %v6080 = vpop.f32.mrf.mxu0
      %v6081 = vadd.f32 %v5688, %v6080
      %v6082 = vpop.f32.mrf.mxu0
      %v6083 = vadd.f32 %v5690, %v6082
      %v6084 = vpop.f32.mrf.mxu0
      %v6085 = vadd.f32 %v5692, %v6084
      %v6086 = vpop.f32.mrf.mxu0
      %v6087 = vadd.f32 %v5694, %v6086
      %6088 = vmatprep.mubr.bf16.mxu0 0
      %6089 = vmatmul.mubr.bf16.gmra.mxu0 %v2157
      %v6090 = vpop.f32.mrf.mxu0
      %v6091 = vadd.f32 %v5698, %v6090
      %v6092 = vpop.f32.mrf.mxu0
      %v6093 = vadd.f32 %v5700, %v6092
      %v6094 = vpop.f32.mrf.mxu0
      %v6095 = vadd.f32 %v5702, %v6094
      %v6096 = vpop.f32.mrf.mxu0
      %v6097 = vadd.f32 %v5704, %v6096
      %6098 = vmatprep.mubr.bf16.mxu0 0
      %6099 = vmatmul.mubr.bf16.gmra.mxu0 %v2160
      %v6100 = vpop.f32.mrf.mxu0
      %v6101 = vadd.f32 %v5708, %v6100
      %v6102 = vpop.f32.mrf.mxu0
      %v6103 = vadd.f32 %v5710, %v6102
      %v6104 = vpop.f32.mrf.mxu0
      %v6105 = vadd.f32 %v5712, %v6104
      %v6106 = vpop.f32.mrf.mxu0
      %v6107 = vadd.f32 %v5714, %v6106
      %6108 = vmatprep.mubr.bf16.mxu0 0
      %6109 = vmatmul.mubr.bf16.gmra.mxu0 %v2163
      %v6110 = vpop.f32.mrf.mxu0
      %v6111 = vadd.f32 %v5718, %v6110
      %v6112 = vpop.f32.mrf.mxu0
      %v6113 = vadd.f32 %v5720, %v6112
      %v6114 = vpop.f32.mrf.mxu0
      %v6115 = vadd.f32 %v5722, %v6114
      %v6116 = vpop.f32.mrf.mxu0
      %v6117 = vadd.f32 %v5724, %v6116
      %6118 = vmatprep.mubr.bf16.mxu0 0
      %6119 = vmatmul.mubr.bf16.gmra.mxu0 %v2166
      %v6120 = vpop.f32.mrf.mxu0
      %v6121 = vadd.f32 %v5728, %v6120
      %v6122 = vpop.f32.mrf.mxu0
      %v6123 = vadd.f32 %v5730, %v6122
      %v6124 = vpop.f32.mrf.mxu0
      %v6125 = vadd.f32 %v5732, %v6124
      %v6126 = vpop.f32.mrf.mxu0
      %v6127 = vadd.f32 %v5734, %v6126
      %6128 = vmatprep.mubr.bf16.mxu0 0
      %6129 = vmatmul.mubr.bf16.gmra.mxu0 %v2169
      %v6130 = vpop.f32.mrf.mxu0
      %v6131 = vadd.f32 %v5738, %v6130
      %v6132 = vpop.f32.mrf.mxu0
      %v6133 = vadd.f32 %v5740, %v6132
      %v6134 = vpop.f32.mrf.mxu0
      %v6135 = vadd.f32 %v5742, %v6134
      %v6136 = vpop.f32.mrf.mxu0
      %v6137 = vadd.f32 %v5744, %v6136
      %6138 = vmatprep.mubr.bf16.mxu0 0
      %6139 = vmatmul.mubr.bf16.gmra.mxu0 %v2172
      %v6140 = vpop.f32.mrf.mxu0
      %v6141 = vadd.f32 %v5748, %v6140
      %v6142 = vpop.f32.mrf.mxu0
      %v6143 = vadd.f32 %v5750, %v6142
      %v6144 = vpop.f32.mrf.mxu0
      %v6145 = vadd.f32 %v5752, %v6144
      %v6146 = vpop.f32.mrf.mxu0
      %v6147 = vadd.f32 %v5754, %v6146
      %6148 = vmatprep.mubr.bf16.mxu0 0
      %6149 = vmatmul.mubr.bf16.gmra.mxu0 %v2175
      %v6150 = vpop.f32.mrf.mxu0
      %v6151 = vadd.f32 %v5758, %v6150
      %v6152 = vpop.f32.mrf.mxu0
      %v6153 = vadd.f32 %v5760, %v6152
      %v6154 = vpop.f32.mrf.mxu0
      %v6155 = vadd.f32 %v5762, %v6154
      %v6156 = vpop.f32.mrf.mxu0
      %v6157 = vadd.f32 %v5764, %v6156
      %6158 = vmatprep.mubr.bf16.mxu0 0
      %6159 = vmatmul.mubr.bf16.gmra.mxu0 %v2178
      %v6160 = vpop.f32.mrf.mxu0
      %v6161 = vadd.f32 %v5768, %v6160
      %v6162 = vpop.f32.mrf.mxu0
      %v6163 = vadd.f32 %v5770, %v6162
      %v6164 = vpop.f32.mrf.mxu0
      %v6165 = vadd.f32 %v5772, %v6164
      %v6166 = vpop.f32.mrf.mxu0
      %v6167 = vadd.f32 %v5774, %v6166
      %6168 = vmatprep.mubr.bf16.mxu0 0
      %6169 = vmatmul.mubr.bf16.gmra.mxu0 %v2181
      %v6170 = vpop.f32.mrf.mxu0
      %v6171 = vadd.f32 %v5778, %v6170
      %v6172 = vpop.f32.mrf.mxu0
      %v6173 = vadd.f32 %v5780, %v6172
      %v6174 = vpop.f32.mrf.mxu0
      %v6175 = vadd.f32 %v5782, %v6174
      %v6176 = vpop.f32.mrf.mxu0
      %v6177 = vadd.f32 %v5784, %v6176
      %6178 = vmatprep.mubr.bf16.mxu0 0
      %6179 = vmatmul.mubr.bf16.gmra.mxu0 %v2184
      %v6180 = vpop.f32.mrf.mxu0
      %v6181 = vadd.f32 %v5788, %v6180
      %v6182 = vpop.f32.mrf.mxu0
      %v6183 = vadd.f32 %v5790, %v6182
      %v6184 = vpop.f32.mrf.mxu0
      %v6185 = vadd.f32 %v5792, %v6184
      %v6186 = vpop.f32.mrf.mxu0
      %v6187 = vadd.f32 %v5794, %v6186
      %6188 = vmatprep.mubr.bf16.mxu0 0
      %6189 = vmatmul.mubr.bf16.gmra.mxu0 %v2187
      %v6190 = vpop.f32.mrf.mxu0
      %v6191 = vadd.f32 %v5798, %v6190
      %v6192 = vpop.f32.mrf.mxu0
      %v6193 = vadd.f32 %v5800, %v6192
      %v6194 = vpop.f32.mrf.mxu0
      %v6195 = vadd.f32 %v5802, %v6194
      %v6196 = vpop.f32.mrf.mxu0
      %v6197 = vadd.f32 %v5804, %v6196
      %6198 = vmatprep.mubr.bf16.mxu0 0
      %6199 = vmatmul.mubr.bf16.gmra.mxu0 %v2190
      %v6200 = vpop.f32.mrf.mxu0
      %v6201 = vadd.f32 %v5808, %v6200
      %v6202 = vpop.f32.mrf.mxu0
      %v6203 = vadd.f32 %v5810, %v6202
      %v6204 = vpop.f32.mrf.mxu0
      %v6205 = vadd.f32 %v5812, %v6204
      %v6206 = vpop.f32.mrf.mxu0
      %v6207 = vadd.f32 %v5814, %v6206
      %6208 = vmatprep.mubr.bf16.mxu0 0
      %6209 = vmatmul.mubr.bf16.gmra.mxu0 %v2193
      %v6210 = vpop.f32.mrf.mxu0
      %v6211 = vadd.f32 %v5818, %v6210
      %v6212 = vpop.f32.mrf.mxu0
      %v6213 = vadd.f32 %v5820, %v6212
      %v6214 = vpop.f32.mrf.mxu0
      %v6215 = vadd.f32 %v5822, %v6214
      %v6216 = vpop.f32.mrf.mxu0
      %v6217 = vadd.f32 %v5824, %v6216
      %6218 = vmatprep.mubr.bf16.mxu0 0
      %6219 = vmatmul.mubr.bf16.gmra.mxu0 %v2196
      %v6220 = vpop.f32.mrf.mxu0
      %v6221 = vadd.f32 %v5828, %v6220
      %v6222 = vpop.f32.mrf.mxu0
      %v6223 = vadd.f32 %v5830, %v6222
      %v6224 = vpop.f32.mrf.mxu0
      %v6225 = vadd.f32 %v5832, %v6224
      %v6226 = vpop.f32.mrf.mxu0
      %v6227 = vadd.f32 %v5834, %v6226
      %6228 = vmatprep.mubr.bf16.mxu0 0
      %6229 = vmatmul.mubr.bf16.gmra.mxu0 %v2199
      %v6230 = vpop.f32.mrf.mxu0
      %v6231 = vadd.f32 %v5838, %v6230
      %v6232 = vpop.f32.mrf.mxu0
      %v6233 = vadd.f32 %v5840, %v6232
      %v6234 = vpop.f32.mrf.mxu0
      %v6235 = vadd.f32 %v5842, %v6234
      %v6236 = vpop.f32.mrf.mxu0
      %v6237 = vadd.f32 %v5844, %v6236
      %6238 = vmatprep.mubr.bf16.mxu0 0
      %6239 = vmatmul.mubr.bf16.gmra.mxu0 %v2202
      %v6240 = vpop.f32.mrf.mxu0
      %v6241 = vadd.f32 %v5848, %v6240
      %v6242 = vpop.f32.mrf.mxu0
      %v6243 = vadd.f32 %v5850, %v6242
      %v6244 = vpop.f32.mrf.mxu0
      %v6245 = vadd.f32 %v5852, %v6244
      %v6246 = vpop.f32.mrf.mxu0
      %v6247 = vadd.f32 %v5854, %v6246
      %6248 = vmatprep.mubr.bf16.mxu0 0
      %6249 = vmatmul.mubr.bf16.gmra.mxu0 %v2205
      %v6250 = vpop.f32.mrf.mxu0
      %v6251 = vadd.f32 %v5858, %v6250
      %v6252 = vpop.f32.mrf.mxu0
      %v6253 = vadd.f32 %v5860, %v6252
      %v6254 = vpop.f32.mrf.mxu0
      %v6255 = vadd.f32 %v5862, %v6254
      %v6256 = vpop.f32.mrf.mxu0
      %v6257 = vadd.f32 %v5864, %v6256
      %6258 = vmatprep.mubr.bf16.mxu0 0
      %6259 = vmatmul.mubr.bf16.gmra.mxu0 %v2208
      %v6260 = vpop.f32.mrf.mxu0
      %v6261 = vadd.f32 %v5868, %v6260
      %v6262 = vpop.f32.mrf.mxu0
      %v6263 = vadd.f32 %v5870, %v6262
      %v6264 = vpop.f32.mrf.mxu0
      %v6265 = vadd.f32 %v5872, %v6264
      %v6266 = vpop.f32.mrf.mxu0
      %v6267 = vadd.f32 %v5874, %v6266
      %6268 = vmatprep.mubr.bf16.mxu0 0
      %6269 = vmatmul.mubr.bf16.gmra.mxu0 %v2211
      %v6270 = vpop.f32.mrf.mxu0
      %v6271 = vadd.f32 %v5878, %v6270
      %v6272 = vpop.f32.mrf.mxu0
      %v6273 = vadd.f32 %v5880, %v6272
      %v6274 = vpop.f32.mrf.mxu0
      %v6275 = vadd.f32 %v5882, %v6274
      %v6276 = vpop.f32.mrf.mxu0
      %v6277 = vadd.f32 %v5884, %v6276
      %6278 = vmatprep.mubr.bf16.mxu0 0
      %6279 = vmatmul.mubr.bf16.gmra.mxu0 %v2214
      %v6280 = vpop.f32.mrf.mxu0
      %v6281 = vadd.f32 %v5888, %v6280
      %v6282 = vpop.f32.mrf.mxu0
      %v6283 = vadd.f32 %v5890, %v6282
      %v6284 = vpop.f32.mrf.mxu0
      %v6285 = vadd.f32 %v5892, %v6284
      %v6286 = vpop.f32.mrf.mxu0
      %v6287 = vadd.f32 %v5894, %v6286
      %6288 = vmatprep.mubr.bf16.mxu0 0
      %6289 = vmatmul.mubr.bf16.gmra.mxu0 %v2217
      %v6290 = vpop.f32.mrf.mxu0
      %v6291 = vadd.f32 %v5898, %v6290
      %v6292 = vpop.f32.mrf.mxu0
      %v6293 = vadd.f32 %v5900, %v6292
      %v6294 = vpop.f32.mrf.mxu0
      %v6295 = vadd.f32 %v5902, %v6294
      %v6296 = vpop.f32.mrf.mxu0
      %v6297 = vadd.f32 %v5904, %v6296
      %6298 = vmatprep.mubr.bf16.mxu0 0
      %6299 = vmatmul.mubr.bf16.gmra.mxu0 %v2220
      %v6300 = vpop.f32.mrf.mxu0
      %v6301 = vadd.f32 %v5908, %v6300
      %v6302 = vpop.f32.mrf.mxu0
      %v6303 = vadd.f32 %v5910, %v6302
      %v6304 = vpop.f32.mrf.mxu0
      %v6305 = vadd.f32 %v5912, %v6304
      %v6306 = vpop.f32.mrf.mxu0
      %v6307 = vadd.f32 %v5914, %v6306
      %6308 = vmatprep.mubr.bf16.mxu0 0
      %6309 = vmatmul.mubr.bf16.gmra.mxu0 %v2223
      %v6310 = vpop.f32.mrf.mxu0
      %v6311 = vadd.f32 %v5918, %v6310
      %v6312 = vpop.f32.mrf.mxu0
      %v6313 = vadd.f32 %v5920, %v6312
      %v6314 = vpop.f32.mrf.mxu0
      %v6315 = vadd.f32 %v5922, %v6314
      %v6316 = vpop.f32.mrf.mxu0
      %v6317 = vadd.f32 %v5924, %v6316
      %6318 = vmatprep.mubr.bf16.mxu0 0
      %6319 = vmatmul.mubr.bf16.gmra.mxu0 %v2226
      %v6320 = vpop.f32.mrf.mxu0
      %v6321 = vadd.f32 %v5928, %v6320
      %v6322 = vpop.f32.mrf.mxu0
      %v6323 = vadd.f32 %v5930, %v6322
      %v6324 = vpop.f32.mrf.mxu0
      %v6325 = vadd.f32 %v5932, %v6324
      %v6326 = vpop.f32.mrf.mxu0
      %v6327 = vadd.f32 %v5934, %v6326
      %6328 = vmatprep.mubr.bf16.mxu0 0
      %6329 = vmatmul.mubr.bf16.gmra.mxu0 %v2229
      %v6330 = vpop.f32.mrf.mxu0
      %v6331 = vadd.f32 %v5938, %v6330
      %v6332 = vpop.f32.mrf.mxu0
      %v6333 = vadd.f32 %v5940, %v6332
      %v6334 = vpop.f32.mrf.mxu0
      %v6335 = vadd.f32 %v5942, %v6334
      %v6336 = vpop.f32.mrf.mxu0
      %v6337 = vadd.f32 %v5944, %v6336
      %6338 = vmatprep.mubr.bf16.mxu0 0
      %6339 = vmatmul.mubr.bf16.gmra.mxu0 %v2232
      %v6340 = vpop.f32.mrf.mxu0
      %v6341 = vadd.f32 %v5948, %v6340
      %v6342 = vpop.f32.mrf.mxu0
      %v6343 = vadd.f32 %v5950, %v6342
      %v6344 = vpop.f32.mrf.mxu0
      %v6345 = vadd.f32 %v5952, %v6344
      %v6346 = vpop.f32.mrf.mxu0
      %v6347 = vadd.f32 %v5954, %v6346
      %6348 = vmatprep.mubr.bf16.mxu0 0
      %6349 = vmatmul.mubr.bf16.gmra.mxu0 %v2235
      %v6350 = vpop.f32.mrf.mxu0
      %v6351 = vadd.f32 %v5958, %v6350
      %v6352 = vpop.f32.mrf.mxu0
      %v6353 = vadd.f32 %v5960, %v6352
      %v6354 = vpop.f32.mrf.mxu0
      %v6355 = vadd.f32 %v5962, %v6354
      %v6356 = vpop.f32.mrf.mxu0
      %v6357 = vadd.f32 %v5964, %v6356
      %6358 = vdwg.mxu0
      %v6359 = vld [vmem:[%s31] sm:$0x3]
      %v6361 = vlaneseq
      %v6362 = vshrl.u32 %v6361, 7
      %v6363 = vsub.s32 0, %v6362
      %v6364 = vrot.slane %v6359, %v6363
      %v6365 = vlaneseq
      %v6366 = vshrl.u32 %v6365, 7
      %v6367 = vsub.s32 1, %v6366
      %v6368 = vrot.slane %v6359, %v6367
      %v6371 = vadd.f32 %v6041, %v6364
      %v6372 = vadd.f32 %v6043, %v6368
      %v6373 = vadd.f32 %v6045, %v6364
      %v6374 = vadd.f32 %v6047, %v6368
      %v6375 = vadd.f32 %v6051, %v6364
      %v6376 = vadd.f32 %v6053, %v6368
      %v6377 = vadd.f32 %v6055, %v6364
      %v6378 = vadd.f32 %v6057, %v6368
      %v6379 = vadd.f32 %v6061, %v6364
      %v6380 = vadd.f32 %v6063, %v6368
      %v6381 = vadd.f32 %v6065, %v6364
      %v6382 = vadd.f32 %v6067, %v6368
      %v6383 = vadd.f32 %v6071, %v6364
      %v6384 = vadd.f32 %v6073, %v6368
      %v6385 = vadd.f32 %v6075, %v6364
      %v6386 = vadd.f32 %v6077, %v6368
      %v6387 = vadd.f32 %v6081, %v6364
      %v6388 = vadd.f32 %v6083, %v6368
      %v6389 = vadd.f32 %v6085, %v6364
      %v6390 = vadd.f32 %v6087, %v6368
      %v6391 = vadd.f32 %v6091, %v6364
      %v6392 = vadd.f32 %v6093, %v6368
      %v6393 = vadd.f32 %v6095, %v6364
      %v6394 = vadd.f32 %v6097, %v6368
      %v6395 = vadd.f32 %v6101, %v6364
      %v6396 = vadd.f32 %v6103, %v6368
      %v6397 = vadd.f32 %v6105, %v6364
      %v6398 = vadd.f32 %v6107, %v6368
      %v6399 = vadd.f32 %v6111, %v6364
      %v6400 = vadd.f32 %v6113, %v6368
      %v6401 = vadd.f32 %v6115, %v6364
      %v6402 = vadd.f32 %v6117, %v6368
      %v6403 = vadd.f32 %v6121, %v6364
      %v6404 = vadd.f32 %v6123, %v6368
      %v6405 = vadd.f32 %v6125, %v6364
      %v6406 = vadd.f32 %v6127, %v6368
      %v6407 = vadd.f32 %v6131, %v6364
      %v6408 = vadd.f32 %v6133, %v6368
      %v6409 = vadd.f32 %v6135, %v6364
      %v6410 = vadd.f32 %v6137, %v6368
      %v6411 = vadd.f32 %v6141, %v6364
      %v6412 = vadd.f32 %v6143, %v6368
      %v6413 = vadd.f32 %v6145, %v6364
      %v6414 = vadd.f32 %v6147, %v6368
      %v6415 = vadd.f32 %v6151, %v6364
      %v6416 = vadd.f32 %v6153, %v6368
      %v6417 = vadd.f32 %v6155, %v6364
      %v6418 = vadd.f32 %v6157, %v6368
      %v6419 = vadd.f32 %v6161, %v6364
      %v6420 = vadd.f32 %v6163, %v6368
      %v6421 = vadd.f32 %v6165, %v6364
      %v6422 = vadd.f32 %v6167, %v6368
      %v6423 = vadd.f32 %v6171, %v6364
      %v6424 = vadd.f32 %v6173, %v6368
      %v6425 = vadd.f32 %v6175, %v6364
      %v6426 = vadd.f32 %v6177, %v6368
      %v6427 = vadd.f32 %v6181, %v6364
      %v6428 = vadd.f32 %v6183, %v6368
      %v6429 = vadd.f32 %v6185, %v6364
      %v6430 = vadd.f32 %v6187, %v6368
      %v6431 = vadd.f32 %v6191, %v6364
      %v6432 = vadd.f32 %v6193, %v6368
      %v6433 = vadd.f32 %v6195, %v6364
      %v6434 = vadd.f32 %v6197, %v6368
      %v6435 = vadd.f32 %v6201, %v6364
      %v6436 = vadd.f32 %v6203, %v6368
      %v6437 = vadd.f32 %v6205, %v6364
      %v6438 = vadd.f32 %v6207, %v6368
      %v6439 = vadd.f32 %v6211, %v6364
      %v6440 = vadd.f32 %v6213, %v6368
      %v6441 = vadd.f32 %v6215, %v6364
      %v6442 = vadd.f32 %v6217, %v6368
      %v6443 = vadd.f32 %v6221, %v6364
      %v6444 = vadd.f32 %v6223, %v6368
      %v6445 = vadd.f32 %v6225, %v6364
      %v6446 = vadd.f32 %v6227, %v6368
      %v6447 = vadd.f32 %v6231, %v6364
      %v6448 = vadd.f32 %v6233, %v6368
      %v6449 = vadd.f32 %v6235, %v6364
      %v6450 = vadd.f32 %v6237, %v6368
      %v6451 = vadd.f32 %v6241, %v6364
      %v6452 = vadd.f32 %v6243, %v6368
      %v6453 = vadd.f32 %v6245, %v6364
      %v6454 = vadd.f32 %v6247, %v6368
      %v6455 = vadd.f32 %v6251, %v6364
      %v6456 = vadd.f32 %v6253, %v6368
      %v6457 = vadd.f32 %v6255, %v6364
      %v6458 = vadd.f32 %v6257, %v6368
      %v6459 = vadd.f32 %v6261, %v6364
      %v6460 = vadd.f32 %v6263, %v6368
      %v6461 = vadd.f32 %v6265, %v6364
      %v6462 = vadd.f32 %v6267, %v6368
      %v6463 = vadd.f32 %v6271, %v6364
      %v6464 = vadd.f32 %v6273, %v6368
      %v6465 = vadd.f32 %v6275, %v6364
      %v6466 = vadd.f32 %v6277, %v6368
      %v6467 = vadd.f32 %v6281, %v6364
      %v6468 = vadd.f32 %v6283, %v6368
      %v6469 = vadd.f32 %v6285, %v6364
      %v6470 = vadd.f32 %v6287, %v6368
      %v6471 = vadd.f32 %v6291, %v6364
      %v6472 = vadd.f32 %v6293, %v6368
      %v6473 = vadd.f32 %v6295, %v6364
      %v6474 = vadd.f32 %v6297, %v6368
      %v6475 = vadd.f32 %v6301, %v6364
      %v6476 = vadd.f32 %v6303, %v6368
      %v6477 = vadd.f32 %v6305, %v6364
      %v6478 = vadd.f32 %v6307, %v6368
      %v6479 = vadd.f32 %v6311, %v6364
      %v6480 = vadd.f32 %v6313, %v6368
      %v6481 = vadd.f32 %v6315, %v6364
      %v6482 = vadd.f32 %v6317, %v6368
      %v6483 = vadd.f32 %v6321, %v6364
      %v6484 = vadd.f32 %v6323, %v6368
      %v6485 = vadd.f32 %v6325, %v6364
      %v6486 = vadd.f32 %v6327, %v6368
      %v6487 = vadd.f32 %v6331, %v6364
      %v6488 = vadd.f32 %v6333, %v6368
      %v6489 = vadd.f32 %v6335, %v6364
      %v6490 = vadd.f32 %v6337, %v6368
      %v6491 = vadd.f32 %v6341, %v6364
      %v6492 = vadd.f32 %v6343, %v6368
      %v6493 = vadd.f32 %v6345, %v6364
      %v6494 = vadd.f32 %v6347, %v6368
      %v6495 = vadd.f32 %v6351, %v6364
      %v6496 = vadd.f32 %v6353, %v6368
      %v6497 = vadd.f32 %v6355, %v6364
      %v6498 = vadd.f32 %v6357, %v6368
      %v6499 = vmax.f32 %v6371, 0.0
      %v6500 = vmax.f32 %v6372, 0.0
      %v6501 = vmax.f32 %v6373, 0.0
      %v6502 = vmax.f32 %v6374, 0.0
      %v6503 = vmax.f32 %v6375, 0.0
      %v6504 = vmax.f32 %v6376, 0.0
      %v6505 = vmax.f32 %v6377, 0.0
      %v6506 = vmax.f32 %v6378, 0.0
      %v6507 = vmax.f32 %v6379, 0.0
      %v6508 = vmax.f32 %v6380, 0.0
      %v6509 = vmax.f32 %v6381, 0.0
      %v6510 = vmax.f32 %v6382, 0.0
      %v6511 = vmax.f32 %v6383, 0.0
      %v6512 = vmax.f32 %v6384, 0.0
      %v6513 = vmax.f32 %v6385, 0.0
      %v6514 = vmax.f32 %v6386, 0.0
      %v6515 = vmax.f32 %v6387, 0.0
      %v6516 = vmax.f32 %v6388, 0.0
      %v6517 = vmax.f32 %v6389, 0.0
      %v6518 = vmax.f32 %v6390, 0.0
      %v6519 = vmax.f32 %v6391, 0.0
      %v6520 = vmax.f32 %v6392, 0.0
      %v6521 = vmax.f32 %v6393, 0.0
      %v6522 = vmax.f32 %v6394, 0.0
      %v6523 = vmax.f32 %v6395, 0.0
      %v6524 = vmax.f32 %v6396, 0.0
      %v6525 = vmax.f32 %v6397, 0.0
      %v6526 = vmax.f32 %v6398, 0.0
      %v6527 = vmax.f32 %v6399, 0.0
      %v6528 = vmax.f32 %v6400, 0.0
      %v6529 = vmax.f32 %v6401, 0.0
      %v6530 = vmax.f32 %v6402, 0.0
      %v6531 = vmax.f32 %v6403, 0.0
      %v6532 = vmax.f32 %v6404, 0.0
      %v6533 = vmax.f32 %v6405, 0.0
      %v6534 = vmax.f32 %v6406, 0.0
      %v6535 = vmax.f32 %v6407, 0.0
      %v6536 = vmax.f32 %v6408, 0.0
      %v6537 = vmax.f32 %v6409, 0.0
      %v6538 = vmax.f32 %v6410, 0.0
      %v6539 = vmax.f32 %v6411, 0.0
      %v6540 = vmax.f32 %v6412, 0.0
      %v6541 = vmax.f32 %v6413, 0.0
      %v6542 = vmax.f32 %v6414, 0.0
      %v6543 = vmax.f32 %v6415, 0.0
      %v6544 = vmax.f32 %v6416, 0.0
      %v6545 = vmax.f32 %v6417, 0.0
      %v6546 = vmax.f32 %v6418, 0.0
      %v6547 = vmax.f32 %v6419, 0.0
      %v6548 = vmax.f32 %v6420, 0.0
      %v6549 = vmax.f32 %v6421, 0.0
      %v6550 = vmax.f32 %v6422, 0.0
      %v6551 = vmax.f32 %v6423, 0.0
      %v6552 = vmax.f32 %v6424, 0.0
      %v6553 = vmax.f32 %v6425, 0.0
      %v6554 = vmax.f32 %v6426, 0.0
      %v6555 = vmax.f32 %v6427, 0.0
      %v6556 = vmax.f32 %v6428, 0.0
      %v6557 = vmax.f32 %v6429, 0.0
      %v6558 = vmax.f32 %v6430, 0.0
      %v6559 = vmax.f32 %v6431, 0.0
      %v6560 = vmax.f32 %v6432, 0.0
      %v6561 = vmax.f32 %v6433, 0.0
      %v6562 = vmax.f32 %v6434, 0.0
      %v6563 = vmax.f32 %v6435, 0.0
      %v6564 = vmax.f32 %v6436, 0.0
      %v6565 = vmax.f32 %v6437, 0.0
      %v6566 = vmax.f32 %v6438, 0.0
      %v6567 = vmax.f32 %v6439, 0.0
      %v6568 = vmax.f32 %v6440, 0.0
      %v6569 = vmax.f32 %v6441, 0.0
      %v6570 = vmax.f32 %v6442, 0.0
      %v6571 = vmax.f32 %v6443, 0.0
      %v6572 = vmax.f32 %v6444, 0.0
      %v6573 = vmax.f32 %v6445, 0.0
      %v6574 = vmax.f32 %v6446, 0.0
      %v6575 = vmax.f32 %v6447, 0.0
      %v6576 = vmax.f32 %v6448, 0.0
      %v6577 = vmax.f32 %v6449, 0.0
      %v6578 = vmax.f32 %v6450, 0.0
      %v6579 = vmax.f32 %v6451, 0.0
      %v6580 = vmax.f32 %v6452, 0.0
      %v6581 = vmax.f32 %v6453, 0.0
      %v6582 = vmax.f32 %v6454, 0.0
      %v6583 = vmax.f32 %v6455, 0.0
      %v6584 = vmax.f32 %v6456, 0.0
      %v6585 = vmax.f32 %v6457, 0.0
      %v6586 = vmax.f32 %v6458, 0.0
      %v6587 = vmax.f32 %v6459, 0.0
      %v6588 = vmax.f32 %v6460, 0.0
      %v6589 = vmax.f32 %v6461, 0.0
      %v6590 = vmax.f32 %v6462, 0.0
      %v6591 = vmax.f32 %v6463, 0.0
      %v6592 = vmax.f32 %v6464, 0.0
      %v6593 = vmax.f32 %v6465, 0.0
      %v6594 = vmax.f32 %v6466, 0.0
      %v6595 = vmax.f32 %v6467, 0.0
      %v6596 = vmax.f32 %v6468, 0.0
      %v6597 = vmax.f32 %v6469, 0.0
      %v6598 = vmax.f32 %v6470, 0.0
      %v6599 = vmax.f32 %v6471, 0.0
      %v6600 = vmax.f32 %v6472, 0.0
      %v6601 = vmax.f32 %v6473, 0.0
      %v6602 = vmax.f32 %v6474, 0.0
      %v6603 = vmax.f32 %v6475, 0.0
      %v6604 = vmax.f32 %v6476, 0.0
      %v6605 = vmax.f32 %v6477, 0.0
      %v6606 = vmax.f32 %v6478, 0.0
      %v6607 = vmax.f32 %v6479, 0.0
      %v6608 = vmax.f32 %v6480, 0.0
      %v6609 = vmax.f32 %v6481, 0.0
      %v6610 = vmax.f32 %v6482, 0.0
      %v6611 = vmax.f32 %v6483, 0.0
      %v6612 = vmax.f32 %v6484, 0.0
      %v6613 = vmax.f32 %v6485, 0.0
      %v6614 = vmax.f32 %v6486, 0.0
      %v6615 = vmax.f32 %v6487, 0.0
      %v6616 = vmax.f32 %v6488, 0.0
      %v6617 = vmax.f32 %v6489, 0.0
      %v6618 = vmax.f32 %v6490, 0.0
      %v6619 = vmax.f32 %v6491, 0.0
      %v6620 = vmax.f32 %v6492, 0.0
      %v6621 = vmax.f32 %v6493, 0.0
      %v6622 = vmax.f32 %v6494, 0.0
      %v6623 = vmax.f32 %v6495, 0.0
      %v6624 = vmax.f32 %v6496, 0.0
      %v6625 = vmax.f32 %v6497, 0.0
      %v6626 = vmax.f32 %v6498, 0.0
      %v6627 = vpack.c.bf16 %v6501, %v6499
      %v6628 = vpack.c.bf16 %v6502, %v6500
      %v6629 = vpack.c.bf16 %v6505, %v6503
      %v6630 = vpack.c.bf16 %v6506, %v6504
      %v6631 = vpack.c.bf16 %v6509, %v6507
      %v6632 = vpack.c.bf16 %v6510, %v6508
      %v6633 = vpack.c.bf16 %v6513, %v6511
      %v6634 = vpack.c.bf16 %v6514, %v6512
      %v6635 = vpack.c.bf16 %v6517, %v6515
      %v6636 = vpack.c.bf16 %v6518, %v6516
      %v6637 = vpack.c.bf16 %v6521, %v6519
      %v6638 = vpack.c.bf16 %v6522, %v6520
      %v6639 = vpack.c.bf16 %v6525, %v6523
      %v6640 = vpack.c.bf16 %v6526, %v6524
      %v6641 = vpack.c.bf16 %v6529, %v6527
      %v6642 = vpack.c.bf16 %v6530, %v6528
      %v6643 = vpack.c.bf16 %v6533, %v6531
      %v6644 = vpack.c.bf16 %v6534, %v6532
      %v6645 = vpack.c.bf16 %v6537, %v6535
      %v6646 = vpack.c.bf16 %v6538, %v6536
      %v6647 = vpack.c.bf16 %v6541, %v6539
      %v6648 = vpack.c.bf16 %v6542, %v6540
      %v6649 = vpack.c.bf16 %v6545, %v6543
      %v6650 = vpack.c.bf16 %v6546, %v6544
      %v6651 = vpack.c.bf16 %v6549, %v6547
      %v6652 = vpack.c.bf16 %v6550, %v6548
      %v6653 = vpack.c.bf16 %v6553, %v6551
      %v6654 = vpack.c.bf16 %v6554, %v6552
      %v6655 = vpack.c.bf16 %v6557, %v6555
      %v6656 = vpack.c.bf16 %v6558, %v6556
      %v6657 = vpack.c.bf16 %v6561, %v6559
      %v6658 = vpack.c.bf16 %v6562, %v6560
      %v6659 = vpack.c.bf16 %v6565, %v6563
      %v6660 = vpack.c.bf16 %v6566, %v6564
      %v6661 = vpack.c.bf16 %v6569, %v6567
      %v6662 = vpack.c.bf16 %v6570, %v6568
      %v6663 = vpack.c.bf16 %v6573, %v6571
      %v6664 = vpack.c.bf16 %v6574, %v6572
      %v6665 = vpack.c.bf16 %v6577, %v6575
      %v6666 = vpack.c.bf16 %v6578, %v6576
      %v6667 = vpack.c.bf16 %v6581, %v6579
      %v6668 = vpack.c.bf16 %v6582, %v6580
      %v6669 = vpack.c.bf16 %v6585, %v6583
      %v6670 = vpack.c.bf16 %v6586, %v6584
      %v6671 = vpack.c.bf16 %v6589, %v6587
      %v6672 = vpack.c.bf16 %v6590, %v6588
      %v6673 = vpack.c.bf16 %v6593, %v6591
      %v6674 = vpack.c.bf16 %v6594, %v6592
      %v6675 = vpack.c.bf16 %v6597, %v6595
      %v6676 = vpack.c.bf16 %v6598, %v6596
      %v6677 = vpack.c.bf16 %v6601, %v6599
      %v6678 = vpack.c.bf16 %v6602, %v6600
      %v6679 = vpack.c.bf16 %v6605, %v6603
      %v6680 = vpack.c.bf16 %v6606, %v6604
      %v6681 = vpack.c.bf16 %v6609, %v6607
      %v6682 = vpack.c.bf16 %v6610, %v6608
      %v6683 = vpack.c.bf16 %v6613, %v6611
      %v6684 = vpack.c.bf16 %v6614, %v6612
      %v6685 = vpack.c.bf16 %v6617, %v6615
      %v6686 = vpack.c.bf16 %v6618, %v6616
      %v6687 = vpack.c.bf16 %v6621, %v6619
      %v6688 = vpack.c.bf16 %v6622, %v6620
      %v6689 = vpack.c.bf16 %v6625, %v6623
      %v6690 = vpack.c.bf16 %v6626, %v6624
      %v6691 = vld [vmem:[%s33] sm:$0xff]
      %v6692 = vld [vmem:[%s33 + $0x8] sm:$0xff]
      %v6693 = vld [vmem:[%s33 + $0x10] sm:$0xff]
      %v6694 = vld [vmem:[%s33 + $0x18] sm:$0xff]
      %v6695 = vld [vmem:[%s33 + $0x20] sm:$0xff]
      %v6696 = vld [vmem:[%s33 + $0x28] sm:$0xff]
      %v6697 = vld [vmem:[%s33 + $0x30] sm:$0xff]
      %v6698 = vld [vmem:[%s33 + $0x38] sm:$0xff]
      %v6699 = vld [vmem:[%s33 + $0x40] sm:$0xff]
      %v6700 = vld [vmem:[%s33 + $0x48] sm:$0xff]
      %v6701 = vld [vmem:[%s33 + $0x50] sm:$0xff]
      %v6702 = vld [vmem:[%s33 + $0x58] sm:$0xff]
      %v6703 = vld [vmem:[%s33 + $0x60] sm:$0xff]
      %v6704 = vld [vmem:[%s33 + $0x68] sm:$0xff]
      %v6705 = vld [vmem:[%s33 + $0x70] sm:$0xff]
      %v6706 = vld [vmem:[%s33 + $0x78] sm:$0xff]
      %v6707 = vld [vmem:[%s33 + $0x80] sm:$0xff]
      %v6708 = vld [vmem:[%s33 + $0x88] sm:$0xff]
      %v6709 = vld [vmem:[%s33 + $0x90] sm:$0xff]
      %v6710 = vld [vmem:[%s33 + $0x98] sm:$0xff]
      %v6711 = vld [vmem:[%s33 + $0xa0] sm:$0xff]
      %v6712 = vld [vmem:[%s33 + $0xa8] sm:$0xff]
      %v6713 = vld [vmem:[%s33 + $0xb0] sm:$0xff]
      %v6714 = vld [vmem:[%s33 + $0xb8] sm:$0xff]
      %v6715 = vld [vmem:[%s33 + $0xc0] sm:$0xff]
      %v6716 = vld [vmem:[%s33 + $0xc8] sm:$0xff]
      %v6717 = vld [vmem:[%s33 + $0xd0] sm:$0xff]
      %v6718 = vld [vmem:[%s33 + $0xd8] sm:$0xff]
      %v6719 = vld [vmem:[%s33 + $0xe0] sm:$0xff]
      %v6720 = vld [vmem:[%s33 + $0xe8] sm:$0xff]
      %v6721 = vld [vmem:[%s33 + $0xf0] sm:$0xff]
      %v6722 = vld [vmem:[%s33 + $0xf8] sm:$0xff]
      %v6723 = vld [vmem:[%s35] sm:$0x3]
      %v6725 = vlaneseq
      %v6726 = vshrl.u32 %v6725, 7
      %v6727 = vsub.s32 0, %v6726
      %v6728 = vrot.slane %v6723, %v6727
      %v6729 = vlaneseq
      %v6730 = vshrl.u32 %v6729, 7
      %v6731 = vsub.s32 1, %v6730
      %v6732 = vrot.slane %v6723, %v6731
      %v6767 = vunpack.c.l.b16 %v6691
      %v6768 = vunpack.c.h.b16 %v6691
      %v6769 = vunpack.c.l.b16 %v6692
      %v6770 = vunpack.c.h.b16 %v6692
      %v6771 = vunpack.c.l.b16 %v6693
      %v6772 = vunpack.c.h.b16 %v6693
      %v6773 = vunpack.c.l.b16 %v6694
      %v6774 = vunpack.c.h.b16 %v6694
      %v6775 = vunpack.c.l.b16 %v6695
      %v6776 = vunpack.c.h.b16 %v6695
      %v6777 = vunpack.c.l.b16 %v6696
      %v6778 = vunpack.c.h.b16 %v6696
      %v6779 = vunpack.c.l.b16 %v6697
      %v6780 = vunpack.c.h.b16 %v6697
      %v6781 = vunpack.c.l.b16 %v6698
      %v6782 = vunpack.c.h.b16 %v6698
      %v6783 = vunpack.c.l.b16 %v6699
      %v6784 = vunpack.c.h.b16 %v6699
      %v6785 = vunpack.c.l.b16 %v6700
      %v6786 = vunpack.c.h.b16 %v6700
      %v6787 = vunpack.c.l.b16 %v6701
      %v6788 = vunpack.c.h.b16 %v6701
      %v6789 = vunpack.c.l.b16 %v6702
      %v6790 = vunpack.c.h.b16 %v6702
      %v6791 = vunpack.c.l.b16 %v6703
      %v6792 = vunpack.c.h.b16 %v6703
      %v6793 = vunpack.c.l.b16 %v6704
      %v6794 = vunpack.c.h.b16 %v6704
      %v6795 = vunpack.c.l.b16 %v6705
      %v6796 = vunpack.c.h.b16 %v6705
      %v6797 = vunpack.c.l.b16 %v6706
      %v6798 = vunpack.c.h.b16 %v6706
      %v6799 = vunpack.c.l.b16 %v6707
      %v6800 = vunpack.c.h.b16 %v6707
      %v6801 = vunpack.c.l.b16 %v6708
      %v6802 = vunpack.c.h.b16 %v6708
      %v6803 = vunpack.c.l.b16 %v6709
      %v6804 = vunpack.c.h.b16 %v6709
      %v6805 = vunpack.c.l.b16 %v6710
      %v6806 = vunpack.c.h.b16 %v6710
      %v6807 = vunpack.c.l.b16 %v6711
      %v6808 = vunpack.c.h.b16 %v6711
      %v6809 = vunpack.c.l.b16 %v6712
      %v6810 = vunpack.c.h.b16 %v6712
      %v6811 = vunpack.c.l.b16 %v6713
      %v6812 = vunpack.c.h.b16 %v6713
      %v6813 = vunpack.c.l.b16 %v6714
      %v6814 = vunpack.c.h.b16 %v6714
      %v6815 = vunpack.c.l.b16 %v6715
      %v6816 = vunpack.c.h.b16 %v6715
      %v6817 = vunpack.c.l.b16 %v6716
      %v6818 = vunpack.c.h.b16 %v6716
      %v6819 = vunpack.c.l.b16 %v6717
      %v6820 = vunpack.c.h.b16 %v6717
      %v6821 = vunpack.c.l.b16 %v6718
      %v6822 = vunpack.c.h.b16 %v6718
      %v6823 = vunpack.c.l.b16 %v6719
      %v6824 = vunpack.c.h.b16 %v6719
      %v6825 = vunpack.c.l.b16 %v6720
      %v6826 = vunpack.c.h.b16 %v6720
      %v6827 = vunpack.c.l.b16 %v6721
      %v6828 = vunpack.c.h.b16 %v6721
      %v6829 = vunpack.c.l.b16 %v6722
      %v6830 = vunpack.c.h.b16 %v6722
      %v6831 = vpack.c.b16 %v6769, %v6767
      %v6832 = vpack.c.b16 %v6770, %v6768
      %v6833 = vpack.c.b16 %v6773, %v6771
      %v6834 = vpack.c.b16 %v6774, %v6772
      %v6835 = vpack.c.b16 %v6777, %v6775
      %v6836 = vpack.c.b16 %v6778, %v6776
      %v6837 = vpack.c.b16 %v6781, %v6779
      %v6838 = vpack.c.b16 %v6782, %v6780
      %v6839 = vpack.c.b16 %v6785, %v6783
      %v6840 = vpack.c.b16 %v6786, %v6784
      %v6841 = vpack.c.b16 %v6789, %v6787
      %v6842 = vpack.c.b16 %v6790, %v6788
      %v6843 = vpack.c.b16 %v6793, %v6791
      %v6844 = vpack.c.b16 %v6794, %v6792
      %v6845 = vpack.c.b16 %v6797, %v6795
      %v6846 = vpack.c.b16 %v6798, %v6796
      %v6847 = vpack.c.b16 %v6801, %v6799
      %v6848 = vpack.c.b16 %v6802, %v6800
      %v6849 = vpack.c.b16 %v6805, %v6803
      %v6850 = vpack.c.b16 %v6806, %v6804
      %v6851 = vpack.c.b16 %v6809, %v6807
      %v6852 = vpack.c.b16 %v6810, %v6808
      %v6853 = vpack.c.b16 %v6813, %v6811
      %v6854 = vpack.c.b16 %v6814, %v6812
      %v6855 = vpack.c.b16 %v6817, %v6815
      %v6856 = vpack.c.b16 %v6818, %v6816
      %v6857 = vpack.c.b16 %v6821, %v6819
      %v6858 = vpack.c.b16 %v6822, %v6820
      %v6859 = vpack.c.b16 %v6825, %v6823
      %v6860 = vpack.c.b16 %v6826, %v6824
      %v6861 = vpack.c.b16 %v6829, %v6827
      %v6862 = vpack.c.b16 %v6830, %v6828
      %6895 = vmatprep.subr.bf16.mxu0 %v6846
      %6896 = vmatpush1.bf16.msra.mxu0 %v6845
      %6897 = vmatprep.subr.bf16.mxu0 %v6844
      %6898 = vmatpush1.bf16.msra.mxu0 %v6843
      %6899 = vmatprep.subr.bf16.mxu0 %v6842
      %6900 = vmatpush1.bf16.msra.mxu0 %v6841
      %6901 = vmatprep.subr.bf16.mxu0 %v6840
      %6902 = vmatpush1.bf16.msra.mxu0 %v6839
      %6903 = vmatprep.subr.bf16.mxu0 %v6838
      %6904 = vmatpush1.bf16.msra.mxu0 %v6837
      %6905 = vmatprep.subr.bf16.mxu0 %v6836
      %6906 = vmatpush1.bf16.msra.mxu0 %v6835
      %6907 = vmatprep.subr.bf16.mxu0 %v6834
      %6908 = vmatpush1.bf16.msra.mxu0 %v6833
      %6909 = vmatprep.subr.bf16.mxu0 %v6832
      %6910 = vmatpush1.bf16.msra.mxu0 %v6831
      %6911 = vmatprep.subr.bf16.mxu0 %v6862
      %6912 = vmatpush2.bf16.msra.mxu0 %v6861
      %6913 = vmatprep.subr.bf16.mxu0 %v6860
      %6914 = vmatpush2.bf16.msra.mxu0 %v6859
      %6915 = vmatprep.subr.bf16.mxu0 %v6858
      %6916 = vmatpush2.bf16.msra.mxu0 %v6857
      %6917 = vmatprep.subr.bf16.mxu0 %v6856
      %6918 = vmatpush2.bf16.msra.mxu0 %v6855
      %6919 = vmatprep.subr.bf16.mxu0 %v6854
      %6920 = vmatpush2.bf16.msra.mxu0 %v6853
      %6921 = vmatprep.subr.bf16.mxu0 %v6852
      %6922 = vmatpush2.bf16.msra.mxu0 %v6851
      %6923 = vmatprep.subr.bf16.mxu0 %v6850
      %6924 = vmatpush2.bf16.msra.mxu0 %v6849
      %6925 = vmatprep.subr.bf16.mxu0 %v6848
      %6926 = vmatpush2.bf16.msra.mxu0 %v6847
      %6927 = vmatprep.mubr.bf16.mxu0 %v6628
      %6928 = vmatmul.mubr.bf16.gmra.mxu0 %v6627
      %v6929 = vpop.f32.mrf.mxu0
      %v6930 = vadd.f32 %v6728, %v6929
      %v6931 = vpop.f32.mrf.mxu0
      %v6932 = vadd.f32 %v6732, %v6931
      %v6933 = vpop.f32.mrf.mxu0
      %v6934 = vadd.f32 %v6728, %v6933
      %v6935 = vpop.f32.mrf.mxu0
      %v6936 = vadd.f32 %v6732, %v6935
      %6937 = vmatprep.mubr.bf16.mxu0 %v6630
      %6938 = vmatmul.mubr.bf16.gmra.mxu0 %v6629
      %v6939 = vpop.f32.mrf.mxu0
      %v6940 = vadd.f32 %v6728, %v6939
      %v6941 = vpop.f32.mrf.mxu0
      %v6942 = vadd.f32 %v6732, %v6941
      %v6943 = vpop.f32.mrf.mxu0
      %v6944 = vadd.f32 %v6728, %v6943
      %v6945 = vpop.f32.mrf.mxu0
      %v6946 = vadd.f32 %v6732, %v6945
      %6947 = vmatprep.mubr.bf16.mxu0 %v6632
      %6948 = vmatmul.mubr.bf16.gmra.mxu0 %v6631
      %v6949 = vpop.f32.mrf.mxu0
      %v6950 = vadd.f32 %v6728, %v6949
      %v6951 = vpop.f32.mrf.mxu0
      %v6952 = vadd.f32 %v6732, %v6951
      %v6953 = vpop.f32.mrf.mxu0
      %v6954 = vadd.f32 %v6728, %v6953
      %v6955 = vpop.f32.mrf.mxu0
      %v6956 = vadd.f32 %v6732, %v6955
      %6957 = vmatprep.mubr.bf16.mxu0 %v6634
      %6958 = vmatmul.mubr.bf16.gmra.mxu0 %v6633
      %v6959 = vpop.f32.mrf.mxu0
      %v6960 = vadd.f32 %v6728, %v6959
      %v6961 = vpop.f32.mrf.mxu0
      %v6962 = vadd.f32 %v6732, %v6961
      %v6963 = vpop.f32.mrf.mxu0
      %v6964 = vadd.f32 %v6728, %v6963
      %v6965 = vpop.f32.mrf.mxu0
      %v6966 = vadd.f32 %v6732, %v6965
      %6967 = vmatprep.mubr.bf16.mxu0 %v6636
      %6968 = vmatmul.mubr.bf16.gmra.mxu0 %v6635
      %v6969 = vpop.f32.mrf.mxu0
      %v6970 = vadd.f32 %v6728, %v6969
      %v6971 = vpop.f32.mrf.mxu0
      %v6972 = vadd.f32 %v6732, %v6971
      %v6973 = vpop.f32.mrf.mxu0
      %v6974 = vadd.f32 %v6728, %v6973
      %v6975 = vpop.f32.mrf.mxu0
      %v6976 = vadd.f32 %v6732, %v6975
      %6977 = vmatprep.mubr.bf16.mxu0 %v6638
      %6978 = vmatmul.mubr.bf16.gmra.mxu0 %v6637
      %v6979 = vpop.f32.mrf.mxu0
      %v6980 = vadd.f32 %v6728, %v6979
      %v6981 = vpop.f32.mrf.mxu0
      %v6982 = vadd.f32 %v6732, %v6981
      %v6983 = vpop.f32.mrf.mxu0
      %v6984 = vadd.f32 %v6728, %v6983
      %v6985 = vpop.f32.mrf.mxu0
      %v6986 = vadd.f32 %v6732, %v6985
      %6987 = vmatprep.mubr.bf16.mxu0 %v6640
      %6988 = vmatmul.mubr.bf16.gmra.mxu0 %v6639
      %v6989 = vpop.f32.mrf.mxu0
      %v6990 = vadd.f32 %v6728, %v6989
      %v6991 = vpop.f32.mrf.mxu0
      %v6992 = vadd.f32 %v6732, %v6991
      %v6993 = vpop.f32.mrf.mxu0
      %v6994 = vadd.f32 %v6728, %v6993
      %v6995 = vpop.f32.mrf.mxu0
      %v6996 = vadd.f32 %v6732, %v6995
      %6997 = vmatprep.mubr.bf16.mxu0 %v6642
      %6998 = vmatmul.mubr.bf16.gmra.mxu0 %v6641
      %v6999 = vpop.f32.mrf.mxu0
      %v7000 = vadd.f32 %v6728, %v6999
      %v7001 = vpop.f32.mrf.mxu0
      %v7002 = vadd.f32 %v6732, %v7001
      %v7003 = vpop.f32.mrf.mxu0
      %v7004 = vadd.f32 %v6728, %v7003
      %v7005 = vpop.f32.mrf.mxu0
      %v7006 = vadd.f32 %v6732, %v7005
      %7007 = vmatprep.mubr.bf16.mxu0 %v6644
      %7008 = vmatmul.mubr.bf16.gmra.mxu0 %v6643
      %v7009 = vpop.f32.mrf.mxu0
      %v7010 = vadd.f32 %v6728, %v7009
      %v7011 = vpop.f32.mrf.mxu0
      %v7012 = vadd.f32 %v6732, %v7011
      %v7013 = vpop.f32.mrf.mxu0
      %v7014 = vadd.f32 %v6728, %v7013
      %v7015 = vpop.f32.mrf.mxu0
      %v7016 = vadd.f32 %v6732, %v7015
      %7017 = vmatprep.mubr.bf16.mxu0 %v6646
      %7018 = vmatmul.mubr.bf16.gmra.mxu0 %v6645
      %v7019 = vpop.f32.mrf.mxu0
      %v7020 = vadd.f32 %v6728, %v7019
      %v7021 = vpop.f32.mrf.mxu0
      %v7022 = vadd.f32 %v6732, %v7021
      %v7023 = vpop.f32.mrf.mxu0
      %v7024 = vadd.f32 %v6728, %v7023
      %v7025 = vpop.f32.mrf.mxu0
      %v7026 = vadd.f32 %v6732, %v7025
      %7027 = vmatprep.mubr.bf16.mxu0 %v6648
      %7028 = vmatmul.mubr.bf16.gmra.mxu0 %v6647
      %v7029 = vpop.f32.mrf.mxu0
      %v7030 = vadd.f32 %v6728, %v7029
      %v7031 = vpop.f32.mrf.mxu0
      %v7032 = vadd.f32 %v6732, %v7031
      %v7033 = vpop.f32.mrf.mxu0
      %v7034 = vadd.f32 %v6728, %v7033
      %v7035 = vpop.f32.mrf.mxu0
      %v7036 = vadd.f32 %v6732, %v7035
      %7037 = vmatprep.mubr.bf16.mxu0 %v6650
      %7038 = vmatmul.mubr.bf16.gmra.mxu0 %v6649
      %v7039 = vpop.f32.mrf.mxu0
      %v7040 = vadd.f32 %v6728, %v7039
      %v7041 = vpop.f32.mrf.mxu0
      %v7042 = vadd.f32 %v6732, %v7041
      %v7043 = vpop.f32.mrf.mxu0
      %v7044 = vadd.f32 %v6728, %v7043
      %v7045 = vpop.f32.mrf.mxu0
      %v7046 = vadd.f32 %v6732, %v7045
      %7047 = vmatprep.mubr.bf16.mxu0 %v6652
      %7048 = vmatmul.mubr.bf16.gmra.mxu0 %v6651
      %v7049 = vpop.f32.mrf.mxu0
      %v7050 = vadd.f32 %v6728, %v7049
      %v7051 = vpop.f32.mrf.mxu0
      %v7052 = vadd.f32 %v6732, %v7051
      %v7053 = vpop.f32.mrf.mxu0
      %v7054 = vadd.f32 %v6728, %v7053
      %v7055 = vpop.f32.mrf.mxu0
      %v7056 = vadd.f32 %v6732, %v7055
      %7057 = vmatprep.mubr.bf16.mxu0 %v6654
      %7058 = vmatmul.mubr.bf16.gmra.mxu0 %v6653
      %v7059 = vpop.f32.mrf.mxu0
      %v7060 = vadd.f32 %v6728, %v7059
      %v7061 = vpop.f32.mrf.mxu0
      %v7062 = vadd.f32 %v6732, %v7061
      %v7063 = vpop.f32.mrf.mxu0
      %v7064 = vadd.f32 %v6728, %v7063
      %v7065 = vpop.f32.mrf.mxu0
      %v7066 = vadd.f32 %v6732, %v7065
      %7067 = vmatprep.mubr.bf16.mxu0 %v6656
      %7068 = vmatmul.mubr.bf16.gmra.mxu0 %v6655
      %v7069 = vpop.f32.mrf.mxu0
      %v7070 = vadd.f32 %v6728, %v7069
      %v7071 = vpop.f32.mrf.mxu0
      %v7072 = vadd.f32 %v6732, %v7071
      %v7073 = vpop.f32.mrf.mxu0
      %v7074 = vadd.f32 %v6728, %v7073
      %v7075 = vpop.f32.mrf.mxu0
      %v7076 = vadd.f32 %v6732, %v7075
      %7077 = vmatprep.mubr.bf16.mxu0 %v6658
      %7078 = vmatmul.mubr.bf16.gmra.mxu0 %v6657
      %v7079 = vpop.f32.mrf.mxu0
      %v7080 = vadd.f32 %v6728, %v7079
      %v7081 = vpop.f32.mrf.mxu0
      %v7082 = vadd.f32 %v6732, %v7081
      %v7083 = vpop.f32.mrf.mxu0
      %v7084 = vadd.f32 %v6728, %v7083
      %v7085 = vpop.f32.mrf.mxu0
      %v7086 = vadd.f32 %v6732, %v7085
      %7087 = vmatprep.mubr.bf16.mxu0 %v6660
      %7088 = vmatmul.mubr.bf16.gmra.mxu0 %v6659
      %v7089 = vpop.f32.mrf.mxu0
      %v7090 = vadd.f32 %v6728, %v7089
      %v7091 = vpop.f32.mrf.mxu0
      %v7092 = vadd.f32 %v6732, %v7091
      %v7093 = vpop.f32.mrf.mxu0
      %v7094 = vadd.f32 %v6728, %v7093
      %v7095 = vpop.f32.mrf.mxu0
      %v7096 = vadd.f32 %v6732, %v7095
      %7097 = vmatprep.mubr.bf16.mxu0 %v6662
      %7098 = vmatmul.mubr.bf16.gmra.mxu0 %v6661
      %v7099 = vpop.f32.mrf.mxu0
      %v7100 = vadd.f32 %v6728, %v7099
      %v7101 = vpop.f32.mrf.mxu0
      %v7102 = vadd.f32 %v6732, %v7101
      %v7103 = vpop.f32.mrf.mxu0
      %v7104 = vadd.f32 %v6728, %v7103
      %v7105 = vpop.f32.mrf.mxu0
      %v7106 = vadd.f32 %v6732, %v7105
      %7107 = vmatprep.mubr.bf16.mxu0 %v6664
      %7108 = vmatmul.mubr.bf16.gmra.mxu0 %v6663
      %v7109 = vpop.f32.mrf.mxu0
      %v7110 = vadd.f32 %v6728, %v7109
      %v7111 = vpop.f32.mrf.mxu0
      %v7112 = vadd.f32 %v6732, %v7111
      %v7113 = vpop.f32.mrf.mxu0
      %v7114 = vadd.f32 %v6728, %v7113
      %v7115 = vpop.f32.mrf.mxu0
      %v7116 = vadd.f32 %v6732, %v7115
      %7117 = vmatprep.mubr.bf16.mxu0 %v6666
      %7118 = vmatmul.mubr.bf16.gmra.mxu0 %v6665
      %v7119 = vpop.f32.mrf.mxu0
      %v7120 = vadd.f32 %v6728, %v7119
      %v7121 = vpop.f32.mrf.mxu0
      %v7122 = vadd.f32 %v6732, %v7121
      %v7123 = vpop.f32.mrf.mxu0
      %v7124 = vadd.f32 %v6728, %v7123
      %v7125 = vpop.f32.mrf.mxu0
      %v7126 = vadd.f32 %v6732, %v7125
      %7127 = vmatprep.mubr.bf16.mxu0 %v6668
      %7128 = vmatmul.mubr.bf16.gmra.mxu0 %v6667
      %v7129 = vpop.f32.mrf.mxu0
      %v7130 = vadd.f32 %v6728, %v7129
      %v7131 = vpop.f32.mrf.mxu0
      %v7132 = vadd.f32 %v6732, %v7131
      %v7133 = vpop.f32.mrf.mxu0
      %v7134 = vadd.f32 %v6728, %v7133
      %v7135 = vpop.f32.mrf.mxu0
      %v7136 = vadd.f32 %v6732, %v7135
      %7137 = vmatprep.mubr.bf16.mxu0 %v6670
      %7138 = vmatmul.mubr.bf16.gmra.mxu0 %v6669
      %v7139 = vpop.f32.mrf.mxu0
      %v7140 = vadd.f32 %v6728, %v7139
      %v7141 = vpop.f32.mrf.mxu0
      %v7142 = vadd.f32 %v6732, %v7141
      %v7143 = vpop.f32.mrf.mxu0
      %v7144 = vadd.f32 %v6728, %v7143
      %v7145 = vpop.f32.mrf.mxu0
      %v7146 = vadd.f32 %v6732, %v7145
      %7147 = vmatprep.mubr.bf16.mxu0 %v6672
      %7148 = vmatmul.mubr.bf16.gmra.mxu0 %v6671
      %v7149 = vpop.f32.mrf.mxu0
      %v7150 = vadd.f32 %v6728, %v7149
      %v7151 = vpop.f32.mrf.mxu0
      %v7152 = vadd.f32 %v6732, %v7151
      %v7153 = vpop.f32.mrf.mxu0
      %v7154 = vadd.f32 %v6728, %v7153
      %v7155 = vpop.f32.mrf.mxu0
      %v7156 = vadd.f32 %v6732, %v7155
      %7157 = vmatprep.mubr.bf16.mxu0 %v6674
      %7158 = vmatmul.mubr.bf16.gmra.mxu0 %v6673
      %v7159 = vpop.f32.mrf.mxu0
      %v7160 = vadd.f32 %v6728, %v7159
      %v7161 = vpop.f32.mrf.mxu0
      %v7162 = vadd.f32 %v6732, %v7161
      %v7163 = vpop.f32.mrf.mxu0
      %v7164 = vadd.f32 %v6728, %v7163
      %v7165 = vpop.f32.mrf.mxu0
      %v7166 = vadd.f32 %v6732, %v7165
      %7167 = vmatprep.mubr.bf16.mxu0 %v6676
      %7168 = vmatmul.mubr.bf16.gmra.mxu0 %v6675
      %v7169 = vpop.f32.mrf.mxu0
      %v7170 = vadd.f32 %v6728, %v7169
      %v7171 = vpop.f32.mrf.mxu0
      %v7172 = vadd.f32 %v6732, %v7171
      %v7173 = vpop.f32.mrf.mxu0
      %v7174 = vadd.f32 %v6728, %v7173
      %v7175 = vpop.f32.mrf.mxu0
      %v7176 = vadd.f32 %v6732, %v7175
      %7177 = vmatprep.mubr.bf16.mxu0 %v6678
      %7178 = vmatmul.mubr.bf16.gmra.mxu0 %v6677
      %v7179 = vpop.f32.mrf.mxu0
      %v7180 = vadd.f32 %v6728, %v7179
      %v7181 = vpop.f32.mrf.mxu0
      %v7182 = vadd.f32 %v6732, %v7181
      %v7183 = vpop.f32.mrf.mxu0
      %v7184 = vadd.f32 %v6728, %v7183
      %v7185 = vpop.f32.mrf.mxu0
      %v7186 = vadd.f32 %v6732, %v7185
      %7187 = vmatprep.mubr.bf16.mxu0 %v6680
      %7188 = vmatmul.mubr.bf16.gmra.mxu0 %v6679
      %v7189 = vpop.f32.mrf.mxu0
      %v7190 = vadd.f32 %v6728, %v7189
      %v7191 = vpop.f32.mrf.mxu0
      %v7192 = vadd.f32 %v6732, %v7191
      %v7193 = vpop.f32.mrf.mxu0
      %v7194 = vadd.f32 %v6728, %v7193
      %v7195 = vpop.f32.mrf.mxu0
      %v7196 = vadd.f32 %v6732, %v7195
      %7197 = vmatprep.mubr.bf16.mxu0 %v6682
      %7198 = vmatmul.mubr.bf16.gmra.mxu0 %v6681
      %v7199 = vpop.f32.mrf.mxu0
      %v7200 = vadd.f32 %v6728, %v7199
      %v7201 = vpop.f32.mrf.mxu0
      %v7202 = vadd.f32 %v6732, %v7201
      %v7203 = vpop.f32.mrf.mxu0
      %v7204 = vadd.f32 %v6728, %v7203
      %v7205 = vpop.f32.mrf.mxu0
      %v7206 = vadd.f32 %v6732, %v7205
      %7207 = vmatprep.mubr.bf16.mxu0 %v6684
      %7208 = vmatmul.mubr.bf16.gmra.mxu0 %v6683
      %v7209 = vpop.f32.mrf.mxu0
      %v7210 = vadd.f32 %v6728, %v7209
      %v7211 = vpop.f32.mrf.mxu0
      %v7212 = vadd.f32 %v6732, %v7211
      %v7213 = vpop.f32.mrf.mxu0
      %v7214 = vadd.f32 %v6728, %v7213
      %v7215 = vpop.f32.mrf.mxu0
      %v7216 = vadd.f32 %v6732, %v7215
      %7217 = vmatprep.mubr.bf16.mxu0 %v6686
      %7218 = vmatmul.mubr.bf16.gmra.mxu0 %v6685
      %v7219 = vpop.f32.mrf.mxu0
      %v7220 = vadd.f32 %v6728, %v7219
      %v7221 = vpop.f32.mrf.mxu0
      %v7222 = vadd.f32 %v6732, %v7221
      %v7223 = vpop.f32.mrf.mxu0
      %v7224 = vadd.f32 %v6728, %v7223
      %v7225 = vpop.f32.mrf.mxu0
      %v7226 = vadd.f32 %v6732, %v7225
      %7227 = vmatprep.mubr.bf16.mxu0 %v6688
      %7228 = vmatmul.mubr.bf16.gmra.mxu0 %v6687
      %v7229 = vpop.f32.mrf.mxu0
      %v7230 = vadd.f32 %v6728, %v7229
      %v7231 = vpop.f32.mrf.mxu0
      %v7232 = vadd.f32 %v6732, %v7231
      %v7233 = vpop.f32.mrf.mxu0
      %v7234 = vadd.f32 %v6728, %v7233
      %v7235 = vpop.f32.mrf.mxu0
      %v7236 = vadd.f32 %v6732, %v7235
      %7237 = vmatprep.mubr.bf16.mxu0 %v6690
      %7238 = vmatmul.mubr.bf16.gmra.mxu0 %v6689
      %v7239 = vpop.f32.mrf.mxu0
      %v7240 = vadd.f32 %v6728, %v7239
      %v7241 = vpop.f32.mrf.mxu0
      %v7242 = vadd.f32 %v6732, %v7241
      %v7243 = vpop.f32.mrf.mxu0
      %v7244 = vadd.f32 %v6728, %v7243
      %v7245 = vpop.f32.mrf.mxu0
      %v7246 = vadd.f32 %v6732, %v7245
      %7247 = vdwg.mxu0
      %v7248 = vmax.f32 %v6930, 0.0
      %v7249 = vmax.f32 %v6932, 0.0
      %v7250 = vmax.f32 %v6934, 0.0
      %v7251 = vmax.f32 %v6936, 0.0
      %v7252 = vmax.f32 %v6940, 0.0
      %v7253 = vmax.f32 %v6942, 0.0
      %v7254 = vmax.f32 %v6944, 0.0
      %v7255 = vmax.f32 %v6946, 0.0
      %v7256 = vmax.f32 %v6950, 0.0
      %v7257 = vmax.f32 %v6952, 0.0
      %v7258 = vmax.f32 %v6954, 0.0
      %v7259 = vmax.f32 %v6956, 0.0
      %v7260 = vmax.f32 %v6960, 0.0
      %v7261 = vmax.f32 %v6962, 0.0
      %v7262 = vmax.f32 %v6964, 0.0
      %v7263 = vmax.f32 %v6966, 0.0
      %v7264 = vmax.f32 %v6970, 0.0
      %v7265 = vmax.f32 %v6972, 0.0
      %v7266 = vmax.f32 %v6974, 0.0
      %v7267 = vmax.f32 %v6976, 0.0
      %v7268 = vmax.f32 %v6980, 0.0
      %v7269 = vmax.f32 %v6982, 0.0
      %v7270 = vmax.f32 %v6984, 0.0
      %v7271 = vmax.f32 %v6986, 0.0
      %v7272 = vmax.f32 %v6990, 0.0
      %v7273 = vmax.f32 %v6992, 0.0
      %v7274 = vmax.f32 %v6994, 0.0
      %v7275 = vmax.f32 %v6996, 0.0
      %v7276 = vmax.f32 %v7000, 0.0
      %v7277 = vmax.f32 %v7002, 0.0
      %v7278 = vmax.f32 %v7004, 0.0
      %v7279 = vmax.f32 %v7006, 0.0
      %v7280 = vmax.f32 %v7010, 0.0
      %v7281 = vmax.f32 %v7012, 0.0
      %v7282 = vmax.f32 %v7014, 0.0
      %v7283 = vmax.f32 %v7016, 0.0
      %v7284 = vmax.f32 %v7020, 0.0
      %v7285 = vmax.f32 %v7022, 0.0
      %v7286 = vmax.f32 %v7024, 0.0
      %v7287 = vmax.f32 %v7026, 0.0
      %v7288 = vmax.f32 %v7030, 0.0
      %v7289 = vmax.f32 %v7032, 0.0
      %v7290 = vmax.f32 %v7034, 0.0
      %v7291 = vmax.f32 %v7036, 0.0
      %v7292 = vmax.f32 %v7040, 0.0
      %v7293 = vmax.f32 %v7042, 0.0
      %v7294 = vmax.f32 %v7044, 0.0
      %v7295 = vmax.f32 %v7046, 0.0
      %v7296 = vmax.f32 %v7050, 0.0
      %v7297 = vmax.f32 %v7052, 0.0
      %v7298 = vmax.f32 %v7054, 0.0
      %v7299 = vmax.f32 %v7056, 0.0
      %v7300 = vmax.f32 %v7060, 0.0
      %v7301 = vmax.f32 %v7062, 0.0
      %v7302 = vmax.f32 %v7064, 0.0
      %v7303 = vmax.f32 %v7066, 0.0
      %v7304 = vmax.f32 %v7070, 0.0
      %v7305 = vmax.f32 %v7072, 0.0
      %v7306 = vmax.f32 %v7074, 0.0
      %v7307 = vmax.f32 %v7076, 0.0
      %v7308 = vmax.f32 %v7080, 0.0
      %v7309 = vmax.f32 %v7082, 0.0
      %v7310 = vmax.f32 %v7084, 0.0
      %v7311 = vmax.f32 %v7086, 0.0
      %v7312 = vmax.f32 %v7090, 0.0
      %v7313 = vmax.f32 %v7092, 0.0
      %v7314 = vmax.f32 %v7094, 0.0
      %v7315 = vmax.f32 %v7096, 0.0
      %v7316 = vmax.f32 %v7100, 0.0
      %v7317 = vmax.f32 %v7102, 0.0
      %v7318 = vmax.f32 %v7104, 0.0
      %v7319 = vmax.f32 %v7106, 0.0
      %v7320 = vmax.f32 %v7110, 0.0
      %v7321 = vmax.f32 %v7112, 0.0
      %v7322 = vmax.f32 %v7114, 0.0
      %v7323 = vmax.f32 %v7116, 0.0
      %v7324 = vmax.f32 %v7120, 0.0
      %v7325 = vmax.f32 %v7122, 0.0
      %v7326 = vmax.f32 %v7124, 0.0
      %v7327 = vmax.f32 %v7126, 0.0
      %v7328 = vmax.f32 %v7130, 0.0
      %v7329 = vmax.f32 %v7132, 0.0
      %v7330 = vmax.f32 %v7134, 0.0
      %v7331 = vmax.f32 %v7136, 0.0
      %v7332 = vmax.f32 %v7140, 0.0
      %v7333 = vmax.f32 %v7142, 0.0
      %v7334 = vmax.f32 %v7144, 0.0
      %v7335 = vmax.f32 %v7146, 0.0
      %v7336 = vmax.f32 %v7150, 0.0
      %v7337 = vmax.f32 %v7152, 0.0
      %v7338 = vmax.f32 %v7154, 0.0
      %v7339 = vmax.f32 %v7156, 0.0
      %v7340 = vmax.f32 %v7160, 0.0
      %v7341 = vmax.f32 %v7162, 0.0
      %v7342 = vmax.f32 %v7164, 0.0
      %v7343 = vmax.f32 %v7166, 0.0
      %v7344 = vmax.f32 %v7170, 0.0
      %v7345 = vmax.f32 %v7172, 0.0
      %v7346 = vmax.f32 %v7174, 0.0
      %v7347 = vmax.f32 %v7176, 0.0
      %v7348 = vmax.f32 %v7180, 0.0
      %v7349 = vmax.f32 %v7182, 0.0
      %v7350 = vmax.f32 %v7184, 0.0
      %v7351 = vmax.f32 %v7186, 0.0
      %v7352 = vmax.f32 %v7190, 0.0
      %v7353 = vmax.f32 %v7192, 0.0
      %v7354 = vmax.f32 %v7194, 0.0
      %v7355 = vmax.f32 %v7196, 0.0
      %v7356 = vmax.f32 %v7200, 0.0
      %v7357 = vmax.f32 %v7202, 0.0
      %v7358 = vmax.f32 %v7204, 0.0
      %v7359 = vmax.f32 %v7206, 0.0
      %v7360 = vmax.f32 %v7210, 0.0
      %v7361 = vmax.f32 %v7212, 0.0
      %v7362 = vmax.f32 %v7214, 0.0
      %v7363 = vmax.f32 %v7216, 0.0
      %v7364 = vmax.f32 %v7220, 0.0
      %v7365 = vmax.f32 %v7222, 0.0
      %v7366 = vmax.f32 %v7224, 0.0
      %v7367 = vmax.f32 %v7226, 0.0
      %v7368 = vmax.f32 %v7230, 0.0
      %v7369 = vmax.f32 %v7232, 0.0
      %v7370 = vmax.f32 %v7234, 0.0
      %v7371 = vmax.f32 %v7236, 0.0
      %v7372 = vmax.f32 %v7240, 0.0
      %v7373 = vmax.f32 %v7242, 0.0
      %v7374 = vmax.f32 %v7244, 0.0
      %v7375 = vmax.f32 %v7246, 0.0
      %v7376 = vpack.c.bf16 %v7250, %v7248
      %v7377 = vpack.c.bf16 %v7251, %v7249
      %v7378 = vpack.c.bf16 %v7254, %v7252
      %v7379 = vpack.c.bf16 %v7255, %v7253
      %v7380 = vpack.c.bf16 %v7258, %v7256
      %v7381 = vpack.c.bf16 %v7259, %v7257
      %v7382 = vpack.c.bf16 %v7262, %v7260
      %v7383 = vpack.c.bf16 %v7263, %v7261
      %v7384 = vpack.c.bf16 %v7266, %v7264
      %v7385 = vpack.c.bf16 %v7267, %v7265
      %v7386 = vpack.c.bf16 %v7270, %v7268
      %v7387 = vpack.c.bf16 %v7271, %v7269
      %v7388 = vpack.c.bf16 %v7274, %v7272
      %v7389 = vpack.c.bf16 %v7275, %v7273
      %v7390 = vpack.c.bf16 %v7278, %v7276
      %v7391 = vpack.c.bf16 %v7279, %v7277
      %v7392 = vpack.c.bf16 %v7282, %v7280
      %v7393 = vpack.c.bf16 %v7283, %v7281
      %v7394 = vpack.c.bf16 %v7286, %v7284
      %v7395 = vpack.c.bf16 %v7287, %v7285
      %v7396 = vpack.c.bf16 %v7290, %v7288
      %v7397 = vpack.c.bf16 %v7291, %v7289
      %v7398 = vpack.c.bf16 %v7294, %v7292
      %v7399 = vpack.c.bf16 %v7295, %v7293
      %v7400 = vpack.c.bf16 %v7298, %v7296
      %v7401 = vpack.c.bf16 %v7299, %v7297
      %v7402 = vpack.c.bf16 %v7302, %v7300
      %v7403 = vpack.c.bf16 %v7303, %v7301
      %v7404 = vpack.c.bf16 %v7306, %v7304
      %v7405 = vpack.c.bf16 %v7307, %v7305
      %v7406 = vpack.c.bf16 %v7310, %v7308
      %v7407 = vpack.c.bf16 %v7311, %v7309
      %v7408 = vpack.c.bf16 %v7314, %v7312
      %v7409 = vpack.c.bf16 %v7315, %v7313
      %v7410 = vpack.c.bf16 %v7318, %v7316
      %v7411 = vpack.c.bf16 %v7319, %v7317
      %v7412 = vpack.c.bf16 %v7322, %v7320
      %v7413 = vpack.c.bf16 %v7323, %v7321
      %v7414 = vpack.c.bf16 %v7326, %v7324
      %v7415 = vpack.c.bf16 %v7327, %v7325
      %v7416 = vpack.c.bf16 %v7330, %v7328
      %v7417 = vpack.c.bf16 %v7331, %v7329
      %v7418 = vpack.c.bf16 %v7334, %v7332
      %v7419 = vpack.c.bf16 %v7335, %v7333
      %v7420 = vpack.c.bf16 %v7338, %v7336
      %v7421 = vpack.c.bf16 %v7339, %v7337
      %v7422 = vpack.c.bf16 %v7342, %v7340
      %v7423 = vpack.c.bf16 %v7343, %v7341
      %v7424 = vpack.c.bf16 %v7346, %v7344
      %v7425 = vpack.c.bf16 %v7347, %v7345
      %v7426 = vpack.c.bf16 %v7350, %v7348
      %v7427 = vpack.c.bf16 %v7351, %v7349
      %v7428 = vpack.c.bf16 %v7354, %v7352
      %v7429 = vpack.c.bf16 %v7355, %v7353
      %v7430 = vpack.c.bf16 %v7358, %v7356
      %v7431 = vpack.c.bf16 %v7359, %v7357
      %v7432 = vpack.c.bf16 %v7362, %v7360
      %v7433 = vpack.c.bf16 %v7363, %v7361
      %v7434 = vpack.c.bf16 %v7366, %v7364
      %v7435 = vpack.c.bf16 %v7367, %v7365
      %v7436 = vpack.c.bf16 %v7370, %v7368
      %v7437 = vpack.c.bf16 %v7371, %v7369
      %v7438 = vpack.c.bf16 %v7374, %v7372
      %v7439 = vpack.c.bf16 %v7375, %v7373
      %v7440 = vld [vmem:[%s37] sm:$0xff]
      %v7441 = vld [vmem:[%s37 + $0x8] sm:$0xff]
      %v7442 = vld [vmem:[%s37 + $0x10] sm:$0xff]
      %v7443 = vld [vmem:[%s37 + $0x18] sm:$0xff]
      %v7444 = vld [vmem:[%s37 + $0x20] sm:$0xff]
      %v7445 = vld [vmem:[%s37 + $0x28] sm:$0xff]
      %v7446 = vld [vmem:[%s37 + $0x30] sm:$0xff]
      %v7447 = vld [vmem:[%s37 + $0x38] sm:$0xff]
      %v7448 = vld [vmem:[%s37 + $0x40] sm:$0xff]
      %v7449 = vld [vmem:[%s37 + $0x48] sm:$0xff]
      %v7450 = vld [vmem:[%s37 + $0x50] sm:$0xff]
      %v7451 = vld [vmem:[%s37 + $0x58] sm:$0xff]
      %v7452 = vld [vmem:[%s37 + $0x60] sm:$0xff]
      %v7453 = vld [vmem:[%s37 + $0x68] sm:$0xff]
      %v7454 = vld [vmem:[%s37 + $0x70] sm:$0xff]
      %v7455 = vld [vmem:[%s37 + $0x78] sm:$0xff]
      %v7456 = vld [vmem:[%s37 + $0x80] sm:$0xff]
      %v7457 = vld [vmem:[%s37 + $0x88] sm:$0xff]
      %v7458 = vld [vmem:[%s37 + $0x90] sm:$0xff]
      %v7459 = vld [vmem:[%s37 + $0x98] sm:$0xff]
      %v7460 = vld [vmem:[%s37 + $0xa0] sm:$0xff]
      %v7461 = vld [vmem:[%s37 + $0xa8] sm:$0xff]
      %v7462 = vld [vmem:[%s37 + $0xb0] sm:$0xff]
      %v7463 = vld [vmem:[%s37 + $0xb8] sm:$0xff]
      %v7464 = vld [vmem:[%s37 + $0xc0] sm:$0xff]
      %v7465 = vld [vmem:[%s37 + $0xc8] sm:$0xff]
      %v7466 = vld [vmem:[%s37 + $0xd0] sm:$0xff]
      %v7467 = vld [vmem:[%s37 + $0xd8] sm:$0xff]
      %v7468 = vld [vmem:[%s37 + $0xe0] sm:$0xff]
      %v7469 = vld [vmem:[%s37 + $0xe8] sm:$0xff]
      %v7470 = vld [vmem:[%s37 + $0xf0] sm:$0xff]
      %v7471 = vld [vmem:[%s37 + $0xf8] sm:$0xff]
      %v7472 = vld [vmem:[%s39] sm:$0x3]
      %v7474 = vlaneseq
      %v7475 = vshrl.u32 %v7474, 7
      %v7476 = vsub.s32 0, %v7475
      %v7477 = vrot.slane %v7472, %v7476
      %v7478 = vlaneseq
      %v7479 = vshrl.u32 %v7478, 7
      %v7480 = vsub.s32 1, %v7479
      %v7481 = vrot.slane %v7472, %v7480
      %v7516 = vunpack.c.l.b16 %v7440
      %v7517 = vunpack.c.h.b16 %v7440
      %v7518 = vunpack.c.l.b16 %v7441
      %v7519 = vunpack.c.h.b16 %v7441
      %v7520 = vunpack.c.l.b16 %v7442
      %v7521 = vunpack.c.h.b16 %v7442
      %v7522 = vunpack.c.l.b16 %v7443
      %v7523 = vunpack.c.h.b16 %v7443
      %v7524 = vunpack.c.l.b16 %v7444
      %v7525 = vunpack.c.h.b16 %v7444
      %v7526 = vunpack.c.l.b16 %v7445
      %v7527 = vunpack.c.h.b16 %v7445
      %v7528 = vunpack.c.l.b16 %v7446
      %v7529 = vunpack.c.h.b16 %v7446
      %v7530 = vunpack.c.l.b16 %v7447
      %v7531 = vunpack.c.h.b16 %v7447
      %v7532 = vunpack.c.l.b16 %v7448
      %v7533 = vunpack.c.h.b16 %v7448
      %v7534 = vunpack.c.l.b16 %v7449
      %v7535 = vunpack.c.h.b16 %v7449
      %v7536 = vunpack.c.l.b16 %v7450
      %v7537 = vunpack.c.h.b16 %v7450
      %v7538 = vunpack.c.l.b16 %v7451
      %v7539 = vunpack.c.h.b16 %v7451
      %v7540 = vunpack.c.l.b16 %v7452
      %v7541 = vunpack.c.h.b16 %v7452
      %v7542 = vunpack.c.l.b16 %v7453
      %v7543 = vunpack.c.h.b16 %v7453
      %v7544 = vunpack.c.l.b16 %v7454
      %v7545 = vunpack.c.h.b16 %v7454
      %v7546 = vunpack.c.l.b16 %v7455
      %v7547 = vunpack.c.h.b16 %v7455
      %v7548 = vunpack.c.l.b16 %v7456
      %v7549 = vunpack.c.h.b16 %v7456
      %v7550 = vunpack.c.l.b16 %v7457
      %v7551 = vunpack.c.h.b16 %v7457
      %v7552 = vunpack.c.l.b16 %v7458
      %v7553 = vunpack.c.h.b16 %v7458
      %v7554 = vunpack.c.l.b16 %v7459
      %v7555 = vunpack.c.h.b16 %v7459
      %v7556 = vunpack.c.l.b16 %v7460
      %v7557 = vunpack.c.h.b16 %v7460
      %v7558 = vunpack.c.l.b16 %v7461
      %v7559 = vunpack.c.h.b16 %v7461
      %v7560 = vunpack.c.l.b16 %v7462
      %v7561 = vunpack.c.h.b16 %v7462
      %v7562 = vunpack.c.l.b16 %v7463
      %v7563 = vunpack.c.h.b16 %v7463
      %v7564 = vunpack.c.l.b16 %v7464
      %v7565 = vunpack.c.h.b16 %v7464
      %v7566 = vunpack.c.l.b16 %v7465
      %v7567 = vunpack.c.h.b16 %v7465
      %v7568 = vunpack.c.l.b16 %v7466
      %v7569 = vunpack.c.h.b16 %v7466
      %v7570 = vunpack.c.l.b16 %v7467
      %v7571 = vunpack.c.h.b16 %v7467
      %v7572 = vunpack.c.l.b16 %v7468
      %v7573 = vunpack.c.h.b16 %v7468
      %v7574 = vunpack.c.l.b16 %v7469
      %v7575 = vunpack.c.h.b16 %v7469
      %v7576 = vunpack.c.l.b16 %v7470
      %v7577 = vunpack.c.h.b16 %v7470
      %v7578 = vunpack.c.l.b16 %v7471
      %v7579 = vunpack.c.h.b16 %v7471
      %v7580 = vpack.c.b16 %v7518, %v7516
      %v7581 = vpack.c.b16 %v7519, %v7517
      %v7582 = vpack.c.b16 %v7522, %v7520
      %v7583 = vpack.c.b16 %v7523, %v7521
      %v7584 = vpack.c.b16 %v7526, %v7524
      %v7585 = vpack.c.b16 %v7527, %v7525
      %v7586 = vpack.c.b16 %v7530, %v7528
      %v7587 = vpack.c.b16 %v7531, %v7529
      %v7588 = vpack.c.b16 %v7534, %v7532
      %v7589 = vpack.c.b16 %v7535, %v7533
      %v7590 = vpack.c.b16 %v7538, %v7536
      %v7591 = vpack.c.b16 %v7539, %v7537
      %v7592 = vpack.c.b16 %v7542, %v7540
      %v7593 = vpack.c.b16 %v7543, %v7541
      %v7594 = vpack.c.b16 %v7546, %v7544
      %v7595 = vpack.c.b16 %v7547, %v7545
      %v7596 = vpack.c.b16 %v7550, %v7548
      %v7597 = vpack.c.b16 %v7551, %v7549
      %v7598 = vpack.c.b16 %v7554, %v7552
      %v7599 = vpack.c.b16 %v7555, %v7553
      %v7600 = vpack.c.b16 %v7558, %v7556
      %v7601 = vpack.c.b16 %v7559, %v7557
      %v7602 = vpack.c.b16 %v7562, %v7560
      %v7603 = vpack.c.b16 %v7563, %v7561
      %v7604 = vpack.c.b16 %v7566, %v7564
      %v7605 = vpack.c.b16 %v7567, %v7565
      %v7606 = vpack.c.b16 %v7570, %v7568
      %v7607 = vpack.c.b16 %v7571, %v7569
      %v7608 = vpack.c.b16 %v7574, %v7572
      %v7609 = vpack.c.b16 %v7575, %v7573
      %v7610 = vpack.c.b16 %v7578, %v7576
      %v7611 = vpack.c.b16 %v7579, %v7577
      %7644 = vmatprep.subr.bf16.mxu0 %v7595
      %7645 = vmatpush1.bf16.msra.mxu0 %v7594
      %7646 = vmatprep.subr.bf16.mxu0 %v7593
      %7647 = vmatpush1.bf16.msra.mxu0 %v7592
      %7648 = vmatprep.subr.bf16.mxu0 %v7591
      %7649 = vmatpush1.bf16.msra.mxu0 %v7590
      %7650 = vmatprep.subr.bf16.mxu0 %v7589
      %7651 = vmatpush1.bf16.msra.mxu0 %v7588
      %7652 = vmatprep.subr.bf16.mxu0 %v7587
      %7653 = vmatpush1.bf16.msra.mxu0 %v7586
      %7654 = vmatprep.subr.bf16.mxu0 %v7585
      %7655 = vmatpush1.bf16.msra.mxu0 %v7584
      %7656 = vmatprep.subr.bf16.mxu0 %v7583
      %7657 = vmatpush1.bf16.msra.mxu0 %v7582
      %7658 = vmatprep.subr.bf16.mxu0 %v7581
      %7659 = vmatpush1.bf16.msra.mxu0 %v7580
      %7660 = vmatprep.subr.bf16.mxu0 %v7611
      %7661 = vmatpush2.bf16.msra.mxu0 %v7610
      %7662 = vmatprep.subr.bf16.mxu0 %v7609
      %7663 = vmatpush2.bf16.msra.mxu0 %v7608
      %7664 = vmatprep.subr.bf16.mxu0 %v7607
      %7665 = vmatpush2.bf16.msra.mxu0 %v7606
      %7666 = vmatprep.subr.bf16.mxu0 %v7605
      %7667 = vmatpush2.bf16.msra.mxu0 %v7604
      %7668 = vmatprep.subr.bf16.mxu0 %v7603
      %7669 = vmatpush2.bf16.msra.mxu0 %v7602
      %7670 = vmatprep.subr.bf16.mxu0 %v7601
      %7671 = vmatpush2.bf16.msra.mxu0 %v7600
      %7672 = vmatprep.subr.bf16.mxu0 %v7599
      %7673 = vmatpush2.bf16.msra.mxu0 %v7598
      %7674 = vmatprep.subr.bf16.mxu0 %v7597
      %7675 = vmatpush2.bf16.msra.mxu0 %v7596
      %7676 = vmatprep.mubr.bf16.mxu0 %v7377
      %7677 = vmatmul.mubr.bf16.gmra.mxu0 %v7376
      %v7678 = vpop.f32.mrf.mxu0
      %v7679 = vadd.f32 %v7477, %v7678
      %v7680 = vpop.f32.mrf.mxu0
      %v7681 = vadd.f32 %v7481, %v7680
      %v7682 = vpop.f32.mrf.mxu0
      %v7683 = vadd.f32 %v7477, %v7682
      %v7684 = vpop.f32.mrf.mxu0
      %v7685 = vadd.f32 %v7481, %v7684
      %7686 = vmatprep.mubr.bf16.mxu0 %v7379
      %7687 = vmatmul.mubr.bf16.gmra.mxu0 %v7378
      %v7688 = vpop.f32.mrf.mxu0
      %v7689 = vadd.f32 %v7477, %v7688
      %v7690 = vpop.f32.mrf.mxu0
      %v7691 = vadd.f32 %v7481, %v7690
      %v7692 = vpop.f32.mrf.mxu0
      %v7693 = vadd.f32 %v7477, %v7692
      %v7694 = vpop.f32.mrf.mxu0
      %v7695 = vadd.f32 %v7481, %v7694
      %7696 = vmatprep.mubr.bf16.mxu0 %v7381
      %7697 = vmatmul.mubr.bf16.gmra.mxu0 %v7380
      %v7698 = vpop.f32.mrf.mxu0
      %v7699 = vadd.f32 %v7477, %v7698
      %v7700 = vpop.f32.mrf.mxu0
      %v7701 = vadd.f32 %v7481, %v7700
      %v7702 = vpop.f32.mrf.mxu0
      %v7703 = vadd.f32 %v7477, %v7702
      %v7704 = vpop.f32.mrf.mxu0
      %v7705 = vadd.f32 %v7481, %v7704
      %7706 = vmatprep.mubr.bf16.mxu0 %v7383
      %7707 = vmatmul.mubr.bf16.gmra.mxu0 %v7382
      %v7708 = vpop.f32.mrf.mxu0
      %v7709 = vadd.f32 %v7477, %v7708
      %v7710 = vpop.f32.mrf.mxu0
      %v7711 = vadd.f32 %v7481, %v7710
      %v7712 = vpop.f32.mrf.mxu0
      %v7713 = vadd.f32 %v7477, %v7712
      %v7714 = vpop.f32.mrf.mxu0
      %v7715 = vadd.f32 %v7481, %v7714
      %7716 = vmatprep.mubr.bf16.mxu0 %v7385
      %7717 = vmatmul.mubr.bf16.gmra.mxu0 %v7384
      %v7718 = vpop.f32.mrf.mxu0
      %v7719 = vadd.f32 %v7477, %v7718
      %v7720 = vpop.f32.mrf.mxu0
      %v7721 = vadd.f32 %v7481, %v7720
      %v7722 = vpop.f32.mrf.mxu0
      %v7723 = vadd.f32 %v7477, %v7722
      %v7724 = vpop.f32.mrf.mxu0
      %v7725 = vadd.f32 %v7481, %v7724
      %7726 = vmatprep.mubr.bf16.mxu0 %v7387
      %7727 = vmatmul.mubr.bf16.gmra.mxu0 %v7386
      %v7728 = vpop.f32.mrf.mxu0
      %v7729 = vadd.f32 %v7477, %v7728
      %v7730 = vpop.f32.mrf.mxu0
      %v7731 = vadd.f32 %v7481, %v7730
      %v7732 = vpop.f32.mrf.mxu0
      %v7733 = vadd.f32 %v7477, %v7732
      %v7734 = vpop.f32.mrf.mxu0
      %v7735 = vadd.f32 %v7481, %v7734
      %7736 = vmatprep.mubr.bf16.mxu0 %v7389
      %7737 = vmatmul.mubr.bf16.gmra.mxu0 %v7388
      %v7738 = vpop.f32.mrf.mxu0
      %v7739 = vadd.f32 %v7477, %v7738
      %v7740 = vpop.f32.mrf.mxu0
      %v7741 = vadd.f32 %v7481, %v7740
      %v7742 = vpop.f32.mrf.mxu0
      %v7743 = vadd.f32 %v7477, %v7742
      %v7744 = vpop.f32.mrf.mxu0
      %v7745 = vadd.f32 %v7481, %v7744
      %7746 = vmatprep.mubr.bf16.mxu0 %v7391
      %7747 = vmatmul.mubr.bf16.gmra.mxu0 %v7390
      %v7748 = vpop.f32.mrf.mxu0
      %v7749 = vadd.f32 %v7477, %v7748
      %v7750 = vpop.f32.mrf.mxu0
      %v7751 = vadd.f32 %v7481, %v7750
      %v7752 = vpop.f32.mrf.mxu0
      %v7753 = vadd.f32 %v7477, %v7752
      %v7754 = vpop.f32.mrf.mxu0
      %v7755 = vadd.f32 %v7481, %v7754
      %7756 = vmatprep.mubr.bf16.mxu0 %v7393
      %7757 = vmatmul.mubr.bf16.gmra.mxu0 %v7392
      %v7758 = vpop.f32.mrf.mxu0
      %v7759 = vadd.f32 %v7477, %v7758
      %v7760 = vpop.f32.mrf.mxu0
      %v7761 = vadd.f32 %v7481, %v7760
      %v7762 = vpop.f32.mrf.mxu0
      %v7763 = vadd.f32 %v7477, %v7762
      %v7764 = vpop.f32.mrf.mxu0
      %v7765 = vadd.f32 %v7481, %v7764
      %7766 = vmatprep.mubr.bf16.mxu0 %v7395
      %7767 = vmatmul.mubr.bf16.gmra.mxu0 %v7394
      %v7768 = vpop.f32.mrf.mxu0
      %v7769 = vadd.f32 %v7477, %v7768
      %v7770 = vpop.f32.mrf.mxu0
      %v7771 = vadd.f32 %v7481, %v7770
      %v7772 = vpop.f32.mrf.mxu0
      %v7773 = vadd.f32 %v7477, %v7772
      %v7774 = vpop.f32.mrf.mxu0
      %v7775 = vadd.f32 %v7481, %v7774
      %7776 = vmatprep.mubr.bf16.mxu0 %v7397
      %7777 = vmatmul.mubr.bf16.gmra.mxu0 %v7396
      %v7778 = vpop.f32.mrf.mxu0
      %v7779 = vadd.f32 %v7477, %v7778
      %v7780 = vpop.f32.mrf.mxu0
      %v7781 = vadd.f32 %v7481, %v7780
      %v7782 = vpop.f32.mrf.mxu0
      %v7783 = vadd.f32 %v7477, %v7782
      %v7784 = vpop.f32.mrf.mxu0
      %v7785 = vadd.f32 %v7481, %v7784
      %7786 = vmatprep.mubr.bf16.mxu0 %v7399
      %7787 = vmatmul.mubr.bf16.gmra.mxu0 %v7398
      %v7788 = vpop.f32.mrf.mxu0
      %v7789 = vadd.f32 %v7477, %v7788
      %v7790 = vpop.f32.mrf.mxu0
      %v7791 = vadd.f32 %v7481, %v7790
      %v7792 = vpop.f32.mrf.mxu0
      %v7793 = vadd.f32 %v7477, %v7792
      %v7794 = vpop.f32.mrf.mxu0
      %v7795 = vadd.f32 %v7481, %v7794
      %7796 = vmatprep.mubr.bf16.mxu0 %v7401
      %7797 = vmatmul.mubr.bf16.gmra.mxu0 %v7400
      %v7798 = vpop.f32.mrf.mxu0
      %v7799 = vadd.f32 %v7477, %v7798
      %v7800 = vpop.f32.mrf.mxu0
      %v7801 = vadd.f32 %v7481, %v7800
      %v7802 = vpop.f32.mrf.mxu0
      %v7803 = vadd.f32 %v7477, %v7802
      %v7804 = vpop.f32.mrf.mxu0
      %v7805 = vadd.f32 %v7481, %v7804
      %7806 = vmatprep.mubr.bf16.mxu0 %v7403
      %7807 = vmatmul.mubr.bf16.gmra.mxu0 %v7402
      %v7808 = vpop.f32.mrf.mxu0
      %v7809 = vadd.f32 %v7477, %v7808
      %v7810 = vpop.f32.mrf.mxu0
      %v7811 = vadd.f32 %v7481, %v7810
      %v7812 = vpop.f32.mrf.mxu0
      %v7813 = vadd.f32 %v7477, %v7812
      %v7814 = vpop.f32.mrf.mxu0
      %v7815 = vadd.f32 %v7481, %v7814
      %7816 = vmatprep.mubr.bf16.mxu0 %v7405
      %7817 = vmatmul.mubr.bf16.gmra.mxu0 %v7404
      %v7818 = vpop.f32.mrf.mxu0
      %v7819 = vadd.f32 %v7477, %v7818
      %v7820 = vpop.f32.mrf.mxu0
      %v7821 = vadd.f32 %v7481, %v7820
      %v7822 = vpop.f32.mrf.mxu0
      %v7823 = vadd.f32 %v7477, %v7822
      %v7824 = vpop.f32.mrf.mxu0
      %v7825 = vadd.f32 %v7481, %v7824
      %7826 = vmatprep.mubr.bf16.mxu0 %v7407
      %7827 = vmatmul.mubr.bf16.gmra.mxu0 %v7406
      %v7828 = vpop.f32.mrf.mxu0
      %v7829 = vadd.f32 %v7477, %v7828
      %v7830 = vpop.f32.mrf.mxu0
      %v7831 = vadd.f32 %v7481, %v7830
      %v7832 = vpop.f32.mrf.mxu0
      %v7833 = vadd.f32 %v7477, %v7832
      %v7834 = vpop.f32.mrf.mxu0
      %v7835 = vadd.f32 %v7481, %v7834
      %7836 = vmatprep.mubr.bf16.mxu0 %v7409
      %7837 = vmatmul.mubr.bf16.gmra.mxu0 %v7408
      %v7838 = vpop.f32.mrf.mxu0
      %v7839 = vadd.f32 %v7477, %v7838
      %v7840 = vpop.f32.mrf.mxu0
      %v7841 = vadd.f32 %v7481, %v7840
      %v7842 = vpop.f32.mrf.mxu0
      %v7843 = vadd.f32 %v7477, %v7842
      %v7844 = vpop.f32.mrf.mxu0
      %v7845 = vadd.f32 %v7481, %v7844
      %7846 = vmatprep.mubr.bf16.mxu0 %v7411
      %7847 = vmatmul.mubr.bf16.gmra.mxu0 %v7410
      %v7848 = vpop.f32.mrf.mxu0
      %v7849 = vadd.f32 %v7477, %v7848
      %v7850 = vpop.f32.mrf.mxu0
      %v7851 = vadd.f32 %v7481, %v7850
      %v7852 = vpop.f32.mrf.mxu0
      %v7853 = vadd.f32 %v7477, %v7852
      %v7854 = vpop.f32.mrf.mxu0
      %v7855 = vadd.f32 %v7481, %v7854
      %7856 = vmatprep.mubr.bf16.mxu0 %v7413
      %7857 = vmatmul.mubr.bf16.gmra.mxu0 %v7412
      %v7858 = vpop.f32.mrf.mxu0
      %v7859 = vadd.f32 %v7477, %v7858
      %v7860 = vpop.f32.mrf.mxu0
      %v7861 = vadd.f32 %v7481, %v7860
      %v7862 = vpop.f32.mrf.mxu0
      %v7863 = vadd.f32 %v7477, %v7862
      %v7864 = vpop.f32.mrf.mxu0
      %v7865 = vadd.f32 %v7481, %v7864
      %7866 = vmatprep.mubr.bf16.mxu0 %v7415
      %7867 = vmatmul.mubr.bf16.gmra.mxu0 %v7414
      %v7868 = vpop.f32.mrf.mxu0
      %v7869 = vadd.f32 %v7477, %v7868
      %v7870 = vpop.f32.mrf.mxu0
      %v7871 = vadd.f32 %v7481, %v7870
      %v7872 = vpop.f32.mrf.mxu0
      %v7873 = vadd.f32 %v7477, %v7872
      %v7874 = vpop.f32.mrf.mxu0
      %v7875 = vadd.f32 %v7481, %v7874
      %7876 = vmatprep.mubr.bf16.mxu0 %v7417
      %7877 = vmatmul.mubr.bf16.gmra.mxu0 %v7416
      %v7878 = vpop.f32.mrf.mxu0
      %v7879 = vadd.f32 %v7477, %v7878
      %v7880 = vpop.f32.mrf.mxu0
      %v7881 = vadd.f32 %v7481, %v7880
      %v7882 = vpop.f32.mrf.mxu0
      %v7883 = vadd.f32 %v7477, %v7882
      %v7884 = vpop.f32.mrf.mxu0
      %v7885 = vadd.f32 %v7481, %v7884
      %7886 = vmatprep.mubr.bf16.mxu0 %v7419
      %7887 = vmatmul.mubr.bf16.gmra.mxu0 %v7418
      %v7888 = vpop.f32.mrf.mxu0
      %v7889 = vadd.f32 %v7477, %v7888
      %v7890 = vpop.f32.mrf.mxu0
      %v7891 = vadd.f32 %v7481, %v7890
      %v7892 = vpop.f32.mrf.mxu0
      %v7893 = vadd.f32 %v7477, %v7892
      %v7894 = vpop.f32.mrf.mxu0
      %v7895 = vadd.f32 %v7481, %v7894
      %7896 = vmatprep.mubr.bf16.mxu0 %v7421
      %7897 = vmatmul.mubr.bf16.gmra.mxu0 %v7420
      %v7898 = vpop.f32.mrf.mxu0
      %v7899 = vadd.f32 %v7477, %v7898
      %v7900 = vpop.f32.mrf.mxu0
      %v7901 = vadd.f32 %v7481, %v7900
      %v7902 = vpop.f32.mrf.mxu0
      %v7903 = vadd.f32 %v7477, %v7902
      %v7904 = vpop.f32.mrf.mxu0
      %v7905 = vadd.f32 %v7481, %v7904
      %7906 = vmatprep.mubr.bf16.mxu0 %v7423
      %7907 = vmatmul.mubr.bf16.gmra.mxu0 %v7422
      %v7908 = vpop.f32.mrf.mxu0
      %v7909 = vadd.f32 %v7477, %v7908
      %v7910 = vpop.f32.mrf.mxu0
      %v7911 = vadd.f32 %v7481, %v7910
      %v7912 = vpop.f32.mrf.mxu0
      %v7913 = vadd.f32 %v7477, %v7912
      %v7914 = vpop.f32.mrf.mxu0
      %v7915 = vadd.f32 %v7481, %v7914
      %7916 = vmatprep.mubr.bf16.mxu0 %v7425
      %7917 = vmatmul.mubr.bf16.gmra.mxu0 %v7424
      %v7918 = vpop.f32.mrf.mxu0
      %v7919 = vadd.f32 %v7477, %v7918
      %v7920 = vpop.f32.mrf.mxu0
      %v7921 = vadd.f32 %v7481, %v7920
      %v7922 = vpop.f32.mrf.mxu0
      %v7923 = vadd.f32 %v7477, %v7922
      %v7924 = vpop.f32.mrf.mxu0
      %v7925 = vadd.f32 %v7481, %v7924
      %7926 = vmatprep.mubr.bf16.mxu0 %v7427
      %7927 = vmatmul.mubr.bf16.gmra.mxu0 %v7426
      %v7928 = vpop.f32.mrf.mxu0
      %v7929 = vadd.f32 %v7477, %v7928
      %v7930 = vpop.f32.mrf.mxu0
      %v7931 = vadd.f32 %v7481, %v7930
      %v7932 = vpop.f32.mrf.mxu0
      %v7933 = vadd.f32 %v7477, %v7932
      %v7934 = vpop.f32.mrf.mxu0
      %v7935 = vadd.f32 %v7481, %v7934
      %7936 = vmatprep.mubr.bf16.mxu0 %v7429
      %7937 = vmatmul.mubr.bf16.gmra.mxu0 %v7428
      %v7938 = vpop.f32.mrf.mxu0
      %v7939 = vadd.f32 %v7477, %v7938
      %v7940 = vpop.f32.mrf.mxu0
      %v7941 = vadd.f32 %v7481, %v7940
      %v7942 = vpop.f32.mrf.mxu0
      %v7943 = vadd.f32 %v7477, %v7942
      %v7944 = vpop.f32.mrf.mxu0
      %v7945 = vadd.f32 %v7481, %v7944
      %7946 = vmatprep.mubr.bf16.mxu0 %v7431
      %7947 = vmatmul.mubr.bf16.gmra.mxu0 %v7430
      %v7948 = vpop.f32.mrf.mxu0
      %v7949 = vadd.f32 %v7477, %v7948
      %v7950 = vpop.f32.mrf.mxu0
      %v7951 = vadd.f32 %v7481, %v7950
      %v7952 = vpop.f32.mrf.mxu0
      %v7953 = vadd.f32 %v7477, %v7952
      %v7954 = vpop.f32.mrf.mxu0
      %v7955 = vadd.f32 %v7481, %v7954
      %7956 = vmatprep.mubr.bf16.mxu0 %v7433
      %7957 = vmatmul.mubr.bf16.gmra.mxu0 %v7432
      %v7958 = vpop.f32.mrf.mxu0
      %v7959 = vadd.f32 %v7477, %v7958
      %v7960 = vpop.f32.mrf.mxu0
      %v7961 = vadd.f32 %v7481, %v7960
      %v7962 = vpop.f32.mrf.mxu0
      %v7963 = vadd.f32 %v7477, %v7962
      %v7964 = vpop.f32.mrf.mxu0
      %v7965 = vadd.f32 %v7481, %v7964
      %7966 = vmatprep.mubr.bf16.mxu0 %v7435
      %7967 = vmatmul.mubr.bf16.gmra.mxu0 %v7434
      %v7968 = vpop.f32.mrf.mxu0
      %v7969 = vadd.f32 %v7477, %v7968
      %v7970 = vpop.f32.mrf.mxu0
      %v7971 = vadd.f32 %v7481, %v7970
      %v7972 = vpop.f32.mrf.mxu0
      %v7973 = vadd.f32 %v7477, %v7972
      %v7974 = vpop.f32.mrf.mxu0
      %v7975 = vadd.f32 %v7481, %v7974
      %7976 = vmatprep.mubr.bf16.mxu0 %v7437
      %7977 = vmatmul.mubr.bf16.gmra.mxu0 %v7436
      %v7978 = vpop.f32.mrf.mxu0
      %v7979 = vadd.f32 %v7477, %v7978
      %v7980 = vpop.f32.mrf.mxu0
      %v7981 = vadd.f32 %v7481, %v7980
      %v7982 = vpop.f32.mrf.mxu0
      %v7983 = vadd.f32 %v7477, %v7982
      %v7984 = vpop.f32.mrf.mxu0
      %v7985 = vadd.f32 %v7481, %v7984
      %7986 = vmatprep.mubr.bf16.mxu0 %v7439
      %7987 = vmatmul.mubr.bf16.gmra.mxu0 %v7438
      %v7988 = vpop.f32.mrf.mxu0
      %v7989 = vadd.f32 %v7477, %v7988
      %v7990 = vpop.f32.mrf.mxu0
      %v7991 = vadd.f32 %v7481, %v7990
      %v7992 = vpop.f32.mrf.mxu0
      %v7993 = vadd.f32 %v7477, %v7992
      %v7994 = vpop.f32.mrf.mxu0
      %v7995 = vadd.f32 %v7481, %v7994
      %7996 = vdwg.mxu0
      %v7997 = vmax.f32 %v7679, 0.0
      %v7998 = vmax.f32 %v7681, 0.0
      %v7999 = vmax.f32 %v7683, 0.0
      %v8000 = vmax.f32 %v7685, 0.0
      %v8001 = vmax.f32 %v7689, 0.0
      %v8002 = vmax.f32 %v7691, 0.0
      %v8003 = vmax.f32 %v7693, 0.0
      %v8004 = vmax.f32 %v7695, 0.0
      %v8005 = vmax.f32 %v7699, 0.0
      %v8006 = vmax.f32 %v7701, 0.0
      %v8007 = vmax.f32 %v7703, 0.0
      %v8008 = vmax.f32 %v7705, 0.0
      %v8009 = vmax.f32 %v7709, 0.0
      %v8010 = vmax.f32 %v7711, 0.0
      %v8011 = vmax.f32 %v7713, 0.0
      %v8012 = vmax.f32 %v7715, 0.0
      %v8013 = vmax.f32 %v7719, 0.0
      %v8014 = vmax.f32 %v7721, 0.0
      %v8015 = vmax.f32 %v7723, 0.0
      %v8016 = vmax.f32 %v7725, 0.0
      %v8017 = vmax.f32 %v7729, 0.0
      %v8018 = vmax.f32 %v7731, 0.0
      %v8019 = vmax.f32 %v7733, 0.0
      %v8020 = vmax.f32 %v7735, 0.0
      %v8021 = vmax.f32 %v7739, 0.0
      %v8022 = vmax.f32 %v7741, 0.0
      %v8023 = vmax.f32 %v7743, 0.0
      %v8024 = vmax.f32 %v7745, 0.0
      %v8025 = vmax.f32 %v7749, 0.0
      %v8026 = vmax.f32 %v7751, 0.0
      %v8027 = vmax.f32 %v7753, 0.0
      %v8028 = vmax.f32 %v7755, 0.0
      %v8029 = vmax.f32 %v7759, 0.0
      %v8030 = vmax.f32 %v7761, 0.0
      %v8031 = vmax.f32 %v7763, 0.0
      %v8032 = vmax.f32 %v7765, 0.0
      %v8033 = vmax.f32 %v7769, 0.0
      %v8034 = vmax.f32 %v7771, 0.0
      %v8035 = vmax.f32 %v7773, 0.0
      %v8036 = vmax.f32 %v7775, 0.0
      %v8037 = vmax.f32 %v7779, 0.0
      %v8038 = vmax.f32 %v7781, 0.0
      %v8039 = vmax.f32 %v7783, 0.0
      %v8040 = vmax.f32 %v7785, 0.0
      %v8041 = vmax.f32 %v7789, 0.0
      %v8042 = vmax.f32 %v7791, 0.0
      %v8043 = vmax.f32 %v7793, 0.0
      %v8044 = vmax.f32 %v7795, 0.0
      %v8045 = vmax.f32 %v7799, 0.0
      %v8046 = vmax.f32 %v7801, 0.0
      %v8047 = vmax.f32 %v7803, 0.0
      %v8048 = vmax.f32 %v7805, 0.0
      %v8049 = vmax.f32 %v7809, 0.0
      %v8050 = vmax.f32 %v7811, 0.0
      %v8051 = vmax.f32 %v7813, 0.0
      %v8052 = vmax.f32 %v7815, 0.0
      %v8053 = vmax.f32 %v7819, 0.0
      %v8054 = vmax.f32 %v7821, 0.0
      %v8055 = vmax.f32 %v7823, 0.0
      %v8056 = vmax.f32 %v7825, 0.0
      %v8057 = vmax.f32 %v7829, 0.0
      %v8058 = vmax.f32 %v7831, 0.0
      %v8059 = vmax.f32 %v7833, 0.0
      %v8060 = vmax.f32 %v7835, 0.0
      %v8061 = vmax.f32 %v7839, 0.0
      %v8062 = vmax.f32 %v7841, 0.0
      %v8063 = vmax.f32 %v7843, 0.0
      %v8064 = vmax.f32 %v7845, 0.0
      %v8065 = vmax.f32 %v7849, 0.0
      %v8066 = vmax.f32 %v7851, 0.0
      %v8067 = vmax.f32 %v7853, 0.0
      %v8068 = vmax.f32 %v7855, 0.0
      %v8069 = vmax.f32 %v7859, 0.0
      %v8070 = vmax.f32 %v7861, 0.0
      %v8071 = vmax.f32 %v7863, 0.0
      %v8072 = vmax.f32 %v7865, 0.0
      %v8073 = vmax.f32 %v7869, 0.0
      %v8074 = vmax.f32 %v7871, 0.0
      %v8075 = vmax.f32 %v7873, 0.0
      %v8076 = vmax.f32 %v7875, 0.0
      %v8077 = vmax.f32 %v7879, 0.0
      %v8078 = vmax.f32 %v7881, 0.0
      %v8079 = vmax.f32 %v7883, 0.0
      %v8080 = vmax.f32 %v7885, 0.0
      %v8081 = vmax.f32 %v7889, 0.0
      %v8082 = vmax.f32 %v7891, 0.0
      %v8083 = vmax.f32 %v7893, 0.0
      %v8084 = vmax.f32 %v7895, 0.0
      %v8085 = vmax.f32 %v7899, 0.0
      %v8086 = vmax.f32 %v7901, 0.0
      %v8087 = vmax.f32 %v7903, 0.0
      %v8088 = vmax.f32 %v7905, 0.0
      %v8089 = vmax.f32 %v7909, 0.0
      %v8090 = vmax.f32 %v7911, 0.0
      %v8091 = vmax.f32 %v7913, 0.0
      %v8092 = vmax.f32 %v7915, 0.0
      %v8093 = vmax.f32 %v7919, 0.0
      %v8094 = vmax.f32 %v7921, 0.0
      %v8095 = vmax.f32 %v7923, 0.0
      %v8096 = vmax.f32 %v7925, 0.0
      %v8097 = vmax.f32 %v7929, 0.0
      %v8098 = vmax.f32 %v7931, 0.0
      %v8099 = vmax.f32 %v7933, 0.0
      %v8100 = vmax.f32 %v7935, 0.0
      %v8101 = vmax.f32 %v7939, 0.0
      %v8102 = vmax.f32 %v7941, 0.0
      %v8103 = vmax.f32 %v7943, 0.0
      %v8104 = vmax.f32 %v7945, 0.0
      %v8105 = vmax.f32 %v7949, 0.0
      %v8106 = vmax.f32 %v7951, 0.0
      %v8107 = vmax.f32 %v7953, 0.0
      %v8108 = vmax.f32 %v7955, 0.0
      %v8109 = vmax.f32 %v7959, 0.0
      %v8110 = vmax.f32 %v7961, 0.0
      %v8111 = vmax.f32 %v7963, 0.0
      %v8112 = vmax.f32 %v7965, 0.0
      %v8113 = vmax.f32 %v7969, 0.0
      %v8114 = vmax.f32 %v7971, 0.0
      %v8115 = vmax.f32 %v7973, 0.0
      %v8116 = vmax.f32 %v7975, 0.0
      %v8117 = vmax.f32 %v7979, 0.0
      %v8118 = vmax.f32 %v7981, 0.0
      %v8119 = vmax.f32 %v7983, 0.0
      %v8120 = vmax.f32 %v7985, 0.0
      %v8121 = vmax.f32 %v7989, 0.0
      %v8122 = vmax.f32 %v7991, 0.0
      %v8123 = vmax.f32 %v7993, 0.0
      %v8124 = vmax.f32 %v7995, 0.0
      %v8125 = vld [vmem:[%s41] sm:$0x3]
      %v8127 = vlaneseq
      %v8128 = vshrl.u32 %v8127, 7
      %v8129 = vsub.s32 0, %v8128
      %v8130 = vrot.slane %v8125, %v8129
      %v8131 = vlaneseq
      %v8132 = vshrl.u32 %v8131, 7
      %v8133 = vsub.s32 1, %v8132
      %v8134 = vrot.slane %v8125, %v8133
      %v8137 = vmul.f32 %v7997, %v8130
      %v8138 = vmul.f32 %v7998, %v8134
      %v8139 = vmul.f32 %v7999, %v8130
      %v8140 = vmul.f32 %v8000, %v8134
      %v8141 = vmul.f32 %v8001, %v8130
      %v8142 = vmul.f32 %v8002, %v8134
      %v8143 = vmul.f32 %v8003, %v8130
      %v8144 = vmul.f32 %v8004, %v8134
      %v8145 = vmul.f32 %v8005, %v8130
      %v8146 = vmul.f32 %v8006, %v8134
      %v8147 = vmul.f32 %v8007, %v8130
      %v8148 = vmul.f32 %v8008, %v8134
      %v8149 = vmul.f32 %v8009, %v8130
      %v8150 = vmul.f32 %v8010, %v8134
      %v8151 = vmul.f32 %v8011, %v8130
      %v8152 = vmul.f32 %v8012, %v8134
      %v8153 = vmul.f32 %v8013, %v8130
      %v8154 = vmul.f32 %v8014, %v8134
      %v8155 = vmul.f32 %v8015, %v8130
      %v8156 = vmul.f32 %v8016, %v8134
      %v8157 = vmul.f32 %v8017, %v8130
      %v8158 = vmul.f32 %v8018, %v8134
      %v8159 = vmul.f32 %v8019, %v8130
      %v8160 = vmul.f32 %v8020, %v8134
      %v8161 = vmul.f32 %v8021, %v8130
      %v8162 = vmul.f32 %v8022, %v8134
      %v8163 = vmul.f32 %v8023, %v8130
      %v8164 = vmul.f32 %v8024, %v8134
      %v8165 = vmul.f32 %v8025, %v8130
      %v8166 = vmul.f32 %v8026, %v8134
      %v8167 = vmul.f32 %v8027, %v8130
      %v8168 = vmul.f32 %v8028, %v8134
      %v8169 = vmul.f32 %v8029, %v8130
      %v8170 = vmul.f32 %v8030, %v8134
      %v8171 = vmul.f32 %v8031, %v8130
      %v8172 = vmul.f32 %v8032, %v8134
      %v8173 = vmul.f32 %v8033, %v8130
      %v8174 = vmul.f32 %v8034, %v8134
      %v8175 = vmul.f32 %v8035, %v8130
      %v8176 = vmul.f32 %v8036, %v8134
      %v8177 = vmul.f32 %v8037, %v8130
      %v8178 = vmul.f32 %v8038, %v8134
      %v8179 = vmul.f32 %v8039, %v8130
      %v8180 = vmul.f32 %v8040, %v8134
      %v8181 = vmul.f32 %v8041, %v8130
      %v8182 = vmul.f32 %v8042, %v8134
      %v8183 = vmul.f32 %v8043, %v8130
      %v8184 = vmul.f32 %v8044, %v8134
      %v8185 = vmul.f32 %v8045, %v8130
      %v8186 = vmul.f32 %v8046, %v8134
      %v8187 = vmul.f32 %v8047, %v8130
      %v8188 = vmul.f32 %v8048, %v8134
      %v8189 = vmul.f32 %v8049, %v8130
      %v8190 = vmul.f32 %v8050, %v8134
      %v8191 = vmul.f32 %v8051, %v8130
      %v8192 = vmul.f32 %v8052, %v8134
      %v8193 = vmul.f32 %v8053, %v8130
      %v8194 = vmul.f32 %v8054, %v8134
      %v8195 = vmul.f32 %v8055, %v8130
      %v8196 = vmul.f32 %v8056, %v8134
      %v8197 = vmul.f32 %v8057, %v8130
      %v8198 = vmul.f32 %v8058, %v8134
      %v8199 = vmul.f32 %v8059, %v8130
      %v8200 = vmul.f32 %v8060, %v8134
      %v8201 = vmul.f32 %v8061, %v8130
      %v8202 = vmul.f32 %v8062, %v8134
      %v8203 = vmul.f32 %v8063, %v8130
      %v8204 = vmul.f32 %v8064, %v8134
      %v8205 = vmul.f32 %v8065, %v8130
      %v8206 = vmul.f32 %v8066, %v8134
      %v8207 = vmul.f32 %v8067, %v8130
      %v8208 = vmul.f32 %v8068, %v8134
      %v8209 = vmul.f32 %v8069, %v8130
      %v8210 = vmul.f32 %v8070, %v8134
      %v8211 = vmul.f32 %v8071, %v8130
      %v8212 = vmul.f32 %v8072, %v8134
      %v8213 = vmul.f32 %v8073, %v8130
      %v8214 = vmul.f32 %v8074, %v8134
      %v8215 = vmul.f32 %v8075, %v8130
      %v8216 = vmul.f32 %v8076, %v8134
      %v8217 = vmul.f32 %v8077, %v8130
      %v8218 = vmul.f32 %v8078, %v8134
      %v8219 = vmul.f32 %v8079, %v8130
      %v8220 = vmul.f32 %v8080, %v8134
      %v8221 = vmul.f32 %v8081, %v8130
      %v8222 = vmul.f32 %v8082, %v8134
      %v8223 = vmul.f32 %v8083, %v8130
      %v8224 = vmul.f32 %v8084, %v8134
      %v8225 = vmul.f32 %v8085, %v8130
      %v8226 = vmul.f32 %v8086, %v8134
      %v8227 = vmul.f32 %v8087, %v8130
      %v8228 = vmul.f32 %v8088, %v8134
      %v8229 = vmul.f32 %v8089, %v8130
      %v8230 = vmul.f32 %v8090, %v8134
      %v8231 = vmul.f32 %v8091, %v8130
      %v8232 = vmul.f32 %v8092, %v8134
      %v8233 = vmul.f32 %v8093, %v8130
      %v8234 = vmul.f32 %v8094, %v8134
      %v8235 = vmul.f32 %v8095, %v8130
      %v8236 = vmul.f32 %v8096, %v8134
      %v8237 = vmul.f32 %v8097, %v8130
      %v8238 = vmul.f32 %v8098, %v8134
      %v8239 = vmul.f32 %v8099, %v8130
      %v8240 = vmul.f32 %v8100, %v8134
      %v8241 = vmul.f32 %v8101, %v8130
      %v8242 = vmul.f32 %v8102, %v8134
      %v8243 = vmul.f32 %v8103, %v8130
      %v8244 = vmul.f32 %v8104, %v8134
      %v8245 = vmul.f32 %v8105, %v8130
      %v8246 = vmul.f32 %v8106, %v8134
      %v8247 = vmul.f32 %v8107, %v8130
      %v8248 = vmul.f32 %v8108, %v8134
      %v8249 = vmul.f32 %v8109, %v8130
      %v8250 = vmul.f32 %v8110, %v8134
      %v8251 = vmul.f32 %v8111, %v8130
      %v8252 = vmul.f32 %v8112, %v8134
      %v8253 = vmul.f32 %v8113, %v8130
      %v8254 = vmul.f32 %v8114, %v8134
      %v8255 = vmul.f32 %v8115, %v8130
      %v8256 = vmul.f32 %v8116, %v8134
      %v8257 = vmul.f32 %v8117, %v8130
      %v8258 = vmul.f32 %v8118, %v8134
      %v8259 = vmul.f32 %v8119, %v8130
      %v8260 = vmul.f32 %v8120, %v8134
      %v8261 = vmul.f32 %v8121, %v8130
      %v8262 = vmul.f32 %v8122, %v8134
      %v8263 = vmul.f32 %v8123, %v8130
      %v8264 = vmul.f32 %v8124, %v8134
      %v8265 = vadd.f32 %v8137, %v8138
      %8266 = vadd.xlane.f32.xlu0 %v8265
      %v8267 = vpop.xlane.xlu0 %8266
      %v8268 = vadd.f32 %v8139, %v8140
      %8269 = vadd.xlane.f32.xlu0 %v8268
      %v8270 = vpop.xlane.xlu0 %8269
      %v8271 = vadd.f32 %v8141, %v8142
      %8272 = vadd.xlane.f32.xlu0 %v8271
      %v8273 = vpop.xlane.xlu0 %8272
      %v8274 = vadd.f32 %v8143, %v8144
      %8275 = vadd.xlane.f32.xlu0 %v8274
      %v8276 = vpop.xlane.xlu0 %8275
      %v8277 = vadd.f32 %v8145, %v8146
      %8278 = vadd.xlane.f32.xlu0 %v8277
      %v8279 = vpop.xlane.xlu0 %8278
      %v8280 = vadd.f32 %v8147, %v8148
      %8281 = vadd.xlane.f32.xlu0 %v8280
      %v8282 = vpop.xlane.xlu0 %8281
      %v8283 = vadd.f32 %v8149, %v8150
      %8284 = vadd.xlane.f32.xlu0 %v8283
      %v8285 = vpop.xlane.xlu0 %8284
      %v8286 = vadd.f32 %v8151, %v8152
      %8287 = vadd.xlane.f32.xlu0 %v8286
      %v8288 = vpop.xlane.xlu0 %8287
      %v8289 = vadd.f32 %v8153, %v8154
      %8290 = vadd.xlane.f32.xlu0 %v8289
      %v8291 = vpop.xlane.xlu0 %8290
      %v8292 = vadd.f32 %v8155, %v8156
      %8293 = vadd.xlane.f32.xlu0 %v8292
      %v8294 = vpop.xlane.xlu0 %8293
      %v8295 = vadd.f32 %v8157, %v8158
      %8296 = vadd.xlane.f32.xlu0 %v8295
      %v8297 = vpop.xlane.xlu0 %8296
      %v8298 = vadd.f32 %v8159, %v8160
      %8299 = vadd.xlane.f32.xlu0 %v8298
      %v8300 = vpop.xlane.xlu0 %8299
      %v8301 = vadd.f32 %v8161, %v8162
      %8302 = vadd.xlane.f32.xlu0 %v8301
      %v8303 = vpop.xlane.xlu0 %8302
      %v8304 = vadd.f32 %v8163, %v8164
      %8305 = vadd.xlane.f32.xlu0 %v8304
      %v8306 = vpop.xlane.xlu0 %8305
      %v8307 = vadd.f32 %v8165, %v8166
      %8308 = vadd.xlane.f32.xlu0 %v8307
      %v8309 = vpop.xlane.xlu0 %8308
      %v8310 = vadd.f32 %v8167, %v8168
      %8311 = vadd.xlane.f32.xlu0 %v8310
      %v8312 = vpop.xlane.xlu0 %8311
      %v8313 = vadd.f32 %v8169, %v8170
      %8314 = vadd.xlane.f32.xlu0 %v8313
      %v8315 = vpop.xlane.xlu0 %8314
      %v8316 = vadd.f32 %v8171, %v8172
      %8317 = vadd.xlane.f32.xlu0 %v8316
      %v8318 = vpop.xlane.xlu0 %8317
      %v8319 = vadd.f32 %v8173, %v8174
      %8320 = vadd.xlane.f32.xlu0 %v8319
      %v8321 = vpop.xlane.xlu0 %8320
      %v8322 = vadd.f32 %v8175, %v8176
      %8323 = vadd.xlane.f32.xlu0 %v8322
      %v8324 = vpop.xlane.xlu0 %8323
      %v8325 = vadd.f32 %v8177, %v8178
      %8326 = vadd.xlane.f32.xlu0 %v8325
      %v8327 = vpop.xlane.xlu0 %8326
      %v8328 = vadd.f32 %v8179, %v8180
      %8329 = vadd.xlane.f32.xlu0 %v8328
      %v8330 = vpop.xlane.xlu0 %8329
      %v8331 = vadd.f32 %v8181, %v8182
      %8332 = vadd.xlane.f32.xlu0 %v8331
      %v8333 = vpop.xlane.xlu0 %8332
      %v8334 = vadd.f32 %v8183, %v8184
      %8335 = vadd.xlane.f32.xlu0 %v8334
      %v8336 = vpop.xlane.xlu0 %8335
      %v8337 = vadd.f32 %v8185, %v8186
      %8338 = vadd.xlane.f32.xlu0 %v8337
      %v8339 = vpop.xlane.xlu0 %8338
      %v8340 = vadd.f32 %v8187, %v8188
      %8341 = vadd.xlane.f32.xlu0 %v8340
      %v8342 = vpop.xlane.xlu0 %8341
      %v8343 = vadd.f32 %v8189, %v8190
      %8344 = vadd.xlane.f32.xlu0 %v8343
      %v8345 = vpop.xlane.xlu0 %8344
      %v8346 = vadd.f32 %v8191, %v8192
      %8347 = vadd.xlane.f32.xlu0 %v8346
      %v8348 = vpop.xlane.xlu0 %8347
      %v8349 = vadd.f32 %v8193, %v8194
      %8350 = vadd.xlane.f32.xlu0 %v8349
      %v8351 = vpop.xlane.xlu0 %8350
      %v8352 = vadd.f32 %v8195, %v8196
      %8353 = vadd.xlane.f32.xlu0 %v8352
      %v8354 = vpop.xlane.xlu0 %8353
      %v8355 = vadd.f32 %v8197, %v8198
      %8356 = vadd.xlane.f32.xlu0 %v8355
      %v8357 = vpop.xlane.xlu0 %8356
      %v8358 = vadd.f32 %v8199, %v8200
      %8359 = vadd.xlane.f32.xlu0 %v8358
      %v8360 = vpop.xlane.xlu0 %8359
      %v8361 = vadd.f32 %v8201, %v8202
      %8362 = vadd.xlane.f32.xlu0 %v8361
      %v8363 = vpop.xlane.xlu0 %8362
      %v8364 = vadd.f32 %v8203, %v8204
      %8365 = vadd.xlane.f32.xlu0 %v8364
      %v8366 = vpop.xlane.xlu0 %8365
      %v8367 = vadd.f32 %v8205, %v8206
      %8368 = vadd.xlane.f32.xlu0 %v8367
      %v8369 = vpop.xlane.xlu0 %8368
      %v8370 = vadd.f32 %v8207, %v8208
      %8371 = vadd.xlane.f32.xlu0 %v8370
      %v8372 = vpop.xlane.xlu0 %8371
      %v8373 = vadd.f32 %v8209, %v8210
      %8374 = vadd.xlane.f32.xlu0 %v8373
      %v8375 = vpop.xlane.xlu0 %8374
      %v8376 = vadd.f32 %v8211, %v8212
      %8377 = vadd.xlane.f32.xlu0 %v8376
      %v8378 = vpop.xlane.xlu0 %8377
      %v8379 = vadd.f32 %v8213, %v8214
      %8380 = vadd.xlane.f32.xlu0 %v8379
      %v8381 = vpop.xlane.xlu0 %8380
      %v8382 = vadd.f32 %v8215, %v8216
      %8383 = vadd.xlane.f32.xlu0 %v8382
      %v8384 = vpop.xlane.xlu0 %8383
      %v8385 = vadd.f32 %v8217, %v8218
      %8386 = vadd.xlane.f32.xlu0 %v8385
      %v8387 = vpop.xlane.xlu0 %8386
      %v8388 = vadd.f32 %v8219, %v8220
      %8389 = vadd.xlane.f32.xlu0 %v8388
      %v8390 = vpop.xlane.xlu0 %8389
      %v8391 = vadd.f32 %v8221, %v8222
      %8392 = vadd.xlane.f32.xlu0 %v8391
      %v8393 = vpop.xlane.xlu0 %8392
      %v8394 = vadd.f32 %v8223, %v8224
      %8395 = vadd.xlane.f32.xlu0 %v8394
      %v8396 = vpop.xlane.xlu0 %8395
      %v8397 = vadd.f32 %v8225, %v8226
      %8398 = vadd.xlane.f32.xlu0 %v8397
      %v8399 = vpop.xlane.xlu0 %8398
      %v8400 = vadd.f32 %v8227, %v8228
      %8401 = vadd.xlane.f32.xlu0 %v8400
      %v8402 = vpop.xlane.xlu0 %8401
      %v8403 = vadd.f32 %v8229, %v8230
      %8404 = vadd.xlane.f32.xlu0 %v8403
      %v8405 = vpop.xlane.xlu0 %8404
      %v8406 = vadd.f32 %v8231, %v8232
      %8407 = vadd.xlane.f32.xlu0 %v8406
      %v8408 = vpop.xlane.xlu0 %8407
      %v8409 = vadd.f32 %v8233, %v8234
      %8410 = vadd.xlane.f32.xlu0 %v8409
      %v8411 = vpop.xlane.xlu0 %8410
      %v8412 = vadd.f32 %v8235, %v8236
      %8413 = vadd.xlane.f32.xlu0 %v8412
      %v8414 = vpop.xlane.xlu0 %8413
      %v8415 = vadd.f32 %v8237, %v8238
      %8416 = vadd.xlane.f32.xlu0 %v8415
      %v8417 = vpop.xlane.xlu0 %8416
      %v8418 = vadd.f32 %v8239, %v8240
      %8419 = vadd.xlane.f32.xlu0 %v8418
      %v8420 = vpop.xlane.xlu0 %8419
      %v8421 = vadd.f32 %v8241, %v8242
      %8422 = vadd.xlane.f32.xlu0 %v8421
      %v8423 = vpop.xlane.xlu0 %8422
      %v8424 = vadd.f32 %v8243, %v8244
      %8425 = vadd.xlane.f32.xlu0 %v8424
      %v8426 = vpop.xlane.xlu0 %8425
      %v8427 = vadd.f32 %v8245, %v8246
      %8428 = vadd.xlane.f32.xlu0 %v8427
      %v8429 = vpop.xlane.xlu0 %8428
      %v8430 = vadd.f32 %v8247, %v8248
      %8431 = vadd.xlane.f32.xlu0 %v8430
      %v8432 = vpop.xlane.xlu0 %8431
      %v8433 = vadd.f32 %v8249, %v8250
      %8434 = vadd.xlane.f32.xlu0 %v8433
      %v8435 = vpop.xlane.xlu0 %8434
      %v8436 = vadd.f32 %v8251, %v8252
      %8437 = vadd.xlane.f32.xlu0 %v8436
      %v8438 = vpop.xlane.xlu0 %8437
      %v8439 = vadd.f32 %v8253, %v8254
      %8440 = vadd.xlane.f32.xlu0 %v8439
      %v8441 = vpop.xlane.xlu0 %8440
      %v8442 = vadd.f32 %v8255, %v8256
      %8443 = vadd.xlane.f32.xlu0 %v8442
      %v8444 = vpop.xlane.xlu0 %8443
      %v8445 = vadd.f32 %v8257, %v8258
      %8446 = vadd.xlane.f32.xlu0 %v8445
      %v8447 = vpop.xlane.xlu0 %8446
      %v8448 = vadd.f32 %v8259, %v8260
      %8449 = vadd.xlane.f32.xlu0 %v8448
      %v8450 = vpop.xlane.xlu0 %8449
      %v8451 = vadd.f32 %v8261, %v8262
      %8452 = vadd.xlane.f32.xlu0 %v8451
      %v8453 = vpop.xlane.xlu0 %8452
      %v8454 = vadd.f32 %v8263, %v8264
      %8455 = vadd.xlane.f32.xlu0 %v8454
      %v8456 = vpop.xlane.xlu0 %8455
      %v8457 = vld [vmem:[#allocation2] sm:$0x1]
      %v8459 = vlaneseq
      %v8460 = vshrl.u32 %v8459, 7
      %v8461 = vsub.s32 0, %v8460
      %v8462 = vrot.slane %v8457, %v8461
      %v8464 = vadd.f32 %v8267, %v8462
      %v8465 = vadd.f32 %v8270, %v8462
      %v8466 = vadd.f32 %v8273, %v8462
      %v8467 = vadd.f32 %v8276, %v8462
      %v8468 = vadd.f32 %v8279, %v8462
      %v8469 = vadd.f32 %v8282, %v8462
      %v8470 = vadd.f32 %v8285, %v8462
      %v8471 = vadd.f32 %v8288, %v8462
      %v8472 = vadd.f32 %v8291, %v8462
      %v8473 = vadd.f32 %v8294, %v8462
      %v8474 = vadd.f32 %v8297, %v8462
      %v8475 = vadd.f32 %v8300, %v8462
      %v8476 = vadd.f32 %v8303, %v8462
      %v8477 = vadd.f32 %v8306, %v8462
      %v8478 = vadd.f32 %v8309, %v8462
      %v8479 = vadd.f32 %v8312, %v8462
      %v8480 = vadd.f32 %v8315, %v8462
      %v8481 = vadd.f32 %v8318, %v8462
      %v8482 = vadd.f32 %v8321, %v8462
      %v8483 = vadd.f32 %v8324, %v8462
      %v8484 = vadd.f32 %v8327, %v8462
      %v8485 = vadd.f32 %v8330, %v8462
      %v8486 = vadd.f32 %v8333, %v8462
      %v8487 = vadd.f32 %v8336, %v8462
      %v8488 = vadd.f32 %v8339, %v8462
      %v8489 = vadd.f32 %v8342, %v8462
      %v8490 = vadd.f32 %v8345, %v8462
      %v8491 = vadd.f32 %v8348, %v8462
      %v8492 = vadd.f32 %v8351, %v8462
      %v8493 = vadd.f32 %v8354, %v8462
      %v8494 = vadd.f32 %v8357, %v8462
      %v8495 = vadd.f32 %v8360, %v8462
      %v8496 = vadd.f32 %v8363, %v8462
      %v8497 = vadd.f32 %v8366, %v8462
      %v8498 = vadd.f32 %v8369, %v8462
      %v8499 = vadd.f32 %v8372, %v8462
      %v8500 = vadd.f32 %v8375, %v8462
      %v8501 = vadd.f32 %v8378, %v8462
      %v8502 = vadd.f32 %v8381, %v8462
      %v8503 = vadd.f32 %v8384, %v8462
      %v8504 = vadd.f32 %v8387, %v8462
      %v8505 = vadd.f32 %v8390, %v8462
      %v8506 = vadd.f32 %v8393, %v8462
      %v8507 = vadd.f32 %v8396, %v8462
      %v8508 = vadd.f32 %v8399, %v8462
      %v8509 = vadd.f32 %v8402, %v8462
      %v8510 = vadd.f32 %v8405, %v8462
      %v8511 = vadd.f32 %v8408, %v8462
      %v8512 = vadd.f32 %v8411, %v8462
      %v8513 = vadd.f32 %v8414, %v8462
      %v8514 = vadd.f32 %v8417, %v8462
      %v8515 = vadd.f32 %v8420, %v8462
      %v8516 = vadd.f32 %v8423, %v8462
      %v8517 = vadd.f32 %v8426, %v8462
      %v8518 = vadd.f32 %v8429, %v8462
      %v8519 = vadd.f32 %v8432, %v8462
      %v8520 = vadd.f32 %v8435, %v8462
      %v8521 = vadd.f32 %v8438, %v8462
      %v8522 = vadd.f32 %v8441, %v8462
      %v8523 = vadd.f32 %v8444, %v8462
      %v8524 = vadd.f32 %v8447, %v8462
      %v8525 = vadd.f32 %v8450, %v8462
      %v8526 = vadd.f32 %v8453, %v8462
      %v8527 = vadd.f32 %v8456, %v8462
      %v8528 = vmax.f32 %v8464, 0.0
      %v8529 = vmax.f32 %v8465, 0.0
      %v8530 = vmax.f32 %v8466, 0.0
      %v8531 = vmax.f32 %v8467, 0.0
      %v8532 = vmax.f32 %v8468, 0.0
      %v8533 = vmax.f32 %v8469, 0.0
      %v8534 = vmax.f32 %v8470, 0.0
      %v8535 = vmax.f32 %v8471, 0.0
      %v8536 = vmax.f32 %v8472, 0.0
      %v8537 = vmax.f32 %v8473, 0.0
      %v8538 = vmax.f32 %v8474, 0.0
      %v8539 = vmax.f32 %v8475, 0.0
      %v8540 = vmax.f32 %v8476, 0.0
      %v8541 = vmax.f32 %v8477, 0.0
      %v8542 = vmax.f32 %v8478, 0.0
      %v8543 = vmax.f32 %v8479, 0.0
      %v8544 = vmax.f32 %v8480, 0.0
      %v8545 = vmax.f32 %v8481, 0.0
      %v8546 = vmax.f32 %v8482, 0.0
      %v8547 = vmax.f32 %v8483, 0.0
      %v8548 = vmax.f32 %v8484, 0.0
      %v8549 = vmax.f32 %v8485, 0.0
      %v8550 = vmax.f32 %v8486, 0.0
      %v8551 = vmax.f32 %v8487, 0.0
      %v8552 = vmax.f32 %v8488, 0.0
      %v8553 = vmax.f32 %v8489, 0.0
      %v8554 = vmax.f32 %v8490, 0.0
      %v8555 = vmax.f32 %v8491, 0.0
      %v8556 = vmax.f32 %v8492, 0.0
      %v8557 = vmax.f32 %v8493, 0.0
      %v8558 = vmax.f32 %v8494, 0.0
      %v8559 = vmax.f32 %v8495, 0.0
      %v8560 = vmax.f32 %v8496, 0.0
      %v8561 = vmax.f32 %v8497, 0.0
      %v8562 = vmax.f32 %v8498, 0.0
      %v8563 = vmax.f32 %v8499, 0.0
      %v8564 = vmax.f32 %v8500, 0.0
      %v8565 = vmax.f32 %v8501, 0.0
      %v8566 = vmax.f32 %v8502, 0.0
      %v8567 = vmax.f32 %v8503, 0.0
      %v8568 = vmax.f32 %v8504, 0.0
      %v8569 = vmax.f32 %v8505, 0.0
      %v8570 = vmax.f32 %v8506, 0.0
      %v8571 = vmax.f32 %v8507, 0.0
      %v8572 = vmax.f32 %v8508, 0.0
      %v8573 = vmax.f32 %v8509, 0.0
      %v8574 = vmax.f32 %v8510, 0.0
      %v8575 = vmax.f32 %v8511, 0.0
      %v8576 = vmax.f32 %v8512, 0.0
      %v8577 = vmax.f32 %v8513, 0.0
      %v8578 = vmax.f32 %v8514, 0.0
      %v8579 = vmax.f32 %v8515, 0.0
      %v8580 = vmax.f32 %v8516, 0.0
      %v8581 = vmax.f32 %v8517, 0.0
      %v8582 = vmax.f32 %v8518, 0.0
      %v8583 = vmax.f32 %v8519, 0.0
      %v8584 = vmax.f32 %v8520, 0.0
      %v8585 = vmax.f32 %v8521, 0.0
      %v8586 = vmax.f32 %v8522, 0.0
      %v8587 = vmax.f32 %v8523, 0.0
      %v8588 = vmax.f32 %v8524, 0.0
      %v8589 = vmax.f32 %v8525, 0.0
      %v8590 = vmax.f32 %v8526, 0.0
      %v8591 = vmax.f32 %v8527, 0.0
      %v8592 = vpack.c.bf16 %v7999, %v7997
      %v8593 = vpack.c.bf16 %v8000, %v7998
      %v8594 = vpack.c.bf16 %v8003, %v8001
      %v8595 = vpack.c.bf16 %v8004, %v8002
      %v8596 = vpack.c.bf16 %v8007, %v8005
      %v8597 = vpack.c.bf16 %v8008, %v8006
      %v8598 = vpack.c.bf16 %v8011, %v8009
      %v8599 = vpack.c.bf16 %v8012, %v8010
      %v8600 = vpack.c.bf16 %v8015, %v8013
      %v8601 = vpack.c.bf16 %v8016, %v8014
      %v8602 = vpack.c.bf16 %v8019, %v8017
      %v8603 = vpack.c.bf16 %v8020, %v8018
      %v8604 = vpack.c.bf16 %v8023, %v8021
      %v8605 = vpack.c.bf16 %v8024, %v8022
      %v8606 = vpack.c.bf16 %v8027, %v8025
      %v8607 = vpack.c.bf16 %v8028, %v8026
      %v8608 = vpack.c.bf16 %v8031, %v8029
      %v8609 = vpack.c.bf16 %v8032, %v8030
      %v8610 = vpack.c.bf16 %v8035, %v8033
      %v8611 = vpack.c.bf16 %v8036, %v8034
      %v8612 = vpack.c.bf16 %v8039, %v8037
      %v8613 = vpack.c.bf16 %v8040, %v8038
      %v8614 = vpack.c.bf16 %v8043, %v8041
      %v8615 = vpack.c.bf16 %v8044, %v8042
      %v8616 = vpack.c.bf16 %v8047, %v8045
      %v8617 = vpack.c.bf16 %v8048, %v8046
      %v8618 = vpack.c.bf16 %v8051, %v8049
      %v8619 = vpack.c.bf16 %v8052, %v8050
      %v8620 = vpack.c.bf16 %v8055, %v8053
      %v8621 = vpack.c.bf16 %v8056, %v8054
      %v8622 = vpack.c.bf16 %v8059, %v8057
      %v8623 = vpack.c.bf16 %v8060, %v8058
      %v8624 = vpack.c.bf16 %v8063, %v8061
      %v8625 = vpack.c.bf16 %v8064, %v8062
      %v8626 = vpack.c.bf16 %v8067, %v8065
      %v8627 = vpack.c.bf16 %v8068, %v8066
      %v8628 = vpack.c.bf16 %v8071, %v8069
      %v8629 = vpack.c.bf16 %v8072, %v8070
      %v8630 = vpack.c.bf16 %v8075, %v8073
      %v8631 = vpack.c.bf16 %v8076, %v8074
      %v8632 = vpack.c.bf16 %v8079, %v8077
      %v8633 = vpack.c.bf16 %v8080, %v8078
      %v8634 = vpack.c.bf16 %v8083, %v8081
      %v8635 = vpack.c.bf16 %v8084, %v8082
      %v8636 = vpack.c.bf16 %v8087, %v8085
      %v8637 = vpack.c.bf16 %v8088, %v8086
      %v8638 = vpack.c.bf16 %v8091, %v8089
      %v8639 = vpack.c.bf16 %v8092, %v8090
      %v8640 = vpack.c.bf16 %v8095, %v8093
      %v8641 = vpack.c.bf16 %v8096, %v8094
      %v8642 = vpack.c.bf16 %v8099, %v8097
      %v8643 = vpack.c.bf16 %v8100, %v8098
      %v8644 = vpack.c.bf16 %v8103, %v8101
      %v8645 = vpack.c.bf16 %v8104, %v8102
      %v8646 = vpack.c.bf16 %v8107, %v8105
      %v8647 = vpack.c.bf16 %v8108, %v8106
      %v8648 = vpack.c.bf16 %v8111, %v8109
      %v8649 = vpack.c.bf16 %v8112, %v8110
      %v8650 = vpack.c.bf16 %v8115, %v8113
      %v8651 = vpack.c.bf16 %v8116, %v8114
      %v8652 = vpack.c.bf16 %v8119, %v8117
      %v8653 = vpack.c.bf16 %v8120, %v8118
      %v8654 = vpack.c.bf16 %v8123, %v8121
      %v8655 = vpack.c.bf16 %v8124, %v8122
      %v8656 = vld [vmem:[%s45] sm:$0xff]
      %v8657 = vld [vmem:[%s45 + $0x8] sm:$0xff]
      %v8658 = vld [vmem:[%s45 + $0x10] sm:$0xff]
      %v8659 = vld [vmem:[%s45 + $0x18] sm:$0xff]
      %v8660 = vld [vmem:[%s45 + $0x20] sm:$0xff]
      %v8661 = vld [vmem:[%s45 + $0x28] sm:$0xff]
      %v8662 = vld [vmem:[%s45 + $0x30] sm:$0xff]
      %v8663 = vld [vmem:[%s45 + $0x38] sm:$0xff]
      %v8664 = vld [vmem:[%s45 + $0x40] sm:$0xff]
      %v8665 = vld [vmem:[%s45 + $0x48] sm:$0xff]
      %v8666 = vld [vmem:[%s45 + $0x50] sm:$0xff]
      %v8667 = vld [vmem:[%s45 + $0x58] sm:$0xff]
      %v8668 = vld [vmem:[%s45 + $0x60] sm:$0xff]
      %v8669 = vld [vmem:[%s45 + $0x68] sm:$0xff]
      %v8670 = vld [vmem:[%s45 + $0x70] sm:$0xff]
      %v8671 = vld [vmem:[%s45 + $0x78] sm:$0xff]
      %v8672 = vld [vmem:[%s45 + $0x80] sm:$0xff]
      %v8673 = vld [vmem:[%s45 + $0x88] sm:$0xff]
      %v8674 = vld [vmem:[%s45 + $0x90] sm:$0xff]
      %v8675 = vld [vmem:[%s45 + $0x98] sm:$0xff]
      %v8676 = vld [vmem:[%s45 + $0xa0] sm:$0xff]
      %v8677 = vld [vmem:[%s45 + $0xa8] sm:$0xff]
      %v8678 = vld [vmem:[%s45 + $0xb0] sm:$0xff]
      %v8679 = vld [vmem:[%s45 + $0xb8] sm:$0xff]
      %v8680 = vld [vmem:[%s45 + $0xc0] sm:$0xff]
      %v8681 = vld [vmem:[%s45 + $0xc8] sm:$0xff]
      %v8682 = vld [vmem:[%s45 + $0xd0] sm:$0xff]
      %v8683 = vld [vmem:[%s45 + $0xd8] sm:$0xff]
      %v8684 = vld [vmem:[%s45 + $0xe0] sm:$0xff]
      %v8685 = vld [vmem:[%s45 + $0xe8] sm:$0xff]
      %v8686 = vld [vmem:[%s45 + $0xf0] sm:$0xff]
      %v8687 = vld [vmem:[%s45 + $0xf8] sm:$0xff]
      %v8688 = vld [vmem:[%s47] sm:$0x3]
      %v8690 = vlaneseq
      %v8691 = vshrl.u32 %v8690, 7
      %v8692 = vsub.s32 0, %v8691
      %v8693 = vrot.slane %v8688, %v8692
      %v8694 = vlaneseq
      %v8695 = vshrl.u32 %v8694, 7
      %v8696 = vsub.s32 1, %v8695
      %v8697 = vrot.slane %v8688, %v8696
      %v8732 = vunpack.c.l.b16 %v8656
      %v8733 = vunpack.c.h.b16 %v8656
      %v8734 = vunpack.c.l.b16 %v8657
      %v8735 = vunpack.c.h.b16 %v8657
      %v8736 = vunpack.c.l.b16 %v8658
      %v8737 = vunpack.c.h.b16 %v8658
      %v8738 = vunpack.c.l.b16 %v8659
      %v8739 = vunpack.c.h.b16 %v8659
      %v8740 = vunpack.c.l.b16 %v8660
      %v8741 = vunpack.c.h.b16 %v8660
      %v8742 = vunpack.c.l.b16 %v8661
      %v8743 = vunpack.c.h.b16 %v8661
      %v8744 = vunpack.c.l.b16 %v8662
      %v8745 = vunpack.c.h.b16 %v8662
      %v8746 = vunpack.c.l.b16 %v8663
      %v8747 = vunpack.c.h.b16 %v8663
      %v8748 = vunpack.c.l.b16 %v8664
      %v8749 = vunpack.c.h.b16 %v8664
      %v8750 = vunpack.c.l.b16 %v8665
      %v8751 = vunpack.c.h.b16 %v8665
      %v8752 = vunpack.c.l.b16 %v8666
      %v8753 = vunpack.c.h.b16 %v8666
      %v8754 = vunpack.c.l.b16 %v8667
      %v8755 = vunpack.c.h.b16 %v8667
      %v8756 = vunpack.c.l.b16 %v8668
      %v8757 = vunpack.c.h.b16 %v8668
      %v8758 = vunpack.c.l.b16 %v8669
      %v8759 = vunpack.c.h.b16 %v8669
      %v8760 = vunpack.c.l.b16 %v8670
      %v8761 = vunpack.c.h.b16 %v8670
      %v8762 = vunpack.c.l.b16 %v8671
      %v8763 = vunpack.c.h.b16 %v8671
      %v8764 = vunpack.c.l.b16 %v8672
      %v8765 = vunpack.c.h.b16 %v8672
      %v8766 = vunpack.c.l.b16 %v8673
      %v8767 = vunpack.c.h.b16 %v8673
      %v8768 = vunpack.c.l.b16 %v8674
      %v8769 = vunpack.c.h.b16 %v8674
      %v8770 = vunpack.c.l.b16 %v8675
      %v8771 = vunpack.c.h.b16 %v8675
      %v8772 = vunpack.c.l.b16 %v8676
      %v8773 = vunpack.c.h.b16 %v8676
      %v8774 = vunpack.c.l.b16 %v8677
      %v8775 = vunpack.c.h.b16 %v8677
      %v8776 = vunpack.c.l.b16 %v8678
      %v8777 = vunpack.c.h.b16 %v8678
      %v8778 = vunpack.c.l.b16 %v8679
      %v8779 = vunpack.c.h.b16 %v8679
      %v8780 = vunpack.c.l.b16 %v8680
      %v8781 = vunpack.c.h.b16 %v8680
      %v8782 = vunpack.c.l.b16 %v8681
      %v8783 = vunpack.c.h.b16 %v8681
      %v8784 = vunpack.c.l.b16 %v8682
      %v8785 = vunpack.c.h.b16 %v8682
      %v8786 = vunpack.c.l.b16 %v8683
      %v8787 = vunpack.c.h.b16 %v8683
      %v8788 = vunpack.c.l.b16 %v8684
      %v8789 = vunpack.c.h.b16 %v8684
      %v8790 = vunpack.c.l.b16 %v8685
      %v8791 = vunpack.c.h.b16 %v8685
      %v8792 = vunpack.c.l.b16 %v8686
      %v8793 = vunpack.c.h.b16 %v8686
      %v8794 = vunpack.c.l.b16 %v8687
      %v8795 = vunpack.c.h.b16 %v8687
      %v8796 = vpack.c.b16 %v8734, %v8732
      %v8797 = vpack.c.b16 %v8735, %v8733
      %v8798 = vpack.c.b16 %v8738, %v8736
      %v8799 = vpack.c.b16 %v8739, %v8737
      %v8800 = vpack.c.b16 %v8742, %v8740
      %v8801 = vpack.c.b16 %v8743, %v8741
      %v8802 = vpack.c.b16 %v8746, %v8744
      %v8803 = vpack.c.b16 %v8747, %v8745
      %v8804 = vpack.c.b16 %v8750, %v8748
      %v8805 = vpack.c.b16 %v8751, %v8749
      %v8806 = vpack.c.b16 %v8754, %v8752
      %v8807 = vpack.c.b16 %v8755, %v8753
      %v8808 = vpack.c.b16 %v8758, %v8756
      %v8809 = vpack.c.b16 %v8759, %v8757
      %v8810 = vpack.c.b16 %v8762, %v8760
      %v8811 = vpack.c.b16 %v8763, %v8761
      %v8812 = vpack.c.b16 %v8766, %v8764
      %v8813 = vpack.c.b16 %v8767, %v8765
      %v8814 = vpack.c.b16 %v8770, %v8768
      %v8815 = vpack.c.b16 %v8771, %v8769
      %v8816 = vpack.c.b16 %v8774, %v8772
      %v8817 = vpack.c.b16 %v8775, %v8773
      %v8818 = vpack.c.b16 %v8778, %v8776
      %v8819 = vpack.c.b16 %v8779, %v8777
      %v8820 = vpack.c.b16 %v8782, %v8780
      %v8821 = vpack.c.b16 %v8783, %v8781
      %v8822 = vpack.c.b16 %v8786, %v8784
      %v8823 = vpack.c.b16 %v8787, %v8785
      %v8824 = vpack.c.b16 %v8790, %v8788
      %v8825 = vpack.c.b16 %v8791, %v8789
      %v8826 = vpack.c.b16 %v8794, %v8792
      %v8827 = vpack.c.b16 %v8795, %v8793
      %8860 = vmatprep.subr.bf16.mxu0 %v8811
      %8861 = vmatpush1.bf16.msra.mxu0 %v8810
      %8862 = vmatprep.subr.bf16.mxu0 %v8809
      %8863 = vmatpush1.bf16.msra.mxu0 %v8808
      %8864 = vmatprep.subr.bf16.mxu0 %v8807
      %8865 = vmatpush1.bf16.msra.mxu0 %v8806
      %8866 = vmatprep.subr.bf16.mxu0 %v8805
      %8867 = vmatpush1.bf16.msra.mxu0 %v8804
      %8868 = vmatprep.subr.bf16.mxu0 %v8803
      %8869 = vmatpush1.bf16.msra.mxu0 %v8802
      %8870 = vmatprep.subr.bf16.mxu0 %v8801
      %8871 = vmatpush1.bf16.msra.mxu0 %v8800
      %8872 = vmatprep.subr.bf16.mxu0 %v8799
      %8873 = vmatpush1.bf16.msra.mxu0 %v8798
      %8874 = vmatprep.subr.bf16.mxu0 %v8797
      %8875 = vmatpush1.bf16.msra.mxu0 %v8796
      %8876 = vmatprep.subr.bf16.mxu0 %v8827
      %8877 = vmatpush2.bf16.msra.mxu0 %v8826
      %8878 = vmatprep.subr.bf16.mxu0 %v8825
      %8879 = vmatpush2.bf16.msra.mxu0 %v8824
      %8880 = vmatprep.subr.bf16.mxu0 %v8823
      %8881 = vmatpush2.bf16.msra.mxu0 %v8822
      %8882 = vmatprep.subr.bf16.mxu0 %v8821
      %8883 = vmatpush2.bf16.msra.mxu0 %v8820
      %8884 = vmatprep.subr.bf16.mxu0 %v8819
      %8885 = vmatpush2.bf16.msra.mxu0 %v8818
      %8886 = vmatprep.subr.bf16.mxu0 %v8817
      %8887 = vmatpush2.bf16.msra.mxu0 %v8816
      %8888 = vmatprep.subr.bf16.mxu0 %v8815
      %8889 = vmatpush2.bf16.msra.mxu0 %v8814
      %8890 = vmatprep.subr.bf16.mxu0 %v8813
      %8891 = vmatpush2.bf16.msra.mxu0 %v8812
      %8892 = vmatprep.mubr.bf16.mxu0 %v8593
      %8893 = vmatmul.mubr.bf16.gmra.mxu0 %v8592
      %v8894 = vpop.f32.mrf.mxu0
      %v8895 = vadd.f32 %v8693, %v8894
      %v8896 = vpop.f32.mrf.mxu0
      %v8897 = vadd.f32 %v8697, %v8896
      %v8898 = vpop.f32.mrf.mxu0
      %v8899 = vadd.f32 %v8693, %v8898
      %v8900 = vpop.f32.mrf.mxu0
      %v8901 = vadd.f32 %v8697, %v8900
      %8902 = vmatprep.mubr.bf16.mxu0 %v8595
      %8903 = vmatmul.mubr.bf16.gmra.mxu0 %v8594
      %v8904 = vpop.f32.mrf.mxu0
      %v8905 = vadd.f32 %v8693, %v8904
      %v8906 = vpop.f32.mrf.mxu0
      %v8907 = vadd.f32 %v8697, %v8906
      %v8908 = vpop.f32.mrf.mxu0
      %v8909 = vadd.f32 %v8693, %v8908
      %v8910 = vpop.f32.mrf.mxu0
      %v8911 = vadd.f32 %v8697, %v8910
      %8912 = vmatprep.mubr.bf16.mxu0 %v8597
      %8913 = vmatmul.mubr.bf16.gmra.mxu0 %v8596
      %v8914 = vpop.f32.mrf.mxu0
      %v8915 = vadd.f32 %v8693, %v8914
      %v8916 = vpop.f32.mrf.mxu0
      %v8917 = vadd.f32 %v8697, %v8916
      %v8918 = vpop.f32.mrf.mxu0
      %v8919 = vadd.f32 %v8693, %v8918
      %v8920 = vpop.f32.mrf.mxu0
      %v8921 = vadd.f32 %v8697, %v8920
      %8922 = vmatprep.mubr.bf16.mxu0 %v8599
      %8923 = vmatmul.mubr.bf16.gmra.mxu0 %v8598
      %v8924 = vpop.f32.mrf.mxu0
      %v8925 = vadd.f32 %v8693, %v8924
      %v8926 = vpop.f32.mrf.mxu0
      %v8927 = vadd.f32 %v8697, %v8926
      %v8928 = vpop.f32.mrf.mxu0
      %v8929 = vadd.f32 %v8693, %v8928
      %v8930 = vpop.f32.mrf.mxu0
      %v8931 = vadd.f32 %v8697, %v8930
      %8932 = vmatprep.mubr.bf16.mxu0 %v8601
      %8933 = vmatmul.mubr.bf16.gmra.mxu0 %v8600
      %v8934 = vpop.f32.mrf.mxu0
      %v8935 = vadd.f32 %v8693, %v8934
      %v8936 = vpop.f32.mrf.mxu0
      %v8937 = vadd.f32 %v8697, %v8936
      %v8938 = vpop.f32.mrf.mxu0
      %v8939 = vadd.f32 %v8693, %v8938
      %v8940 = vpop.f32.mrf.mxu0
      %v8941 = vadd.f32 %v8697, %v8940
      %8942 = vmatprep.mubr.bf16.mxu0 %v8603
      %8943 = vmatmul.mubr.bf16.gmra.mxu0 %v8602
      %v8944 = vpop.f32.mrf.mxu0
      %v8945 = vadd.f32 %v8693, %v8944
      %v8946 = vpop.f32.mrf.mxu0
      %v8947 = vadd.f32 %v8697, %v8946
      %v8948 = vpop.f32.mrf.mxu0
      %v8949 = vadd.f32 %v8693, %v8948
      %v8950 = vpop.f32.mrf.mxu0
      %v8951 = vadd.f32 %v8697, %v8950
      %8952 = vmatprep.mubr.bf16.mxu0 %v8605
      %8953 = vmatmul.mubr.bf16.gmra.mxu0 %v8604
      %v8954 = vpop.f32.mrf.mxu0
      %v8955 = vadd.f32 %v8693, %v8954
      %v8956 = vpop.f32.mrf.mxu0
      %v8957 = vadd.f32 %v8697, %v8956
      %v8958 = vpop.f32.mrf.mxu0
      %v8959 = vadd.f32 %v8693, %v8958
      %v8960 = vpop.f32.mrf.mxu0
      %v8961 = vadd.f32 %v8697, %v8960
      %8962 = vmatprep.mubr.bf16.mxu0 %v8607
      %8963 = vmatmul.mubr.bf16.gmra.mxu0 %v8606
      %v8964 = vpop.f32.mrf.mxu0
      %v8965 = vadd.f32 %v8693, %v8964
      %v8966 = vpop.f32.mrf.mxu0
      %v8967 = vadd.f32 %v8697, %v8966
      %v8968 = vpop.f32.mrf.mxu0
      %v8969 = vadd.f32 %v8693, %v8968
      %v8970 = vpop.f32.mrf.mxu0
      %v8971 = vadd.f32 %v8697, %v8970
      %8972 = vmatprep.mubr.bf16.mxu0 %v8609
      %8973 = vmatmul.mubr.bf16.gmra.mxu0 %v8608
      %v8974 = vpop.f32.mrf.mxu0
      %v8975 = vadd.f32 %v8693, %v8974
      %v8976 = vpop.f32.mrf.mxu0
      %v8977 = vadd.f32 %v8697, %v8976
      %v8978 = vpop.f32.mrf.mxu0
      %v8979 = vadd.f32 %v8693, %v8978
      %v8980 = vpop.f32.mrf.mxu0
      %v8981 = vadd.f32 %v8697, %v8980
      %8982 = vmatprep.mubr.bf16.mxu0 %v8611
      %8983 = vmatmul.mubr.bf16.gmra.mxu0 %v8610
      %v8984 = vpop.f32.mrf.mxu0
      %v8985 = vadd.f32 %v8693, %v8984
      %v8986 = vpop.f32.mrf.mxu0
      %v8987 = vadd.f32 %v8697, %v8986
      %v8988 = vpop.f32.mrf.mxu0
      %v8989 = vadd.f32 %v8693, %v8988
      %v8990 = vpop.f32.mrf.mxu0
      %v8991 = vadd.f32 %v8697, %v8990
      %8992 = vmatprep.mubr.bf16.mxu0 %v8613
      %8993 = vmatmul.mubr.bf16.gmra.mxu0 %v8612
      %v8994 = vpop.f32.mrf.mxu0
      %v8995 = vadd.f32 %v8693, %v8994
      %v8996 = vpop.f32.mrf.mxu0
      %v8997 = vadd.f32 %v8697, %v8996
      %v8998 = vpop.f32.mrf.mxu0
      %v8999 = vadd.f32 %v8693, %v8998
      %v9000 = vpop.f32.mrf.mxu0
      %v9001 = vadd.f32 %v8697, %v9000
      %9002 = vmatprep.mubr.bf16.mxu0 %v8615
      %9003 = vmatmul.mubr.bf16.gmra.mxu0 %v8614
      %v9004 = vpop.f32.mrf.mxu0
      %v9005 = vadd.f32 %v8693, %v9004
      %v9006 = vpop.f32.mrf.mxu0
      %v9007 = vadd.f32 %v8697, %v9006
      %v9008 = vpop.f32.mrf.mxu0
      %v9009 = vadd.f32 %v8693, %v9008
      %v9010 = vpop.f32.mrf.mxu0
      %v9011 = vadd.f32 %v8697, %v9010
      %9012 = vmatprep.mubr.bf16.mxu0 %v8617
      %9013 = vmatmul.mubr.bf16.gmra.mxu0 %v8616
      %v9014 = vpop.f32.mrf.mxu0
      %v9015 = vadd.f32 %v8693, %v9014
      %v9016 = vpop.f32.mrf.mxu0
      %v9017 = vadd.f32 %v8697, %v9016
      %v9018 = vpop.f32.mrf.mxu0
      %v9019 = vadd.f32 %v8693, %v9018
      %v9020 = vpop.f32.mrf.mxu0
      %v9021 = vadd.f32 %v8697, %v9020
      %9022 = vmatprep.mubr.bf16.mxu0 %v8619
      %9023 = vmatmul.mubr.bf16.gmra.mxu0 %v8618
      %v9024 = vpop.f32.mrf.mxu0
      %v9025 = vadd.f32 %v8693, %v9024
      %v9026 = vpop.f32.mrf.mxu0
      %v9027 = vadd.f32 %v8697, %v9026
      %v9028 = vpop.f32.mrf.mxu0
      %v9029 = vadd.f32 %v8693, %v9028
      %v9030 = vpop.f32.mrf.mxu0
      %v9031 = vadd.f32 %v8697, %v9030
      %9032 = vmatprep.mubr.bf16.mxu0 %v8621
      %9033 = vmatmul.mubr.bf16.gmra.mxu0 %v8620
      %v9034 = vpop.f32.mrf.mxu0
      %v9035 = vadd.f32 %v8693, %v9034
      %v9036 = vpop.f32.mrf.mxu0
      %v9037 = vadd.f32 %v8697, %v9036
      %v9038 = vpop.f32.mrf.mxu0
      %v9039 = vadd.f32 %v8693, %v9038
      %v9040 = vpop.f32.mrf.mxu0
      %v9041 = vadd.f32 %v8697, %v9040
      %9042 = vmatprep.mubr.bf16.mxu0 %v8623
      %9043 = vmatmul.mubr.bf16.gmra.mxu0 %v8622
      %v9044 = vpop.f32.mrf.mxu0
      %v9045 = vadd.f32 %v8693, %v9044
      %v9046 = vpop.f32.mrf.mxu0
      %v9047 = vadd.f32 %v8697, %v9046
      %v9048 = vpop.f32.mrf.mxu0
      %v9049 = vadd.f32 %v8693, %v9048
      %v9050 = vpop.f32.mrf.mxu0
      %v9051 = vadd.f32 %v8697, %v9050
      %9052 = vmatprep.mubr.bf16.mxu0 %v8625
      %9053 = vmatmul.mubr.bf16.gmra.mxu0 %v8624
      %v9054 = vpop.f32.mrf.mxu0
      %v9055 = vadd.f32 %v8693, %v9054
      %v9056 = vpop.f32.mrf.mxu0
      %v9057 = vadd.f32 %v8697, %v9056
      %v9058 = vpop.f32.mrf.mxu0
      %v9059 = vadd.f32 %v8693, %v9058
      %v9060 = vpop.f32.mrf.mxu0
      %v9061 = vadd.f32 %v8697, %v9060
      %9062 = vmatprep.mubr.bf16.mxu0 %v8627
      %9063 = vmatmul.mubr.bf16.gmra.mxu0 %v8626
      %v9064 = vpop.f32.mrf.mxu0
      %v9065 = vadd.f32 %v8693, %v9064
      %v9066 = vpop.f32.mrf.mxu0
      %v9067 = vadd.f32 %v8697, %v9066
      %v9068 = vpop.f32.mrf.mxu0
      %v9069 = vadd.f32 %v8693, %v9068
      %v9070 = vpop.f32.mrf.mxu0
      %v9071 = vadd.f32 %v8697, %v9070
      %9072 = vmatprep.mubr.bf16.mxu0 %v8629
      %9073 = vmatmul.mubr.bf16.gmra.mxu0 %v8628
      %v9074 = vpop.f32.mrf.mxu0
      %v9075 = vadd.f32 %v8693, %v9074
      %v9076 = vpop.f32.mrf.mxu0
      %v9077 = vadd.f32 %v8697, %v9076
      %v9078 = vpop.f32.mrf.mxu0
      %v9079 = vadd.f32 %v8693, %v9078
      %v9080 = vpop.f32.mrf.mxu0
      %v9081 = vadd.f32 %v8697, %v9080
      %9082 = vmatprep.mubr.bf16.mxu0 %v8631
      %9083 = vmatmul.mubr.bf16.gmra.mxu0 %v8630
      %v9084 = vpop.f32.mrf.mxu0
      %v9085 = vadd.f32 %v8693, %v9084
      %v9086 = vpop.f32.mrf.mxu0
      %v9087 = vadd.f32 %v8697, %v9086
      %v9088 = vpop.f32.mrf.mxu0
      %v9089 = vadd.f32 %v8693, %v9088
      %v9090 = vpop.f32.mrf.mxu0
      %v9091 = vadd.f32 %v8697, %v9090
      %9092 = vmatprep.mubr.bf16.mxu0 %v8633
      %9093 = vmatmul.mubr.bf16.gmra.mxu0 %v8632
      %v9094 = vpop.f32.mrf.mxu0
      %v9095 = vadd.f32 %v8693, %v9094
      %v9096 = vpop.f32.mrf.mxu0
      %v9097 = vadd.f32 %v8697, %v9096
      %v9098 = vpop.f32.mrf.mxu0
      %v9099 = vadd.f32 %v8693, %v9098
      %v9100 = vpop.f32.mrf.mxu0
      %v9101 = vadd.f32 %v8697, %v9100
      %9102 = vmatprep.mubr.bf16.mxu0 %v8635
      %9103 = vmatmul.mubr.bf16.gmra.mxu0 %v8634
      %v9104 = vpop.f32.mrf.mxu0
      %v9105 = vadd.f32 %v8693, %v9104
      %v9106 = vpop.f32.mrf.mxu0
      %v9107 = vadd.f32 %v8697, %v9106
      %v9108 = vpop.f32.mrf.mxu0
      %v9109 = vadd.f32 %v8693, %v9108
      %v9110 = vpop.f32.mrf.mxu0
      %v9111 = vadd.f32 %v8697, %v9110
      %9112 = vmatprep.mubr.bf16.mxu0 %v8637
      %9113 = vmatmul.mubr.bf16.gmra.mxu0 %v8636
      %v9114 = vpop.f32.mrf.mxu0
      %v9115 = vadd.f32 %v8693, %v9114
      %v9116 = vpop.f32.mrf.mxu0
      %v9117 = vadd.f32 %v8697, %v9116
      %v9118 = vpop.f32.mrf.mxu0
      %v9119 = vadd.f32 %v8693, %v9118
      %v9120 = vpop.f32.mrf.mxu0
      %v9121 = vadd.f32 %v8697, %v9120
      %9122 = vmatprep.mubr.bf16.mxu0 %v8639
      %9123 = vmatmul.mubr.bf16.gmra.mxu0 %v8638
      %v9124 = vpop.f32.mrf.mxu0
      %v9125 = vadd.f32 %v8693, %v9124
      %v9126 = vpop.f32.mrf.mxu0
      %v9127 = vadd.f32 %v8697, %v9126
      %v9128 = vpop.f32.mrf.mxu0
      %v9129 = vadd.f32 %v8693, %v9128
      %v9130 = vpop.f32.mrf.mxu0
      %v9131 = vadd.f32 %v8697, %v9130
      %9132 = vmatprep.mubr.bf16.mxu0 %v8641
      %9133 = vmatmul.mubr.bf16.gmra.mxu0 %v8640
      %v9134 = vpop.f32.mrf.mxu0
      %v9135 = vadd.f32 %v8693, %v9134
      %v9136 = vpop.f32.mrf.mxu0
      %v9137 = vadd.f32 %v8697, %v9136
      %v9138 = vpop.f32.mrf.mxu0
      %v9139 = vadd.f32 %v8693, %v9138
      %v9140 = vpop.f32.mrf.mxu0
      %v9141 = vadd.f32 %v8697, %v9140
      %9142 = vmatprep.mubr.bf16.mxu0 %v8643
      %9143 = vmatmul.mubr.bf16.gmra.mxu0 %v8642
      %v9144 = vpop.f32.mrf.mxu0
      %v9145 = vadd.f32 %v8693, %v9144
      %v9146 = vpop.f32.mrf.mxu0
      %v9147 = vadd.f32 %v8697, %v9146
      %v9148 = vpop.f32.mrf.mxu0
      %v9149 = vadd.f32 %v8693, %v9148
      %v9150 = vpop.f32.mrf.mxu0
      %v9151 = vadd.f32 %v8697, %v9150
      %9152 = vmatprep.mubr.bf16.mxu0 %v8645
      %9153 = vmatmul.mubr.bf16.gmra.mxu0 %v8644
      %v9154 = vpop.f32.mrf.mxu0
      %v9155 = vadd.f32 %v8693, %v9154
      %v9156 = vpop.f32.mrf.mxu0
      %v9157 = vadd.f32 %v8697, %v9156
      %v9158 = vpop.f32.mrf.mxu0
      %v9159 = vadd.f32 %v8693, %v9158
      %v9160 = vpop.f32.mrf.mxu0
      %v9161 = vadd.f32 %v8697, %v9160
      %9162 = vmatprep.mubr.bf16.mxu0 %v8647
      %9163 = vmatmul.mubr.bf16.gmra.mxu0 %v8646
      %v9164 = vpop.f32.mrf.mxu0
      %v9165 = vadd.f32 %v8693, %v9164
      %v9166 = vpop.f32.mrf.mxu0
      %v9167 = vadd.f32 %v8697, %v9166
      %v9168 = vpop.f32.mrf.mxu0
      %v9169 = vadd.f32 %v8693, %v9168
      %v9170 = vpop.f32.mrf.mxu0
      %v9171 = vadd.f32 %v8697, %v9170
      %9172 = vmatprep.mubr.bf16.mxu0 %v8649
      %9173 = vmatmul.mubr.bf16.gmra.mxu0 %v8648
      %v9174 = vpop.f32.mrf.mxu0
      %v9175 = vadd.f32 %v8693, %v9174
      %v9176 = vpop.f32.mrf.mxu0
      %v9177 = vadd.f32 %v8697, %v9176
      %v9178 = vpop.f32.mrf.mxu0
      %v9179 = vadd.f32 %v8693, %v9178
      %v9180 = vpop.f32.mrf.mxu0
      %v9181 = vadd.f32 %v8697, %v9180
      %9182 = vmatprep.mubr.bf16.mxu0 %v8651
      %9183 = vmatmul.mubr.bf16.gmra.mxu0 %v8650
      %v9184 = vpop.f32.mrf.mxu0
      %v9185 = vadd.f32 %v8693, %v9184
      %v9186 = vpop.f32.mrf.mxu0
      %v9187 = vadd.f32 %v8697, %v9186
      %v9188 = vpop.f32.mrf.mxu0
      %v9189 = vadd.f32 %v8693, %v9188
      %v9190 = vpop.f32.mrf.mxu0
      %v9191 = vadd.f32 %v8697, %v9190
      %9192 = vmatprep.mubr.bf16.mxu0 %v8653
      %9193 = vmatmul.mubr.bf16.gmra.mxu0 %v8652
      %v9194 = vpop.f32.mrf.mxu0
      %v9195 = vadd.f32 %v8693, %v9194
      %v9196 = vpop.f32.mrf.mxu0
      %v9197 = vadd.f32 %v8697, %v9196
      %v9198 = vpop.f32.mrf.mxu0
      %v9199 = vadd.f32 %v8693, %v9198
      %v9200 = vpop.f32.mrf.mxu0
      %v9201 = vadd.f32 %v8697, %v9200
      %9202 = vmatprep.mubr.bf16.mxu0 %v8655
      %9203 = vmatmul.mubr.bf16.gmra.mxu0 %v8654
      %v9204 = vpop.f32.mrf.mxu0
      %v9205 = vadd.f32 %v8693, %v9204
      %v9206 = vpop.f32.mrf.mxu0
      %v9207 = vadd.f32 %v8697, %v9206
      %v9208 = vpop.f32.mrf.mxu0
      %v9209 = vadd.f32 %v8693, %v9208
      %v9210 = vpop.f32.mrf.mxu0
      %v9211 = vadd.f32 %v8697, %v9210
      %9212 = vdwg.mxu0
      %v9213 = vmax.f32 %v8895, 0.0
      %v9214 = vmax.f32 %v8897, 0.0
      %v9215 = vmax.f32 %v8899, 0.0
      %v9216 = vmax.f32 %v8901, 0.0
      %v9217 = vmax.f32 %v8905, 0.0
      %v9218 = vmax.f32 %v8907, 0.0
      %v9219 = vmax.f32 %v8909, 0.0
      %v9220 = vmax.f32 %v8911, 0.0
      %v9221 = vmax.f32 %v8915, 0.0
      %v9222 = vmax.f32 %v8917, 0.0
      %v9223 = vmax.f32 %v8919, 0.0
      %v9224 = vmax.f32 %v8921, 0.0
      %v9225 = vmax.f32 %v8925, 0.0
      %v9226 = vmax.f32 %v8927, 0.0
      %v9227 = vmax.f32 %v8929, 0.0
      %v9228 = vmax.f32 %v8931, 0.0
      %v9229 = vmax.f32 %v8935, 0.0
      %v9230 = vmax.f32 %v8937, 0.0
      %v9231 = vmax.f32 %v8939, 0.0
      %v9232 = vmax.f32 %v8941, 0.0
      %v9233 = vmax.f32 %v8945, 0.0
      %v9234 = vmax.f32 %v8947, 0.0
      %v9235 = vmax.f32 %v8949, 0.0
      %v9236 = vmax.f32 %v8951, 0.0
      %v9237 = vmax.f32 %v8955, 0.0
      %v9238 = vmax.f32 %v8957, 0.0
      %v9239 = vmax.f32 %v8959, 0.0
      %v9240 = vmax.f32 %v8961, 0.0
      %v9241 = vmax.f32 %v8965, 0.0
      %v9242 = vmax.f32 %v8967, 0.0
      %v9243 = vmax.f32 %v8969, 0.0
      %v9244 = vmax.f32 %v8971, 0.0
      %v9245 = vmax.f32 %v8975, 0.0
      %v9246 = vmax.f32 %v8977, 0.0
      %v9247 = vmax.f32 %v8979, 0.0
      %v9248 = vmax.f32 %v8981, 0.0
      %v9249 = vmax.f32 %v8985, 0.0
      %v9250 = vmax.f32 %v8987, 0.0
      %v9251 = vmax.f32 %v8989, 0.0
      %v9252 = vmax.f32 %v8991, 0.0
      %v9253 = vmax.f32 %v8995, 0.0
      %v9254 = vmax.f32 %v8997, 0.0
      %v9255 = vmax.f32 %v8999, 0.0
      %v9256 = vmax.f32 %v9001, 0.0
      %v9257 = vmax.f32 %v9005, 0.0
      %v9258 = vmax.f32 %v9007, 0.0
      %v9259 = vmax.f32 %v9009, 0.0
      %v9260 = vmax.f32 %v9011, 0.0
      %v9261 = vmax.f32 %v9015, 0.0
      %v9262 = vmax.f32 %v9017, 0.0
      %v9263 = vmax.f32 %v9019, 0.0
      %v9264 = vmax.f32 %v9021, 0.0
      %v9265 = vmax.f32 %v9025, 0.0
      %v9266 = vmax.f32 %v9027, 0.0
      %v9267 = vmax.f32 %v9029, 0.0
      %v9268 = vmax.f32 %v9031, 0.0
      %v9269 = vmax.f32 %v9035, 0.0
      %v9270 = vmax.f32 %v9037, 0.0
      %v9271 = vmax.f32 %v9039, 0.0
      %v9272 = vmax.f32 %v9041, 0.0
      %v9273 = vmax.f32 %v9045, 0.0
      %v9274 = vmax.f32 %v9047, 0.0
      %v9275 = vmax.f32 %v9049, 0.0
      %v9276 = vmax.f32 %v9051, 0.0
      %v9277 = vmax.f32 %v9055, 0.0
      %v9278 = vmax.f32 %v9057, 0.0
      %v9279 = vmax.f32 %v9059, 0.0
      %v9280 = vmax.f32 %v9061, 0.0
      %v9281 = vmax.f32 %v9065, 0.0
      %v9282 = vmax.f32 %v9067, 0.0
      %v9283 = vmax.f32 %v9069, 0.0
      %v9284 = vmax.f32 %v9071, 0.0
      %v9285 = vmax.f32 %v9075, 0.0
      %v9286 = vmax.f32 %v9077, 0.0
      %v9287 = vmax.f32 %v9079, 0.0
      %v9288 = vmax.f32 %v9081, 0.0
      %v9289 = vmax.f32 %v9085, 0.0
      %v9290 = vmax.f32 %v9087, 0.0
      %v9291 = vmax.f32 %v9089, 0.0
      %v9292 = vmax.f32 %v9091, 0.0
      %v9293 = vmax.f32 %v9095, 0.0
      %v9294 = vmax.f32 %v9097, 0.0
      %v9295 = vmax.f32 %v9099, 0.0
      %v9296 = vmax.f32 %v9101, 0.0
      %v9297 = vmax.f32 %v9105, 0.0
      %v9298 = vmax.f32 %v9107, 0.0
      %v9299 = vmax.f32 %v9109, 0.0
      %v9300 = vmax.f32 %v9111, 0.0
      %v9301 = vmax.f32 %v9115, 0.0
      %v9302 = vmax.f32 %v9117, 0.0
      %v9303 = vmax.f32 %v9119, 0.0
      %v9304 = vmax.f32 %v9121, 0.0
      %v9305 = vmax.f32 %v9125, 0.0
      %v9306 = vmax.f32 %v9127, 0.0
      %v9307 = vmax.f32 %v9129, 0.0
      %v9308 = vmax.f32 %v9131, 0.0
      %v9309 = vmax.f32 %v9135, 0.0
      %v9310 = vmax.f32 %v9137, 0.0
      %v9311 = vmax.f32 %v9139, 0.0
      %v9312 = vmax.f32 %v9141, 0.0
      %v9313 = vmax.f32 %v9145, 0.0
      %v9314 = vmax.f32 %v9147, 0.0
      %v9315 = vmax.f32 %v9149, 0.0
      %v9316 = vmax.f32 %v9151, 0.0
      %v9317 = vmax.f32 %v9155, 0.0
      %v9318 = vmax.f32 %v9157, 0.0
      %v9319 = vmax.f32 %v9159, 0.0
      %v9320 = vmax.f32 %v9161, 0.0
      %v9321 = vmax.f32 %v9165, 0.0
      %v9322 = vmax.f32 %v9167, 0.0
      %v9323 = vmax.f32 %v9169, 0.0
      %v9324 = vmax.f32 %v9171, 0.0
      %v9325 = vmax.f32 %v9175, 0.0
      %v9326 = vmax.f32 %v9177, 0.0
      %v9327 = vmax.f32 %v9179, 0.0
      %v9328 = vmax.f32 %v9181, 0.0
      %v9329 = vmax.f32 %v9185, 0.0
      %v9330 = vmax.f32 %v9187, 0.0
      %v9331 = vmax.f32 %v9189, 0.0
      %v9332 = vmax.f32 %v9191, 0.0
      %v9333 = vmax.f32 %v9195, 0.0
      %v9334 = vmax.f32 %v9197, 0.0
      %v9335 = vmax.f32 %v9199, 0.0
      %v9336 = vmax.f32 %v9201, 0.0
      %v9337 = vmax.f32 %v9205, 0.0
      %v9338 = vmax.f32 %v9207, 0.0
      %v9339 = vmax.f32 %v9209, 0.0
      %v9340 = vmax.f32 %v9211, 0.0
      %v9341 = vld [vmem:[%s49] sm:$0xff]
      %v9342 = vld [vmem:[%s49 + $0x8] sm:$0xff]
      %v9343 = vld [vmem:[%s49 + $0x10] sm:$0xff]
      %v9344 = vld [vmem:[%s49 + $0x18] sm:$0xff]
      %v9345 = vpack.c.bf16 %v9215, %v9213
      %v9346 = vpack.c.bf16 %v9216, %v9214
      %v9347 = vpack.c.bf16 %v9219, %v9217
      %v9348 = vpack.c.bf16 %v9220, %v9218
      %v9349 = vpack.c.bf16 %v9223, %v9221
      %v9350 = vpack.c.bf16 %v9224, %v9222
      %v9351 = vpack.c.bf16 %v9227, %v9225
      %v9352 = vpack.c.bf16 %v9228, %v9226
      %v9353 = vpack.c.bf16 %v9231, %v9229
      %v9354 = vpack.c.bf16 %v9232, %v9230
      %v9355 = vpack.c.bf16 %v9235, %v9233
      %v9356 = vpack.c.bf16 %v9236, %v9234
      %v9357 = vpack.c.bf16 %v9239, %v9237
      %v9358 = vpack.c.bf16 %v9240, %v9238
      %v9359 = vpack.c.bf16 %v9243, %v9241
      %v9360 = vpack.c.bf16 %v9244, %v9242
      %v9361 = vpack.c.bf16 %v9247, %v9245
      %v9362 = vpack.c.bf16 %v9248, %v9246
      %v9363 = vpack.c.bf16 %v9251, %v9249
      %v9364 = vpack.c.bf16 %v9252, %v9250
      %v9365 = vpack.c.bf16 %v9255, %v9253
      %v9366 = vpack.c.bf16 %v9256, %v9254
      %v9367 = vpack.c.bf16 %v9259, %v9257
      %v9368 = vpack.c.bf16 %v9260, %v9258
      %v9369 = vpack.c.bf16 %v9263, %v9261
      %v9370 = vpack.c.bf16 %v9264, %v9262
      %v9371 = vpack.c.bf16 %v9267, %v9265
      %v9372 = vpack.c.bf16 %v9268, %v9266
      %v9373 = vpack.c.bf16 %v9271, %v9269
      %v9374 = vpack.c.bf16 %v9272, %v9270
      %v9375 = vpack.c.bf16 %v9275, %v9273
      %v9376 = vpack.c.bf16 %v9276, %v9274
      %v9377 = vpack.c.bf16 %v9279, %v9277
      %v9378 = vpack.c.bf16 %v9280, %v9278
      %v9379 = vpack.c.bf16 %v9283, %v9281
      %v9380 = vpack.c.bf16 %v9284, %v9282
      %v9381 = vpack.c.bf16 %v9287, %v9285
      %v9382 = vpack.c.bf16 %v9288, %v9286
      %v9383 = vpack.c.bf16 %v9291, %v9289
      %v9384 = vpack.c.bf16 %v9292, %v9290
      %v9385 = vpack.c.bf16 %v9295, %v9293
      %v9386 = vpack.c.bf16 %v9296, %v9294
      %v9387 = vpack.c.bf16 %v9299, %v9297
      %v9388 = vpack.c.bf16 %v9300, %v9298
      %v9389 = vpack.c.bf16 %v9303, %v9301
      %v9390 = vpack.c.bf16 %v9304, %v9302
      %v9391 = vpack.c.bf16 %v9307, %v9305
      %v9392 = vpack.c.bf16 %v9308, %v9306
      %v9393 = vpack.c.bf16 %v9311, %v9309
      %v9394 = vpack.c.bf16 %v9312, %v9310
      %v9395 = vpack.c.bf16 %v9315, %v9313
      %v9396 = vpack.c.bf16 %v9316, %v9314
      %v9397 = vpack.c.bf16 %v9319, %v9317
      %v9398 = vpack.c.bf16 %v9320, %v9318
      %v9399 = vpack.c.bf16 %v9323, %v9321
      %v9400 = vpack.c.bf16 %v9324, %v9322
      %v9401 = vpack.c.bf16 %v9327, %v9325
      %v9402 = vpack.c.bf16 %v9328, %v9326
      %v9403 = vpack.c.bf16 %v9331, %v9329
      %v9404 = vpack.c.bf16 %v9332, %v9330
      %v9405 = vpack.c.bf16 %v9335, %v9333
      %v9406 = vpack.c.bf16 %v9336, %v9334
      %v9407 = vpack.c.bf16 %v9339, %v9337
      %v9408 = vpack.c.bf16 %v9340, %v9338
      %v9409 = vld [vmem:[%s51] sm:$0xff]
      %v9410 = vld [vmem:[%s51 + $0x8] sm:$0xff]
      %v9411 = vld [vmem:[%s51 + $0x10] sm:$0xff]
      %v9412 = vld [vmem:[%s51 + $0x18] sm:$0xff]
      %v9413 = vld [vmem:[%s51 + $0x20] sm:$0xff]
      %v9414 = vld [vmem:[%s51 + $0x28] sm:$0xff]
      %v9415 = vld [vmem:[%s51 + $0x30] sm:$0xff]
      %v9416 = vld [vmem:[%s51 + $0x38] sm:$0xff]
      %v9417 = vld [vmem:[%s51 + $0x40] sm:$0xff]
      %v9418 = vld [vmem:[%s51 + $0x48] sm:$0xff]
      %v9419 = vld [vmem:[%s51 + $0x50] sm:$0xff]
      %v9420 = vld [vmem:[%s51 + $0x58] sm:$0xff]
      %v9421 = vld [vmem:[%s51 + $0x60] sm:$0xff]
      %v9422 = vld [vmem:[%s51 + $0x68] sm:$0xff]
      %v9423 = vld [vmem:[%s51 + $0x70] sm:$0xff]
      %v9424 = vld [vmem:[%s51 + $0x78] sm:$0xff]
      %v9425 = vld [vmem:[%s51 + $0x80] sm:$0xff]
      %v9426 = vld [vmem:[%s51 + $0x88] sm:$0xff]
      %v9427 = vld [vmem:[%s51 + $0x90] sm:$0xff]
      %v9428 = vld [vmem:[%s51 + $0x98] sm:$0xff]
      %v9429 = vld [vmem:[%s51 + $0xa0] sm:$0xff]
      %v9430 = vld [vmem:[%s51 + $0xa8] sm:$0xff]
      %v9431 = vld [vmem:[%s51 + $0xb0] sm:$0xff]
      %v9432 = vld [vmem:[%s51 + $0xb8] sm:$0xff]
      %v9433 = vld [vmem:[%s51 + $0xc0] sm:$0xff]
      %v9434 = vld [vmem:[%s51 + $0xc8] sm:$0xff]
      %v9435 = vld [vmem:[%s51 + $0xd0] sm:$0xff]
      %v9436 = vld [vmem:[%s51 + $0xd8] sm:$0xff]
      %v9437 = vld [vmem:[%s51 + $0xe0] sm:$0xff]
      %v9438 = vld [vmem:[%s51 + $0xe8] sm:$0xff]
      %v9439 = vld [vmem:[%s51 + $0xf0] sm:$0xff]
      %v9440 = vld [vmem:[%s51 + $0xf8] sm:$0xff]
      %v9473 = vunpack.c.l.b16 %v9409
      %v9474 = vunpack.c.h.b16 %v9409
      %v9475 = vunpack.c.l.b16 %v9410
      %v9476 = vunpack.c.h.b16 %v9410
      %v9477 = vunpack.c.l.b16 %v9411
      %v9478 = vunpack.c.h.b16 %v9411
      %v9479 = vunpack.c.l.b16 %v9412
      %v9480 = vunpack.c.h.b16 %v9412
      %v9481 = vunpack.c.l.b16 %v9413
      %v9482 = vunpack.c.h.b16 %v9413
      %v9483 = vunpack.c.l.b16 %v9414
      %v9484 = vunpack.c.h.b16 %v9414
      %v9485 = vunpack.c.l.b16 %v9415
      %v9486 = vunpack.c.h.b16 %v9415
      %v9487 = vunpack.c.l.b16 %v9416
      %v9488 = vunpack.c.h.b16 %v9416
      %v9489 = vunpack.c.l.b16 %v9417
      %v9490 = vunpack.c.h.b16 %v9417
      %v9491 = vunpack.c.l.b16 %v9418
      %v9492 = vunpack.c.h.b16 %v9418
      %v9493 = vunpack.c.l.b16 %v9419
      %v9494 = vunpack.c.h.b16 %v9419
      %v9495 = vunpack.c.l.b16 %v9420
      %v9496 = vunpack.c.h.b16 %v9420
      %v9497 = vunpack.c.l.b16 %v9421
      %v9498 = vunpack.c.h.b16 %v9421
      %v9499 = vunpack.c.l.b16 %v9422
      %v9500 = vunpack.c.h.b16 %v9422
      %v9501 = vunpack.c.l.b16 %v9423
      %v9502 = vunpack.c.h.b16 %v9423
      %v9503 = vunpack.c.l.b16 %v9424
      %v9504 = vunpack.c.h.b16 %v9424
      %v9505 = vunpack.c.l.b16 %v9425
      %v9506 = vunpack.c.h.b16 %v9425
      %v9507 = vunpack.c.l.b16 %v9426
      %v9508 = vunpack.c.h.b16 %v9426
      %v9509 = vunpack.c.l.b16 %v9427
      %v9510 = vunpack.c.h.b16 %v9427
      %v9511 = vunpack.c.l.b16 %v9428
      %v9512 = vunpack.c.h.b16 %v9428
      %v9513 = vunpack.c.l.b16 %v9429
      %v9514 = vunpack.c.h.b16 %v9429
      %v9515 = vunpack.c.l.b16 %v9430
      %v9516 = vunpack.c.h.b16 %v9430
      %v9517 = vunpack.c.l.b16 %v9431
      %v9518 = vunpack.c.h.b16 %v9431
      %v9519 = vunpack.c.l.b16 %v9432
      %v9520 = vunpack.c.h.b16 %v9432
      %v9521 = vunpack.c.l.b16 %v9433
      %v9522 = vunpack.c.h.b16 %v9433
      %v9523 = vunpack.c.l.b16 %v9434
      %v9524 = vunpack.c.h.b16 %v9434
      %v9525 = vunpack.c.l.b16 %v9435
      %v9526 = vunpack.c.h.b16 %v9435
      %v9527 = vunpack.c.l.b16 %v9436
      %v9528 = vunpack.c.h.b16 %v9436
      %v9529 = vunpack.c.l.b16 %v9437
      %v9530 = vunpack.c.h.b16 %v9437
      %v9531 = vunpack.c.l.b16 %v9438
      %v9532 = vunpack.c.h.b16 %v9438
      %v9533 = vunpack.c.l.b16 %v9439
      %v9534 = vunpack.c.h.b16 %v9439
      %v9535 = vunpack.c.l.b16 %v9440
      %v9536 = vunpack.c.h.b16 %v9440
      %v9537 = vpack.c.b16 %v9475, %v9473
      %v9538 = vpack.c.b16 %v9476, %v9474
      %v9539 = vpack.c.b16 %v9479, %v9477
      %v9540 = vpack.c.b16 %v9480, %v9478
      %v9541 = vpack.c.b16 %v9483, %v9481
      %v9542 = vpack.c.b16 %v9484, %v9482
      %v9543 = vpack.c.b16 %v9487, %v9485
      %v9544 = vpack.c.b16 %v9488, %v9486
      %v9545 = vpack.c.b16 %v9491, %v9489
      %v9546 = vpack.c.b16 %v9492, %v9490
      %v9547 = vpack.c.b16 %v9495, %v9493
      %v9548 = vpack.c.b16 %v9496, %v9494
      %v9549 = vpack.c.b16 %v9499, %v9497
      %v9550 = vpack.c.b16 %v9500, %v9498
      %v9551 = vpack.c.b16 %v9503, %v9501
      %v9552 = vpack.c.b16 %v9504, %v9502
      %v9553 = vpack.c.b16 %v9507, %v9505
      %v9554 = vpack.c.b16 %v9508, %v9506
      %v9555 = vpack.c.b16 %v9511, %v9509
      %v9556 = vpack.c.b16 %v9512, %v9510
      %v9557 = vpack.c.b16 %v9515, %v9513
      %v9558 = vpack.c.b16 %v9516, %v9514
      %v9559 = vpack.c.b16 %v9519, %v9517
      %v9560 = vpack.c.b16 %v9520, %v9518
      %v9561 = vpack.c.b16 %v9523, %v9521
      %v9562 = vpack.c.b16 %v9524, %v9522
      %v9563 = vpack.c.b16 %v9527, %v9525
      %v9564 = vpack.c.b16 %v9528, %v9526
      %v9565 = vpack.c.b16 %v9531, %v9529
      %v9566 = vpack.c.b16 %v9532, %v9530
      %v9567 = vpack.c.b16 %v9535, %v9533
      %v9568 = vpack.c.b16 %v9536, %v9534
      %9601 = vmatprep.subr.bf16.mxu0 %v9552
      %9602 = vmatpush1.bf16.msra.mxu0 %v9551
      %9603 = vmatprep.subr.bf16.mxu0 %v9550
      %9604 = vmatpush1.bf16.msra.mxu0 %v9549
      %9605 = vmatprep.subr.bf16.mxu0 %v9548
      %9606 = vmatpush1.bf16.msra.mxu0 %v9547
      %9607 = vmatprep.subr.bf16.mxu0 %v9546
      %9608 = vmatpush1.bf16.msra.mxu0 %v9545
      %9609 = vmatprep.subr.bf16.mxu0 %v9544
      %9610 = vmatpush1.bf16.msra.mxu0 %v9543
      %9611 = vmatprep.subr.bf16.mxu0 %v9542
      %9612 = vmatpush1.bf16.msra.mxu0 %v9541
      %9613 = vmatprep.subr.bf16.mxu0 %v9540
      %9614 = vmatpush1.bf16.msra.mxu0 %v9539
      %9615 = vmatprep.subr.bf16.mxu0 %v9538
      %9616 = vmatpush1.bf16.msra.mxu0 %v9537
      %9617 = vmatprep.subr.bf16.mxu0 %v9568
      %9618 = vmatpush2.bf16.msra.mxu0 %v9567
      %9619 = vmatprep.subr.bf16.mxu0 %v9566
      %9620 = vmatpush2.bf16.msra.mxu0 %v9565
      %9621 = vmatprep.subr.bf16.mxu0 %v9564
      %9622 = vmatpush2.bf16.msra.mxu0 %v9563
      %9623 = vmatprep.subr.bf16.mxu0 %v9562
      %9624 = vmatpush2.bf16.msra.mxu0 %v9561
      %9625 = vmatprep.subr.bf16.mxu0 %v9560
      %9626 = vmatpush2.bf16.msra.mxu0 %v9559
      %9627 = vmatprep.subr.bf16.mxu0 %v9558
      %9628 = vmatpush2.bf16.msra.mxu0 %v9557
      %9629 = vmatprep.subr.bf16.mxu0 %v9556
      %9630 = vmatpush2.bf16.msra.mxu0 %v9555
      %9631 = vmatprep.subr.bf16.mxu0 %v9554
      %9632 = vmatpush2.bf16.msra.mxu0 %v9553
      %9633 = vmatprep.mubr.bf16.mxu0 %v9346
      %9634 = vmatmul.mubr.bf16.gmra.mxu0 %v9345
      %v9635 = vpop.f32.mrf.mxu0
      %v9636 = vadd.f32 0.0, %v9635
      %v9637 = vpop.f32.mrf.mxu0
      %v9638 = vadd.f32 0.0, %v9637
      %v9639 = vpop.f32.mrf.mxu0
      %v9640 = vadd.f32 0.0, %v9639
      %v9641 = vpop.f32.mrf.mxu0
      %v9642 = vadd.f32 0.0, %v9641
      %9643 = vmatprep.mubr.bf16.mxu0 %v9348
      %9644 = vmatmul.mubr.bf16.gmra.mxu0 %v9347
      %v9645 = vpop.f32.mrf.mxu0
      %v9646 = vadd.f32 0.0, %v9645
      %v9647 = vpop.f32.mrf.mxu0
      %v9648 = vadd.f32 0.0, %v9647
      %v9649 = vpop.f32.mrf.mxu0
      %v9650 = vadd.f32 0.0, %v9649
      %v9651 = vpop.f32.mrf.mxu0
      %v9652 = vadd.f32 0.0, %v9651
      %9653 = vmatprep.mubr.bf16.mxu0 %v9350
      %9654 = vmatmul.mubr.bf16.gmra.mxu0 %v9349
      %v9655 = vpop.f32.mrf.mxu0
      %v9656 = vadd.f32 0.0, %v9655
      %v9657 = vpop.f32.mrf.mxu0
      %v9658 = vadd.f32 0.0, %v9657
      %v9659 = vpop.f32.mrf.mxu0
      %v9660 = vadd.f32 0.0, %v9659
      %v9661 = vpop.f32.mrf.mxu0
      %v9662 = vadd.f32 0.0, %v9661
      %9663 = vmatprep.mubr.bf16.mxu0 %v9352
      %9664 = vmatmul.mubr.bf16.gmra.mxu0 %v9351
      %v9665 = vpop.f32.mrf.mxu0
      %v9666 = vadd.f32 0.0, %v9665
      %v9667 = vpop.f32.mrf.mxu0
      %v9668 = vadd.f32 0.0, %v9667
      %v9669 = vpop.f32.mrf.mxu0
      %v9670 = vadd.f32 0.0, %v9669
      %v9671 = vpop.f32.mrf.mxu0
      %v9672 = vadd.f32 0.0, %v9671
      %9673 = vmatprep.mubr.bf16.mxu0 %v9354
      %9674 = vmatmul.mubr.bf16.gmra.mxu0 %v9353
      %v9675 = vpop.f32.mrf.mxu0
      %v9676 = vadd.f32 0.0, %v9675
      %v9677 = vpop.f32.mrf.mxu0
      %v9678 = vadd.f32 0.0, %v9677
      %v9679 = vpop.f32.mrf.mxu0
      %v9680 = vadd.f32 0.0, %v9679
      %v9681 = vpop.f32.mrf.mxu0
      %v9682 = vadd.f32 0.0, %v9681
      %9683 = vmatprep.mubr.bf16.mxu0 %v9356
      %9684 = vmatmul.mubr.bf16.gmra.mxu0 %v9355
      %v9685 = vpop.f32.mrf.mxu0
      %v9686 = vadd.f32 0.0, %v9685
      %v9687 = vpop.f32.mrf.mxu0
      %v9688 = vadd.f32 0.0, %v9687
      %v9689 = vpop.f32.mrf.mxu0
      %v9690 = vadd.f32 0.0, %v9689
      %v9691 = vpop.f32.mrf.mxu0
      %v9692 = vadd.f32 0.0, %v9691
      %9693 = vmatprep.mubr.bf16.mxu0 %v9358
      %9694 = vmatmul.mubr.bf16.gmra.mxu0 %v9357
      %v9695 = vpop.f32.mrf.mxu0
      %v9696 = vadd.f32 0.0, %v9695
      %v9697 = vpop.f32.mrf.mxu0
      %v9698 = vadd.f32 0.0, %v9697
      %v9699 = vpop.f32.mrf.mxu0
      %v9700 = vadd.f32 0.0, %v9699
      %v9701 = vpop.f32.mrf.mxu0
      %v9702 = vadd.f32 0.0, %v9701
      %9703 = vmatprep.mubr.bf16.mxu0 %v9360
      %9704 = vmatmul.mubr.bf16.gmra.mxu0 %v9359
      %v9705 = vpop.f32.mrf.mxu0
      %v9706 = vadd.f32 0.0, %v9705
      %v9707 = vpop.f32.mrf.mxu0
      %v9708 = vadd.f32 0.0, %v9707
      %v9709 = vpop.f32.mrf.mxu0
      %v9710 = vadd.f32 0.0, %v9709
      %v9711 = vpop.f32.mrf.mxu0
      %v9712 = vadd.f32 0.0, %v9711
      %9713 = vmatprep.mubr.bf16.mxu0 %v9362
      %9714 = vmatmul.mubr.bf16.gmra.mxu0 %v9361
      %v9715 = vpop.f32.mrf.mxu0
      %v9716 = vadd.f32 0.0, %v9715
      %v9717 = vpop.f32.mrf.mxu0
      %v9718 = vadd.f32 0.0, %v9717
      %v9719 = vpop.f32.mrf.mxu0
      %v9720 = vadd.f32 0.0, %v9719
      %v9721 = vpop.f32.mrf.mxu0
      %v9722 = vadd.f32 0.0, %v9721
      %9723 = vmatprep.mubr.bf16.mxu0 %v9364
      %9724 = vmatmul.mubr.bf16.gmra.mxu0 %v9363
      %v9725 = vpop.f32.mrf.mxu0
      %v9726 = vadd.f32 0.0, %v9725
      %v9727 = vpop.f32.mrf.mxu0
      %v9728 = vadd.f32 0.0, %v9727
      %v9729 = vpop.f32.mrf.mxu0
      %v9730 = vadd.f32 0.0, %v9729
      %v9731 = vpop.f32.mrf.mxu0
      %v9732 = vadd.f32 0.0, %v9731
      %9733 = vmatprep.mubr.bf16.mxu0 %v9366
      %9734 = vmatmul.mubr.bf16.gmra.mxu0 %v9365
      %v9735 = vpop.f32.mrf.mxu0
      %v9736 = vadd.f32 0.0, %v9735
      %v9737 = vpop.f32.mrf.mxu0
      %v9738 = vadd.f32 0.0, %v9737
      %v9739 = vpop.f32.mrf.mxu0
      %v9740 = vadd.f32 0.0, %v9739
      %v9741 = vpop.f32.mrf.mxu0
      %v9742 = vadd.f32 0.0, %v9741
      %9743 = vmatprep.mubr.bf16.mxu0 %v9368
      %9744 = vmatmul.mubr.bf16.gmra.mxu0 %v9367
      %v9745 = vpop.f32.mrf.mxu0
      %v9746 = vadd.f32 0.0, %v9745
      %v9747 = vpop.f32.mrf.mxu0
      %v9748 = vadd.f32 0.0, %v9747
      %v9749 = vpop.f32.mrf.mxu0
      %v9750 = vadd.f32 0.0, %v9749
      %v9751 = vpop.f32.mrf.mxu0
      %v9752 = vadd.f32 0.0, %v9751
      %9753 = vmatprep.mubr.bf16.mxu0 %v9370
      %9754 = vmatmul.mubr.bf16.gmra.mxu0 %v9369
      %v9755 = vpop.f32.mrf.mxu0
      %v9756 = vadd.f32 0.0, %v9755
      %v9757 = vpop.f32.mrf.mxu0
      %v9758 = vadd.f32 0.0, %v9757
      %v9759 = vpop.f32.mrf.mxu0
      %v9760 = vadd.f32 0.0, %v9759
      %v9761 = vpop.f32.mrf.mxu0
      %v9762 = vadd.f32 0.0, %v9761
      %9763 = vmatprep.mubr.bf16.mxu0 %v9372
      %9764 = vmatmul.mubr.bf16.gmra.mxu0 %v9371
      %v9765 = vpop.f32.mrf.mxu0
      %v9766 = vadd.f32 0.0, %v9765
      %v9767 = vpop.f32.mrf.mxu0
      %v9768 = vadd.f32 0.0, %v9767
      %v9769 = vpop.f32.mrf.mxu0
      %v9770 = vadd.f32 0.0, %v9769
      %v9771 = vpop.f32.mrf.mxu0
      %v9772 = vadd.f32 0.0, %v9771
      %9773 = vmatprep.mubr.bf16.mxu0 %v9374
      %9774 = vmatmul.mubr.bf16.gmra.mxu0 %v9373
      %v9775 = vpop.f32.mrf.mxu0
      %v9776 = vadd.f32 0.0, %v9775
      %v9777 = vpop.f32.mrf.mxu0
      %v9778 = vadd.f32 0.0, %v9777
      %v9779 = vpop.f32.mrf.mxu0
      %v9780 = vadd.f32 0.0, %v9779
      %v9781 = vpop.f32.mrf.mxu0
      %v9782 = vadd.f32 0.0, %v9781
      %9783 = vmatprep.mubr.bf16.mxu0 %v9376
      %9784 = vmatmul.mubr.bf16.gmra.mxu0 %v9375
      %v9785 = vpop.f32.mrf.mxu0
      %v9786 = vadd.f32 0.0, %v9785
      %v9787 = vpop.f32.mrf.mxu0
      %v9788 = vadd.f32 0.0, %v9787
      %v9789 = vpop.f32.mrf.mxu0
      %v9790 = vadd.f32 0.0, %v9789
      %v9791 = vpop.f32.mrf.mxu0
      %v9792 = vadd.f32 0.0, %v9791
      %9793 = vmatprep.mubr.bf16.mxu0 %v9378
      %9794 = vmatmul.mubr.bf16.gmra.mxu0 %v9377
      %v9795 = vpop.f32.mrf.mxu0
      %v9796 = vadd.f32 0.0, %v9795
      %v9797 = vpop.f32.mrf.mxu0
      %v9798 = vadd.f32 0.0, %v9797
      %v9799 = vpop.f32.mrf.mxu0
      %v9800 = vadd.f32 0.0, %v9799
      %v9801 = vpop.f32.mrf.mxu0
      %v9802 = vadd.f32 0.0, %v9801
      %9803 = vmatprep.mubr.bf16.mxu0 %v9380
      %9804 = vmatmul.mubr.bf16.gmra.mxu0 %v9379
      %v9805 = vpop.f32.mrf.mxu0
      %v9806 = vadd.f32 0.0, %v9805
      %v9807 = vpop.f32.mrf.mxu0
      %v9808 = vadd.f32 0.0, %v9807
      %v9809 = vpop.f32.mrf.mxu0
      %v9810 = vadd.f32 0.0, %v9809
      %v9811 = vpop.f32.mrf.mxu0
      %v9812 = vadd.f32 0.0, %v9811
      %9813 = vmatprep.mubr.bf16.mxu0 %v9382
      %9814 = vmatmul.mubr.bf16.gmra.mxu0 %v9381
      %v9815 = vpop.f32.mrf.mxu0
      %v9816 = vadd.f32 0.0, %v9815
      %v9817 = vpop.f32.mrf.mxu0
      %v9818 = vadd.f32 0.0, %v9817
      %v9819 = vpop.f32.mrf.mxu0
      %v9820 = vadd.f32 0.0, %v9819
      %v9821 = vpop.f32.mrf.mxu0
      %v9822 = vadd.f32 0.0, %v9821
      %9823 = vmatprep.mubr.bf16.mxu0 %v9384
      %9824 = vmatmul.mubr.bf16.gmra.mxu0 %v9383
      %v9825 = vpop.f32.mrf.mxu0
      %v9826 = vadd.f32 0.0, %v9825
      %v9827 = vpop.f32.mrf.mxu0
      %v9828 = vadd.f32 0.0, %v9827
      %v9829 = vpop.f32.mrf.mxu0
      %v9830 = vadd.f32 0.0, %v9829
      %v9831 = vpop.f32.mrf.mxu0
      %v9832 = vadd.f32 0.0, %v9831
      %9833 = vmatprep.mubr.bf16.mxu0 %v9386
      %9834 = vmatmul.mubr.bf16.gmra.mxu0 %v9385
      %v9835 = vpop.f32.mrf.mxu0
      %v9836 = vadd.f32 0.0, %v9835
      %v9837 = vpop.f32.mrf.mxu0
      %v9838 = vadd.f32 0.0, %v9837
      %v9839 = vpop.f32.mrf.mxu0
      %v9840 = vadd.f32 0.0, %v9839
      %v9841 = vpop.f32.mrf.mxu0
      %v9842 = vadd.f32 0.0, %v9841
      %9843 = vmatprep.mubr.bf16.mxu0 %v9388
      %9844 = vmatmul.mubr.bf16.gmra.mxu0 %v9387
      %v9845 = vpop.f32.mrf.mxu0
      %v9846 = vadd.f32 0.0, %v9845
      %v9847 = vpop.f32.mrf.mxu0
      %v9848 = vadd.f32 0.0, %v9847
      %v9849 = vpop.f32.mrf.mxu0
      %v9850 = vadd.f32 0.0, %v9849
      %v9851 = vpop.f32.mrf.mxu0
      %v9852 = vadd.f32 0.0, %v9851
      %9853 = vmatprep.mubr.bf16.mxu0 %v9390
      %9854 = vmatmul.mubr.bf16.gmra.mxu0 %v9389
      %v9855 = vpop.f32.mrf.mxu0
      %v9856 = vadd.f32 0.0, %v9855
      %v9857 = vpop.f32.mrf.mxu0
      %v9858 = vadd.f32 0.0, %v9857
      %v9859 = vpop.f32.mrf.mxu0
      %v9860 = vadd.f32 0.0, %v9859
      %v9861 = vpop.f32.mrf.mxu0
      %v9862 = vadd.f32 0.0, %v9861
      %9863 = vmatprep.mubr.bf16.mxu0 %v9392
      %9864 = vmatmul.mubr.bf16.gmra.mxu0 %v9391
      %v9865 = vpop.f32.mrf.mxu0
      %v9866 = vadd.f32 0.0, %v9865
      %v9867 = vpop.f32.mrf.mxu0
      %v9868 = vadd.f32 0.0, %v9867
      %v9869 = vpop.f32.mrf.mxu0
      %v9870 = vadd.f32 0.0, %v9869
      %v9871 = vpop.f32.mrf.mxu0
      %v9872 = vadd.f32 0.0, %v9871
      %9873 = vmatprep.mubr.bf16.mxu0 %v9394
      %9874 = vmatmul.mubr.bf16.gmra.mxu0 %v9393
      %v9875 = vpop.f32.mrf.mxu0
      %v9876 = vadd.f32 0.0, %v9875
      %v9877 = vpop.f32.mrf.mxu0
      %v9878 = vadd.f32 0.0, %v9877
      %v9879 = vpop.f32.mrf.mxu0
      %v9880 = vadd.f32 0.0, %v9879
      %v9881 = vpop.f32.mrf.mxu0
      %v9882 = vadd.f32 0.0, %v9881
      %9883 = vmatprep.mubr.bf16.mxu0 %v9396
      %9884 = vmatmul.mubr.bf16.gmra.mxu0 %v9395
      %v9885 = vpop.f32.mrf.mxu0
      %v9886 = vadd.f32 0.0, %v9885
      %v9887 = vpop.f32.mrf.mxu0
      %v9888 = vadd.f32 0.0, %v9887
      %v9889 = vpop.f32.mrf.mxu0
      %v9890 = vadd.f32 0.0, %v9889
      %v9891 = vpop.f32.mrf.mxu0
      %v9892 = vadd.f32 0.0, %v9891
      %9893 = vmatprep.mubr.bf16.mxu0 %v9398
      %9894 = vmatmul.mubr.bf16.gmra.mxu0 %v9397
      %v9895 = vpop.f32.mrf.mxu0
      %v9896 = vadd.f32 0.0, %v9895
      %v9897 = vpop.f32.mrf.mxu0
      %v9898 = vadd.f32 0.0, %v9897
      %v9899 = vpop.f32.mrf.mxu0
      %v9900 = vadd.f32 0.0, %v9899
      %v9901 = vpop.f32.mrf.mxu0
      %v9902 = vadd.f32 0.0, %v9901
      %9903 = vmatprep.mubr.bf16.mxu0 %v9400
      %9904 = vmatmul.mubr.bf16.gmra.mxu0 %v9399
      %v9905 = vpop.f32.mrf.mxu0
      %v9906 = vadd.f32 0.0, %v9905
      %v9907 = vpop.f32.mrf.mxu0
      %v9908 = vadd.f32 0.0, %v9907
      %v9909 = vpop.f32.mrf.mxu0
      %v9910 = vadd.f32 0.0, %v9909
      %v9911 = vpop.f32.mrf.mxu0
      %v9912 = vadd.f32 0.0, %v9911
      %9913 = vmatprep.mubr.bf16.mxu0 %v9402
      %9914 = vmatmul.mubr.bf16.gmra.mxu0 %v9401
      %v9915 = vpop.f32.mrf.mxu0
      %v9916 = vadd.f32 0.0, %v9915
      %v9917 = vpop.f32.mrf.mxu0
      %v9918 = vadd.f32 0.0, %v9917
      %v9919 = vpop.f32.mrf.mxu0
      %v9920 = vadd.f32 0.0, %v9919
      %v9921 = vpop.f32.mrf.mxu0
      %v9922 = vadd.f32 0.0, %v9921
      %9923 = vmatprep.mubr.bf16.mxu0 %v9404
      %9924 = vmatmul.mubr.bf16.gmra.mxu0 %v9403
      %v9925 = vpop.f32.mrf.mxu0
      %v9926 = vadd.f32 0.0, %v9925
      %v9927 = vpop.f32.mrf.mxu0
      %v9928 = vadd.f32 0.0, %v9927
      %v9929 = vpop.f32.mrf.mxu0
      %v9930 = vadd.f32 0.0, %v9929
      %v9931 = vpop.f32.mrf.mxu0
      %v9932 = vadd.f32 0.0, %v9931
      %9933 = vmatprep.mubr.bf16.mxu0 %v9406
      %9934 = vmatmul.mubr.bf16.gmra.mxu0 %v9405
      %v9935 = vpop.f32.mrf.mxu0
      %v9936 = vadd.f32 0.0, %v9935
      %v9937 = vpop.f32.mrf.mxu0
      %v9938 = vadd.f32 0.0, %v9937
      %v9939 = vpop.f32.mrf.mxu0
      %v9940 = vadd.f32 0.0, %v9939
      %v9941 = vpop.f32.mrf.mxu0
      %v9942 = vadd.f32 0.0, %v9941
      %9943 = vmatprep.mubr.bf16.mxu0 %v9408
      %9944 = vmatmul.mubr.bf16.gmra.mxu0 %v9407
      %v9945 = vpop.f32.mrf.mxu0
      %v9946 = vadd.f32 0.0, %v9945
      %v9947 = vpop.f32.mrf.mxu0
      %v9948 = vadd.f32 0.0, %v9947
      %v9949 = vpop.f32.mrf.mxu0
      %v9950 = vadd.f32 0.0, %v9949
      %v9951 = vpop.f32.mrf.mxu0
      %v9952 = vadd.f32 0.0, %v9951
      %9953 = vdwg.mxu0
      %v10018 = vunpack.c.l.b16 %v1017
      %v10019 = vunpack.c.l.b16 %v1018
      %v10020 = vunpack.c.l.b16 %v1019
      %v10021 = vunpack.c.l.b16 %v1020
      %v10022 = vunpack.c.l.b16 %v1021
      %v10023 = vunpack.c.l.b16 %v1022
      %v10024 = vunpack.c.l.b16 %v1023
      %v10025 = vunpack.c.l.b16 %v1024
      %v10026 = vunpack.c.l.b16 %v1025
      %v10027 = vunpack.c.l.b16 %v1026
      %v10028 = vunpack.c.l.b16 %v1027
      %v10029 = vunpack.c.l.b16 %v1028
      %v10030 = vunpack.c.l.b16 %v1029
      %v10031 = vunpack.c.l.b16 %v1030
      %v10032 = vunpack.c.l.b16 %v1031
      %v10033 = vunpack.c.l.b16 %v1032
      %v10034 = vunpack.c.l.b16 %v1033
      %v10035 = vunpack.c.l.b16 %v1034
      %v10036 = vunpack.c.l.b16 %v1035
      %v10037 = vunpack.c.l.b16 %v1036
      %v10038 = vunpack.c.l.b16 %v1037
      %v10039 = vunpack.c.l.b16 %v1038
      %v10040 = vunpack.c.l.b16 %v1039
      %v10041 = vunpack.c.l.b16 %v1040
      %v10042 = vunpack.c.l.b16 %v1041
      %v10043 = vunpack.c.l.b16 %v1042
      %v10044 = vunpack.c.l.b16 %v1043
      %v10045 = vunpack.c.l.b16 %v1044
      %v10046 = vunpack.c.l.b16 %v1045
      %v10047 = vunpack.c.l.b16 %v1046
      %v10048 = vunpack.c.l.b16 %v1047
      %v10049 = vunpack.c.l.b16 %v1048
      %v10050 = vunpack.c.l.b16 %v1049
      %v10051 = vunpack.c.l.b16 %v1050
      %v10052 = vunpack.c.l.b16 %v1051
      %v10053 = vunpack.c.l.b16 %v1052
      %v10054 = vunpack.c.l.b16 %v1053
      %v10055 = vunpack.c.l.b16 %v1054
      %v10056 = vunpack.c.l.b16 %v1055
      %v10057 = vunpack.c.l.b16 %v1056
      %v10058 = vunpack.c.l.b16 %v1057
      %v10059 = vunpack.c.l.b16 %v1058
      %v10060 = vunpack.c.l.b16 %v1059
      %v10061 = vunpack.c.l.b16 %v1060
      %v10062 = vunpack.c.l.b16 %v1061
      %v10063 = vunpack.c.l.b16 %v1062
      %v10064 = vunpack.c.l.b16 %v1063
      %v10065 = vunpack.c.l.b16 %v1064
      %v10066 = vunpack.c.l.b16 %v1065
      %v10067 = vunpack.c.l.b16 %v1066
      %v10068 = vunpack.c.l.b16 %v1067
      %v10069 = vunpack.c.l.b16 %v1068
      %v10070 = vunpack.c.l.b16 %v1069
      %v10071 = vunpack.c.l.b16 %v1070
      %v10072 = vunpack.c.l.b16 %v1071
      %v10073 = vunpack.c.l.b16 %v1072
      %v10074 = vunpack.c.l.b16 %v1073
      %v10075 = vunpack.c.l.b16 %v1074
      %v10076 = vunpack.c.l.b16 %v1075
      %v10077 = vunpack.c.l.b16 %v1076
      %v10078 = vunpack.c.l.b16 %v1077
      %v10079 = vunpack.c.l.b16 %v1078
      %v10080 = vunpack.c.l.b16 %v1079
      %v10081 = vunpack.c.l.b16 %v1080
      %v10082 = vpack.c.b16 %v10019, %v10018
      %v10083 = vpack.c.b16 %v10021, %v10020
      %v10084 = vpack.c.b16 %v10023, %v10022
      %v10085 = vpack.c.b16 %v10025, %v10024
      %v10086 = vpack.c.b16 %v10027, %v10026
      %v10087 = vpack.c.b16 %v10029, %v10028
      %v10088 = vpack.c.b16 %v10031, %v10030
      %v10089 = vpack.c.b16 %v10033, %v10032
      %v10090 = vpack.c.b16 %v10035, %v10034
      %v10091 = vpack.c.b16 %v10037, %v10036
      %v10092 = vpack.c.b16 %v10039, %v10038
      %v10093 = vpack.c.b16 %v10041, %v10040
      %v10094 = vpack.c.b16 %v10043, %v10042
      %v10095 = vpack.c.b16 %v10045, %v10044
      %v10096 = vpack.c.b16 %v10047, %v10046
      %v10097 = vpack.c.b16 %v10049, %v10048
      %v10098 = vpack.c.b16 %v10051, %v10050
      %v10099 = vpack.c.b16 %v10053, %v10052
      %v10100 = vpack.c.b16 %v10055, %v10054
      %v10101 = vpack.c.b16 %v10057, %v10056
      %v10102 = vpack.c.b16 %v10059, %v10058
      %v10103 = vpack.c.b16 %v10061, %v10060
      %v10104 = vpack.c.b16 %v10063, %v10062
      %v10105 = vpack.c.b16 %v10065, %v10064
      %v10106 = vpack.c.b16 %v10067, %v10066
      %v10107 = vpack.c.b16 %v10069, %v10068
      %v10108 = vpack.c.b16 %v10071, %v10070
      %v10109 = vpack.c.b16 %v10073, %v10072
      %v10110 = vpack.c.b16 %v10075, %v10074
      %v10111 = vpack.c.b16 %v10077, %v10076
      %v10112 = vpack.c.b16 %v10079, %v10078
      %v10113 = vpack.c.b16 %v10081, %v10080
      %v10118 = vunpack.c.l.b16 %v9341
      %v10119 = vunpack.c.h.b16 %v9341
      %v10120 = vunpack.c.l.b16 %v9342
      %v10121 = vunpack.c.h.b16 %v9342
      %v10122 = vunpack.c.l.b16 %v9343
      %v10123 = vunpack.c.h.b16 %v9343
      %v10124 = vunpack.c.l.b16 %v9344
      %v10125 = vunpack.c.h.b16 %v9344
      %v10126 = vpack.c.b16 %v10120, %v10118
      %v10127 = vpack.c.b16 %v10121, %v10119
      %v10128 = vpack.c.b16 %v10124, %v10122
      %v10129 = vpack.c.b16 %v10125, %v10123
      %vm10134 = vcmask 261120
      %v10136 = vsel %vm10134, %v10082, 0
      %v10139 = vsel %vm10134, %v10083, 0
      %v10142 = vsel %vm10134, %v10084, 0
      %v10145 = vsel %vm10134, %v10085, 0
      %v10148 = vsel %vm10134, %v10086, 0
      %v10151 = vsel %vm10134, %v10087, 0
      %v10154 = vsel %vm10134, %v10088, 0
      %v10157 = vsel %vm10134, %v10089, 0
      %v10160 = vsel %vm10134, %v10090, 0
      %v10163 = vsel %vm10134, %v10091, 0
      %v10166 = vsel %vm10134, %v10092, 0
      %v10169 = vsel %vm10134, %v10093, 0
      %v10172 = vsel %vm10134, %v10094, 0
      %v10175 = vsel %vm10134, %v10095, 0
      %v10178 = vsel %vm10134, %v10096, 0
      %v10181 = vsel %vm10134, %v10097, 0
      %v10184 = vsel %vm10134, %v10098, 0
      %v10187 = vsel %vm10134, %v10099, 0
      %v10190 = vsel %vm10134, %v10100, 0
      %v10193 = vsel %vm10134, %v10101, 0
      %v10196 = vsel %vm10134, %v10102, 0
      %v10199 = vsel %vm10134, %v10103, 0
      %v10202 = vsel %vm10134, %v10104, 0
      %v10205 = vsel %vm10134, %v10105, 0
      %v10208 = vsel %vm10134, %v10106, 0
      %v10211 = vsel %vm10134, %v10107, 0
      %v10214 = vsel %vm10134, %v10108, 0
      %v10217 = vsel %vm10134, %v10109, 0
      %v10220 = vsel %vm10134, %v10110, 0
      %v10223 = vsel %vm10134, %v10111, 0
      %v10226 = vsel %vm10134, %v10112, 0
      %v10229 = vsel %vm10134, %v10113, 0
      %10231 = vmatprep.subr.bf16.mxu0 0
      %10232 = vmatpush1.bf16.msra.mxu0 0
      %10233 = vmatprep.subr.bf16.mxu0 0
      %10234 = vmatpush1.bf16.msra.mxu0 0
      %10235 = vmatprep.subr.bf16.mxu0 0
      %10236 = vmatpush1.bf16.msra.mxu0 0
      %10237 = vmatprep.subr.bf16.mxu0 0
      %10238 = vmatpush1.bf16.msra.mxu0 0
      %10239 = vmatprep.subr.bf16.mxu0 0
      %10240 = vmatpush1.bf16.msra.mxu0 0
      %10241 = vmatprep.subr.bf16.mxu0 0
      %10242 = vmatpush1.bf16.msra.mxu0 0
      %10243 = vmatprep.subr.bf16.mxu0 %v10129
      %10244 = vmatpush1.bf16.msra.mxu0 %v10128
      %10245 = vmatprep.subr.bf16.mxu0 %v10127
      %10246 = vmatpush1.bf16.msra.mxu0 %v10126
      %10247 = vmatprep.subr.bf16.mxu0 0
      %10248 = vmatpush2.bf16.msra.mxu0 0
      %10249 = vmatprep.subr.bf16.mxu0 0
      %10250 = vmatpush2.bf16.msra.mxu0 0
      %10251 = vmatprep.subr.bf16.mxu0 0
      %10252 = vmatpush2.bf16.msra.mxu0 0
      %10253 = vmatprep.subr.bf16.mxu0 0
      %10254 = vmatpush2.bf16.msra.mxu0 0
      %10255 = vmatprep.subr.bf16.mxu0 0
      %10256 = vmatpush2.bf16.msra.mxu0 0
      %10257 = vmatprep.subr.bf16.mxu0 0
      %10258 = vmatpush2.bf16.msra.mxu0 0
      %10259 = vmatprep.subr.bf16.mxu0 0
      %10260 = vmatpush2.bf16.msra.mxu0 0
      %10261 = vmatprep.subr.bf16.mxu0 0
      %10262 = vmatpush2.bf16.msra.mxu0 0
      %10263 = vmatprep.mubr.bf16.mxu0 0
      %10264 = vmatmul.mubr.bf16.gmra.mxu0 %v10136
      %v10265 = vpop.f32.mrf.mxu0
      %v10266 = vadd.f32 %v9636, %v10265
      %v10267 = vpop.f32.mrf.mxu0
      %v10268 = vadd.f32 %v9638, %v10267
      %v10269 = vpop.f32.mrf.mxu0
      %v10270 = vadd.f32 %v9640, %v10269
      %v10271 = vpop.f32.mrf.mxu0
      %v10272 = vadd.f32 %v9642, %v10271
      %10273 = vmatprep.mubr.bf16.mxu0 0
      %10274 = vmatmul.mubr.bf16.gmra.mxu0 %v10139
      %v10275 = vpop.f32.mrf.mxu0
      %v10276 = vadd.f32 %v9646, %v10275
      %v10277 = vpop.f32.mrf.mxu0
      %v10278 = vadd.f32 %v9648, %v10277
      %v10279 = vpop.f32.mrf.mxu0
      %v10280 = vadd.f32 %v9650, %v10279
      %v10281 = vpop.f32.mrf.mxu0
      %v10282 = vadd.f32 %v9652, %v10281
      %10283 = vmatprep.mubr.bf16.mxu0 0
      %10284 = vmatmul.mubr.bf16.gmra.mxu0 %v10142
      %v10285 = vpop.f32.mrf.mxu0
      %v10286 = vadd.f32 %v9656, %v10285
      %v10287 = vpop.f32.mrf.mxu0
      %v10288 = vadd.f32 %v9658, %v10287
      %v10289 = vpop.f32.mrf.mxu0
      %v10290 = vadd.f32 %v9660, %v10289
      %v10291 = vpop.f32.mrf.mxu0
      %v10292 = vadd.f32 %v9662, %v10291
      %10293 = vmatprep.mubr.bf16.mxu0 0
      %10294 = vmatmul.mubr.bf16.gmra.mxu0 %v10145
      %v10295 = vpop.f32.mrf.mxu0
      %v10296 = vadd.f32 %v9666, %v10295
      %v10297 = vpop.f32.mrf.mxu0
      %v10298 = vadd.f32 %v9668, %v10297
      %v10299 = vpop.f32.mrf.mxu0
      %v10300 = vadd.f32 %v9670, %v10299
      %v10301 = vpop.f32.mrf.mxu0
      %v10302 = vadd.f32 %v9672, %v10301
      %10303 = vmatprep.mubr.bf16.mxu0 0
      %10304 = vmatmul.mubr.bf16.gmra.mxu0 %v10148
      %v10305 = vpop.f32.mrf.mxu0
      %v10306 = vadd.f32 %v9676, %v10305
      %v10307 = vpop.f32.mrf.mxu0
      %v10308 = vadd.f32 %v9678, %v10307
      %v10309 = vpop.f32.mrf.mxu0
      %v10310 = vadd.f32 %v9680, %v10309
      %v10311 = vpop.f32.mrf.mxu0
      %v10312 = vadd.f32 %v9682, %v10311
      %10313 = vmatprep.mubr.bf16.mxu0 0
      %10314 = vmatmul.mubr.bf16.gmra.mxu0 %v10151
      %v10315 = vpop.f32.mrf.mxu0
      %v10316 = vadd.f32 %v9686, %v10315
      %v10317 = vpop.f32.mrf.mxu0
      %v10318 = vadd.f32 %v9688, %v10317
      %v10319 = vpop.f32.mrf.mxu0
      %v10320 = vadd.f32 %v9690, %v10319
      %v10321 = vpop.f32.mrf.mxu0
      %v10322 = vadd.f32 %v9692, %v10321
      %10323 = vmatprep.mubr.bf16.mxu0 0
      %10324 = vmatmul.mubr.bf16.gmra.mxu0 %v10154
      %v10325 = vpop.f32.mrf.mxu0
      %v10326 = vadd.f32 %v9696, %v10325
      %v10327 = vpop.f32.mrf.mxu0
      %v10328 = vadd.f32 %v9698, %v10327
      %v10329 = vpop.f32.mrf.mxu0
      %v10330 = vadd.f32 %v9700, %v10329
      %v10331 = vpop.f32.mrf.mxu0
      %v10332 = vadd.f32 %v9702, %v10331
      %10333 = vmatprep.mubr.bf16.mxu0 0
      %10334 = vmatmul.mubr.bf16.gmra.mxu0 %v10157
      %v10335 = vpop.f32.mrf.mxu0
      %v10336 = vadd.f32 %v9706, %v10335
      %v10337 = vpop.f32.mrf.mxu0
      %v10338 = vadd.f32 %v9708, %v10337
      %v10339 = vpop.f32.mrf.mxu0
      %v10340 = vadd.f32 %v9710, %v10339
      %v10341 = vpop.f32.mrf.mxu0
      %v10342 = vadd.f32 %v9712, %v10341
      %10343 = vmatprep.mubr.bf16.mxu0 0
      %10344 = vmatmul.mubr.bf16.gmra.mxu0 %v10160
      %v10345 = vpop.f32.mrf.mxu0
      %v10346 = vadd.f32 %v9716, %v10345
      %v10347 = vpop.f32.mrf.mxu0
      %v10348 = vadd.f32 %v9718, %v10347
      %v10349 = vpop.f32.mrf.mxu0
      %v10350 = vadd.f32 %v9720, %v10349
      %v10351 = vpop.f32.mrf.mxu0
      %v10352 = vadd.f32 %v9722, %v10351
      %10353 = vmatprep.mubr.bf16.mxu0 0
      %10354 = vmatmul.mubr.bf16.gmra.mxu0 %v10163
      %v10355 = vpop.f32.mrf.mxu0
      %v10356 = vadd.f32 %v9726, %v10355
      %v10357 = vpop.f32.mrf.mxu0
      %v10358 = vadd.f32 %v9728, %v10357
      %v10359 = vpop.f32.mrf.mxu0
      %v10360 = vadd.f32 %v9730, %v10359
      %v10361 = vpop.f32.mrf.mxu0
      %v10362 = vadd.f32 %v9732, %v10361
      %10363 = vmatprep.mubr.bf16.mxu0 0
      %10364 = vmatmul.mubr.bf16.gmra.mxu0 %v10166
      %v10365 = vpop.f32.mrf.mxu0
      %v10366 = vadd.f32 %v9736, %v10365
      %v10367 = vpop.f32.mrf.mxu0
      %v10368 = vadd.f32 %v9738, %v10367
      %v10369 = vpop.f32.mrf.mxu0
      %v10370 = vadd.f32 %v9740, %v10369
      %v10371 = vpop.f32.mrf.mxu0
      %v10372 = vadd.f32 %v9742, %v10371
      %10373 = vmatprep.mubr.bf16.mxu0 0
      %10374 = vmatmul.mubr.bf16.gmra.mxu0 %v10169
      %v10375 = vpop.f32.mrf.mxu0
      %v10376 = vadd.f32 %v9746, %v10375
      %v10377 = vpop.f32.mrf.mxu0
      %v10378 = vadd.f32 %v9748, %v10377
      %v10379 = vpop.f32.mrf.mxu0
      %v10380 = vadd.f32 %v9750, %v10379
      %v10381 = vpop.f32.mrf.mxu0
      %v10382 = vadd.f32 %v9752, %v10381
      %10383 = vmatprep.mubr.bf16.mxu0 0
      %10384 = vmatmul.mubr.bf16.gmra.mxu0 %v10172
      %v10385 = vpop.f32.mrf.mxu0
      %v10386 = vadd.f32 %v9756, %v10385
      %v10387 = vpop.f32.mrf.mxu0
      %v10388 = vadd.f32 %v9758, %v10387
      %v10389 = vpop.f32.mrf.mxu0
      %v10390 = vadd.f32 %v9760, %v10389
      %v10391 = vpop.f32.mrf.mxu0
      %v10392 = vadd.f32 %v9762, %v10391
      %10393 = vmatprep.mubr.bf16.mxu0 0
      %10394 = vmatmul.mubr.bf16.gmra.mxu0 %v10175
      %v10395 = vpop.f32.mrf.mxu0
      %v10396 = vadd.f32 %v9766, %v10395
      %v10397 = vpop.f32.mrf.mxu0
      %v10398 = vadd.f32 %v9768, %v10397
      %v10399 = vpop.f32.mrf.mxu0
      %v10400 = vadd.f32 %v9770, %v10399
      %v10401 = vpop.f32.mrf.mxu0
      %v10402 = vadd.f32 %v9772, %v10401
      %10403 = vmatprep.mubr.bf16.mxu0 0
      %10404 = vmatmul.mubr.bf16.gmra.mxu0 %v10178
      %v10405 = vpop.f32.mrf.mxu0
      %v10406 = vadd.f32 %v9776, %v10405
      %v10407 = vpop.f32.mrf.mxu0
      %v10408 = vadd.f32 %v9778, %v10407
      %v10409 = vpop.f32.mrf.mxu0
      %v10410 = vadd.f32 %v9780, %v10409
      %v10411 = vpop.f32.mrf.mxu0
      %v10412 = vadd.f32 %v9782, %v10411
      %10413 = vmatprep.mubr.bf16.mxu0 0
      %10414 = vmatmul.mubr.bf16.gmra.mxu0 %v10181
      %v10415 = vpop.f32.mrf.mxu0
      %v10416 = vadd.f32 %v9786, %v10415
      %v10417 = vpop.f32.mrf.mxu0
      %v10418 = vadd.f32 %v9788, %v10417
      %v10419 = vpop.f32.mrf.mxu0
      %v10420 = vadd.f32 %v9790, %v10419
      %v10421 = vpop.f32.mrf.mxu0
      %v10422 = vadd.f32 %v9792, %v10421
      %10423 = vmatprep.mubr.bf16.mxu0 0
      %10424 = vmatmul.mubr.bf16.gmra.mxu0 %v10184
      %v10425 = vpop.f32.mrf.mxu0
      %v10426 = vadd.f32 %v9796, %v10425
      %v10427 = vpop.f32.mrf.mxu0
      %v10428 = vadd.f32 %v9798, %v10427
      %v10429 = vpop.f32.mrf.mxu0
      %v10430 = vadd.f32 %v9800, %v10429
      %v10431 = vpop.f32.mrf.mxu0
      %v10432 = vadd.f32 %v9802, %v10431
      %10433 = vmatprep.mubr.bf16.mxu0 0
      %10434 = vmatmul.mubr.bf16.gmra.mxu0 %v10187
      %v10435 = vpop.f32.mrf.mxu0
      %v10436 = vadd.f32 %v9806, %v10435
      %v10437 = vpop.f32.mrf.mxu0
      %v10438 = vadd.f32 %v9808, %v10437
      %v10439 = vpop.f32.mrf.mxu0
      %v10440 = vadd.f32 %v9810, %v10439
      %v10441 = vpop.f32.mrf.mxu0
      %v10442 = vadd.f32 %v9812, %v10441
      %10443 = vmatprep.mubr.bf16.mxu0 0
      %10444 = vmatmul.mubr.bf16.gmra.mxu0 %v10190
      %v10445 = vpop.f32.mrf.mxu0
      %v10446 = vadd.f32 %v9816, %v10445
      %v10447 = vpop.f32.mrf.mxu0
      %v10448 = vadd.f32 %v9818, %v10447
      %v10449 = vpop.f32.mrf.mxu0
      %v10450 = vadd.f32 %v9820, %v10449
      %v10451 = vpop.f32.mrf.mxu0
      %v10452 = vadd.f32 %v9822, %v10451
      %10453 = vmatprep.mubr.bf16.mxu0 0
      %10454 = vmatmul.mubr.bf16.gmra.mxu0 %v10193
      %v10455 = vpop.f32.mrf.mxu0
      %v10456 = vadd.f32 %v9826, %v10455
      %v10457 = vpop.f32.mrf.mxu0
      %v10458 = vadd.f32 %v9828, %v10457
      %v10459 = vpop.f32.mrf.mxu0
      %v10460 = vadd.f32 %v9830, %v10459
      %v10461 = vpop.f32.mrf.mxu0
      %v10462 = vadd.f32 %v9832, %v10461
      %10463 = vmatprep.mubr.bf16.mxu0 0
      %10464 = vmatmul.mubr.bf16.gmra.mxu0 %v10196
      %v10465 = vpop.f32.mrf.mxu0
      %v10466 = vadd.f32 %v9836, %v10465
      %v10467 = vpop.f32.mrf.mxu0
      %v10468 = vadd.f32 %v9838, %v10467
      %v10469 = vpop.f32.mrf.mxu0
      %v10470 = vadd.f32 %v9840, %v10469
      %v10471 = vpop.f32.mrf.mxu0
      %v10472 = vadd.f32 %v9842, %v10471
      %10473 = vmatprep.mubr.bf16.mxu0 0
      %10474 = vmatmul.mubr.bf16.gmra.mxu0 %v10199
      %v10475 = vpop.f32.mrf.mxu0
      %v10476 = vadd.f32 %v9846, %v10475
      %v10477 = vpop.f32.mrf.mxu0
      %v10478 = vadd.f32 %v9848, %v10477
      %v10479 = vpop.f32.mrf.mxu0
      %v10480 = vadd.f32 %v9850, %v10479
      %v10481 = vpop.f32.mrf.mxu0
      %v10482 = vadd.f32 %v9852, %v10481
      %10483 = vmatprep.mubr.bf16.mxu0 0
      %10484 = vmatmul.mubr.bf16.gmra.mxu0 %v10202
      %v10485 = vpop.f32.mrf.mxu0
      %v10486 = vadd.f32 %v9856, %v10485
      %v10487 = vpop.f32.mrf.mxu0
      %v10488 = vadd.f32 %v9858, %v10487
      %v10489 = vpop.f32.mrf.mxu0
      %v10490 = vadd.f32 %v9860, %v10489
      %v10491 = vpop.f32.mrf.mxu0
      %v10492 = vadd.f32 %v9862, %v10491
      %10493 = vmatprep.mubr.bf16.mxu0 0
      %10494 = vmatmul.mubr.bf16.gmra.mxu0 %v10205
      %v10495 = vpop.f32.mrf.mxu0
      %v10496 = vadd.f32 %v9866, %v10495
      %v10497 = vpop.f32.mrf.mxu0
      %v10498 = vadd.f32 %v9868, %v10497
      %v10499 = vpop.f32.mrf.mxu0
      %v10500 = vadd.f32 %v9870, %v10499
      %v10501 = vpop.f32.mrf.mxu0
      %v10502 = vadd.f32 %v9872, %v10501
      %10503 = vmatprep.mubr.bf16.mxu0 0
      %10504 = vmatmul.mubr.bf16.gmra.mxu0 %v10208
      %v10505 = vpop.f32.mrf.mxu0
      %v10506 = vadd.f32 %v9876, %v10505
      %v10507 = vpop.f32.mrf.mxu0
      %v10508 = vadd.f32 %v9878, %v10507
      %v10509 = vpop.f32.mrf.mxu0
      %v10510 = vadd.f32 %v9880, %v10509
      %v10511 = vpop.f32.mrf.mxu0
      %v10512 = vadd.f32 %v9882, %v10511
      %10513 = vmatprep.mubr.bf16.mxu0 0
      %10514 = vmatmul.mubr.bf16.gmra.mxu0 %v10211
      %v10515 = vpop.f32.mrf.mxu0
      %v10516 = vadd.f32 %v9886, %v10515
      %v10517 = vpop.f32.mrf.mxu0
      %v10518 = vadd.f32 %v9888, %v10517
      %v10519 = vpop.f32.mrf.mxu0
      %v10520 = vadd.f32 %v9890, %v10519
      %v10521 = vpop.f32.mrf.mxu0
      %v10522 = vadd.f32 %v9892, %v10521
      %10523 = vmatprep.mubr.bf16.mxu0 0
      %10524 = vmatmul.mubr.bf16.gmra.mxu0 %v10214
      %v10525 = vpop.f32.mrf.mxu0
      %v10526 = vadd.f32 %v9896, %v10525
      %v10527 = vpop.f32.mrf.mxu0
      %v10528 = vadd.f32 %v9898, %v10527
      %v10529 = vpop.f32.mrf.mxu0
      %v10530 = vadd.f32 %v9900, %v10529
      %v10531 = vpop.f32.mrf.mxu0
      %v10532 = vadd.f32 %v9902, %v10531
      %10533 = vmatprep.mubr.bf16.mxu0 0
      %10534 = vmatmul.mubr.bf16.gmra.mxu0 %v10217
      %v10535 = vpop.f32.mrf.mxu0
      %v10536 = vadd.f32 %v9906, %v10535
      %v10537 = vpop.f32.mrf.mxu0
      %v10538 = vadd.f32 %v9908, %v10537
      %v10539 = vpop.f32.mrf.mxu0
      %v10540 = vadd.f32 %v9910, %v10539
      %v10541 = vpop.f32.mrf.mxu0
      %v10542 = vadd.f32 %v9912, %v10541
      %10543 = vmatprep.mubr.bf16.mxu0 0
      %10544 = vmatmul.mubr.bf16.gmra.mxu0 %v10220
      %v10545 = vpop.f32.mrf.mxu0
      %v10546 = vadd.f32 %v9916, %v10545
      %v10547 = vpop.f32.mrf.mxu0
      %v10548 = vadd.f32 %v9918, %v10547
      %v10549 = vpop.f32.mrf.mxu0
      %v10550 = vadd.f32 %v9920, %v10549
      %v10551 = vpop.f32.mrf.mxu0
      %v10552 = vadd.f32 %v9922, %v10551
      %10553 = vmatprep.mubr.bf16.mxu0 0
      %10554 = vmatmul.mubr.bf16.gmra.mxu0 %v10223
      %v10555 = vpop.f32.mrf.mxu0
      %v10556 = vadd.f32 %v9926, %v10555
      %v10557 = vpop.f32.mrf.mxu0
      %v10558 = vadd.f32 %v9928, %v10557
      %v10559 = vpop.f32.mrf.mxu0
      %v10560 = vadd.f32 %v9930, %v10559
      %v10561 = vpop.f32.mrf.mxu0
      %v10562 = vadd.f32 %v9932, %v10561
      %10563 = vmatprep.mubr.bf16.mxu0 0
      %10564 = vmatmul.mubr.bf16.gmra.mxu0 %v10226
      %v10565 = vpop.f32.mrf.mxu0
      %v10566 = vadd.f32 %v9936, %v10565
      %v10567 = vpop.f32.mrf.mxu0
      %v10568 = vadd.f32 %v9938, %v10567
      %v10569 = vpop.f32.mrf.mxu0
      %v10570 = vadd.f32 %v9940, %v10569
      %v10571 = vpop.f32.mrf.mxu0
      %v10572 = vadd.f32 %v9942, %v10571
      %10573 = vmatprep.mubr.bf16.mxu0 0
      %10574 = vmatmul.mubr.bf16.gmra.mxu0 %v10229
      %v10575 = vpop.f32.mrf.mxu0
      %v10576 = vadd.f32 %v9946, %v10575
      %v10577 = vpop.f32.mrf.mxu0
      %v10578 = vadd.f32 %v9948, %v10577
      %v10579 = vpop.f32.mrf.mxu0
      %v10580 = vadd.f32 %v9950, %v10579
      %v10581 = vpop.f32.mrf.mxu0
      %v10582 = vadd.f32 %v9952, %v10581
      %10583 = vdwg.mxu0
      %v10584 = vld [vmem:[%s53] sm:$0x3]
      %v10586 = vlaneseq
      %v10587 = vshrl.u32 %v10586, 7
      %v10588 = vsub.s32 0, %v10587
      %v10589 = vrot.slane %v10584, %v10588
      %v10590 = vlaneseq
      %v10591 = vshrl.u32 %v10590, 7
      %v10592 = vsub.s32 1, %v10591
      %v10593 = vrot.slane %v10584, %v10592
      %v10596 = vadd.f32 %v10266, %v10589
      %v10597 = vadd.f32 %v10268, %v10593
      %v10598 = vadd.f32 %v10270, %v10589
      %v10599 = vadd.f32 %v10272, %v10593
      %v10600 = vadd.f32 %v10276, %v10589
      %v10601 = vadd.f32 %v10278, %v10593
      %v10602 = vadd.f32 %v10280, %v10589
      %v10603 = vadd.f32 %v10282, %v10593
      %v10604 = vadd.f32 %v10286, %v10589
      %v10605 = vadd.f32 %v10288, %v10593
      %v10606 = vadd.f32 %v10290, %v10589
      %v10607 = vadd.f32 %v10292, %v10593
      %v10608 = vadd.f32 %v10296, %v10589
      %v10609 = vadd.f32 %v10298, %v10593
      %v10610 = vadd.f32 %v10300, %v10589
      %v10611 = vadd.f32 %v10302, %v10593
      %v10612 = vadd.f32 %v10306, %v10589
      %v10613 = vadd.f32 %v10308, %v10593
      %v10614 = vadd.f32 %v10310, %v10589
      %v10615 = vadd.f32 %v10312, %v10593
      %v10616 = vadd.f32 %v10316, %v10589
      %v10617 = vadd.f32 %v10318, %v10593
      %v10618 = vadd.f32 %v10320, %v10589
      %v10619 = vadd.f32 %v10322, %v10593
      %v10620 = vadd.f32 %v10326, %v10589
      %v10621 = vadd.f32 %v10328, %v10593
      %v10622 = vadd.f32 %v10330, %v10589
      %v10623 = vadd.f32 %v10332, %v10593
      %v10624 = vadd.f32 %v10336, %v10589
      %v10625 = vadd.f32 %v10338, %v10593
      %v10626 = vadd.f32 %v10340, %v10589
      %v10627 = vadd.f32 %v10342, %v10593
      %v10628 = vadd.f32 %v10346, %v10589
      %v10629 = vadd.f32 %v10348, %v10593
      %v10630 = vadd.f32 %v10350, %v10589
      %v10631 = vadd.f32 %v10352, %v10593
      %v10632 = vadd.f32 %v10356, %v10589
      %v10633 = vadd.f32 %v10358, %v10593
      %v10634 = vadd.f32 %v10360, %v10589
      %v10635 = vadd.f32 %v10362, %v10593
      %v10636 = vadd.f32 %v10366, %v10589
      %v10637 = vadd.f32 %v10368, %v10593
      %v10638 = vadd.f32 %v10370, %v10589
      %v10639 = vadd.f32 %v10372, %v10593
      %v10640 = vadd.f32 %v10376, %v10589
      %v10641 = vadd.f32 %v10378, %v10593
      %v10642 = vadd.f32 %v10380, %v10589
      %v10643 = vadd.f32 %v10382, %v10593
      %v10644 = vadd.f32 %v10386, %v10589
      %v10645 = vadd.f32 %v10388, %v10593
      %v10646 = vadd.f32 %v10390, %v10589
      %v10647 = vadd.f32 %v10392, %v10593
      %v10648 = vadd.f32 %v10396, %v10589
      %v10649 = vadd.f32 %v10398, %v10593
      %v10650 = vadd.f32 %v10400, %v10589
      %v10651 = vadd.f32 %v10402, %v10593
      %v10652 = vadd.f32 %v10406, %v10589
      %v10653 = vadd.f32 %v10408, %v10593
      %v10654 = vadd.f32 %v10410, %v10589
      %v10655 = vadd.f32 %v10412, %v10593
      %v10656 = vadd.f32 %v10416, %v10589
      %v10657 = vadd.f32 %v10418, %v10593
      %v10658 = vadd.f32 %v10420, %v10589
      %v10659 = vadd.f32 %v10422, %v10593
      %v10660 = vadd.f32 %v10426, %v10589
      %v10661 = vadd.f32 %v10428, %v10593
      %v10662 = vadd.f32 %v10430, %v10589
      %v10663 = vadd.f32 %v10432, %v10593
      %v10664 = vadd.f32 %v10436, %v10589
      %v10665 = vadd.f32 %v10438, %v10593
      %v10666 = vadd.f32 %v10440, %v10589
      %v10667 = vadd.f32 %v10442, %v10593
      %v10668 = vadd.f32 %v10446, %v10589
      %v10669 = vadd.f32 %v10448, %v10593
      %v10670 = vadd.f32 %v10450, %v10589
      %v10671 = vadd.f32 %v10452, %v10593
      %v10672 = vadd.f32 %v10456, %v10589
      %v10673 = vadd.f32 %v10458, %v10593
      %v10674 = vadd.f32 %v10460, %v10589
      %v10675 = vadd.f32 %v10462, %v10593
      %v10676 = vadd.f32 %v10466, %v10589
      %v10677 = vadd.f32 %v10468, %v10593
      %v10678 = vadd.f32 %v10470, %v10589
      %v10679 = vadd.f32 %v10472, %v10593
      %v10680 = vadd.f32 %v10476, %v10589
      %v10681 = vadd.f32 %v10478, %v10593
      %v10682 = vadd.f32 %v10480, %v10589
      %v10683 = vadd.f32 %v10482, %v10593
      %v10684 = vadd.f32 %v10486, %v10589
      %v10685 = vadd.f32 %v10488, %v10593
      %v10686 = vadd.f32 %v10490, %v10589
      %v10687 = vadd.f32 %v10492, %v10593
      %v10688 = vadd.f32 %v10496, %v10589
      %v10689 = vadd.f32 %v10498, %v10593
      %v10690 = vadd.f32 %v10500, %v10589
      %v10691 = vadd.f32 %v10502, %v10593
      %v10692 = vadd.f32 %v10506, %v10589
      %v10693 = vadd.f32 %v10508, %v10593
      %v10694 = vadd.f32 %v10510, %v10589
      %v10695 = vadd.f32 %v10512, %v10593
      %v10696 = vadd.f32 %v10516, %v10589
      %v10697 = vadd.f32 %v10518, %v10593
      %v10698 = vadd.f32 %v10520, %v10589
      %v10699 = vadd.f32 %v10522, %v10593
      %v10700 = vadd.f32 %v10526, %v10589
      %v10701 = vadd.f32 %v10528, %v10593
      %v10702 = vadd.f32 %v10530, %v10589
      %v10703 = vadd.f32 %v10532, %v10593
      %v10704 = vadd.f32 %v10536, %v10589
      %v10705 = vadd.f32 %v10538, %v10593
      %v10706 = vadd.f32 %v10540, %v10589
      %v10707 = vadd.f32 %v10542, %v10593
      %v10708 = vadd.f32 %v10546, %v10589
      %v10709 = vadd.f32 %v10548, %v10593
      %v10710 = vadd.f32 %v10550, %v10589
      %v10711 = vadd.f32 %v10552, %v10593
      %v10712 = vadd.f32 %v10556, %v10589
      %v10713 = vadd.f32 %v10558, %v10593
      %v10714 = vadd.f32 %v10560, %v10589
      %v10715 = vadd.f32 %v10562, %v10593
      %v10716 = vadd.f32 %v10566, %v10589
      %v10717 = vadd.f32 %v10568, %v10593
      %v10718 = vadd.f32 %v10570, %v10589
      %v10719 = vadd.f32 %v10572, %v10593
      %v10720 = vadd.f32 %v10576, %v10589
      %v10721 = vadd.f32 %v10578, %v10593
      %v10722 = vadd.f32 %v10580, %v10589
      %v10723 = vadd.f32 %v10582, %v10593
      %v10724 = vmax.f32 %v10596, 0.0
      %v10725 = vmax.f32 %v10597, 0.0
      %v10726 = vmax.f32 %v10598, 0.0
      %v10727 = vmax.f32 %v10599, 0.0
      %v10728 = vmax.f32 %v10600, 0.0
      %v10729 = vmax.f32 %v10601, 0.0
      %v10730 = vmax.f32 %v10602, 0.0
      %v10731 = vmax.f32 %v10603, 0.0
      %v10732 = vmax.f32 %v10604, 0.0
      %v10733 = vmax.f32 %v10605, 0.0
      %v10734 = vmax.f32 %v10606, 0.0
      %v10735 = vmax.f32 %v10607, 0.0
      %v10736 = vmax.f32 %v10608, 0.0
      %v10737 = vmax.f32 %v10609, 0.0
      %v10738 = vmax.f32 %v10610, 0.0
      %v10739 = vmax.f32 %v10611, 0.0
      %v10740 = vmax.f32 %v10612, 0.0
      %v10741 = vmax.f32 %v10613, 0.0
      %v10742 = vmax.f32 %v10614, 0.0
      %v10743 = vmax.f32 %v10615, 0.0
      %v10744 = vmax.f32 %v10616, 0.0
      %v10745 = vmax.f32 %v10617, 0.0
      %v10746 = vmax.f32 %v10618, 0.0
      %v10747 = vmax.f32 %v10619, 0.0
      %v10748 = vmax.f32 %v10620, 0.0
      %v10749 = vmax.f32 %v10621, 0.0
      %v10750 = vmax.f32 %v10622, 0.0
      %v10751 = vmax.f32 %v10623, 0.0
      %v10752 = vmax.f32 %v10624, 0.0
      %v10753 = vmax.f32 %v10625, 0.0
      %v10754 = vmax.f32 %v10626, 0.0
      %v10755 = vmax.f32 %v10627, 0.0
      %v10756 = vmax.f32 %v10628, 0.0
      %v10757 = vmax.f32 %v10629, 0.0
      %v10758 = vmax.f32 %v10630, 0.0
      %v10759 = vmax.f32 %v10631, 0.0
      %v10760 = vmax.f32 %v10632, 0.0
      %v10761 = vmax.f32 %v10633, 0.0
      %v10762 = vmax.f32 %v10634, 0.0
      %v10763 = vmax.f32 %v10635, 0.0
      %v10764 = vmax.f32 %v10636, 0.0
      %v10765 = vmax.f32 %v10637, 0.0
      %v10766 = vmax.f32 %v10638, 0.0
      %v10767 = vmax.f32 %v10639, 0.0
      %v10768 = vmax.f32 %v10640, 0.0
      %v10769 = vmax.f32 %v10641, 0.0
      %v10770 = vmax.f32 %v10642, 0.0
      %v10771 = vmax.f32 %v10643, 0.0
      %v10772 = vmax.f32 %v10644, 0.0
      %v10773 = vmax.f32 %v10645, 0.0
      %v10774 = vmax.f32 %v10646, 0.0
      %v10775 = vmax.f32 %v10647, 0.0
      %v10776 = vmax.f32 %v10648, 0.0
      %v10777 = vmax.f32 %v10649, 0.0
      %v10778 = vmax.f32 %v10650, 0.0
      %v10779 = vmax.f32 %v10651, 0.0
      %v10780 = vmax.f32 %v10652, 0.0
      %v10781 = vmax.f32 %v10653, 0.0
      %v10782 = vmax.f32 %v10654, 0.0
      %v10783 = vmax.f32 %v10655, 0.0
      %v10784 = vmax.f32 %v10656, 0.0
      %v10785 = vmax.f32 %v10657, 0.0
      %v10786 = vmax.f32 %v10658, 0.0
      %v10787 = vmax.f32 %v10659, 0.0
      %v10788 = vmax.f32 %v10660, 0.0
      %v10789 = vmax.f32 %v10661, 0.0
      %v10790 = vmax.f32 %v10662, 0.0
      %v10791 = vmax.f32 %v10663, 0.0
      %v10792 = vmax.f32 %v10664, 0.0
      %v10793 = vmax.f32 %v10665, 0.0
      %v10794 = vmax.f32 %v10666, 0.0
      %v10795 = vmax.f32 %v10667, 0.0
      %v10796 = vmax.f32 %v10668, 0.0
      %v10797 = vmax.f32 %v10669, 0.0
      %v10798 = vmax.f32 %v10670, 0.0
      %v10799 = vmax.f32 %v10671, 0.0
      %v10800 = vmax.f32 %v10672, 0.0
      %v10801 = vmax.f32 %v10673, 0.0
      %v10802 = vmax.f32 %v10674, 0.0
      %v10803 = vmax.f32 %v10675, 0.0
      %v10804 = vmax.f32 %v10676, 0.0
      %v10805 = vmax.f32 %v10677, 0.0
      %v10806 = vmax.f32 %v10678, 0.0
      %v10807 = vmax.f32 %v10679, 0.0
      %v10808 = vmax.f32 %v10680, 0.0
      %v10809 = vmax.f32 %v10681, 0.0
      %v10810 = vmax.f32 %v10682, 0.0
      %v10811 = vmax.f32 %v10683, 0.0
      %v10812 = vmax.f32 %v10684, 0.0
      %v10813 = vmax.f32 %v10685, 0.0
      %v10814 = vmax.f32 %v10686, 0.0
      %v10815 = vmax.f32 %v10687, 0.0
      %v10816 = vmax.f32 %v10688, 0.0
      %v10817 = vmax.f32 %v10689, 0.0
      %v10818 = vmax.f32 %v10690, 0.0
      %v10819 = vmax.f32 %v10691, 0.0
      %v10820 = vmax.f32 %v10692, 0.0
      %v10821 = vmax.f32 %v10693, 0.0
      %v10822 = vmax.f32 %v10694, 0.0
      %v10823 = vmax.f32 %v10695, 0.0
      %v10824 = vmax.f32 %v10696, 0.0
      %v10825 = vmax.f32 %v10697, 0.0
      %v10826 = vmax.f32 %v10698, 0.0
      %v10827 = vmax.f32 %v10699, 0.0
      %v10828 = vmax.f32 %v10700, 0.0
      %v10829 = vmax.f32 %v10701, 0.0
      %v10830 = vmax.f32 %v10702, 0.0
      %v10831 = vmax.f32 %v10703, 0.0
      %v10832 = vmax.f32 %v10704, 0.0
      %v10833 = vmax.f32 %v10705, 0.0
      %v10834 = vmax.f32 %v10706, 0.0
      %v10835 = vmax.f32 %v10707, 0.0
      %v10836 = vmax.f32 %v10708, 0.0
      %v10837 = vmax.f32 %v10709, 0.0
      %v10838 = vmax.f32 %v10710, 0.0
      %v10839 = vmax.f32 %v10711, 0.0
      %v10840 = vmax.f32 %v10712, 0.0
      %v10841 = vmax.f32 %v10713, 0.0
      %v10842 = vmax.f32 %v10714, 0.0
      %v10843 = vmax.f32 %v10715, 0.0
      %v10844 = vmax.f32 %v10716, 0.0
      %v10845 = vmax.f32 %v10717, 0.0
      %v10846 = vmax.f32 %v10718, 0.0
      %v10847 = vmax.f32 %v10719, 0.0
      %v10848 = vmax.f32 %v10720, 0.0
      %v10849 = vmax.f32 %v10721, 0.0
      %v10850 = vmax.f32 %v10722, 0.0
      %v10851 = vmax.f32 %v10723, 0.0
      %v10852 = vpack.c.bf16 %v10726, %v10724
      %v10853 = vpack.c.bf16 %v10727, %v10725
      %v10854 = vpack.c.bf16 %v10730, %v10728
      %v10855 = vpack.c.bf16 %v10731, %v10729
      %v10856 = vpack.c.bf16 %v10734, %v10732
      %v10857 = vpack.c.bf16 %v10735, %v10733
      %v10858 = vpack.c.bf16 %v10738, %v10736
      %v10859 = vpack.c.bf16 %v10739, %v10737
      %v10860 = vpack.c.bf16 %v10742, %v10740
      %v10861 = vpack.c.bf16 %v10743, %v10741
      %v10862 = vpack.c.bf16 %v10746, %v10744
      %v10863 = vpack.c.bf16 %v10747, %v10745
      %v10864 = vpack.c.bf16 %v10750, %v10748
      %v10865 = vpack.c.bf16 %v10751, %v10749
      %v10866 = vpack.c.bf16 %v10754, %v10752
      %v10867 = vpack.c.bf16 %v10755, %v10753
      %v10868 = vpack.c.bf16 %v10758, %v10756
      %v10869 = vpack.c.bf16 %v10759, %v10757
      %v10870 = vpack.c.bf16 %v10762, %v10760
      %v10871 = vpack.c.bf16 %v10763, %v10761
      %v10872 = vpack.c.bf16 %v10766, %v10764
      %v10873 = vpack.c.bf16 %v10767, %v10765
      %v10874 = vpack.c.bf16 %v10770, %v10768
      %v10875 = vpack.c.bf16 %v10771, %v10769
      %v10876 = vpack.c.bf16 %v10774, %v10772
      %v10877 = vpack.c.bf16 %v10775, %v10773
      %v10878 = vpack.c.bf16 %v10778, %v10776
      %v10879 = vpack.c.bf16 %v10779, %v10777
      %v10880 = vpack.c.bf16 %v10782, %v10780
      %v10881 = vpack.c.bf16 %v10783, %v10781
      %v10882 = vpack.c.bf16 %v10786, %v10784
      %v10883 = vpack.c.bf16 %v10787, %v10785
      %v10884 = vpack.c.bf16 %v10790, %v10788
      %v10885 = vpack.c.bf16 %v10791, %v10789
      %v10886 = vpack.c.bf16 %v10794, %v10792
      %v10887 = vpack.c.bf16 %v10795, %v10793
      %v10888 = vpack.c.bf16 %v10798, %v10796
      %v10889 = vpack.c.bf16 %v10799, %v10797
      %v10890 = vpack.c.bf16 %v10802, %v10800
      %v10891 = vpack.c.bf16 %v10803, %v10801
      %v10892 = vpack.c.bf16 %v10806, %v10804
      %v10893 = vpack.c.bf16 %v10807, %v10805
      %v10894 = vpack.c.bf16 %v10810, %v10808
      %v10895 = vpack.c.bf16 %v10811, %v10809
      %v10896 = vpack.c.bf16 %v10814, %v10812
      %v10897 = vpack.c.bf16 %v10815, %v10813
      %v10898 = vpack.c.bf16 %v10818, %v10816
      %v10899 = vpack.c.bf16 %v10819, %v10817
      %v10900 = vpack.c.bf16 %v10822, %v10820
      %v10901 = vpack.c.bf16 %v10823, %v10821
      %v10902 = vpack.c.bf16 %v10826, %v10824
      %v10903 = vpack.c.bf16 %v10827, %v10825
      %v10904 = vpack.c.bf16 %v10830, %v10828
      %v10905 = vpack.c.bf16 %v10831, %v10829
      %v10906 = vpack.c.bf16 %v10834, %v10832
      %v10907 = vpack.c.bf16 %v10835, %v10833
      %v10908 = vpack.c.bf16 %v10838, %v10836
      %v10909 = vpack.c.bf16 %v10839, %v10837
      %v10910 = vpack.c.bf16 %v10842, %v10840
      %v10911 = vpack.c.bf16 %v10843, %v10841
      %v10912 = vpack.c.bf16 %v10846, %v10844
      %v10913 = vpack.c.bf16 %v10847, %v10845
      %v10914 = vpack.c.bf16 %v10850, %v10848
      %v10915 = vpack.c.bf16 %v10851, %v10849
      %v10916 = vld [vmem:[%s55] sm:$0xf]
      %v10917 = vld [vmem:[%s55 + $0x4] sm:$0xf]
      %v10918 = vld [vmem:[%s55 + $0x8] sm:$0xf]
      %v10919 = vld [vmem:[%s55 + $0xc] sm:$0xf]
      %v10920 = vld [vmem:[%s55 + $0x10] sm:$0xf]
      %v10921 = vld [vmem:[%s55 + $0x14] sm:$0xf]
      %v10922 = vld [vmem:[%s55 + $0x18] sm:$0xf]
      %v10923 = vld [vmem:[%s55 + $0x1c] sm:$0xf]
      %v10924 = vld [vmem:[%s55 + $0x20] sm:$0xf]
      %v10925 = vld [vmem:[%s55 + $0x24] sm:$0xf]
      %v10926 = vld [vmem:[%s55 + $0x28] sm:$0xf]
      %v10927 = vld [vmem:[%s55 + $0x2c] sm:$0xf]
      %v10928 = vld [vmem:[%s55 + $0x30] sm:$0xf]
      %v10929 = vld [vmem:[%s55 + $0x34] sm:$0xf]
      %v10930 = vld [vmem:[%s55 + $0x38] sm:$0xf]
      %v10931 = vld [vmem:[%s55 + $0x3c] sm:$0xf]
      %v10932 = vld [vmem:[%s55 + $0x40] sm:$0xf]
      %v10933 = vld [vmem:[%s55 + $0x44] sm:$0xf]
      %v10934 = vld [vmem:[%s55 + $0x48] sm:$0xf]
      %v10935 = vld [vmem:[%s55 + $0x4c] sm:$0xf]
      %v10936 = vld [vmem:[%s55 + $0x50] sm:$0xf]
      %v10937 = vld [vmem:[%s55 + $0x54] sm:$0xf]
      %v10938 = vld [vmem:[%s55 + $0x58] sm:$0xf]
      %v10939 = vld [vmem:[%s55 + $0x5c] sm:$0xf]
      %v10940 = vld [vmem:[%s55 + $0x60] sm:$0xf]
      %v10941 = vld [vmem:[%s55 + $0x64] sm:$0xf]
      %v10942 = vld [vmem:[%s55 + $0x68] sm:$0xf]
      %v10943 = vld [vmem:[%s55 + $0x6c] sm:$0xf]
      %v10944 = vld [vmem:[%s55 + $0x70] sm:$0xf]
      %v10945 = vld [vmem:[%s55 + $0x74] sm:$0xf]
      %v10946 = vld [vmem:[%s55 + $0x78] sm:$0xf]
      %v10947 = vld [vmem:[%s55 + $0x7c] sm:$0xf]
      %v10948 = vld [vmem:[%s57] sm:$0x1]
      %v10950 = vlaneseq
      %v10951 = vshrl.u32 %v10950, 7
      %v10952 = vsub.s32 0, %v10951
      %v10953 = vrot.slane %v10948, %v10952
      %v10987 = vunpack.c.l.b16 %v10916
      %v10988 = vunpack.c.l.b16 %v10917
      %v10989 = vunpack.c.l.b16 %v10918
      %v10990 = vunpack.c.l.b16 %v10919
      %v10991 = vunpack.c.l.b16 %v10920
      %v10992 = vunpack.c.l.b16 %v10921
      %v10993 = vunpack.c.l.b16 %v10922
      %v10994 = vunpack.c.l.b16 %v10923
      %v10995 = vunpack.c.l.b16 %v10924
      %v10996 = vunpack.c.l.b16 %v10925
      %v10997 = vunpack.c.l.b16 %v10926
      %v10998 = vunpack.c.l.b16 %v10927
      %v10999 = vunpack.c.l.b16 %v10928
      %v11000 = vunpack.c.l.b16 %v10929
      %v11001 = vunpack.c.l.b16 %v10930
      %v11002 = vunpack.c.l.b16 %v10931
      %v11003 = vunpack.c.l.b16 %v10932
      %v11004 = vunpack.c.l.b16 %v10933
      %v11005 = vunpack.c.l.b16 %v10934
      %v11006 = vunpack.c.l.b16 %v10935
      %v11007 = vunpack.c.l.b16 %v10936
      %v11008 = vunpack.c.l.b16 %v10937
      %v11009 = vunpack.c.l.b16 %v10938
      %v11010 = vunpack.c.l.b16 %v10939
      %v11011 = vunpack.c.l.b16 %v10940
      %v11012 = vunpack.c.l.b16 %v10941
      %v11013 = vunpack.c.l.b16 %v10942
      %v11014 = vunpack.c.l.b16 %v10943
      %v11015 = vunpack.c.l.b16 %v10944
      %v11016 = vunpack.c.l.b16 %v10945
      %v11017 = vunpack.c.l.b16 %v10946
      %v11018 = vunpack.c.l.b16 %v10947
      %v11019 = vpack.c.b16 %v10988, %v10987
      %v11020 = vpack.c.b16 %v10990, %v10989
      %v11021 = vpack.c.b16 %v10992, %v10991
      %v11022 = vpack.c.b16 %v10994, %v10993
      %v11023 = vpack.c.b16 %v10996, %v10995
      %v11024 = vpack.c.b16 %v10998, %v10997
      %v11025 = vpack.c.b16 %v11000, %v10999
      %v11026 = vpack.c.b16 %v11002, %v11001
      %v11027 = vpack.c.b16 %v11004, %v11003
      %v11028 = vpack.c.b16 %v11006, %v11005
      %v11029 = vpack.c.b16 %v11008, %v11007
      %v11030 = vpack.c.b16 %v11010, %v11009
      %v11031 = vpack.c.b16 %v11012, %v11011
      %v11032 = vpack.c.b16 %v11014, %v11013
      %v11033 = vpack.c.b16 %v11016, %v11015
      %v11034 = vpack.c.b16 %v11018, %v11017
      %11051 = vmatprep.subr.bf16.mxu0 0
      %11052 = vmatpush1.bf16.msra.mxu0 %v11026
      %11053 = vmatprep.subr.bf16.mxu0 0
      %11054 = vmatpush1.bf16.msra.mxu0 %v11025
      %11055 = vmatprep.subr.bf16.mxu0 0
      %11056 = vmatpush1.bf16.msra.mxu0 %v11024
      %11057 = vmatprep.subr.bf16.mxu0 0
      %11058 = vmatpush1.bf16.msra.mxu0 %v11023
      %11059 = vmatprep.subr.bf16.mxu0 0
      %11060 = vmatpush1.bf16.msra.mxu0 %v11022
      %11061 = vmatprep.subr.bf16.mxu0 0
      %11062 = vmatpush1.bf16.msra.mxu0 %v11021
      %11063 = vmatprep.subr.bf16.mxu0 0
      %11064 = vmatpush1.bf16.msra.mxu0 %v11020
      %11065 = vmatprep.subr.bf16.mxu0 0
      %11066 = vmatpush1.bf16.msra.mxu0 %v11019
      %11067 = vmatprep.subr.bf16.mxu0 0
      %11068 = vmatpush2.bf16.msra.mxu0 %v11034
      %11069 = vmatprep.subr.bf16.mxu0 0
      %11070 = vmatpush2.bf16.msra.mxu0 %v11033
      %11071 = vmatprep.subr.bf16.mxu0 0
      %11072 = vmatpush2.bf16.msra.mxu0 %v11032
      %11073 = vmatprep.subr.bf16.mxu0 0
      %11074 = vmatpush2.bf16.msra.mxu0 %v11031
      %11075 = vmatprep.subr.bf16.mxu0 0
      %11076 = vmatpush2.bf16.msra.mxu0 %v11030
      %11077 = vmatprep.subr.bf16.mxu0 0
      %11078 = vmatpush2.bf16.msra.mxu0 %v11029
      %11079 = vmatprep.subr.bf16.mxu0 0
      %11080 = vmatpush2.bf16.msra.mxu0 %v11028
      %11081 = vmatprep.subr.bf16.mxu0 0
      %11082 = vmatpush2.bf16.msra.mxu0 %v11027
      %11083 = vmatprep.mubr.bf16.mxu0 %v10853
      %11084 = vmatmul.mubr.bf16.gmra.mxu0 %v10852
      %v11085 = vpop.f32.mrf.mxu0
      %v11086 = vadd.f32 %v10953, %v11085
      %v11087 = vpop.f32.mrf.mxu0
      %v11088 = vpop.f32.mrf.mxu0
      %v11089 = vadd.f32 %v10953, %v11088
      %v11090 = vpop.f32.mrf.mxu0
      %11091 = vmatprep.mubr.bf16.mxu0 %v10855
      %11092 = vmatmul.mubr.bf16.gmra.mxu0 %v10854
      %v11093 = vpop.f32.mrf.mxu0
      %v11094 = vadd.f32 %v10953, %v11093
      %v11095 = vpop.f32.mrf.mxu0
      %v11096 = vpop.f32.mrf.mxu0
      %v11097 = vadd.f32 %v10953, %v11096
      %v11098 = vpop.f32.mrf.mxu0
      %11099 = vmatprep.mubr.bf16.mxu0 %v10857
      %11100 = vmatmul.mubr.bf16.gmra.mxu0 %v10856
      %v11101 = vpop.f32.mrf.mxu0
      %v11102 = vadd.f32 %v10953, %v11101
      %v11103 = vpop.f32.mrf.mxu0
      %v11104 = vpop.f32.mrf.mxu0
      %v11105 = vadd.f32 %v10953, %v11104
      %v11106 = vpop.f32.mrf.mxu0
      %11107 = vmatprep.mubr.bf16.mxu0 %v10859
      %11108 = vmatmul.mubr.bf16.gmra.mxu0 %v10858
      %v11109 = vpop.f32.mrf.mxu0
      %v11110 = vadd.f32 %v10953, %v11109
      %v11111 = vpop.f32.mrf.mxu0
      %v11112 = vpop.f32.mrf.mxu0
      %v11113 = vadd.f32 %v10953, %v11112
      %v11114 = vpop.f32.mrf.mxu0
      %11115 = vmatprep.mubr.bf16.mxu0 %v10861
      %11116 = vmatmul.mubr.bf16.gmra.mxu0 %v10860
      %v11117 = vpop.f32.mrf.mxu0
      %v11118 = vadd.f32 %v10953, %v11117
      %v11119 = vpop.f32.mrf.mxu0
      %v11120 = vpop.f32.mrf.mxu0
      %v11121 = vadd.f32 %v10953, %v11120
      %v11122 = vpop.f32.mrf.mxu0
      %11123 = vmatprep.mubr.bf16.mxu0 %v10863
      %11124 = vmatmul.mubr.bf16.gmra.mxu0 %v10862
      %v11125 = vpop.f32.mrf.mxu0
      %v11126 = vadd.f32 %v10953, %v11125
      %v11127 = vpop.f32.mrf.mxu0
      %v11128 = vpop.f32.mrf.mxu0
      %v11129 = vadd.f32 %v10953, %v11128
      %v11130 = vpop.f32.mrf.mxu0
      %11131 = vmatprep.mubr.bf16.mxu0 %v10865
      %11132 = vmatmul.mubr.bf16.gmra.mxu0 %v10864
      %v11133 = vpop.f32.mrf.mxu0
      %v11134 = vadd.f32 %v10953, %v11133
      %v11135 = vpop.f32.mrf.mxu0
      %v11136 = vpop.f32.mrf.mxu0
      %v11137 = vadd.f32 %v10953, %v11136
      %v11138 = vpop.f32.mrf.mxu0
      %11139 = vmatprep.mubr.bf16.mxu0 %v10867
      %11140 = vmatmul.mubr.bf16.gmra.mxu0 %v10866
      %v11141 = vpop.f32.mrf.mxu0
      %v11142 = vadd.f32 %v10953, %v11141
      %v11143 = vpop.f32.mrf.mxu0
      %v11144 = vpop.f32.mrf.mxu0
      %v11145 = vadd.f32 %v10953, %v11144
      %v11146 = vpop.f32.mrf.mxu0
      %11147 = vmatprep.mubr.bf16.mxu0 %v10869
      %11148 = vmatmul.mubr.bf16.gmra.mxu0 %v10868
      %v11149 = vpop.f32.mrf.mxu0
      %v11150 = vadd.f32 %v10953, %v11149
      %v11151 = vpop.f32.mrf.mxu0
      %v11152 = vpop.f32.mrf.mxu0
      %v11153 = vadd.f32 %v10953, %v11152
      %v11154 = vpop.f32.mrf.mxu0
      %11155 = vmatprep.mubr.bf16.mxu0 %v10871
      %11156 = vmatmul.mubr.bf16.gmra.mxu0 %v10870
      %v11157 = vpop.f32.mrf.mxu0
      %v11158 = vadd.f32 %v10953, %v11157
      %v11159 = vpop.f32.mrf.mxu0
      %v11160 = vpop.f32.mrf.mxu0
      %v11161 = vadd.f32 %v10953, %v11160
      %v11162 = vpop.f32.mrf.mxu0
      %11163 = vmatprep.mubr.bf16.mxu0 %v10873
      %11164 = vmatmul.mubr.bf16.gmra.mxu0 %v10872
      %v11165 = vpop.f32.mrf.mxu0
      %v11166 = vadd.f32 %v10953, %v11165
      %v11167 = vpop.f32.mrf.mxu0
      %v11168 = vpop.f32.mrf.mxu0
      %v11169 = vadd.f32 %v10953, %v11168
      %v11170 = vpop.f32.mrf.mxu0
      %11171 = vmatprep.mubr.bf16.mxu0 %v10875
      %11172 = vmatmul.mubr.bf16.gmra.mxu0 %v10874
      %v11173 = vpop.f32.mrf.mxu0
      %v11174 = vadd.f32 %v10953, %v11173
      %v11175 = vpop.f32.mrf.mxu0
      %v11176 = vpop.f32.mrf.mxu0
      %v11177 = vadd.f32 %v10953, %v11176
      %v11178 = vpop.f32.mrf.mxu0
      %11179 = vmatprep.mubr.bf16.mxu0 %v10877
      %11180 = vmatmul.mubr.bf16.gmra.mxu0 %v10876
      %v11181 = vpop.f32.mrf.mxu0
      %v11182 = vadd.f32 %v10953, %v11181
      %v11183 = vpop.f32.mrf.mxu0
      %v11184 = vpop.f32.mrf.mxu0
      %v11185 = vadd.f32 %v10953, %v11184
      %v11186 = vpop.f32.mrf.mxu0
      %11187 = vmatprep.mubr.bf16.mxu0 %v10879
      %11188 = vmatmul.mubr.bf16.gmra.mxu0 %v10878
      %v11189 = vpop.f32.mrf.mxu0
      %v11190 = vadd.f32 %v10953, %v11189
      %v11191 = vpop.f32.mrf.mxu0
      %v11192 = vpop.f32.mrf.mxu0
      %v11193 = vadd.f32 %v10953, %v11192
      %v11194 = vpop.f32.mrf.mxu0
      %11195 = vmatprep.mubr.bf16.mxu0 %v10881
      %11196 = vmatmul.mubr.bf16.gmra.mxu0 %v10880
      %v11197 = vpop.f32.mrf.mxu0
      %v11198 = vadd.f32 %v10953, %v11197
      %v11199 = vpop.f32.mrf.mxu0
      %v11200 = vpop.f32.mrf.mxu0
      %v11201 = vadd.f32 %v10953, %v11200
      %v11202 = vpop.f32.mrf.mxu0
      %11203 = vmatprep.mubr.bf16.mxu0 %v10883
      %11204 = vmatmul.mubr.bf16.gmra.mxu0 %v10882
      %v11205 = vpop.f32.mrf.mxu0
      %v11206 = vadd.f32 %v10953, %v11205
      %v11207 = vpop.f32.mrf.mxu0
      %v11208 = vpop.f32.mrf.mxu0
      %v11209 = vadd.f32 %v10953, %v11208
      %v11210 = vpop.f32.mrf.mxu0
      %11211 = vmatprep.mubr.bf16.mxu0 %v10885
      %11212 = vmatmul.mubr.bf16.gmra.mxu0 %v10884
      %v11213 = vpop.f32.mrf.mxu0
      %v11214 = vadd.f32 %v10953, %v11213
      %v11215 = vpop.f32.mrf.mxu0
      %v11216 = vpop.f32.mrf.mxu0
      %v11217 = vadd.f32 %v10953, %v11216
      %v11218 = vpop.f32.mrf.mxu0
      %11219 = vmatprep.mubr.bf16.mxu0 %v10887
      %11220 = vmatmul.mubr.bf16.gmra.mxu0 %v10886
      %v11221 = vpop.f32.mrf.mxu0
      %v11222 = vadd.f32 %v10953, %v11221
      %v11223 = vpop.f32.mrf.mxu0
      %v11224 = vpop.f32.mrf.mxu0
      %v11225 = vadd.f32 %v10953, %v11224
      %v11226 = vpop.f32.mrf.mxu0
      %11227 = vmatprep.mubr.bf16.mxu0 %v10889
      %11228 = vmatmul.mubr.bf16.gmra.mxu0 %v10888
      %v11229 = vpop.f32.mrf.mxu0
      %v11230 = vadd.f32 %v10953, %v11229
      %v11231 = vpop.f32.mrf.mxu0
      %v11232 = vpop.f32.mrf.mxu0
      %v11233 = vadd.f32 %v10953, %v11232
      %v11234 = vpop.f32.mrf.mxu0
      %11235 = vmatprep.mubr.bf16.mxu0 %v10891
      %11236 = vmatmul.mubr.bf16.gmra.mxu0 %v10890
      %v11237 = vpop.f32.mrf.mxu0
      %v11238 = vadd.f32 %v10953, %v11237
      %v11239 = vpop.f32.mrf.mxu0
      %v11240 = vpop.f32.mrf.mxu0
      %v11241 = vadd.f32 %v10953, %v11240
      %v11242 = vpop.f32.mrf.mxu0
      %11243 = vmatprep.mubr.bf16.mxu0 %v10893
      %11244 = vmatmul.mubr.bf16.gmra.mxu0 %v10892
      %v11245 = vpop.f32.mrf.mxu0
      %v11246 = vadd.f32 %v10953, %v11245
      %v11247 = vpop.f32.mrf.mxu0
      %v11248 = vpop.f32.mrf.mxu0
      %v11249 = vadd.f32 %v10953, %v11248
      %v11250 = vpop.f32.mrf.mxu0
      %11251 = vmatprep.mubr.bf16.mxu0 %v10895
      %11252 = vmatmul.mubr.bf16.gmra.mxu0 %v10894
      %v11253 = vpop.f32.mrf.mxu0
      %v11254 = vadd.f32 %v10953, %v11253
      %v11255 = vpop.f32.mrf.mxu0
      %v11256 = vpop.f32.mrf.mxu0
      %v11257 = vadd.f32 %v10953, %v11256
      %v11258 = vpop.f32.mrf.mxu0
      %11259 = vmatprep.mubr.bf16.mxu0 %v10897
      %11260 = vmatmul.mubr.bf16.gmra.mxu0 %v10896
      %v11261 = vpop.f32.mrf.mxu0
      %v11262 = vadd.f32 %v10953, %v11261
      %v11263 = vpop.f32.mrf.mxu0
      %v11264 = vpop.f32.mrf.mxu0
      %v11265 = vadd.f32 %v10953, %v11264
      %v11266 = vpop.f32.mrf.mxu0
      %11267 = vmatprep.mubr.bf16.mxu0 %v10899
      %11268 = vmatmul.mubr.bf16.gmra.mxu0 %v10898
      %v11269 = vpop.f32.mrf.mxu0
      %v11270 = vadd.f32 %v10953, %v11269
      %v11271 = vpop.f32.mrf.mxu0
      %v11272 = vpop.f32.mrf.mxu0
      %v11273 = vadd.f32 %v10953, %v11272
      %v11274 = vpop.f32.mrf.mxu0
      %11275 = vmatprep.mubr.bf16.mxu0 %v10901
      %11276 = vmatmul.mubr.bf16.gmra.mxu0 %v10900
      %v11277 = vpop.f32.mrf.mxu0
      %v11278 = vadd.f32 %v10953, %v11277
      %v11279 = vpop.f32.mrf.mxu0
      %v11280 = vpop.f32.mrf.mxu0
      %v11281 = vadd.f32 %v10953, %v11280
      %v11282 = vpop.f32.mrf.mxu0
      %11283 = vmatprep.mubr.bf16.mxu0 %v10903
      %11284 = vmatmul.mubr.bf16.gmra.mxu0 %v10902
      %v11285 = vpop.f32.mrf.mxu0
      %v11286 = vadd.f32 %v10953, %v11285
      %v11287 = vpop.f32.mrf.mxu0
      %v11288 = vpop.f32.mrf.mxu0
      %v11289 = vadd.f32 %v10953, %v11288
      %v11290 = vpop.f32.mrf.mxu0
      %11291 = vmatprep.mubr.bf16.mxu0 %v10905
      %11292 = vmatmul.mubr.bf16.gmra.mxu0 %v10904
      %v11293 = vpop.f32.mrf.mxu0
      %v11294 = vadd.f32 %v10953, %v11293
      %v11295 = vpop.f32.mrf.mxu0
      %v11296 = vpop.f32.mrf.mxu0
      %v11297 = vadd.f32 %v10953, %v11296
      %v11298 = vpop.f32.mrf.mxu0
      %11299 = vmatprep.mubr.bf16.mxu0 %v10907
      %11300 = vmatmul.mubr.bf16.gmra.mxu0 %v10906
      %v11301 = vpop.f32.mrf.mxu0
      %v11302 = vadd.f32 %v10953, %v11301
      %v11303 = vpop.f32.mrf.mxu0
      %v11304 = vpop.f32.mrf.mxu0
      %v11305 = vadd.f32 %v10953, %v11304
      %v11306 = vpop.f32.mrf.mxu0
      %11307 = vmatprep.mubr.bf16.mxu0 %v10909
      %11308 = vmatmul.mubr.bf16.gmra.mxu0 %v10908
      %v11309 = vpop.f32.mrf.mxu0
      %v11310 = vadd.f32 %v10953, %v11309
      %v11311 = vpop.f32.mrf.mxu0
      %v11312 = vpop.f32.mrf.mxu0
      %v11313 = vadd.f32 %v10953, %v11312
      %v11314 = vpop.f32.mrf.mxu0
      %11315 = vmatprep.mubr.bf16.mxu0 %v10911
      %11316 = vmatmul.mubr.bf16.gmra.mxu0 %v10910
      %v11317 = vpop.f32.mrf.mxu0
      %v11318 = vadd.f32 %v10953, %v11317
      %v11319 = vpop.f32.mrf.mxu0
      %v11320 = vpop.f32.mrf.mxu0
      %v11321 = vadd.f32 %v10953, %v11320
      %v11322 = vpop.f32.mrf.mxu0
      %11323 = vmatprep.mubr.bf16.mxu0 %v10913
      %11324 = vmatmul.mubr.bf16.gmra.mxu0 %v10912
      %v11325 = vpop.f32.mrf.mxu0
      %v11326 = vadd.f32 %v10953, %v11325
      %v11327 = vpop.f32.mrf.mxu0
      %v11328 = vpop.f32.mrf.mxu0
      %v11329 = vadd.f32 %v10953, %v11328
      %v11330 = vpop.f32.mrf.mxu0
      %11331 = vmatprep.mubr.bf16.mxu0 %v10915
      %11332 = vmatmul.mubr.bf16.gmra.mxu0 %v10914
      %v11333 = vpop.f32.mrf.mxu0
      %v11334 = vadd.f32 %v10953, %v11333
      %v11335 = vpop.f32.mrf.mxu0
      %v11336 = vpop.f32.mrf.mxu0
      %v11337 = vadd.f32 %v10953, %v11336
      %v11338 = vpop.f32.mrf.mxu0
      %11339 = vdwg.mxu0
      %v11340 = vmax.f32 %v11086, 0.0
      %v11341 = vmax.f32 %v11089, 0.0
      %v11342 = vmax.f32 %v11094, 0.0
      %v11343 = vmax.f32 %v11097, 0.0
      %v11344 = vmax.f32 %v11102, 0.0
      %v11345 = vmax.f32 %v11105, 0.0
      %v11346 = vmax.f32 %v11110, 0.0
      %v11347 = vmax.f32 %v11113, 0.0
      %v11348 = vmax.f32 %v11118, 0.0
      %v11349 = vmax.f32 %v11121, 0.0
      %v11350 = vmax.f32 %v11126, 0.0
      %v11351 = vmax.f32 %v11129, 0.0
      %v11352 = vmax.f32 %v11134, 0.0
      %v11353 = vmax.f32 %v11137, 0.0
      %v11354 = vmax.f32 %v11142, 0.0
      %v11355 = vmax.f32 %v11145, 0.0
      %v11356 = vmax.f32 %v11150, 0.0
      %v11357 = vmax.f32 %v11153, 0.0
      %v11358 = vmax.f32 %v11158, 0.0
      %v11359 = vmax.f32 %v11161, 0.0
      %v11360 = vmax.f32 %v11166, 0.0
      %v11361 = vmax.f32 %v11169, 0.0
      %v11362 = vmax.f32 %v11174, 0.0
      %v11363 = vmax.f32 %v11177, 0.0
      %v11364 = vmax.f32 %v11182, 0.0
      %v11365 = vmax.f32 %v11185, 0.0
      %v11366 = vmax.f32 %v11190, 0.0
      %v11367 = vmax.f32 %v11193, 0.0
      %v11368 = vmax.f32 %v11198, 0.0
      %v11369 = vmax.f32 %v11201, 0.0
      %v11370 = vmax.f32 %v11206, 0.0
      %v11371 = vmax.f32 %v11209, 0.0
      %v11372 = vmax.f32 %v11214, 0.0
      %v11373 = vmax.f32 %v11217, 0.0
      %v11374 = vmax.f32 %v11222, 0.0
      %v11375 = vmax.f32 %v11225, 0.0
      %v11376 = vmax.f32 %v11230, 0.0
      %v11377 = vmax.f32 %v11233, 0.0
      %v11378 = vmax.f32 %v11238, 0.0
      %v11379 = vmax.f32 %v11241, 0.0
      %v11380 = vmax.f32 %v11246, 0.0
      %v11381 = vmax.f32 %v11249, 0.0
      %v11382 = vmax.f32 %v11254, 0.0
      %v11383 = vmax.f32 %v11257, 0.0
      %v11384 = vmax.f32 %v11262, 0.0
      %v11385 = vmax.f32 %v11265, 0.0
      %v11386 = vmax.f32 %v11270, 0.0
      %v11387 = vmax.f32 %v11273, 0.0
      %v11388 = vmax.f32 %v11278, 0.0
      %v11389 = vmax.f32 %v11281, 0.0
      %v11390 = vmax.f32 %v11286, 0.0
      %v11391 = vmax.f32 %v11289, 0.0
      %v11392 = vmax.f32 %v11294, 0.0
      %v11393 = vmax.f32 %v11297, 0.0
      %v11394 = vmax.f32 %v11302, 0.0
      %v11395 = vmax.f32 %v11305, 0.0
      %v11396 = vmax.f32 %v11310, 0.0
      %v11397 = vmax.f32 %v11313, 0.0
      %v11398 = vmax.f32 %v11318, 0.0
      %v11399 = vmax.f32 %v11321, 0.0
      %v11400 = vmax.f32 %v11326, 0.0
      %v11401 = vmax.f32 %v11329, 0.0
      %v11402 = vmax.f32 %v11334, 0.0
      %v11403 = vmax.f32 %v11337, 0.0
      %v11404 = vxor.u32 %v11340, 2147483648
      %v11405 = vxor.u32 %v11341, 2147483648
      %v11406 = vxor.u32 %v11342, 2147483648
      %v11407 = vxor.u32 %v11343, 2147483648
      %v11408 = vxor.u32 %v11344, 2147483648
      %v11409 = vxor.u32 %v11345, 2147483648
      %v11410 = vxor.u32 %v11346, 2147483648
      %v11411 = vxor.u32 %v11347, 2147483648
      %v11412 = vxor.u32 %v11348, 2147483648
      %v11413 = vxor.u32 %v11349, 2147483648
      %v11414 = vxor.u32 %v11350, 2147483648
      %v11415 = vxor.u32 %v11351, 2147483648
      %v11416 = vxor.u32 %v11352, 2147483648
      %v11417 = vxor.u32 %v11353, 2147483648
      %v11418 = vxor.u32 %v11354, 2147483648
      %v11419 = vxor.u32 %v11355, 2147483648
      %v11420 = vxor.u32 %v11356, 2147483648
      %v11421 = vxor.u32 %v11357, 2147483648
      %v11422 = vxor.u32 %v11358, 2147483648
      %v11423 = vxor.u32 %v11359, 2147483648
      %v11424 = vxor.u32 %v11360, 2147483648
      %v11425 = vxor.u32 %v11361, 2147483648
      %v11426 = vxor.u32 %v11362, 2147483648
      %v11427 = vxor.u32 %v11363, 2147483648
      %v11428 = vxor.u32 %v11364, 2147483648
      %v11429 = vxor.u32 %v11365, 2147483648
      %v11430 = vxor.u32 %v11366, 2147483648
      %v11431 = vxor.u32 %v11367, 2147483648
      %v11432 = vxor.u32 %v11368, 2147483648
      %v11433 = vxor.u32 %v11369, 2147483648
      %v11434 = vxor.u32 %v11370, 2147483648
      %v11435 = vxor.u32 %v11371, 2147483648
      %v11436 = vxor.u32 %v11372, 2147483648
      %v11437 = vxor.u32 %v11373, 2147483648
      %v11438 = vxor.u32 %v11374, 2147483648
      %v11439 = vxor.u32 %v11375, 2147483648
      %v11440 = vxor.u32 %v11376, 2147483648
      %v11441 = vxor.u32 %v11377, 2147483648
      %v11442 = vxor.u32 %v11378, 2147483648
      %v11443 = vxor.u32 %v11379, 2147483648
      %v11444 = vxor.u32 %v11380, 2147483648
      %v11445 = vxor.u32 %v11381, 2147483648
      %v11446 = vxor.u32 %v11382, 2147483648
      %v11447 = vxor.u32 %v11383, 2147483648
      %v11448 = vxor.u32 %v11384, 2147483648
      %v11449 = vxor.u32 %v11385, 2147483648
      %v11450 = vxor.u32 %v11386, 2147483648
      %v11451 = vxor.u32 %v11387, 2147483648
      %v11452 = vxor.u32 %v11388, 2147483648
      %v11453 = vxor.u32 %v11389, 2147483648
      %v11454 = vxor.u32 %v11390, 2147483648
      %v11455 = vxor.u32 %v11391, 2147483648
      %v11456 = vxor.u32 %v11392, 2147483648
      %v11457 = vxor.u32 %v11393, 2147483648
      %v11458 = vxor.u32 %v11394, 2147483648
      %v11459 = vxor.u32 %v11395, 2147483648
      %v11460 = vxor.u32 %v11396, 2147483648
      %v11461 = vxor.u32 %v11397, 2147483648
      %v11462 = vxor.u32 %v11398, 2147483648
      %v11463 = vxor.u32 %v11399, 2147483648
      %v11464 = vxor.u32 %v11400, 2147483648
      %v11465 = vxor.u32 %v11401, 2147483648
      %v11466 = vxor.u32 %v11402, 2147483648
      %v11467 = vxor.u32 %v11403, 2147483648
      %v11468 = vmul.f32 %v11404, 1.442695
      %v11469 = vpow.pop %v11468
      %v11470 = vmul.f32 %v11405, 1.442695
      %v11471 = vpow.pop %v11470
      %v11472 = vmul.f32 %v11406, 1.442695
      %v11473 = vpow.pop %v11472
      %v11474 = vmul.f32 %v11407, 1.442695
      %v11475 = vpow.pop %v11474
      %v11476 = vmul.f32 %v11408, 1.442695
      %v11477 = vpow.pop %v11476
      %v11478 = vmul.f32 %v11409, 1.442695
      %v11479 = vpow.pop %v11478
      %v11480 = vmul.f32 %v11410, 1.442695
      %v11481 = vpow.pop %v11480
      %v11482 = vmul.f32 %v11411, 1.442695
      %v11483 = vpow.pop %v11482
      %v11484 = vmul.f32 %v11412, 1.442695
      %v11485 = vpow.pop %v11484
      %v11486 = vmul.f32 %v11413, 1.442695
      %v11487 = vpow.pop %v11486
      %v11488 = vmul.f32 %v11414, 1.442695
      %v11489 = vpow.pop %v11488
      %v11490 = vmul.f32 %v11415, 1.442695
      %v11491 = vpow.pop %v11490
      %v11492 = vmul.f32 %v11416, 1.442695
      %v11493 = vpow.pop %v11492
      %v11494 = vmul.f32 %v11417, 1.442695
      %v11495 = vpow.pop %v11494
      %v11496 = vmul.f32 %v11418, 1.442695
      %v11497 = vpow.pop %v11496
      %v11498 = vmul.f32 %v11419, 1.442695
      %v11499 = vpow.pop %v11498
      %v11500 = vmul.f32 %v11420, 1.442695
      %v11501 = vpow.pop %v11500
      %v11502 = vmul.f32 %v11421, 1.442695
      %v11503 = vpow.pop %v11502
      %v11504 = vmul.f32 %v11422, 1.442695
      %v11505 = vpow.pop %v11504
      %v11506 = vmul.f32 %v11423, 1.442695
      %v11507 = vpow.pop %v11506
      %v11508 = vmul.f32 %v11424, 1.442695
      %v11509 = vpow.pop %v11508
      %v11510 = vmul.f32 %v11425, 1.442695
      %v11511 = vpow.pop %v11510
      %v11512 = vmul.f32 %v11426, 1.442695
      %v11513 = vpow.pop %v11512
      %v11514 = vmul.f32 %v11427, 1.442695
      %v11515 = vpow.pop %v11514
      %v11516 = vmul.f32 %v11428, 1.442695
      %v11517 = vpow.pop %v11516
      %v11518 = vmul.f32 %v11429, 1.442695
      %v11519 = vpow.pop %v11518
      %v11520 = vmul.f32 %v11430, 1.442695
      %v11521 = vpow.pop %v11520
      %v11522 = vmul.f32 %v11431, 1.442695
      %v11523 = vpow.pop %v11522
      %v11524 = vmul.f32 %v11432, 1.442695
      %v11525 = vpow.pop %v11524
      %v11526 = vmul.f32 %v11433, 1.442695
      %v11527 = vpow.pop %v11526
      %v11528 = vmul.f32 %v11434, 1.442695
      %v11529 = vpow.pop %v11528
      %v11530 = vmul.f32 %v11435, 1.442695
      %v11531 = vpow.pop %v11530
      %v11532 = vmul.f32 %v11436, 1.442695
      %v11533 = vpow.pop %v11532
      %v11534 = vmul.f32 %v11437, 1.442695
      %v11535 = vpow.pop %v11534
      %v11536 = vmul.f32 %v11438, 1.442695
      %v11537 = vpow.pop %v11536
      %v11538 = vmul.f32 %v11439, 1.442695
      %v11539 = vpow.pop %v11538
      %v11540 = vmul.f32 %v11440, 1.442695
      %v11541 = vpow.pop %v11540
      %v11542 = vmul.f32 %v11441, 1.442695
      %v11543 = vpow.pop %v11542
      %v11544 = vmul.f32 %v11442, 1.442695
      %v11545 = vpow.pop %v11544
      %v11546 = vmul.f32 %v11443, 1.442695
      %v11547 = vpow.pop %v11546
      %v11548 = vmul.f32 %v11444, 1.442695
      %v11549 = vpow.pop %v11548
      %v11550 = vmul.f32 %v11445, 1.442695
      %v11551 = vpow.pop %v11550
      %v11552 = vmul.f32 %v11446, 1.442695
      %v11553 = vpow.pop %v11552
      %v11554 = vmul.f32 %v11447, 1.442695
      %v11555 = vpow.pop %v11554
      %v11556 = vmul.f32 %v11448, 1.442695
      %v11557 = vpow.pop %v11556
      %v11558 = vmul.f32 %v11449, 1.442695
      %v11559 = vpow.pop %v11558
      %v11560 = vmul.f32 %v11450, 1.442695
      %v11561 = vpow.pop %v11560
      %v11562 = vmul.f32 %v11451, 1.442695
      %v11563 = vpow.pop %v11562
      %v11564 = vmul.f32 %v11452, 1.442695
      %v11565 = vpow.pop %v11564
      %v11566 = vmul.f32 %v11453, 1.442695
      %v11567 = vpow.pop %v11566
      %v11568 = vmul.f32 %v11454, 1.442695
      %v11569 = vpow.pop %v11568
      %v11570 = vmul.f32 %v11455, 1.442695
      %v11571 = vpow.pop %v11570
      %v11572 = vmul.f32 %v11456, 1.442695
      %v11573 = vpow.pop %v11572
      %v11574 = vmul.f32 %v11457, 1.442695
      %v11575 = vpow.pop %v11574
      %v11576 = vmul.f32 %v11458, 1.442695
      %v11577 = vpow.pop %v11576
      %v11578 = vmul.f32 %v11459, 1.442695
      %v11579 = vpow.pop %v11578
      %v11580 = vmul.f32 %v11460, 1.442695
      %v11581 = vpow.pop %v11580
      %v11582 = vmul.f32 %v11461, 1.442695
      %v11583 = vpow.pop %v11582
      %v11584 = vmul.f32 %v11462, 1.442695
      %v11585 = vpow.pop %v11584
      %v11586 = vmul.f32 %v11463, 1.442695
      %v11587 = vpow.pop %v11586
      %v11588 = vmul.f32 %v11464, 1.442695
      %v11589 = vpow.pop %v11588
      %v11590 = vmul.f32 %v11465, 1.442695
      %v11591 = vpow.pop %v11590
      %v11592 = vmul.f32 %v11466, 1.442695
      %v11593 = vpow.pop %v11592
      %v11594 = vmul.f32 %v11467, 1.442695
      %v11595 = vpow.pop %v11594
      %v11596 = vadd.f32 %v11469, 1.0
      %v11597 = vadd.f32 %v11471, 1.0
      %v11598 = vadd.f32 %v11473, 1.0
      %v11599 = vadd.f32 %v11475, 1.0
      %v11600 = vadd.f32 %v11477, 1.0
      %v11601 = vadd.f32 %v11479, 1.0
      %v11602 = vadd.f32 %v11481, 1.0
      %v11603 = vadd.f32 %v11483, 1.0
      %v11604 = vadd.f32 %v11485, 1.0
      %v11605 = vadd.f32 %v11487, 1.0
      %v11606 = vadd.f32 %v11489, 1.0
      %v11607 = vadd.f32 %v11491, 1.0
      %v11608 = vadd.f32 %v11493, 1.0
      %v11609 = vadd.f32 %v11495, 1.0
      %v11610 = vadd.f32 %v11497, 1.0
      %v11611 = vadd.f32 %v11499, 1.0
      %v11612 = vadd.f32 %v11501, 1.0
      %v11613 = vadd.f32 %v11503, 1.0
      %v11614 = vadd.f32 %v11505, 1.0
      %v11615 = vadd.f32 %v11507, 1.0
      %v11616 = vadd.f32 %v11509, 1.0
      %v11617 = vadd.f32 %v11511, 1.0
      %v11618 = vadd.f32 %v11513, 1.0
      %v11619 = vadd.f32 %v11515, 1.0
      %v11620 = vadd.f32 %v11517, 1.0
      %v11621 = vadd.f32 %v11519, 1.0
      %v11622 = vadd.f32 %v11521, 1.0
      %v11623 = vadd.f32 %v11523, 1.0
      %v11624 = vadd.f32 %v11525, 1.0
      %v11625 = vadd.f32 %v11527, 1.0
      %v11626 = vadd.f32 %v11529, 1.0
      %v11627 = vadd.f32 %v11531, 1.0
      %v11628 = vadd.f32 %v11533, 1.0
      %v11629 = vadd.f32 %v11535, 1.0
      %v11630 = vadd.f32 %v11537, 1.0
      %v11631 = vadd.f32 %v11539, 1.0
      %v11632 = vadd.f32 %v11541, 1.0
      %v11633 = vadd.f32 %v11543, 1.0
      %v11634 = vadd.f32 %v11545, 1.0
      %v11635 = vadd.f32 %v11547, 1.0
      %v11636 = vadd.f32 %v11549, 1.0
      %v11637 = vadd.f32 %v11551, 1.0
      %v11638 = vadd.f32 %v11553, 1.0
      %v11639 = vadd.f32 %v11555, 1.0
      %v11640 = vadd.f32 %v11557, 1.0
      %v11641 = vadd.f32 %v11559, 1.0
      %v11642 = vadd.f32 %v11561, 1.0
      %v11643 = vadd.f32 %v11563, 1.0
      %v11644 = vadd.f32 %v11565, 1.0
      %v11645 = vadd.f32 %v11567, 1.0
      %v11646 = vadd.f32 %v11569, 1.0
      %v11647 = vadd.f32 %v11571, 1.0
      %v11648 = vadd.f32 %v11573, 1.0
      %v11649 = vadd.f32 %v11575, 1.0
      %v11650 = vadd.f32 %v11577, 1.0
      %v11651 = vadd.f32 %v11579, 1.0
      %v11652 = vadd.f32 %v11581, 1.0
      %v11653 = vadd.f32 %v11583, 1.0
      %v11654 = vadd.f32 %v11585, 1.0
      %v11655 = vadd.f32 %v11587, 1.0
      %v11656 = vadd.f32 %v11589, 1.0
      %v11657 = vadd.f32 %v11591, 1.0
      %v11658 = vadd.f32 %v11593, 1.0
      %v11659 = vadd.f32 %v11595, 1.0
      %v11660 = vrcp.pop %v11596
      %v11661 = vmul.f32 1.0, %v11660
      %v11662 = vrcp.pop %v11597
      %v11663 = vmul.f32 1.0, %v11662
      %v11664 = vrcp.pop %v11598
      %v11665 = vmul.f32 1.0, %v11664
      %v11666 = vrcp.pop %v11599
      %v11667 = vmul.f32 1.0, %v11666
      %v11668 = vrcp.pop %v11600
      %v11669 = vmul.f32 1.0, %v11668
      %v11670 = vrcp.pop %v11601
      %v11671 = vmul.f32 1.0, %v11670
      %v11672 = vrcp.pop %v11602
      %v11673 = vmul.f32 1.0, %v11672
      %v11674 = vrcp.pop %v11603
      %v11675 = vmul.f32 1.0, %v11674
      %v11676 = vrcp.pop %v11604
      %v11677 = vmul.f32 1.0, %v11676
      %v11678 = vrcp.pop %v11605
      %v11679 = vmul.f32 1.0, %v11678
      %v11680 = vrcp.pop %v11606
      %v11681 = vmul.f32 1.0, %v11680
      %v11682 = vrcp.pop %v11607
      %v11683 = vmul.f32 1.0, %v11682
      %v11684 = vrcp.pop %v11608
      %v11685 = vmul.f32 1.0, %v11684
      %v11686 = vrcp.pop %v11609
      %v11687 = vmul.f32 1.0, %v11686
      %v11688 = vrcp.pop %v11610
      %v11689 = vmul.f32 1.0, %v11688
      %v11690 = vrcp.pop %v11611
      %v11691 = vmul.f32 1.0, %v11690
      %v11692 = vrcp.pop %v11612
      %v11693 = vmul.f32 1.0, %v11692
      %v11694 = vrcp.pop %v11613
      %v11695 = vmul.f32 1.0, %v11694
      %v11696 = vrcp.pop %v11614
      %v11697 = vmul.f32 1.0, %v11696
      %v11698 = vrcp.pop %v11615
      %v11699 = vmul.f32 1.0, %v11698
      %v11700 = vrcp.pop %v11616
      %v11701 = vmul.f32 1.0, %v11700
      %v11702 = vrcp.pop %v11617
      %v11703 = vmul.f32 1.0, %v11702
      %v11704 = vrcp.pop %v11618
      %v11705 = vmul.f32 1.0, %v11704
      %v11706 = vrcp.pop %v11619
      %v11707 = vmul.f32 1.0, %v11706
      %v11708 = vrcp.pop %v11620
      %v11709 = vmul.f32 1.0, %v11708
      %v11710 = vrcp.pop %v11621
      %v11711 = vmul.f32 1.0, %v11710
      %v11712 = vrcp.pop %v11622
      %v11713 = vmul.f32 1.0, %v11712
      %v11714 = vrcp.pop %v11623
      %v11715 = vmul.f32 1.0, %v11714
      %v11716 = vrcp.pop %v11624
      %v11717 = vmul.f32 1.0, %v11716
      %v11718 = vrcp.pop %v11625
      %v11719 = vmul.f32 1.0, %v11718
      %v11720 = vrcp.pop %v11626
      %v11721 = vmul.f32 1.0, %v11720
      %v11722 = vrcp.pop %v11627
      %v11723 = vmul.f32 1.0, %v11722
      %v11724 = vrcp.pop %v11628
      %v11725 = vmul.f32 1.0, %v11724
      %v11726 = vrcp.pop %v11629
      %v11727 = vmul.f32 1.0, %v11726
      %v11728 = vrcp.pop %v11630
      %v11729 = vmul.f32 1.0, %v11728
      %v11730 = vrcp.pop %v11631
      %v11731 = vmul.f32 1.0, %v11730
      %v11732 = vrcp.pop %v11632
      %v11733 = vmul.f32 1.0, %v11732
      %v11734 = vrcp.pop %v11633
      %v11735 = vmul.f32 1.0, %v11734
      %v11736 = vrcp.pop %v11634
      %v11737 = vmul.f32 1.0, %v11736
      %v11738 = vrcp.pop %v11635
      %v11739 = vmul.f32 1.0, %v11738
      %v11740 = vrcp.pop %v11636
      %v11741 = vmul.f32 1.0, %v11740
      %v11742 = vrcp.pop %v11637
      %v11743 = vmul.f32 1.0, %v11742
      %v11744 = vrcp.pop %v11638
      %v11745 = vmul.f32 1.0, %v11744
      %v11746 = vrcp.pop %v11639
      %v11747 = vmul.f32 1.0, %v11746
      %v11748 = vrcp.pop %v11640
      %v11749 = vmul.f32 1.0, %v11748
      %v11750 = vrcp.pop %v11641
      %v11751 = vmul.f32 1.0, %v11750
      %v11752 = vrcp.pop %v11642
      %v11753 = vmul.f32 1.0, %v11752
      %v11754 = vrcp.pop %v11643
      %v11755 = vmul.f32 1.0, %v11754
      %v11756 = vrcp.pop %v11644
      %v11757 = vmul.f32 1.0, %v11756
      %v11758 = vrcp.pop %v11645
      %v11759 = vmul.f32 1.0, %v11758
      %v11760 = vrcp.pop %v11646
      %v11761 = vmul.f32 1.0, %v11760
      %v11762 = vrcp.pop %v11647
      %v11763 = vmul.f32 1.0, %v11762
      %v11764 = vrcp.pop %v11648
      %v11765 = vmul.f32 1.0, %v11764
      %v11766 = vrcp.pop %v11649
      %v11767 = vmul.f32 1.0, %v11766
      %v11768 = vrcp.pop %v11650
      %v11769 = vmul.f32 1.0, %v11768
      %v11770 = vrcp.pop %v11651
      %v11771 = vmul.f32 1.0, %v11770
      %v11772 = vrcp.pop %v11652
      %v11773 = vmul.f32 1.0, %v11772
      %v11774 = vrcp.pop %v11653
      %v11775 = vmul.f32 1.0, %v11774
      %v11776 = vrcp.pop %v11654
      %v11777 = vmul.f32 1.0, %v11776
      %v11778 = vrcp.pop %v11655
      %v11779 = vmul.f32 1.0, %v11778
      %v11780 = vrcp.pop %v11656
      %v11781 = vmul.f32 1.0, %v11780
      %v11782 = vrcp.pop %v11657
      %v11783 = vmul.f32 1.0, %v11782
      %v11784 = vrcp.pop %v11658
      %v11785 = vmul.f32 1.0, %v11784
      %v11786 = vrcp.pop %v11659
      %v11787 = vmul.f32 1.0, %v11786
      %vm11788 = vcmask 23552
      %11789 = vst.msk [vmem:[%s950] sm:$0xff] %vm11788, %v11661
      %11790 = vst.msk [vmem:[%s950 + $0x8] sm:$0xff] %vm11788, %v11663
      %11791 = vst.msk [vmem:[%s950 + $0x10] sm:$0xff] %vm11788, %v11665
      %11792 = vst.msk [vmem:[%s950 + $0x18] sm:$0xff] %vm11788, %v11667
      %11793 = vst.msk [vmem:[%s950 + $0x20] sm:$0xff] %vm11788, %v11669
      %11794 = vst.msk [vmem:[%s950 + $0x28] sm:$0xff] %vm11788, %v11671
      %11795 = vst.msk [vmem:[%s950 + $0x30] sm:$0xff] %vm11788, %v11673
      %11796 = vst.msk [vmem:[%s950 + $0x38] sm:$0xff] %vm11788, %v11675
      %11797 = vst.msk [vmem:[%s950 + $0x40] sm:$0xff] %vm11788, %v11677
      %11798 = vst.msk [vmem:[%s950 + $0x48] sm:$0xff] %vm11788, %v11679
      %11799 = vst.msk [vmem:[%s950 + $0x50] sm:$0xff] %vm11788, %v11681
      %11800 = vst.msk [vmem:[%s950 + $0x58] sm:$0xff] %vm11788, %v11683
      %11801 = vst.msk [vmem:[%s950 + $0x60] sm:$0xff] %vm11788, %v11685
      %11802 = vst.msk [vmem:[%s950 + $0x68] sm:$0xff] %vm11788, %v11687
      %11803 = vst.msk [vmem:[%s950 + $0x70] sm:$0xff] %vm11788, %v11689
      %11804 = vst.msk [vmem:[%s950 + $0x78] sm:$0xff] %vm11788, %v11691
      %11805 = vst.msk [vmem:[%s950 + $0x80] sm:$0xff] %vm11788, %v11693
      %11806 = vst.msk [vmem:[%s950 + $0x88] sm:$0xff] %vm11788, %v11695
      %11807 = vst.msk [vmem:[%s950 + $0x90] sm:$0xff] %vm11788, %v11697
      %11808 = vst.msk [vmem:[%s950 + $0x98] sm:$0xff] %vm11788, %v11699
      %11809 = vst.msk [vmem:[%s950 + $0xa0] sm:$0xff] %vm11788, %v11701
      %11810 = vst.msk [vmem:[%s950 + $0xa8] sm:$0xff] %vm11788, %v11703
      %11811 = vst.msk [vmem:[%s950 + $0xb0] sm:$0xff] %vm11788, %v11705
      %11812 = vst.msk [vmem:[%s950 + $0xb8] sm:$0xff] %vm11788, %v11707
      %11813 = vst.msk [vmem:[%s950 + $0xc0] sm:$0xff] %vm11788, %v11709
      %11814 = vst.msk [vmem:[%s950 + $0xc8] sm:$0xff] %vm11788, %v11711
      %11815 = vst.msk [vmem:[%s950 + $0xd0] sm:$0xff] %vm11788, %v11713
      %11816 = vst.msk [vmem:[%s950 + $0xd8] sm:$0xff] %vm11788, %v11715
      %11817 = vst.msk [vmem:[%s950 + $0xe0] sm:$0xff] %vm11788, %v11717
      %11818 = vst.msk [vmem:[%s950 + $0xe8] sm:$0xff] %vm11788, %v11719
      %11819 = vst.msk [vmem:[%s950 + $0xf0] sm:$0xff] %vm11788, %v11721
      %11820 = vst.msk [vmem:[%s950 + $0xf8] sm:$0xff] %vm11788, %v11723
      %11821 = vst.msk [vmem:[%s950 + $0x100] sm:$0xff] %vm11788, %v11725
      %11822 = vst.msk [vmem:[%s950 + $0x108] sm:$0xff] %vm11788, %v11727
      %11823 = vst.msk [vmem:[%s950 + $0x110] sm:$0xff] %vm11788, %v11729
      %11824 = vst.msk [vmem:[%s950 + $0x118] sm:$0xff] %vm11788, %v11731
      %11825 = vst.msk [vmem:[%s950 + $0x120] sm:$0xff] %vm11788, %v11733
      %11826 = vst.msk [vmem:[%s950 + $0x128] sm:$0xff] %vm11788, %v11735
      %11827 = vst.msk [vmem:[%s950 + $0x130] sm:$0xff] %vm11788, %v11737
      %11828 = vst.msk [vmem:[%s950 + $0x138] sm:$0xff] %vm11788, %v11739
      %11829 = vst.msk [vmem:[%s950 + $0x140] sm:$0xff] %vm11788, %v11741
      %11830 = vst.msk [vmem:[%s950 + $0x148] sm:$0xff] %vm11788, %v11743
      %11831 = vst.msk [vmem:[%s950 + $0x150] sm:$0xff] %vm11788, %v11745
      %11832 = vst.msk [vmem:[%s950 + $0x158] sm:$0xff] %vm11788, %v11747
      %11833 = vst.msk [vmem:[%s950 + $0x160] sm:$0xff] %vm11788, %v11749
      %11834 = vst.msk [vmem:[%s950 + $0x168] sm:$0xff] %vm11788, %v11751
      %11835 = vst.msk [vmem:[%s950 + $0x170] sm:$0xff] %vm11788, %v11753
      %11836 = vst.msk [vmem:[%s950 + $0x178] sm:$0xff] %vm11788, %v11755
      %11837 = vst.msk [vmem:[%s950 + $0x180] sm:$0xff] %vm11788, %v11757
      %11838 = vst.msk [vmem:[%s950 + $0x188] sm:$0xff] %vm11788, %v11759
      %11839 = vst.msk [vmem:[%s950 + $0x190] sm:$0xff] %vm11788, %v11761
      %11840 = vst.msk [vmem:[%s950 + $0x198] sm:$0xff] %vm11788, %v11763
      %11841 = vst.msk [vmem:[%s950 + $0x1a0] sm:$0xff] %vm11788, %v11765
      %11842 = vst.msk [vmem:[%s950 + $0x1a8] sm:$0xff] %vm11788, %v11767
      %11843 = vst.msk [vmem:[%s950 + $0x1b0] sm:$0xff] %vm11788, %v11769
      %11844 = vst.msk [vmem:[%s950 + $0x1b8] sm:$0xff] %vm11788, %v11771
      %11845 = vst.msk [vmem:[%s950 + $0x1c0] sm:$0xff] %vm11788, %v11773
      %11846 = vst.msk [vmem:[%s950 + $0x1c8] sm:$0xff] %vm11788, %v11775
      %11847 = vst.msk [vmem:[%s950 + $0x1d0] sm:$0xff] %vm11788, %v11777
      %11848 = vst.msk [vmem:[%s950 + $0x1d8] sm:$0xff] %vm11788, %v11779
      %11849 = vst.msk [vmem:[%s950 + $0x1e0] sm:$0xff] %vm11788, %v11781
      %11850 = vst.msk [vmem:[%s950 + $0x1e8] sm:$0xff] %vm11788, %v11783
      %11851 = vst.msk [vmem:[%s950 + $0x1f0] sm:$0xff] %vm11788, %v11785
      %11852 = vst.msk [vmem:[%s950 + $0x1f8] sm:$0xff] %vm11788, %v11787
      %11917 = vrot.lane.b32.xlu0 %v8528, 3
      %v11918 = vpop.permute.xlu0 %11917
      %11919 = vrot.lane.b32.xlu0 %v8529, 3
      %v11920 = vpop.permute.xlu0 %11919
      %11921 = vrot.lane.b32.xlu0 %v8530, 3
      %v11922 = vpop.permute.xlu0 %11921
      %11923 = vrot.lane.b32.xlu0 %v8531, 3
      %v11924 = vpop.permute.xlu0 %11923
      %11925 = vrot.lane.b32.xlu0 %v8532, 3
      %v11926 = vpop.permute.xlu0 %11925
      %11927 = vrot.lane.b32.xlu0 %v8533, 3
      %v11928 = vpop.permute.xlu0 %11927
      %11929 = vrot.lane.b32.xlu0 %v8534, 3
      %v11930 = vpop.permute.xlu0 %11929
      %11931 = vrot.lane.b32.xlu0 %v8535, 3
      %v11932 = vpop.permute.xlu0 %11931
      %11933 = vrot.lane.b32.xlu0 %v8536, 3
      %v11934 = vpop.permute.xlu0 %11933
      %11935 = vrot.lane.b32.xlu0 %v8537, 3
      %v11936 = vpop.permute.xlu0 %11935
      %11937 = vrot.lane.b32.xlu0 %v8538, 3
      %v11938 = vpop.permute.xlu0 %11937
      %11939 = vrot.lane.b32.xlu0 %v8539, 3
      %v11940 = vpop.permute.xlu0 %11939
      %11941 = vrot.lane.b32.xlu0 %v8540, 3
      %v11942 = vpop.permute.xlu0 %11941
      %11943 = vrot.lane.b32.xlu0 %v8541, 3
      %v11944 = vpop.permute.xlu0 %11943
      %11945 = vrot.lane.b32.xlu0 %v8542, 3
      %v11946 = vpop.permute.xlu0 %11945
      %11947 = vrot.lane.b32.xlu0 %v8543, 3
      %v11948 = vpop.permute.xlu0 %11947
      %11949 = vrot.lane.b32.xlu0 %v8544, 3
      %v11950 = vpop.permute.xlu0 %11949
      %11951 = vrot.lane.b32.xlu0 %v8545, 3
      %v11952 = vpop.permute.xlu0 %11951
      %11953 = vrot.lane.b32.xlu0 %v8546, 3
      %v11954 = vpop.permute.xlu0 %11953
      %11955 = vrot.lane.b32.xlu0 %v8547, 3
      %v11956 = vpop.permute.xlu0 %11955
      %11957 = vrot.lane.b32.xlu0 %v8548, 3
      %v11958 = vpop.permute.xlu0 %11957
      %11959 = vrot.lane.b32.xlu0 %v8549, 3
      %v11960 = vpop.permute.xlu0 %11959
      %11961 = vrot.lane.b32.xlu0 %v8550, 3
      %v11962 = vpop.permute.xlu0 %11961
      %11963 = vrot.lane.b32.xlu0 %v8551, 3
      %v11964 = vpop.permute.xlu0 %11963
      %11965 = vrot.lane.b32.xlu0 %v8552, 3
      %v11966 = vpop.permute.xlu0 %11965
      %11967 = vrot.lane.b32.xlu0 %v8553, 3
      %v11968 = vpop.permute.xlu0 %11967
      %11969 = vrot.lane.b32.xlu0 %v8554, 3
      %v11970 = vpop.permute.xlu0 %11969
      %11971 = vrot.lane.b32.xlu0 %v8555, 3
      %v11972 = vpop.permute.xlu0 %11971
      %11973 = vrot.lane.b32.xlu0 %v8556, 3
      %v11974 = vpop.permute.xlu0 %11973
      %11975 = vrot.lane.b32.xlu0 %v8557, 3
      %v11976 = vpop.permute.xlu0 %11975
      %11977 = vrot.lane.b32.xlu0 %v8558, 3
      %v11978 = vpop.permute.xlu0 %11977
      %11979 = vrot.lane.b32.xlu0 %v8559, 3
      %v11980 = vpop.permute.xlu0 %11979
      %11981 = vrot.lane.b32.xlu0 %v8560, 3
      %v11982 = vpop.permute.xlu0 %11981
      %11983 = vrot.lane.b32.xlu0 %v8561, 3
      %v11984 = vpop.permute.xlu0 %11983
      %11985 = vrot.lane.b32.xlu0 %v8562, 3
      %v11986 = vpop.permute.xlu0 %11985
      %11987 = vrot.lane.b32.xlu0 %v8563, 3
      %v11988 = vpop.permute.xlu0 %11987
      %11989 = vrot.lane.b32.xlu0 %v8564, 3
      %v11990 = vpop.permute.xlu0 %11989
      %11991 = vrot.lane.b32.xlu0 %v8565, 3
      %v11992 = vpop.permute.xlu0 %11991
      %11993 = vrot.lane.b32.xlu0 %v8566, 3
      %v11994 = vpop.permute.xlu0 %11993
      %11995 = vrot.lane.b32.xlu0 %v8567, 3
      %v11996 = vpop.permute.xlu0 %11995
      %11997 = vrot.lane.b32.xlu0 %v8568, 3
      %v11998 = vpop.permute.xlu0 %11997
      %11999 = vrot.lane.b32.xlu0 %v8569, 3
      %v12000 = vpop.permute.xlu0 %11999
      %12001 = vrot.lane.b32.xlu0 %v8570, 3
      %v12002 = vpop.permute.xlu0 %12001
      %12003 = vrot.lane.b32.xlu0 %v8571, 3
      %v12004 = vpop.permute.xlu0 %12003
      %12005 = vrot.lane.b32.xlu0 %v8572, 3
      %v12006 = vpop.permute.xlu0 %12005
      %12007 = vrot.lane.b32.xlu0 %v8573, 3
      %v12008 = vpop.permute.xlu0 %12007
      %12009 = vrot.lane.b32.xlu0 %v8574, 3
      %v12010 = vpop.permute.xlu0 %12009
      %12011 = vrot.lane.b32.xlu0 %v8575, 3
      %v12012 = vpop.permute.xlu0 %12011
      %12013 = vrot.lane.b32.xlu0 %v8576, 3
      %v12014 = vpop.permute.xlu0 %12013
      %12015 = vrot.lane.b32.xlu0 %v8577, 3
      %v12016 = vpop.permute.xlu0 %12015
      %12017 = vrot.lane.b32.xlu0 %v8578, 3
      %v12018 = vpop.permute.xlu0 %12017
      %12019 = vrot.lane.b32.xlu0 %v8579, 3
      %v12020 = vpop.permute.xlu0 %12019
      %12021 = vrot.lane.b32.xlu0 %v8580, 3
      %v12022 = vpop.permute.xlu0 %12021
      %12023 = vrot.lane.b32.xlu0 %v8581, 3
      %v12024 = vpop.permute.xlu0 %12023
      %12025 = vrot.lane.b32.xlu0 %v8582, 3
      %v12026 = vpop.permute.xlu0 %12025
      %12027 = vrot.lane.b32.xlu0 %v8583, 3
      %v12028 = vpop.permute.xlu0 %12027
      %12029 = vrot.lane.b32.xlu0 %v8584, 3
      %v12030 = vpop.permute.xlu0 %12029
      %12031 = vrot.lane.b32.xlu0 %v8585, 3
      %v12032 = vpop.permute.xlu0 %12031
      %12033 = vrot.lane.b32.xlu0 %v8586, 3
      %v12034 = vpop.permute.xlu0 %12033
      %12035 = vrot.lane.b32.xlu0 %v8587, 3
      %v12036 = vpop.permute.xlu0 %12035
      %12037 = vrot.lane.b32.xlu0 %v8588, 3
      %v12038 = vpop.permute.xlu0 %12037
      %12039 = vrot.lane.b32.xlu0 %v8589, 3
      %v12040 = vpop.permute.xlu0 %12039
      %12041 = vrot.lane.b32.xlu0 %v8590, 3
      %v12042 = vpop.permute.xlu0 %12041
      %12043 = vrot.lane.b32.xlu0 %v8591, 3
      %v12044 = vpop.permute.xlu0 %12043
      %vm12109 = vcmask 31768
      %12110 = vst.msk [vmem:[%s950] sm:$0xff] %vm12109, %v11918
      %12111 = vst.msk [vmem:[%s950 + $0x8] sm:$0xff] %vm12109, %v11920
      %12112 = vst.msk [vmem:[%s950 + $0x10] sm:$0xff] %vm12109, %v11922
      %12113 = vst.msk [vmem:[%s950 + $0x18] sm:$0xff] %vm12109, %v11924
      %12114 = vst.msk [vmem:[%s950 + $0x20] sm:$0xff] %vm12109, %v11926
      %12115 = vst.msk [vmem:[%s950 + $0x28] sm:$0xff] %vm12109, %v11928
      %12116 = vst.msk [vmem:[%s950 + $0x30] sm:$0xff] %vm12109, %v11930
      %12117 = vst.msk [vmem:[%s950 + $0x38] sm:$0xff] %vm12109, %v11932
      %12118 = vst.msk [vmem:[%s950 + $0x40] sm:$0xff] %vm12109, %v11934
      %12119 = vst.msk [vmem:[%s950 + $0x48] sm:$0xff] %vm12109, %v11936
      %12120 = vst.msk [vmem:[%s950 + $0x50] sm:$0xff] %vm12109, %v11938
      %12121 = vst.msk [vmem:[%s950 + $0x58] sm:$0xff] %vm12109, %v11940
      %12122 = vst.msk [vmem:[%s950 + $0x60] sm:$0xff] %vm12109, %v11942
      %12123 = vst.msk [vmem:[%s950 + $0x68] sm:$0xff] %vm12109, %v11944
      %12124 = vst.msk [vmem:[%s950 + $0x70] sm:$0xff] %vm12109, %v11946
      %12125 = vst.msk [vmem:[%s950 + $0x78] sm:$0xff] %vm12109, %v11948
      %12126 = vst.msk [vmem:[%s950 + $0x80] sm:$0xff] %vm12109, %v11950
      %12127 = vst.msk [vmem:[%s950 + $0x88] sm:$0xff] %vm12109, %v11952
      %12128 = vst.msk [vmem:[%s950 + $0x90] sm:$0xff] %vm12109, %v11954
      %12129 = vst.msk [vmem:[%s950 + $0x98] sm:$0xff] %vm12109, %v11956
      %12130 = vst.msk [vmem:[%s950 + $0xa0] sm:$0xff] %vm12109, %v11958
      %12131 = vst.msk [vmem:[%s950 + $0xa8] sm:$0xff] %vm12109, %v11960
      %12132 = vst.msk [vmem:[%s950 + $0xb0] sm:$0xff] %vm12109, %v11962
      %12133 = vst.msk [vmem:[%s950 + $0xb8] sm:$0xff] %vm12109, %v11964
      %12134 = vst.msk [vmem:[%s950 + $0xc0] sm:$0xff] %vm12109, %v11966
      %12135 = vst.msk [vmem:[%s950 + $0xc8] sm:$0xff] %vm12109, %v11968
      %12136 = vst.msk [vmem:[%s950 + $0xd0] sm:$0xff] %vm12109, %v11970
      %12137 = vst.msk [vmem:[%s950 + $0xd8] sm:$0xff] %vm12109, %v11972
      %12138 = vst.msk [vmem:[%s950 + $0xe0] sm:$0xff] %vm12109, %v11974
      %12139 = vst.msk [vmem:[%s950 + $0xe8] sm:$0xff] %vm12109, %v11976
      %12140 = vst.msk [vmem:[%s950 + $0xf0] sm:$0xff] %vm12109, %v11978
      %12141 = vst.msk [vmem:[%s950 + $0xf8] sm:$0xff] %vm12109, %v11980
      %12142 = vst.msk [vmem:[%s950 + $0x100] sm:$0xff] %vm12109, %v11982
      %12143 = vst.msk [vmem:[%s950 + $0x108] sm:$0xff] %vm12109, %v11984
      %12144 = vst.msk [vmem:[%s950 + $0x110] sm:$0xff] %vm12109, %v11986
      %12145 = vst.msk [vmem:[%s950 + $0x118] sm:$0xff] %vm12109, %v11988
      %12146 = vst.msk [vmem:[%s950 + $0x120] sm:$0xff] %vm12109, %v11990
      %12147 = vst.msk [vmem:[%s950 + $0x128] sm:$0xff] %vm12109, %v11992
      %12148 = vst.msk [vmem:[%s950 + $0x130] sm:$0xff] %vm12109, %v11994
      %12149 = vst.msk [vmem:[%s950 + $0x138] sm:$0xff] %vm12109, %v11996
      %12150 = vst.msk [vmem:[%s950 + $0x140] sm:$0xff] %vm12109, %v11998
      %12151 = vst.msk [vmem:[%s950 + $0x148] sm:$0xff] %vm12109, %v12000
      %12152 = vst.msk [vmem:[%s950 + $0x150] sm:$0xff] %vm12109, %v12002
      %12153 = vst.msk [vmem:[%s950 + $0x158] sm:$0xff] %vm12109, %v12004
      %12154 = vst.msk [vmem:[%s950 + $0x160] sm:$0xff] %vm12109, %v12006
      %12155 = vst.msk [vmem:[%s950 + $0x168] sm:$0xff] %vm12109, %v12008
      %12156 = vst.msk [vmem:[%s950 + $0x170] sm:$0xff] %vm12109, %v12010
      %12157 = vst.msk [vmem:[%s950 + $0x178] sm:$0xff] %vm12109, %v12012
      %12158 = vst.msk [vmem:[%s950 + $0x180] sm:$0xff] %vm12109, %v12014
      %12159 = vst.msk [vmem:[%s950 + $0x188] sm:$0xff] %vm12109, %v12016
      %12160 = vst.msk [vmem:[%s950 + $0x190] sm:$0xff] %vm12109, %v12018
      %12161 = vst.msk [vmem:[%s950 + $0x198] sm:$0xff] %vm12109, %v12020
      %12162 = vst.msk [vmem:[%s950 + $0x1a0] sm:$0xff] %vm12109, %v12022
      %12163 = vst.msk [vmem:[%s950 + $0x1a8] sm:$0xff] %vm12109, %v12024
      %12164 = vst.msk [vmem:[%s950 + $0x1b0] sm:$0xff] %vm12109, %v12026
      %12165 = vst.msk [vmem:[%s950 + $0x1b8] sm:$0xff] %vm12109, %v12028
      %12166 = vst.msk [vmem:[%s950 + $0x1c0] sm:$0xff] %vm12109, %v12030
      %12167 = vst.msk [vmem:[%s950 + $0x1c8] sm:$0xff] %vm12109, %v12032
      %12168 = vst.msk [vmem:[%s950 + $0x1d0] sm:$0xff] %vm12109, %v12034
      %12169 = vst.msk [vmem:[%s950 + $0x1d8] sm:$0xff] %vm12109, %v12036
      %12170 = vst.msk [vmem:[%s950 + $0x1e0] sm:$0xff] %vm12109, %v12038
      %12171 = vst.msk [vmem:[%s950 + $0x1e8] sm:$0xff] %vm12109, %v12040
      %12172 = vst.msk [vmem:[%s950 + $0x1f0] sm:$0xff] %vm12109, %v12042
      %12173 = vst.msk [vmem:[%s950 + $0x1f8] sm:$0xff] %vm12109, %v12044
      %s12174 = smul.u32 64, %s72
      %p12175 = scmp.lt.s32.totalorder %s12174, 255
      %s12176 = scalar_select %p12175, %s12174, 255
      %s12177 = smul.addr %s12176, 8
      %s12178 = scalar_lea.vmem %s59, %s12177
      // Predicated region
      $region137: #{renderer_forward.1} parent=135 // pred_check
        %p12179 = pneg %p714
      $region138: #{renderer_forward.1} parent=135 // pred_check_branch
        %12181 = sbr.rel (%p12179) target = $region140
      $region139: #{renderer_forward.1} parent=135 // pred_region
        %s12182 = smul.u32 64, %s72
      $region140: #{renderer_forward.1} parent=135 // pred_fallthru
        _
    $region136: #{renderer_forward.1} parent=5 // pred_fallthru
      _
    %p12183 = scmp.le.s32.totalorder 2, %s67
    // Predicated region
    $region141: #{renderer_forward.1} parent=5 // pred_check
      %p12184 = pneg %p12183
    $region142: #{renderer_forward.1} parent=5 // pred_check_branch
      %12186 = sbr.rel (%p12184) target = $region144
    $region143: #{renderer_forward.1} parent=5 // pred_region
      %s12187 = ssub.s32 %s67, 2
      // Predicated region
      $region145: #{renderer_forward.1} parent=143 // pred_check
        %p12188 = pneg %p720
      $region146: #{renderer_forward.1} parent=143 // pred_check_branch
        %12190 = sbr.rel (%p12188) target = $region148
      $region147: #{renderer_forward.1} parent=143 // pred_region
        %s12191 = smul.u32 64, %s73
        %p12192 = scmp.lt.s32.totalorder %s12191, 255
        %s12193 = scalar_select %p12192, %s12191, 255
        %s12194 = smul.addr %s12193, 8
        %s12195 = scalar_lea.vmem %s59, %s12194
      $region148: #{renderer_forward.1} parent=143 // pred_fallthru
        _
    $region144: #{renderer_forward.1} parent=5 // pred_fallthru
      _
  $region6: #{renderer_forward.1} parent=0 // loop_footer
    %s71 = sadd.s32 1, %s67
  $region7: #{renderer_forward.1} parent=0 // loop_footer_branch
    %66 = sbr.rel target = $region3
  $region8: #{renderer_forward.1} parent=0 // loop_exit
    _

</llo_original>
